<compile_context>
chip_gen: v7x
topology: tpu7x:2x2x1
jax: 0.10.0
libtpu: 0.0.40
codegen_flags: <defaults>
</compile_context>

<pallas_src>
import functools

import jax
import jax.numpy as jnp
import numpy as np
from jax import lax
from jax.experimental import pallas as pl
from jax.experimental.pallas import tpu as pltpu

LN_EPS = 1e-5            # PyTorch nn.LayerNorm default
E_MODEL = 128            # transformer d_model (fixed by the module)
W_LANES = 3 * E_MODEL    # lane width of the packed parameter slabs (widest matrix = QKV)


def _round_up(n, m):
    return (n + m - 1) // m * m


# --------------------------------------------------------------------------------------
# Wrapper-side layout plumbing: parameter packing + batch stacking (plain XLA ops).
# --------------------------------------------------------------------------------------
def pack_params(params, *, n_layers, n_head, n_dim, hidden_dim):
    """Packs all parameters into a matrix slab + a vector slab (lane/row padded, scaled)."""
    E = E_MODEL
    C = n_dim + 1
    Dh = E // n_head
    scale = float(Dh) ** -0.5
    Hp = _round_up(hidden_dim, 128)
    f32 = jnp.float32

    mats, vecs = [], []

    def pad2(a, rows, cols):
        return jnp.pad(a, ((0, rows - a.shape[0]), (0, cols - a.shape[1])))

    def add_mat(name, a):
        mats.append((name, a.astype(f32)))

    def add_vec(name, a):
        vecs.append((name, a.astype(f32)))

    # encoder convs (input channels of conv1 padded to 128 to match the lane-padded input)
    for k in range(3):
        add_mat(f"conv1_w{k}", pad2(params["conv1_w"][k], E, 64))          # (128, 64)
    add_vec("conv1_b", params["conv1_b"])
    for k in range(3):
        add_mat(f"conv2_w{k}", params["conv2_w"][k])                       # (64, 128)
    add_vec("conv2_b", params["conv2_b"])
    add_vec("norm1_g", params["norm1_g"])
    add_vec("norm1_b", params["norm1_b"])
    add_vec("norm2_g", params["norm2_g"])
    add_vec("norm2_b", params["norm2_b"])

    # decoder convs + head: output channels lane-padded to 128 (lane-dense output store)
    for k in range(3):
        add_mat(f"dc1_w{k}", params["dc1_w"][k])                           # (128, 64)
    add_vec("dc1_b", params["dc1_b"])
    for k in range(3):
        add_mat(f"dc2_w{k}", pad2(params["dc2_w"][k], 64, E))              # (64, 128)
    add_vec("dc2_b", pad2(params["dc2_b"], 1, E))
    add_mat("out_w", pad2(params["out_w"], E, E))                          # (128, 128)
    add_vec("out_b", pad2(params["out_b"], 1, E))

    # transformer layers (Q scale folded into weights/biases; FFN hidden padded to 128)
    for l in range(n_layers):
        P = lambda n: params[f"L{l}_{n}"]
        add_mat(f"L{l}_sa_wqkv", P("sa_wqkv").at[:, :E].multiply(scale))   # (128, 384)
        add_vec(f"L{l}_sa_bqkv", P("sa_bqkv").at[:, :E].multiply(scale))
        add_mat(f"L{l}_sa_wo", P("sa_wo"))
        add_vec(f"L{l}_sa_bo", P("sa_bo"))
        add_vec(f"L{l}_ln1_g", P("ln1_g"))
        add_vec(f"L{l}_ln1_b", P("ln1_b"))
        add_mat(f"L{l}_ca_wq", P("ca_wq") * scale)
        add_vec(f"L{l}_ca_bq", P("ca_bq") * scale)
        add_mat(f"L{l}_ca_wkv", P("ca_wkv"))                               # (128, 256)
        add_vec(f"L{l}_ca_bkv", P("ca_bkv"))
        add_mat(f"L{l}_ca_wo", P("ca_wo"))
        add_vec(f"L{l}_ca_bo", P("ca_bo"))
        add_vec(f"L{l}_ln2_g", P("ln2_g"))
        add_vec(f"L{l}_ln2_b", P("ln2_b"))
        add_mat(f"L{l}_ff_w1", pad2(P("ff_w1"), E, Hp))                    # (128, Hp)
        add_vec(f"L{l}_ff_b1", pad2(P("ff_b1"), 1, Hp))
        add_mat(f"L{l}_ff_w2", pad2(P("ff_w2"), Hp, E))                    # (Hp, 128)
        add_vec(f"L{l}_ff_b2", P("ff_b2"))
        add_vec(f"L{l}_ln3_g", P("ln3_g"))
        add_vec(f"L{l}_ln3_b", P("ln3_b"))

    # matrix slab: every block starts on an 8-row boundary, lanes padded to W_LANES
    w_layout, w_parts, row = {}, [], 0
    for name, a in mats:
        r, c = a.shape
        rpad = _round_up(r, 8)
        w_layout[name] = (row, r, c)
        w_parts.append(jnp.pad(a, ((0, rpad - r), (0, W_LANES - c))))
        row += rpad
    wslab = jnp.concatenate(w_parts, axis=0)

    # vector slab: one row per vector
    v_layout, v_parts = {}, []
    for i, (name, a) in enumerate(vecs):
        v_layout[name] = (i, a.shape[1])
        v_parts.append(jnp.pad(a, ((0, 0), (0, W_LANES - a.shape[1]))))
    vslab = jnp.concatenate(v_parts, axis=0)

    return wslab, vslab, w_layout, v_layout


def _stack_batches(a, nb, lanes):
    """(B, L, F) -> (B*nb, lanes): each batch in its own nb-row block, zero padded."""
    b, l, f = a.shape
    a = jnp.pad(a.astype(jnp.float32), ((0, 0), (0, nb - l), (0, lanes - f)))
    return a.reshape(b * nb, lanes)


# --------------------------------------------------------------------------------------
# The kernel
# --------------------------------------------------------------------------------------
def _vnet_kernel(B, T, NB, n_head, n_layers, w_layout, v_layout,
                 x_ref, mem_ref, w_ref, v_ref, out_ref):
    f32 = jnp.float32
    E = E_MODEL
    NH = n_head
    Dh = E // NH
    BN = B * NB

    def W(name):
        r, nr, nc = w_layout[name]
        return w_ref[r:r + nr, 0:nc]

    def V(name):
        r, nc = v_layout[name]
        return v_ref[r:r + 1, 0:nc]

    def mm(a, b):
        return jnp.dot(a, b, preferred_element_type=f32)

    def layer_norm(v, g, b):
        mu = jnp.mean(v, axis=-1, keepdims=True)
        var = jnp.mean((v - mu) ** 2, axis=-1, keepdims=True)
        return (v - mu) * lax.rsqrt(var + LN_EPS) * g + b

    def relu(v):
        return jnp.maximum(v, 0.0)

    # ---- hoisted index tensors (built once; exact 0/1 matrices, no int div/mod) ----
    gi = lax.broadcasted_iota(jnp.int32, (BN, BN), 0)
    gj = lax.broadcasted_iota(jnp.int32, (BN, BN), 1)
    li = jnp.concatenate([lax.broadcasted_iota(jnp.int32, (NB, 1), 0)] * B, axis=0)  # (BN, 1)

    def shift_up(k):    # (S @ z)[i] = z[i + k] inside each NB-row block, 0 otherwise
        return (gj == gi + k).astype(f32) * (li < NB - k).astype(f32)

    def shift_down(k):  # (S @ z)[i] = z[i - k] inside each NB-row block, 0 otherwise
        return (gj == gi - k).astype(f32) * (li >= k).astype(f32)

    s_up1, s_up2 = shift_up(1), shift_up(2)
    s_dn1, s_dn2 = shift_down(1), shift_down(2)

    def row_mask(valid):  # (BN, 1): 1.0 on the first `valid` rows of every block
        return (li < valid).astype(f32)

    # head-indicator matrices for per-head logit reduction / weight broadcast (exact 0/1)
    ef = lax.broadcasted_iota(jnp.int32, (E, NH), 0)
    hf = lax.broadcasted_iota(jnp.int32, (E, NH), 1)
    ind_fwd = (ef >= hf * Dh).astype(f32) * (ef < (hf + 1) * Dh).astype(f32)   # (E, NH)
    eb = lax.broadcasted_iota(jnp.int32, (NH, E), 1)
    hb = lax.broadcasted_iota(jnp.int32, (NH, E), 0)
    ind_bwd = (eb >= hb * Dh).astype(f32) * (eb < (hb + 1) * Dh).astype(f32)   # (NH, E)

    def conv3(z, w0, w1, w2, bias):
        # valid Conv1d(k=3): out[i] = z[i]@w0 + z[i+1]@w1 + z[i+2]@w2 + b (block-local)
        return mm(z, w0) + mm(s_up1, mm(z, w1)) + mm(s_up2, mm(z, w2)) + bias

    def deconv3(z, w0, w1, w2, bias):
        # ConvTranspose1d(k=3): out[i] = z[i]@w0 + z[i-1]@w1 + z[i-2]@w2 + b (block-local)
        return mm(z, w0) + mm(s_dn1, mm(z, w1)) + mm(s_dn2, mm(z, w2)) + bias

    def attention(q, k, v, wo, bo):
        # q/k/v: (BN, E) stacked slabs; the attention "sequence" is the batch/block axis,
        # mixed independently per row (batch_first=False semantics). Q is pre-scaled.
        outs = []
        for s in range(B):
            q_s = q[s * NB:(s + 1) * NB, :]
            logits = [mm(q_s * k[t * NB:(t + 1) * NB, :], ind_fwd) for t in range(B)]  # (NB,NH)
            m = logits[0]
            for t in range(1, B):
                m = jnp.maximum(m, logits[t])
            exps = [jnp.exp(lg - m) for lg in logits]
            denom = exps[0]
            for t in range(1, B):
                denom = denom + exps[t]
            inv = pl.reciprocal(denom, approx=True)
            o_s = mm(exps[0] * inv, ind_bwd) * v[0:NB, :]
            for t in range(1, B):
                o_s = o_s + mm(exps[t] * inv, ind_bwd) * v[t * NB:(t + 1) * NB, :]
            outs.append(o_s)
        o = jnp.concatenate(outs, axis=0)            # (BN, E) full-block, aligned concat
        return mm(o, wo) + bo                        # ONE stacked Wo matmul per attention

    # ------------------- encoder: conv1 -> LN+ReLU -> conv2 -> LN+ReLU -------------------
    x = x_ref[...]                                   # (BN, 128): channels zero-padded
    mem = mem_ref[...]                               # (BN, 128): stacked decoder memory

    h = conv3(x, W("conv1_w0"), W("conv1_w1"), W("conv1_w2"), V("conv1_b"))       # (BN, 64)
    h = relu(layer_norm(h, V("norm1_g"), V("norm1_b")))
    h = conv3(h, W("conv2_w0"), W("conv2_w1"), W("conv2_w2"), V("conv2_b"))       # (BN, 128)
    cur = relu(layer_norm(h, V("norm2_g"), V("norm2_b")))

    # ------------- transformer decoder stack (post-norm; dropout = identity) -------------
    for l in range(n_layers):
        p = f"L{l}_"
        # self-attention: fused QKV projection on the stacked slab
        qkv = mm(cur, W(p + "sa_wqkv")) + V(p + "sa_bqkv")                        # (BN, 3E)
        sa = attention(qkv[:, 0:E], qkv[:, E:2 * E], qkv[:, 2 * E:3 * E],
                       W(p + "sa_wo"), V(p + "sa_bo"))
        cur = layer_norm(cur + sa, V(p + "ln1_g"), V(p + "ln1_b"))

        # cross-attention with the (precomputed) random memory: fused KV projection
        q = mm(cur, W(p + "ca_wq")) + V(p + "ca_bq")
        kv = mm(mem, W(p + "ca_wkv")) + V(p + "ca_bkv")                           # (BN, 2E)
        ca = attention(q, kv[:, 0:E], kv[:, E:2 * E], W(p + "ca_wo"), V(p + "ca_bo"))
        cur = layer_norm(cur + ca, V(p + "ln2_g"), V(p + "ln2_b"))

        # feed-forward (hidden lane-padded to a multiple of 128, numerically a no-op)
        hmid = relu(mm(cur, W(p + "ff_w1")) + V(p + "ff_b1"))
        ffo = mm(hmid, W(p + "ff_w2")) + V(p + "ff_b2")
        cur = layer_norm(cur + ffo, V(p + "ln3_g"), V(p + "ln3_b"))

    # post-transformer act(norm2(...)) (module reuses its norm2 weights)
    cur = relu(layer_norm(cur, V("norm2_g"), V("norm2_b")))

    # ------------ decoder: deconv1 -> LN+ReLU -> deconv2 -> Linear head (dense) ----------
    z1 = cur * row_mask(T - 4)                        # zero out per-block pad rows
    d1 = deconv3(z1, W("dc1_w0"), W("dc1_w1"), W("dc1_w2"), V("dc1_b"))           # (BN, 64)
    d1 = relu(layer_norm(d1, V("norm1_g"), V("norm1_b")))
    z2 = d1 * row_mask(T - 2)
    d2 = deconv3(z2, W("dc2_w0"), W("dc2_w1"), W("dc2_w2"), V("dc2_b"))           # (BN, 128)
    out_ref[...] = mm(d2, W("out_w")) + V("out_b")    # single lane-dense (BN, 128) store


def vnet_forward(x, memory, params, *, n_layers, n_head, n_dim, hidden_dim):
    """x: (B, T, n_dim+1) f32; memory: (B, T-4, 128) f32 (stand-in for torch.rand)."""
    B, T, C = x.shape
    assert C == n_dim + 1
    NB = _round_up(T, 8)                              # rows per batch block (8-aligned)
    wslab, vslab, w_layout, v_layout = pack_params(
        params, n_layers=n_layers, n_head=n_head, n_dim=n_dim, hidden_dim=hidden_dim)
    x_st = _stack_batches(x, NB, E_MODEL)
    mem_st = _stack_batches(memory, NB, E_MODEL)
    kernel = functools.partial(_vnet_kernel, B, T, NB, n_head, n_layers, w_layout, v_layout)
    out_st = pl.pallas_call(
        kernel,
        out_shape=jax.ShapeDtypeStruct((B * NB, E_MODEL), jnp.float32),
        in_specs=[pl.BlockSpec(memory_space=pltpu.MemorySpace.VMEM)] * 4,
        out_specs=pl.BlockSpec(memory_space=pltpu.MemorySpace.VMEM),
    )(x_st, mem_st, wslab, vslab)
    return out_st.reshape(B, NB, E_MODEL)[:, :T, :n_dim]


# --------------------------------------------------------------------------------------
# Deterministic parameters + pure-JAX reference (same semantics as the PyTorch module)
# --------------------------------------------------------------------------------------
def init_params(key, n_dim, n_layers, hidden_dim):
    C = n_dim + 1
    E = E_MODEL
    f32 = jnp.float32
    keys = iter(jax.random.split(key, 64 + 32 * n_layers))

    def uni(shape, fan_in):
        bound = 1.0 / float(np.sqrt(fan_in))
        return jax.random.uniform(next(keys), shape, f32, -bound, bound)

    p = {}
    p["conv1_w"], p["conv1_b"] = uni((3, C, 64), 3 * C), uni((1, 64), 3 * C)
    p["conv2_w"], p["conv2_b"] = uni((3, 64, E), 3 * 64), uni((1, E), 3 * 64)
    p["norm1_g"], p["norm1_b"] = jnp.ones((1, 64), f32), jnp.zeros((1, 64), f32)
    p["norm2_g"], p["norm2_b"] = jnp.ones((1, E), f32), jnp.zeros((1, E), f32)
    p["dc1_w"], p["dc1_b"] = uni((3, E, 64), 3 * E), uni((1, 64), 3 * E)
    p["dc2_w"], p["dc2_b"] = uni((3, 64, C), 3 * 64), uni((1, C), 3 * 64)
    p["out_w"], p["out_b"] = uni((C, n_dim), C), uni((1, n_dim), C)
    for l in range(n_layers):
        p[f"L{l}_sa_wqkv"], p[f"L{l}_sa_bqkv"] = uni((E, 3 * E), E), uni((1, 3 * E), E)
        p[f"L{l}_sa_wo"], p[f"L{l}_sa_bo"] = uni((E, E), E), uni((1, E), E)
        p[f"L{l}_ln1_g"], p[f"L{l}_ln1_b"] = jnp.ones((1, E), f32), jnp.zeros((1, E), f32)
        p[f"L{l}_ca_wq"], p[f"L{l}_ca_bq"] = uni((E, E), E), uni((1, E), E)
        p[f"L{l}_ca_wkv"], p[f"L{l}_ca_bkv"] = uni((E, 2 * E), E), uni((1, 2 * E), E)
        p[f"L{l}_ca_wo"], p[f"L{l}_ca_bo"] = uni((E, E), E), uni((1, E), E)
        p[f"L{l}_ln2_g"], p[f"L{l}_ln2_b"] = jnp.ones((1, E), f32), jnp.zeros((1, E), f32)
        p[f"L{l}_ff_w1"], p[f"L{l}_ff_b1"] = uni((E, hidden_dim), E), uni((1, hidden_dim), E)
        p[f"L{l}_ff_w2"], p[f"L{l}_ff_b2"] = uni((hidden_dim, E), hidden_dim), uni((1, E), hidden_dim)
        p[f"L{l}_ln3_g"], p[f"L{l}_ln3_b"] = jnp.ones((1, E), f32), jnp.zeros((1, E), f32)
    return p


def vnet_reference(x, memory, params, *, n_layers, n_head, n_dim):
    E = E_MODEL
    Dh = E // n_head
    relu = lambda v: jnp.maximum(v, 0.0)

    def ln(v, g, b):
        mu = v.mean(-1, keepdims=True)
        var = ((v - mu) ** 2).mean(-1, keepdims=True)
        return (v - mu) / jnp.sqrt(var + LN_EPS) * g + b

    def conv3(h, w, b):
        L = h.shape[1]
        return h[:, 0:L - 2] @ w[0] + h[:, 1:L - 1] @ w[1] + h[:, 2:L] @ w[2] + b

    def deconv3(h, w, b):
        L = h.shape[1]
        hp = jnp.pad(h, ((0, 0), (2, 2), (0, 0)))
        return hp[:, 2:2 + L + 2] @ w[0] + hp[:, 1:1 + L + 2] @ w[1] + hp[:, 0:L + 2] @ w[2] + b

    def mha(q_in, kv_in, wq, bq, wk, bk, wv, bv, wo, bo):
        S, N, _ = q_in.shape
        Skv = kv_in.shape[0]
        q = (q_in @ wq + bq).reshape(S, N, n_head, Dh)
        k = (kv_in @ wk + bk).reshape(Skv, N, n_head, Dh)
        v = (kv_in @ wv + bv).reshape(Skv, N, n_head, Dh)
        logits = jnp.einsum('snhd,tnhd->nhst', q, k) / float(np.sqrt(Dh))
        a = jax.nn.softmax(logits, axis=-1)
        o = jnp.einsum('nhst,tnhd->snhd', a, v).reshape(S, N, E)
        return o @ wo + bo

    h = relu(ln(conv3(x, params["conv1_w"], params["conv1_b"]), params["norm1_g"], params["norm1_b"]))
    h = relu(ln(conv3(h, params["conv2_w"], params["conv2_b"]), params["norm2_g"], params["norm2_b"]))
    cur = h
    for l in range(n_layers):
        P = lambda n: params[f"L{l}_{n}"]
        wqkv, bqkv = P("sa_wqkv"), P("sa_bqkv")
        sa = mha(cur, cur, wqkv[:, :E], bqkv[:, :E], wqkv[:, E:2 * E], bqkv[:, E:2 * E],
                 wqkv[:, 2 * E:], bqkv[:, 2 * E:], P("sa_wo"), P("sa_bo"))
        cur = ln(cur + sa, P("ln1_g"), P("ln1_b"))
        wkv, bkv = P("ca_wkv"), P("ca_bkv")
        ca = mha(cur, memory, P("ca_wq"), P("ca_bq"), wkv[:, :E], bkv[:, :E],
                 wkv[:, E:], bkv[:, E:], P("ca_wo"), P("ca_bo"))
        cur = ln(cur + ca, P("ln2_g"), P("ln2_b"))
        ff = relu(cur @ P("ff_w1") + P("ff_b1")) @ P("ff_w2") + P("ff_b2")
        cur = ln(cur + ff, P("ln3_g"), P("ln3_b"))
    h = relu(ln(cur, params["norm2_g"], params["norm2_b"]))
    d1 = relu(ln(deconv3(h, params["dc1_w"], params["dc1_b"]), params["norm1_g"], params["norm1_b"]))
    d2 = deconv3(d1, params["dc2_w"], params["dc2_b"])
    return d2 @ params["out_w"] + params["out_b"]


if __name__ == "__main__":
    B, T, N_DIM, N_LAYERS, HIDDEN_DIM, N_HEAD = 2, 16, 3, 2, 32, 4

    key = jax.random.PRNGKey(0)
    kx, kmem, kp = jax.random.split(key, 3)
    x = jax.random.normal(kx, (B, T, N_DIM + 1), jnp.float32)
    # deterministic stand-in for torch.rand(out.shape): uniform [0,1) with shape of the
    # transformer input (B, T-4, 128)
    memory = jax.random.uniform(kmem, (B, T - 4, E_MODEL), jnp.float32)
    params = init_params(kp, N_DIM, N_LAYERS, HIDDEN_DIM)

    out = vnet_forward(x, memory, params, n_layers=N_LAYERS, n_head=N_HEAD,
                       n_dim=N_DIM, hidden_dim=HIDDEN_DIM)
    out = jax.block_until_ready(out)

    ref = vnet_reference(x, memory, params, n_layers=N_LAYERS, n_head=N_HEAD, n_dim=N_DIM)
    # tolerance leaves headroom for pl.reciprocal(approx=True) in the softmax denominator
    np.testing.assert_allclose(np.asarray(out), np.asarray(ref), rtol=3e-3, atol=3e-3)
    assert out.shape == (B, T, N_DIM) and out.dtype == jnp.float32

    print("KERNEL_OK")
</pallas_src>

<mosaic_0001>
module attributes {stable_mosaic.version = 11 : i64} {
  func.func @_vnet_kernel(%arg0: memref<32x128xf32, #tpu.memory_space<vmem>>, %arg1: memref<32x128xf32, #tpu.memory_space<vmem>>, %arg2: memref<3072x384xf32, #tpu.memory_space<vmem>>, %arg3: memref<35x384xf32, #tpu.memory_space<vmem>>, %arg4: memref<32x128xf32, #tpu.memory_space<vmem>>) attributes {dimension_semantics = [], scalar_prefetch = 0 : i64, scratch_operands = 0 : i64, tpu.core_type = #tpu.core_type<tc>} {
    %0 = tpu.iota {dimensions = array<i32: 0>} : vector<32x32xi32>
    %1 = tpu.iota {dimensions = array<i32: 1>} : vector<32x32xi32>
    %2 = tpu.iota {dimensions = array<i32: 0>} : vector<16x1xi32>
    %3 = tpu.concatenate %2, %2 in 0 : vector<16x1xi32>, vector<16x1xi32> -> vector<32x1xi32>
    %c1_i32 = arith.constant 1 : i32
    %4 = vector.broadcast %c1_i32 : i32 to vector<32x32xi32>
    %5 = arith.addi %0, %4 : vector<32x32xi32>
    %6 = arith.cmpi eq, %1, %5 : vector<32x32xi32>
    %7 = arith.extui %6 : vector<32x32xi1> to vector<32x32xi32>
    %8 = arith.sitofp %7 : vector<32x32xi32> to vector<32x32xf32>
    %c15_i32 = arith.constant 15 : i32
    %9 = vector.broadcast %c15_i32 : i32 to vector<32x1xi32>
    %10 = arith.cmpi slt, %3, %9 : vector<32x1xi32>
    %11 = arith.extui %10 : vector<32x1xi1> to vector<32x1xi32>
    %12 = arith.sitofp %11 : vector<32x1xi32> to vector<32x1xf32>
    %13 = vector.broadcast %12 : vector<32x1xf32> to vector<32x32xf32>
    %14 = arith.mulf %8, %13 : vector<32x32xf32>
    %c2_i32 = arith.constant 2 : i32
    %15 = vector.broadcast %c2_i32 : i32 to vector<32x32xi32>
    %16 = arith.addi %0, %15 : vector<32x32xi32>
    %17 = arith.cmpi eq, %1, %16 : vector<32x32xi32>
    %18 = arith.extui %17 : vector<32x32xi1> to vector<32x32xi32>
    %19 = arith.sitofp %18 : vector<32x32xi32> to vector<32x32xf32>
    %c14_i32 = arith.constant 14 : i32
    %20 = vector.broadcast %c14_i32 : i32 to vector<32x1xi32>
    %21 = arith.cmpi slt, %3, %20 : vector<32x1xi32>
    %22 = arith.extui %21 : vector<32x1xi1> to vector<32x1xi32>
    %23 = arith.sitofp %22 : vector<32x1xi32> to vector<32x1xf32>
    %24 = vector.broadcast %23 : vector<32x1xf32> to vector<32x32xf32>
    %25 = arith.mulf %19, %24 : vector<32x32xf32>
    %c1_i32_0 = arith.constant 1 : i32
    %26 = vector.broadcast %c1_i32_0 : i32 to vector<32x32xi32>
    %27 = arith.subi %0, %26 : vector<32x32xi32>
    %28 = arith.cmpi eq, %1, %27 : vector<32x32xi32>
    %29 = arith.extui %28 : vector<32x32xi1> to vector<32x32xi32>
    %30 = arith.sitofp %29 : vector<32x32xi32> to vector<32x32xf32>
    %c1_i32_1 = arith.constant 1 : i32
    %31 = vector.broadcast %c1_i32_1 : i32 to vector<32x1xi32>
    %32 = arith.cmpi sge, %3, %31 : vector<32x1xi32>
    %33 = arith.extui %32 : vector<32x1xi1> to vector<32x1xi32>
    %34 = arith.sitofp %33 : vector<32x1xi32> to vector<32x1xf32>
    %35 = vector.broadcast %34 : vector<32x1xf32> to vector<32x32xf32>
    %36 = arith.mulf %30, %35 : vector<32x32xf32>
    %c2_i32_2 = arith.constant 2 : i32
    %37 = vector.broadcast %c2_i32_2 : i32 to vector<32x32xi32>
    %38 = arith.subi %0, %37 : vector<32x32xi32>
    %39 = arith.cmpi eq, %1, %38 : vector<32x32xi32>
    %40 = arith.extui %39 : vector<32x32xi1> to vector<32x32xi32>
    %41 = arith.sitofp %40 : vector<32x32xi32> to vector<32x32xf32>
    %c2_i32_3 = arith.constant 2 : i32
    %42 = vector.broadcast %c2_i32_3 : i32 to vector<32x1xi32>
    %43 = arith.cmpi sge, %3, %42 : vector<32x1xi32>
    %44 = arith.extui %43 : vector<32x1xi1> to vector<32x1xi32>
    %45 = arith.sitofp %44 : vector<32x1xi32> to vector<32x1xf32>
    %46 = vector.broadcast %45 : vector<32x1xf32> to vector<32x32xf32>
    %47 = arith.mulf %41, %46 : vector<32x32xf32>
    %48 = tpu.iota {dimensions = array<i32: 0>} : vector<128x4xi32>
    %49 = tpu.iota {dimensions = array<i32: 1>} : vector<128x4xi32>
    %c32_i32 = arith.constant 32 : i32
    %50 = vector.broadcast %c32_i32 : i32 to vector<128x4xi32>
    %51 = arith.muli %49, %50 : vector<128x4xi32>
    %52 = arith.cmpi sge, %48, %51 : vector<128x4xi32>
    %53 = arith.extui %52 : vector<128x4xi1> to vector<128x4xi32>
    %54 = arith.sitofp %53 : vector<128x4xi32> to vector<128x4xf32>
    %c1_i32_4 = arith.constant 1 : i32
    %55 = vector.broadcast %c1_i32_4 : i32 to vector<128x4xi32>
    %56 = arith.addi %49, %55 : vector<128x4xi32>
    %c32_i32_5 = arith.constant 32 : i32
    %57 = vector.broadcast %c32_i32_5 : i32 to vector<128x4xi32>
    %58 = arith.muli %56, %57 : vector<128x4xi32>
    %59 = arith.cmpi slt, %48, %58 : vector<128x4xi32>
    %60 = arith.extui %59 : vector<128x4xi1> to vector<128x4xi32>
    %61 = arith.sitofp %60 : vector<128x4xi32> to vector<128x4xf32>
    %62 = arith.mulf %54, %61 : vector<128x4xf32>
    %63 = tpu.iota {dimensions = array<i32: 1>} : vector<4x128xi32>
    %64 = tpu.iota {dimensions = array<i32: 0>} : vector<4x128xi32>
    %c32_i32_6 = arith.constant 32 : i32
    %65 = vector.broadcast %c32_i32_6 : i32 to vector<4x128xi32>
    %66 = arith.muli %64, %65 : vector<4x128xi32>
    %67 = arith.cmpi sge, %63, %66 : vector<4x128xi32>
    %68 = arith.extui %67 : vector<4x128xi1> to vector<4x128xi32>
    %69 = arith.sitofp %68 : vector<4x128xi32> to vector<4x128xf32>
    %c1_i32_7 = arith.constant 1 : i32
    %70 = vector.broadcast %c1_i32_7 : i32 to vector<4x128xi32>
    %71 = arith.addi %64, %70 : vector<4x128xi32>
    %c32_i32_8 = arith.constant 32 : i32
    %72 = vector.broadcast %c32_i32_8 : i32 to vector<4x128xi32>
    %73 = arith.muli %71, %72 : vector<4x128xi32>
    %74 = arith.cmpi slt, %63, %73 : vector<4x128xi32>
    %75 = arith.extui %74 : vector<4x128xi1> to vector<4x128xi32>
    %76 = arith.sitofp %75 : vector<4x128xi32> to vector<4x128xf32>
    %77 = arith.mulf %69, %76 : vector<4x128xf32>
    %c0 = arith.constant 0 : index
    %c0_9 = arith.constant 0 : index
    %78 = vector.load %arg0[%c0, %c0_9] : memref<32x128xf32, #tpu.memory_space<vmem>>, vector<32x128xf32>
    %c0_10 = arith.constant 0 : index
    %c0_11 = arith.constant 0 : index
    %79 = vector.load %arg1[%c0_10, %c0_11] : memref<32x128xf32, #tpu.memory_space<vmem>>, vector<32x128xf32>
    %c0_12 = arith.constant 0 : index
    %c0_13 = arith.constant 0 : index
    %80 = vector.load %arg2[%c0_12, %c0_13] : memref<3072x384xf32, #tpu.memory_space<vmem>>, vector<128x64xf32>
    %c128 = arith.constant 128 : index
    %c0_14 = arith.constant 0 : index
    %81 = vector.load %arg2[%c128, %c0_14] : memref<3072x384xf32, #tpu.memory_space<vmem>>, vector<128x64xf32>
    %c256 = arith.constant 256 : index
    %c0_15 = arith.constant 0 : index
    %82 = vector.load %arg2[%c256, %c0_15] : memref<3072x384xf32, #tpu.memory_space<vmem>>, vector<128x64xf32>
    %c0_16 = arith.constant 0 : index
    %c0_17 = arith.constant 0 : index
    %83 = vector.load %arg3[%c0_16, %c0_17] : memref<35x384xf32, #tpu.memory_space<vmem>>, vector<1x64xf32>
    %cst = arith.constant dense<0.000000e+00> : vector<32x64xf32>
    %84 = tpu.matmul %78, %80, %cst {dimension_numbers = #tpu.dot_dimension_numbers<[1], [0], [0], [1], [0, 0, 1, 1], [], []>} : vector<32x128xf32>, vector<128x64xf32>, vector<32x64xf32> -> vector<32x64xf32>
    %cst_18 = arith.constant dense<0.000000e+00> : vector<32x64xf32>
    %85 = tpu.matmul %78, %81, %cst_18 {dimension_numbers = #tpu.dot_dimension_numbers<[1], [0], [0], [1], [0, 0, 1, 1], [], []>} : vector<32x128xf32>, vector<128x64xf32>, vector<32x64xf32> -> vector<32x64xf32>
    %cst_19 = arith.constant dense<0.000000e+00> : vector<32x64xf32>
    %86 = tpu.matmul %14, %85, %cst_19 {dimension_numbers = #tpu.dot_dimension_numbers<[1], [0], [0], [1], [0, 0, 1, 1], [], []>} : vector<32x32xf32>, vector<32x64xf32>, vector<32x64xf32> -> vector<32x64xf32>
    %87 = arith.addf %84, %86 : vector<32x64xf32>
    %cst_20 = arith.constant dense<0.000000e+00> : vector<32x64xf32>
    %88 = tpu.matmul %78, %82, %cst_20 {dimension_numbers = #tpu.dot_dimension_numbers<[1], [0], [0], [1], [0, 0, 1, 1], [], []>} : vector<32x128xf32>, vector<128x64xf32>, vector<32x64xf32> -> vector<32x64xf32>
    %cst_21 = arith.constant dense<0.000000e+00> : vector<32x64xf32>
    %89 = tpu.matmul %25, %88, %cst_21 {dimension_numbers = #tpu.dot_dimension_numbers<[1], [0], [0], [1], [0, 0, 1, 1], [], []>} : vector<32x32xf32>, vector<32x64xf32>, vector<32x64xf32> -> vector<32x64xf32>
    %90 = arith.addf %87, %89 : vector<32x64xf32>
    %91 = vector.broadcast %83 : vector<1x64xf32> to vector<32x64xf32>
    %92 = arith.addf %90, %91 : vector<32x64xf32>
    %c2 = arith.constant 2 : index
    %c0_22 = arith.constant 0 : index
    %93 = vector.load %arg3[%c2, %c0_22] : memref<35x384xf32, #tpu.memory_space<vmem>>, vector<1x64xf32>
    %c3 = arith.constant 3 : index
    %c0_23 = arith.constant 0 : index
    %94 = vector.load %arg3[%c3, %c0_23] : memref<35x384xf32, #tpu.memory_space<vmem>>, vector<1x64xf32>
    %cst_24 = arith.constant dense<0.000000e+00> : vector<32xf32>
    %95 = vector.multi_reduction <add>, %92, %cst_24 [1] : vector<32x64xf32> to vector<32xf32>
    %96 = vector.shape_cast %95 : vector<32xf32> to vector<32x1xf32>
    %cst_25 = arith.constant 6.400000e+01 : f32
    %97 = vector.broadcast %cst_25 : f32 to vector<32x1xf32>
    %98 = arith.divf %96, %97 : vector<32x1xf32>
    %99 = vector.broadcast %98 : vector<32x1xf32> to vector<32x64xf32>
    %100 = arith.subf %92, %99 : vector<32x64xf32>
    %101 = arith.mulf %100, %100 : vector<32x64xf32>
    %cst_26 = arith.constant dense<0.000000e+00> : vector<32xf32>
    %102 = vector.multi_reduction <add>, %101, %cst_26 [1] : vector<32x64xf32> to vector<32xf32>
    %103 = vector.shape_cast %102 : vector<32xf32> to vector<32x1xf32>
    %cst_27 = arith.constant 6.400000e+01 : f32
    %104 = vector.broadcast %cst_27 : f32 to vector<32x1xf32>
    %105 = arith.divf %103, %104 : vector<32x1xf32>
    %106 = vector.broadcast %98 : vector<32x1xf32> to vector<32x64xf32>
    %107 = arith.subf %92, %106 : vector<32x64xf32>
    %cst_28 = arith.constant 9.99999974E-6 : f32
    %108 = vector.broadcast %cst_28 : f32 to vector<32x1xf32>
    %109 = arith.addf %105, %108 : vector<32x1xf32>
    %110 = math.rsqrt %109 : vector<32x1xf32>
    %111 = vector.broadcast %110 : vector<32x1xf32> to vector<32x64xf32>
    %112 = arith.mulf %107, %111 : vector<32x64xf32>
    %113 = vector.broadcast %93 : vector<1x64xf32> to vector<32x64xf32>
    %114 = arith.mulf %112, %113 : vector<32x64xf32>
    %115 = vector.broadcast %94 : vector<1x64xf32> to vector<32x64xf32>
    %116 = arith.addf %114, %115 : vector<32x64xf32>
    %cst_29 = arith.constant 0.000000e+00 : f32
    %117 = vector.broadcast %cst_29 : f32 to vector<32x64xf32>
    %118 = arith.maximumf %116, %117 : vector<32x64xf32>
    %c384 = arith.constant 384 : index
    %c0_30 = arith.constant 0 : index
    %119 = vector.load %arg2[%c384, %c0_30] : memref<3072x384xf32, #tpu.memory_space<vmem>>, vector<64x128xf32>
    %c448 = arith.constant 448 : index
    %c0_31 = arith.constant 0 : index
    %120 = vector.load %arg2[%c448, %c0_31] : memref<3072x384xf32, #tpu.memory_space<vmem>>, vector<64x128xf32>
    %c512 = arith.constant 512 : index
    %c0_32 = arith.constant 0 : index
    %121 = vector.load %arg2[%c512, %c0_32] : memref<3072x384xf32, #tpu.memory_space<vmem>>, vector<64x128xf32>
    %c1 = arith.constant 1 : index
    %c0_33 = arith.constant 0 : index
    %122 = vector.load %arg3[%c1, %c0_33] : memref<35x384xf32, #tpu.memory_space<vmem>>, vector<1x128xf32>
    %cst_34 = arith.constant dense<0.000000e+00> : vector<32x128xf32>
    %123 = tpu.matmul %118, %119, %cst_34 {dimension_numbers = #tpu.dot_dimension_numbers<[1], [0], [0], [1], [0, 0, 1, 1], [], []>} : vector<32x64xf32>, vector<64x128xf32>, vector<32x128xf32> -> vector<32x128xf32>
    %cst_35 = arith.constant dense<0.000000e+00> : vector<32x128xf32>
    %124 = tpu.matmul %118, %120, %cst_35 {dimension_numbers = #tpu.dot_dimension_numbers<[1], [0], [0], [1], [0, 0, 1, 1], [], []>} : vector<32x64xf32>, vector<64x128xf32>, vector<32x128xf32> -> vector<32x128xf32>
    %cst_36 = arith.constant dense<0.000000e+00> : vector<32x128xf32>
    %125 = tpu.matmul %14, %124, %cst_36 {dimension_numbers = #tpu.dot_dimension_numbers<[1], [0], [0], [1], [0, 0, 1, 1], [], []>} : vector<32x32xf32>, vector<32x128xf32>, vector<32x128xf32> -> vector<32x128xf32>
    %126 = arith.addf %123, %125 : vector<32x128xf32>
    %cst_37 = arith.constant dense<0.000000e+00> : vector<32x128xf32>
    %127 = tpu.matmul %118, %121, %cst_37 {dimension_numbers = #tpu.dot_dimension_numbers<[1], [0], [0], [1], [0, 0, 1, 1], [], []>} : vector<32x64xf32>, vector<64x128xf32>, vector<32x128xf32> -> vector<32x128xf32>
    %cst_38 = arith.constant dense<0.000000e+00> : vector<32x128xf32>
    %128 = tpu.matmul %25, %127, %cst_38 {dimension_numbers = #tpu.dot_dimension_numbers<[1], [0], [0], [1], [0, 0, 1, 1], [], []>} : vector<32x32xf32>, vector<32x128xf32>, vector<32x128xf32> -> vector<32x128xf32>
    %129 = arith.addf %126, %128 : vector<32x128xf32>
    %130 = vector.broadcast %122 : vector<1x128xf32> to vector<32x128xf32>
    %131 = arith.addf %129, %130 : vector<32x128xf32>
    %c4 = arith.constant 4 : index
    %c0_39 = arith.constant 0 : index
    %132 = vector.load %arg3[%c4, %c0_39] : memref<35x384xf32, #tpu.memory_space<vmem>>, vector<1x128xf32>
    %c5 = arith.constant 5 : index
    %c0_40 = arith.constant 0 : index
    %133 = vector.load %arg3[%c5, %c0_40] : memref<35x384xf32, #tpu.memory_space<vmem>>, vector<1x128xf32>
    %cst_41 = arith.constant dense<0.000000e+00> : vector<32xf32>
    %134 = vector.multi_reduction <add>, %131, %cst_41 [1] : vector<32x128xf32> to vector<32xf32>
    %135 = vector.shape_cast %134 : vector<32xf32> to vector<32x1xf32>
    %cst_42 = arith.constant 1.280000e+02 : f32
    %136 = vector.broadcast %cst_42 : f32 to vector<32x1xf32>
    %137 = arith.divf %135, %136 : vector<32x1xf32>
    %138 = vector.broadcast %137 : vector<32x1xf32> to vector<32x128xf32>
    %139 = arith.subf %131, %138 : vector<32x128xf32>
    %140 = arith.mulf %139, %139 : vector<32x128xf32>
    %cst_43 = arith.constant dense<0.000000e+00> : vector<32xf32>
    %141 = vector.multi_reduction <add>, %140, %cst_43 [1] : vector<32x128xf32> to vector<32xf32>
    %142 = vector.shape_cast %141 : vector<32xf32> to vector<32x1xf32>
    %cst_44 = arith.constant 1.280000e+02 : f32
    %143 = vector.broadcast %cst_44 : f32 to vector<32x1xf32>
    %144 = arith.divf %142, %143 : vector<32x1xf32>
    %145 = vector.broadcast %137 : vector<32x1xf32> to vector<32x128xf32>
    %146 = arith.subf %131, %145 : vector<32x128xf32>
    %cst_45 = arith.constant 9.99999974E-6 : f32
    %147 = vector.broadcast %cst_45 : f32 to vector<32x1xf32>
    %148 = arith.addf %144, %147 : vector<32x1xf32>
    %149 = math.rsqrt %148 : vector<32x1xf32>
    %150 = vector.broadcast %149 : vector<32x1xf32> to vector<32x128xf32>
    %151 = arith.mulf %146, %150 : vector<32x128xf32>
    %152 = vector.broadcast %132 : vector<1x128xf32> to vector<32x128xf32>
    %153 = arith.mulf %151, %152 : vector<32x128xf32>
    %154 = vector.broadcast %133 : vector<1x128xf32> to vector<32x128xf32>
    %155 = arith.addf %153, %154 : vector<32x128xf32>
    %cst_46 = arith.constant 0.000000e+00 : f32
    %156 = vector.broadcast %cst_46 : f32 to vector<32x128xf32>
    %157 = arith.maximumf %155, %156 : vector<32x128xf32>
    %c1280 = arith.constant 1280 : index
    %c0_47 = arith.constant 0 : index
    %158 = vector.load %arg2[%c1280, %c0_47] : memref<3072x384xf32, #tpu.memory_space<vmem>>, vector<128x384xf32>
    %cst_48 = arith.constant dense<0.000000e+00> : vector<32x384xf32>
    %159 = tpu.matmul %157, %158, %cst_48 {dimension_numbers = #tpu.dot_dimension_numbers<[1], [0], [0], [1], [0, 0, 1, 1], [], []>} : vector<32x128xf32>, vector<128x384xf32>, vector<32x384xf32> -> vector<32x384xf32>
    %c9 = arith.constant 9 : index
    %c0_49 = arith.constant 0 : index
    %160 = vector.load %arg3[%c9, %c0_49] : memref<35x384xf32, #tpu.memory_space<vmem>>, vector<1x384xf32>
    %161 = vector.broadcast %160 : vector<1x384xf32> to vector<32x384xf32>
    %162 = arith.addf %159, %161 : vector<32x384xf32>
    %163 = vector.extract_strided_slice %162 {offsets = [0, 0], sizes = [32, 128], strides = [1, 1]} : vector<32x384xf32> to vector<32x128xf32>
    %164 = vector.extract_strided_slice %162 {offsets = [0, 128], sizes = [32, 128], strides = [1, 1]} : vector<32x384xf32> to vector<32x128xf32>
    %165 = vector.extract_strided_slice %162 {offsets = [0, 256], sizes = [32, 128], strides = [1, 1]} : vector<32x384xf32> to vector<32x128xf32>
    %c1408 = arith.constant 1408 : index
    %c0_50 = arith.constant 0 : index
    %166 = vector.load %arg2[%c1408, %c0_50] : memref<3072x384xf32, #tpu.memory_space<vmem>>, vector<128x128xf32>
    %c10 = arith.constant 10 : index
    %c0_51 = arith.constant 0 : index
    %167 = vector.load %arg3[%c10, %c0_51] : memref<35x384xf32, #tpu.memory_space<vmem>>, vector<1x128xf32>
    %168 = vector.extract_strided_slice %163 {offsets = [0, 0], sizes = [16, 128], strides = [1, 1]} : vector<32x128xf32> to vector<16x128xf32>
    %169 = vector.extract_strided_slice %164 {offsets = [0, 0], sizes = [16, 128], strides = [1, 1]} : vector<32x128xf32> to vector<16x128xf32>
    %170 = arith.mulf %168, %169 : vector<16x128xf32>
    %cst_52 = arith.constant dense<0.000000e+00> : vector<16x4xf32>
    %171 = tpu.matmul %170, %62, %cst_52 {dimension_numbers = #tpu.dot_dimension_numbers<[1], [0], [0], [1], [0, 0, 1, 1], [], []>} : vector<16x128xf32>, vector<128x4xf32>, vector<16x4xf32> -> vector<16x4xf32>
    %172 = vector.extract_strided_slice %164 {offsets = [16, 0], sizes = [16, 128], strides = [1, 1]} : vector<32x128xf32> to vector<16x128xf32>
    %173 = arith.mulf %168, %172 : vector<16x128xf32>
    %cst_53 = arith.constant dense<0.000000e+00> : vector<16x4xf32>
    %174 = tpu.matmul %173, %62, %cst_53 {dimension_numbers = #tpu.dot_dimension_numbers<[1], [0], [0], [1], [0, 0, 1, 1], [], []>} : vector<16x128xf32>, vector<128x4xf32>, vector<16x4xf32> -> vector<16x4xf32>
    %175 = arith.maximumf %171, %174 : vector<16x4xf32>
    %176 = arith.subf %171, %175 : vector<16x4xf32>
    %177 = math.exp %176 : vector<16x4xf32>
    %178 = arith.subf %174, %175 : vector<16x4xf32>
    %179 = math.exp %178 : vector<16x4xf32>
    %180 = arith.addf %177, %179 : vector<16x4xf32>
    %181 = tpu.reciprocal %180 {approx = true} : vector<16x4xf32> -> vector<16x4xf32>
    %182 = arith.mulf %177, %181 : vector<16x4xf32>
    %cst_54 = arith.constant dense<0.000000e+00> : vector<16x128xf32>
    %183 = tpu.matmul %182, %77, %cst_54 {dimension_numbers = #tpu.dot_dimension_numbers<[1], [0], [0], [1], [0, 0, 1, 1], [], []>} : vector<16x4xf32>, vector<4x128xf32>, vector<16x128xf32> -> vector<16x128xf32>
    %184 = vector.extract_strided_slice %165 {offsets = [0, 0], sizes = [16, 128], strides = [1, 1]} : vector<32x128xf32> to vector<16x128xf32>
    %185 = arith.mulf %183, %184 : vector<16x128xf32>
    %186 = arith.mulf %179, %181 : vector<16x4xf32>
    %cst_55 = arith.constant dense<0.000000e+00> : vector<16x128xf32>
    %187 = tpu.matmul %186, %77, %cst_55 {dimension_numbers = #tpu.dot_dimension_numbers<[1], [0], [0], [1], [0, 0, 1, 1], [], []>} : vector<16x4xf32>, vector<4x128xf32>, vector<16x128xf32> -> vector<16x128xf32>
    %188 = vector.extract_strided_slice %165 {offsets = [16, 0], sizes = [16, 128], strides = [1, 1]} : vector<32x128xf32> to vector<16x128xf32>
    %189 = arith.mulf %187, %188 : vector<16x128xf32>
    %190 = arith.addf %185, %189 : vector<16x128xf32>
    %191 = vector.extract_strided_slice %163 {offsets = [16, 0], sizes = [16, 128], strides = [1, 1]} : vector<32x128xf32> to vector<16x128xf32>
    %192 = vector.extract_strided_slice %164 {offsets = [0, 0], sizes = [16, 128], strides = [1, 1]} : vector<32x128xf32> to vector<16x128xf32>
    %193 = arith.mulf %191, %192 : vector<16x128xf32>
    %cst_56 = arith.constant dense<0.000000e+00> : vector<16x4xf32>
    %194 = tpu.matmul %193, %62, %cst_56 {dimension_numbers = #tpu.dot_dimension_numbers<[1], [0], [0], [1], [0, 0, 1, 1], [], []>} : vector<16x128xf32>, vector<128x4xf32>, vector<16x4xf32> -> vector<16x4xf32>
    %195 = vector.extract_strided_slice %164 {offsets = [16, 0], sizes = [16, 128], strides = [1, 1]} : vector<32x128xf32> to vector<16x128xf32>
    %196 = arith.mulf %191, %195 : vector<16x128xf32>
    %cst_57 = arith.constant dense<0.000000e+00> : vector<16x4xf32>
    %197 = tpu.matmul %196, %62, %cst_57 {dimension_numbers = #tpu.dot_dimension_numbers<[1], [0], [0], [1], [0, 0, 1, 1], [], []>} : vector<16x128xf32>, vector<128x4xf32>, vector<16x4xf32> -> vector<16x4xf32>
    %198 = arith.maximumf %194, %197 : vector<16x4xf32>
    %199 = arith.subf %194, %198 : vector<16x4xf32>
    %200 = math.exp %199 : vector<16x4xf32>
    %201 = arith.subf %197, %198 : vector<16x4xf32>
    %202 = math.exp %201 : vector<16x4xf32>
    %203 = arith.addf %200, %202 : vector<16x4xf32>
    %204 = tpu.reciprocal %203 {approx = true} : vector<16x4xf32> -> vector<16x4xf32>
    %205 = arith.mulf %200, %204 : vector<16x4xf32>
    %cst_58 = arith.constant dense<0.000000e+00> : vector<16x128xf32>
    %206 = tpu.matmul %205, %77, %cst_58 {dimension_numbers = #tpu.dot_dimension_numbers<[1], [0], [0], [1], [0, 0, 1, 1], [], []>} : vector<16x4xf32>, vector<4x128xf32>, vector<16x128xf32> -> vector<16x128xf32>
    %207 = vector.extract_strided_slice %165 {offsets = [0, 0], sizes = [16, 128], strides = [1, 1]} : vector<32x128xf32> to vector<16x128xf32>
    %208 = arith.mulf %206, %207 : vector<16x128xf32>
    %209 = arith.mulf %202, %204 : vector<16x4xf32>
    %cst_59 = arith.constant dense<0.000000e+00> : vector<16x128xf32>
    %210 = tpu.matmul %209, %77, %cst_59 {dimension_numbers = #tpu.dot_dimension_numbers<[1], [0], [0], [1], [0, 0, 1, 1], [], []>} : vector<16x4xf32>, vector<4x128xf32>, vector<16x128xf32> -> vector<16x128xf32>
    %211 = vector.extract_strided_slice %165 {offsets = [16, 0], sizes = [16, 128], strides = [1, 1]} : vector<32x128xf32> to vector<16x128xf32>
    %212 = arith.mulf %210, %211 : vector<16x128xf32>
    %213 = arith.addf %208, %212 : vector<16x128xf32>
    %214 = tpu.concatenate %190, %213 in 0 : vector<16x128xf32>, vector<16x128xf32> -> vector<32x128xf32>
    %cst_60 = arith.constant dense<0.000000e+00> : vector<32x128xf32>
    %215 = tpu.matmul %214, %166, %cst_60 {dimension_numbers = #tpu.dot_dimension_numbers<[1], [0], [0], [1], [0, 0, 1, 1], [], []>} : vector<32x128xf32>, vector<128x128xf32>, vector<32x128xf32> -> vector<32x128xf32>
    %216 = vector.broadcast %167 : vector<1x128xf32> to vector<32x128xf32>
    %217 = arith.addf %215, %216 : vector<32x128xf32>
    %218 = arith.addf %157, %217 : vector<32x128xf32>
    %c11 = arith.constant 11 : index
    %c0_61 = arith.constant 0 : index
    %219 = vector.load %arg3[%c11, %c0_61] : memref<35x384xf32, #tpu.memory_space<vmem>>, vector<1x128xf32>
    %c12 = arith.constant 12 : index
    %c0_62 = arith.constant 0 : index
    %220 = vector.load %arg3[%c12, %c0_62] : memref<35x384xf32, #tpu.memory_space<vmem>>, vector<1x128xf32>
    %cst_63 = arith.constant dense<0.000000e+00> : vector<32xf32>
    %221 = vector.multi_reduction <add>, %218, %cst_63 [1] : vector<32x128xf32> to vector<32xf32>
    %222 = vector.shape_cast %221 : vector<32xf32> to vector<32x1xf32>
    %cst_64 = arith.constant 1.280000e+02 : f32
    %223 = vector.broadcast %cst_64 : f32 to vector<32x1xf32>
    %224 = arith.divf %222, %223 : vector<32x1xf32>
    %225 = vector.broadcast %224 : vector<32x1xf32> to vector<32x128xf32>
    %226 = arith.subf %218, %225 : vector<32x128xf32>
    %227 = arith.mulf %226, %226 : vector<32x128xf32>
    %cst_65 = arith.constant dense<0.000000e+00> : vector<32xf32>
    %228 = vector.multi_reduction <add>, %227, %cst_65 [1] : vector<32x128xf32> to vector<32xf32>
    %229 = vector.shape_cast %228 : vector<32xf32> to vector<32x1xf32>
    %cst_66 = arith.constant 1.280000e+02 : f32
    %230 = vector.broadcast %cst_66 : f32 to vector<32x1xf32>
    %231 = arith.divf %229, %230 : vector<32x1xf32>
    %232 = vector.broadcast %224 : vector<32x1xf32> to vector<32x128xf32>
    %233 = arith.subf %218, %232 : vector<32x128xf32>
    %cst_67 = arith.constant 9.99999974E-6 : f32
    %234 = vector.broadcast %cst_67 : f32 to vector<32x1xf32>
    %235 = arith.addf %231, %234 : vector<32x1xf32>
    %236 = math.rsqrt %235 : vector<32x1xf32>
    %237 = vector.broadcast %236 : vector<32x1xf32> to vector<32x128xf32>
    %238 = arith.mulf %233, %237 : vector<32x128xf32>
    %239 = vector.broadcast %219 : vector<1x128xf32> to vector<32x128xf32>
    %240 = arith.mulf %238, %239 : vector<32x128xf32>
    %241 = vector.broadcast %220 : vector<1x128xf32> to vector<32x128xf32>
    %242 = arith.addf %240, %241 : vector<32x128xf32>
    %c1536 = arith.constant 1536 : index
    %c0_68 = arith.constant 0 : index
    %243 = vector.load %arg2[%c1536, %c0_68] : memref<3072x384xf32, #tpu.memory_space<vmem>>, vector<128x128xf32>
    %cst_69 = arith.constant dense<0.000000e+00> : vector<32x128xf32>
    %244 = tpu.matmul %242, %243, %cst_69 {dimension_numbers = #tpu.dot_dimension_numbers<[1], [0], [0], [1], [0, 0, 1, 1], [], []>} : vector<32x128xf32>, vector<128x128xf32>, vector<32x128xf32> -> vector<32x128xf32>
    %c13 = arith.constant 13 : index
    %c0_70 = arith.constant 0 : index
    %245 = vector.load %arg3[%c13, %c0_70] : memref<35x384xf32, #tpu.memory_space<vmem>>, vector<1x128xf32>
    %246 = vector.broadcast %245 : vector<1x128xf32> to vector<32x128xf32>
    %247 = arith.addf %244, %246 : vector<32x128xf32>
    %c1664 = arith.constant 1664 : index
    %c0_71 = arith.constant 0 : index
    %248 = vector.load %arg2[%c1664, %c0_71] : memref<3072x384xf32, #tpu.memory_space<vmem>>, vector<128x256xf32>
    %cst_72 = arith.constant dense<0.000000e+00> : vector<32x256xf32>
    %249 = tpu.matmul %79, %248, %cst_72 {dimension_numbers = #tpu.dot_dimension_numbers<[1], [0], [0], [1], [0, 0, 1, 1], [], []>} : vector<32x128xf32>, vector<128x256xf32>, vector<32x256xf32> -> vector<32x256xf32>
    %c14 = arith.constant 14 : index
    %c0_73 = arith.constant 0 : index
    %250 = vector.load %arg3[%c14, %c0_73] : memref<35x384xf32, #tpu.memory_space<vmem>>, vector<1x256xf32>
    %251 = vector.broadcast %250 : vector<1x256xf32> to vector<32x256xf32>
    %252 = arith.addf %249, %251 : vector<32x256xf32>
    %253 = vector.extract_strided_slice %252 {offsets = [0, 0], sizes = [32, 128], strides = [1, 1]} : vector<32x256xf32> to vector<32x128xf32>
    %254 = vector.extract_strided_slice %252 {offsets = [0, 128], sizes = [32, 128], strides = [1, 1]} : vector<32x256xf32> to vector<32x128xf32>
    %c1792 = arith.constant 1792 : index
    %c0_74 = arith.constant 0 : index
    %255 = vector.load %arg2[%c1792, %c0_74] : memref<3072x384xf32, #tpu.memory_space<vmem>>, vector<128x128xf32>
    %c15 = arith.constant 15 : index
    %c0_75 = arith.constant 0 : index
    %256 = vector.load %arg3[%c15, %c0_75] : memref<35x384xf32, #tpu.memory_space<vmem>>, vector<1x128xf32>
    %257 = vector.extract_strided_slice %247 {offsets = [0, 0], sizes = [16, 128], strides = [1, 1]} : vector<32x128xf32> to vector<16x128xf32>
    %258 = vector.extract_strided_slice %253 {offsets = [0, 0], sizes = [16, 128], strides = [1, 1]} : vector<32x128xf32> to vector<16x128xf32>
    %259 = arith.mulf %257, %258 : vector<16x128xf32>
    %cst_76 = arith.constant dense<0.000000e+00> : vector<16x4xf32>
    %260 = tpu.matmul %259, %62, %cst_76 {dimension_numbers = #tpu.dot_dimension_numbers<[1], [0], [0], [1], [0, 0, 1, 1], [], []>} : vector<16x128xf32>, vector<128x4xf32>, vector<16x4xf32> -> vector<16x4xf32>
    %261 = vector.extract_strided_slice %253 {offsets = [16, 0], sizes = [16, 128], strides = [1, 1]} : vector<32x128xf32> to vector<16x128xf32>
    %262 = arith.mulf %257, %261 : vector<16x128xf32>
    %cst_77 = arith.constant dense<0.000000e+00> : vector<16x4xf32>
    %263 = tpu.matmul %262, %62, %cst_77 {dimension_numbers = #tpu.dot_dimension_numbers<[1], [0], [0], [1], [0, 0, 1, 1], [], []>} : vector<16x128xf32>, vector<128x4xf32>, vector<16x4xf32> -> vector<16x4xf32>
    %264 = arith.maximumf %260, %263 : vector<16x4xf32>
    %265 = arith.subf %260, %264 : vector<16x4xf32>
    %266 = math.exp %265 : vector<16x4xf32>
    %267 = arith.subf %263, %264 : vector<16x4xf32>
    %268 = math.exp %267 : vector<16x4xf32>
    %269 = arith.addf %266, %268 : vector<16x4xf32>
    %270 = tpu.reciprocal %269 {approx = true} : vector<16x4xf32> -> vector<16x4xf32>
    %271 = arith.mulf %266, %270 : vector<16x4xf32>
    %cst_78 = arith.constant dense<0.000000e+00> : vector<16x128xf32>
    %272 = tpu.matmul %271, %77, %cst_78 {dimension_numbers = #tpu.dot_dimension_numbers<[1], [0], [0], [1], [0, 0, 1, 1], [], []>} : vector<16x4xf32>, vector<4x128xf32>, vector<16x128xf32> -> vector<16x128xf32>
    %273 = vector.extract_strided_slice %254 {offsets = [0, 0], sizes = [16, 128], strides = [1, 1]} : vector<32x128xf32> to vector<16x128xf32>
    %274 = arith.mulf %272, %273 : vector<16x128xf32>
    %275 = arith.mulf %268, %270 : vector<16x4xf32>
    %cst_79 = arith.constant dense<0.000000e+00> : vector<16x128xf32>
    %276 = tpu.matmul %275, %77, %cst_79 {dimension_numbers = #tpu.dot_dimension_numbers<[1], [0], [0], [1], [0, 0, 1, 1], [], []>} : vector<16x4xf32>, vector<4x128xf32>, vector<16x128xf32> -> vector<16x128xf32>
    %277 = vector.extract_strided_slice %254 {offsets = [16, 0], sizes = [16, 128], strides = [1, 1]} : vector<32x128xf32> to vector<16x128xf32>
    %278 = arith.mulf %276, %277 : vector<16x128xf32>
    %279 = arith.addf %274, %278 : vector<16x128xf32>
    %280 = vector.extract_strided_slice %247 {offsets = [16, 0], sizes = [16, 128], strides = [1, 1]} : vector<32x128xf32> to vector<16x128xf32>
    %281 = vector.extract_strided_slice %253 {offsets = [0, 0], sizes = [16, 128], strides = [1, 1]} : vector<32x128xf32> to vector<16x128xf32>
    %282 = arith.mulf %280, %281 : vector<16x128xf32>
    %cst_80 = arith.constant dense<0.000000e+00> : vector<16x4xf32>
    %283 = tpu.matmul %282, %62, %cst_80 {dimension_numbers = #tpu.dot_dimension_numbers<[1], [0], [0], [1], [0, 0, 1, 1], [], []>} : vector<16x128xf32>, vector<128x4xf32>, vector<16x4xf32> -> vector<16x4xf32>
    %284 = vector.extract_strided_slice %253 {offsets = [16, 0], sizes = [16, 128], strides = [1, 1]} : vector<32x128xf32> to vector<16x128xf32>
    %285 = arith.mulf %280, %284 : vector<16x128xf32>
    %cst_81 = arith.constant dense<0.000000e+00> : vector<16x4xf32>
    %286 = tpu.matmul %285, %62, %cst_81 {dimension_numbers = #tpu.dot_dimension_numbers<[1], [0], [0], [1], [0, 0, 1, 1], [], []>} : vector<16x128xf32>, vector<128x4xf32>, vector<16x4xf32> -> vector<16x4xf32>
    %287 = arith.maximumf %283, %286 : vector<16x4xf32>
    %288 = arith.subf %283, %287 : vector<16x4xf32>
    %289 = math.exp %288 : vector<16x4xf32>
    %290 = arith.subf %286, %287 : vector<16x4xf32>
    %291 = math.exp %290 : vector<16x4xf32>
    %292 = arith.addf %289, %291 : vector<16x4xf32>
    %293 = tpu.reciprocal %292 {approx = true} : vector<16x4xf32> -> vector<16x4xf32>
    %294 = arith.mulf %289, %293 : vector<16x4xf32>
    %cst_82 = arith.constant dense<0.000000e+00> : vector<16x128xf32>
    %295 = tpu.matmul %294, %77, %cst_82 {dimension_numbers = #tpu.dot_dimension_numbers<[1], [0], [0], [1], [0, 0, 1, 1], [], []>} : vector<16x4xf32>, vector<4x128xf32>, vector<16x128xf32> -> vector<16x128xf32>
    %296 = vector.extract_strided_slice %254 {offsets = [0, 0], sizes = [16, 128], strides = [1, 1]} : vector<32x128xf32> to vector<16x128xf32>
    %297 = arith.mulf %295, %296 : vector<16x128xf32>
    %298 = arith.mulf %291, %293 : vector<16x4xf32>
    %cst_83 = arith.constant dense<0.000000e+00> : vector<16x128xf32>
    %299 = tpu.matmul %298, %77, %cst_83 {dimension_numbers = #tpu.dot_dimension_numbers<[1], [0], [0], [1], [0, 0, 1, 1], [], []>} : vector<16x4xf32>, vector<4x128xf32>, vector<16x128xf32> -> vector<16x128xf32>
    %300 = vector.extract_strided_slice %254 {offsets = [16, 0], sizes = [16, 128], strides = [1, 1]} : vector<32x128xf32> to vector<16x128xf32>
    %301 = arith.mulf %299, %300 : vector<16x128xf32>
    %302 = arith.addf %297, %301 : vector<16x128xf32>
    %303 = tpu.concatenate %279, %302 in 0 : vector<16x128xf32>, vector<16x128xf32> -> vector<32x128xf32>
    %cst_84 = arith.constant dense<0.000000e+00> : vector<32x128xf32>
    %304 = tpu.matmul %303, %255, %cst_84 {dimension_numbers = #tpu.dot_dimension_numbers<[1], [0], [0], [1], [0, 0, 1, 1], [], []>} : vector<32x128xf32>, vector<128x128xf32>, vector<32x128xf32> -> vector<32x128xf32>
    %305 = vector.broadcast %256 : vector<1x128xf32> to vector<32x128xf32>
    %306 = arith.addf %304, %305 : vector<32x128xf32>
    %307 = arith.addf %242, %306 : vector<32x128xf32>
    %c16 = arith.constant 16 : index
    %c0_85 = arith.constant 0 : index
    %308 = vector.load %arg3[%c16, %c0_85] : memref<35x384xf32, #tpu.memory_space<vmem>>, vector<1x128xf32>
    %c17 = arith.constant 17 : index
    %c0_86 = arith.constant 0 : index
    %309 = vector.load %arg3[%c17, %c0_86] : memref<35x384xf32, #tpu.memory_space<vmem>>, vector<1x128xf32>
    %cst_87 = arith.constant dense<0.000000e+00> : vector<32xf32>
    %310 = vector.multi_reduction <add>, %307, %cst_87 [1] : vector<32x128xf32> to vector<32xf32>
    %311 = vector.shape_cast %310 : vector<32xf32> to vector<32x1xf32>
    %cst_88 = arith.constant 1.280000e+02 : f32
    %312 = vector.broadcast %cst_88 : f32 to vector<32x1xf32>
    %313 = arith.divf %311, %312 : vector<32x1xf32>
    %314 = vector.broadcast %313 : vector<32x1xf32> to vector<32x128xf32>
    %315 = arith.subf %307, %314 : vector<32x128xf32>
    %316 = arith.mulf %315, %315 : vector<32x128xf32>
    %cst_89 = arith.constant dense<0.000000e+00> : vector<32xf32>
    %317 = vector.multi_reduction <add>, %316, %cst_89 [1] : vector<32x128xf32> to vector<32xf32>
    %318 = vector.shape_cast %317 : vector<32xf32> to vector<32x1xf32>
    %cst_90 = arith.constant 1.280000e+02 : f32
    %319 = vector.broadcast %cst_90 : f32 to vector<32x1xf32>
    %320 = arith.divf %318, %319 : vector<32x1xf32>
    %321 = vector.broadcast %313 : vector<32x1xf32> to vector<32x128xf32>
    %322 = arith.subf %307, %321 : vector<32x128xf32>
    %cst_91 = arith.constant 9.99999974E-6 : f32
    %323 = vector.broadcast %cst_91 : f32 to vector<32x1xf32>
    %324 = arith.addf %320, %323 : vector<32x1xf32>
    %325 = math.rsqrt %324 : vector<32x1xf32>
    %326 = vector.broadcast %325 : vector<32x1xf32> to vector<32x128xf32>
    %327 = arith.mulf %322, %326 : vector<32x128xf32>
    %328 = vector.broadcast %308 : vector<1x128xf32> to vector<32x128xf32>
    %329 = arith.mulf %327, %328 : vector<32x128xf32>
    %330 = vector.broadcast %309 : vector<1x128xf32> to vector<32x128xf32>
    %331 = arith.addf %329, %330 : vector<32x128xf32>
    %c1920 = arith.constant 1920 : index
    %c0_92 = arith.constant 0 : index
    %332 = vector.load %arg2[%c1920, %c0_92] : memref<3072x384xf32, #tpu.memory_space<vmem>>, vector<128x128xf32>
    %cst_93 = arith.constant dense<0.000000e+00> : vector<32x128xf32>
    %333 = tpu.matmul %331, %332, %cst_93 {dimension_numbers = #tpu.dot_dimension_numbers<[1], [0], [0], [1], [0, 0, 1, 1], [], []>} : vector<32x128xf32>, vector<128x128xf32>, vector<32x128xf32> -> vector<32x128xf32>
    %c18 = arith.constant 18 : index
    %c0_94 = arith.constant 0 : index
    %334 = vector.load %arg3[%c18, %c0_94] : memref<35x384xf32, #tpu.memory_space<vmem>>, vector<1x128xf32>
    %335 = vector.broadcast %334 : vector<1x128xf32> to vector<32x128xf32>
    %336 = arith.addf %333, %335 : vector<32x128xf32>
    %cst_95 = arith.constant 0.000000e+00 : f32
    %337 = vector.broadcast %cst_95 : f32 to vector<32x128xf32>
    %338 = arith.maximumf %336, %337 : vector<32x128xf32>
    %c2048 = arith.constant 2048 : index
    %c0_96 = arith.constant 0 : index
    %339 = vector.load %arg2[%c2048, %c0_96] : memref<3072x384xf32, #tpu.memory_space<vmem>>, vector<128x128xf32>
    %cst_97 = arith.constant dense<0.000000e+00> : vector<32x128xf32>
    %340 = tpu.matmul %338, %339, %cst_97 {dimension_numbers = #tpu.dot_dimension_numbers<[1], [0], [0], [1], [0, 0, 1, 1], [], []>} : vector<32x128xf32>, vector<128x128xf32>, vector<32x128xf32> -> vector<32x128xf32>
    %c19 = arith.constant 19 : index
    %c0_98 = arith.constant 0 : index
    %341 = vector.load %arg3[%c19, %c0_98] : memref<35x384xf32, #tpu.memory_space<vmem>>, vector<1x128xf32>
    %342 = vector.broadcast %341 : vector<1x128xf32> to vector<32x128xf32>
    %343 = arith.addf %340, %342 : vector<32x128xf32>
    %344 = arith.addf %331, %343 : vector<32x128xf32>
    %c20 = arith.constant 20 : index
    %c0_99 = arith.constant 0 : index
    %345 = vector.load %arg3[%c20, %c0_99] : memref<35x384xf32, #tpu.memory_space<vmem>>, vector<1x128xf32>
    %c21 = arith.constant 21 : index
    %c0_100 = arith.constant 0 : index
    %346 = vector.load %arg3[%c21, %c0_100] : memref<35x384xf32, #tpu.memory_space<vmem>>, vector<1x128xf32>
    %cst_101 = arith.constant dense<0.000000e+00> : vector<32xf32>
    %347 = vector.multi_reduction <add>, %344, %cst_101 [1] : vector<32x128xf32> to vector<32xf32>
    %348 = vector.shape_cast %347 : vector<32xf32> to vector<32x1xf32>
    %cst_102 = arith.constant 1.280000e+02 : f32
    %349 = vector.broadcast %cst_102 : f32 to vector<32x1xf32>
    %350 = arith.divf %348, %349 : vector<32x1xf32>
    %351 = vector.broadcast %350 : vector<32x1xf32> to vector<32x128xf32>
    %352 = arith.subf %344, %351 : vector<32x128xf32>
    %353 = arith.mulf %352, %352 : vector<32x128xf32>
    %cst_103 = arith.constant dense<0.000000e+00> : vector<32xf32>
    %354 = vector.multi_reduction <add>, %353, %cst_103 [1] : vector<32x128xf32> to vector<32xf32>
    %355 = vector.shape_cast %354 : vector<32xf32> to vector<32x1xf32>
    %cst_104 = arith.constant 1.280000e+02 : f32
    %356 = vector.broadcast %cst_104 : f32 to vector<32x1xf32>
    %357 = arith.divf %355, %356 : vector<32x1xf32>
    %358 = vector.broadcast %350 : vector<32x1xf32> to vector<32x128xf32>
    %359 = arith.subf %344, %358 : vector<32x128xf32>
    %cst_105 = arith.constant 9.99999974E-6 : f32
    %360 = vector.broadcast %cst_105 : f32 to vector<32x1xf32>
    %361 = arith.addf %357, %360 : vector<32x1xf32>
    %362 = math.rsqrt %361 : vector<32x1xf32>
    %363 = vector.broadcast %362 : vector<32x1xf32> to vector<32x128xf32>
    %364 = arith.mulf %359, %363 : vector<32x128xf32>
    %365 = vector.broadcast %345 : vector<1x128xf32> to vector<32x128xf32>
    %366 = arith.mulf %364, %365 : vector<32x128xf32>
    %367 = vector.broadcast %346 : vector<1x128xf32> to vector<32x128xf32>
    %368 = arith.addf %366, %367 : vector<32x128xf32>
    %c2176 = arith.constant 2176 : index
    %c0_106 = arith.constant 0 : index
    %369 = vector.load %arg2[%c2176, %c0_106] : memref<3072x384xf32, #tpu.memory_space<vmem>>, vector<128x384xf32>
    %cst_107 = arith.constant dense<0.000000e+00> : vector<32x384xf32>
    %370 = tpu.matmul %368, %369, %cst_107 {dimension_numbers = #tpu.dot_dimension_numbers<[1], [0], [0], [1], [0, 0, 1, 1], [], []>} : vector<32x128xf32>, vector<128x384xf32>, vector<32x384xf32> -> vector<32x384xf32>
    %c22 = arith.constant 22 : index
    %c0_108 = arith.constant 0 : index
    %371 = vector.load %arg3[%c22, %c0_108] : memref<35x384xf32, #tpu.memory_space<vmem>>, vector<1x384xf32>
    %372 = vector.broadcast %371 : vector<1x384xf32> to vector<32x384xf32>
    %373 = arith.addf %370, %372 : vector<32x384xf32>
    %374 = vector.extract_strided_slice %373 {offsets = [0, 0], sizes = [32, 128], strides = [1, 1]} : vector<32x384xf32> to vector<32x128xf32>
    %375 = vector.extract_strided_slice %373 {offsets = [0, 128], sizes = [32, 128], strides = [1, 1]} : vector<32x384xf32> to vector<32x128xf32>
    %376 = vector.extract_strided_slice %373 {offsets = [0, 256], sizes = [32, 128], strides = [1, 1]} : vector<32x384xf32> to vector<32x128xf32>
    %c2304 = arith.constant 2304 : index
    %c0_109 = arith.constant 0 : index
    %377 = vector.load %arg2[%c2304, %c0_109] : memref<3072x384xf32, #tpu.memory_space<vmem>>, vector<128x128xf32>
    %c23 = arith.constant 23 : index
    %c0_110 = arith.constant 0 : index
    %378 = vector.load %arg3[%c23, %c0_110] : memref<35x384xf32, #tpu.memory_space<vmem>>, vector<1x128xf32>
    %379 = vector.extract_strided_slice %374 {offsets = [0, 0], sizes = [16, 128], strides = [1, 1]} : vector<32x128xf32> to vector<16x128xf32>
    %380 = vector.extract_strided_slice %375 {offsets = [0, 0], sizes = [16, 128], strides = [1, 1]} : vector<32x128xf32> to vector<16x128xf32>
    %381 = arith.mulf %379, %380 : vector<16x128xf32>
    %cst_111 = arith.constant dense<0.000000e+00> : vector<16x4xf32>
    %382 = tpu.matmul %381, %62, %cst_111 {dimension_numbers = #tpu.dot_dimension_numbers<[1], [0], [0], [1], [0, 0, 1, 1], [], []>} : vector<16x128xf32>, vector<128x4xf32>, vector<16x4xf32> -> vector<16x4xf32>
    %383 = vector.extract_strided_slice %375 {offsets = [16, 0], sizes = [16, 128], strides = [1, 1]} : vector<32x128xf32> to vector<16x128xf32>
    %384 = arith.mulf %379, %383 : vector<16x128xf32>
    %cst_112 = arith.constant dense<0.000000e+00> : vector<16x4xf32>
    %385 = tpu.matmul %384, %62, %cst_112 {dimension_numbers = #tpu.dot_dimension_numbers<[1], [0], [0], [1], [0, 0, 1, 1], [], []>} : vector<16x128xf32>, vector<128x4xf32>, vector<16x4xf32> -> vector<16x4xf32>
    %386 = arith.maximumf %382, %385 : vector<16x4xf32>
    %387 = arith.subf %382, %386 : vector<16x4xf32>
    %388 = math.exp %387 : vector<16x4xf32>
    %389 = arith.subf %385, %386 : vector<16x4xf32>
    %390 = math.exp %389 : vector<16x4xf32>
    %391 = arith.addf %388, %390 : vector<16x4xf32>
    %392 = tpu.reciprocal %391 {approx = true} : vector<16x4xf32> -> vector<16x4xf32>
    %393 = arith.mulf %388, %392 : vector<16x4xf32>
    %cst_113 = arith.constant dense<0.000000e+00> : vector<16x128xf32>
    %394 = tpu.matmul %393, %77, %cst_113 {dimension_numbers = #tpu.dot_dimension_numbers<[1], [0], [0], [1], [0, 0, 1, 1], [], []>} : vector<16x4xf32>, vector<4x128xf32>, vector<16x128xf32> -> vector<16x128xf32>
    %395 = vector.extract_strided_slice %376 {offsets = [0, 0], sizes = [16, 128], strides = [1, 1]} : vector<32x128xf32> to vector<16x128xf32>
    %396 = arith.mulf %394, %395 : vector<16x128xf32>
    %397 = arith.mulf %390, %392 : vector<16x4xf32>
    %cst_114 = arith.constant dense<0.000000e+00> : vector<16x128xf32>
    %398 = tpu.matmul %397, %77, %cst_114 {dimension_numbers = #tpu.dot_dimension_numbers<[1], [0], [0], [1], [0, 0, 1, 1], [], []>} : vector<16x4xf32>, vector<4x128xf32>, vector<16x128xf32> -> vector<16x128xf32>
    %399 = vector.extract_strided_slice %376 {offsets = [16, 0], sizes = [16, 128], strides = [1, 1]} : vector<32x128xf32> to vector<16x128xf32>
    %400 = arith.mulf %398, %399 : vector<16x128xf32>
    %401 = arith.addf %396, %400 : vector<16x128xf32>
    %402 = vector.extract_strided_slice %374 {offsets = [16, 0], sizes = [16, 128], strides = [1, 1]} : vector<32x128xf32> to vector<16x128xf32>
    %403 = vector.extract_strided_slice %375 {offsets = [0, 0], sizes = [16, 128], strides = [1, 1]} : vector<32x128xf32> to vector<16x128xf32>
    %404 = arith.mulf %402, %403 : vector<16x128xf32>
    %cst_115 = arith.constant dense<0.000000e+00> : vector<16x4xf32>
    %405 = tpu.matmul %404, %62, %cst_115 {dimension_numbers = #tpu.dot_dimension_numbers<[1], [0], [0], [1], [0, 0, 1, 1], [], []>} : vector<16x128xf32>, vector<128x4xf32>, vector<16x4xf32> -> vector<16x4xf32>
    %406 = vector.extract_strided_slice %375 {offsets = [16, 0], sizes = [16, 128], strides = [1, 1]} : vector<32x128xf32> to vector<16x128xf32>
    %407 = arith.mulf %402, %406 : vector<16x128xf32>
    %cst_116 = arith.constant dense<0.000000e+00> : vector<16x4xf32>
    %408 = tpu.matmul %407, %62, %cst_116 {dimension_numbers = #tpu.dot_dimension_numbers<[1], [0], [0], [1], [0, 0, 1, 1], [], []>} : vector<16x128xf32>, vector<128x4xf32>, vector<16x4xf32> -> vector<16x4xf32>
    %409 = arith.maximumf %405, %408 : vector<16x4xf32>
    %410 = arith.subf %405, %409 : vector<16x4xf32>
    %411 = math.exp %410 : vector<16x4xf32>
    %412 = arith.subf %408, %409 : vector<16x4xf32>
    %413 = math.exp %412 : vector<16x4xf32>
    %414 = arith.addf %411, %413 : vector<16x4xf32>
    %415 = tpu.reciprocal %414 {approx = true} : vector<16x4xf32> -> vector<16x4xf32>
    %416 = arith.mulf %411, %415 : vector<16x4xf32>
    %cst_117 = arith.constant dense<0.000000e+00> : vector<16x128xf32>
    %417 = tpu.matmul %416, %77, %cst_117 {dimension_numbers = #tpu.dot_dimension_numbers<[1], [0], [0], [1], [0, 0, 1, 1], [], []>} : vector<16x4xf32>, vector<4x128xf32>, vector<16x128xf32> -> vector<16x128xf32>
    %418 = vector.extract_strided_slice %376 {offsets = [0, 0], sizes = [16, 128], strides = [1, 1]} : vector<32x128xf32> to vector<16x128xf32>
    %419 = arith.mulf %417, %418 : vector<16x128xf32>
    %420 = arith.mulf %413, %415 : vector<16x4xf32>
    %cst_118 = arith.constant dense<0.000000e+00> : vector<16x128xf32>
    %421 = tpu.matmul %420, %77, %cst_118 {dimension_numbers = #tpu.dot_dimension_numbers<[1], [0], [0], [1], [0, 0, 1, 1], [], []>} : vector<16x4xf32>, vector<4x128xf32>, vector<16x128xf32> -> vector<16x128xf32>
    %422 = vector.extract_strided_slice %376 {offsets = [16, 0], sizes = [16, 128], strides = [1, 1]} : vector<32x128xf32> to vector<16x128xf32>
    %423 = arith.mulf %421, %422 : vector<16x128xf32>
    %424 = arith.addf %419, %423 : vector<16x128xf32>
    %425 = tpu.concatenate %401, %424 in 0 : vector<16x128xf32>, vector<16x128xf32> -> vector<32x128xf32>
    %cst_119 = arith.constant dense<0.000000e+00> : vector<32x128xf32>
    %426 = tpu.matmul %425, %377, %cst_119 {dimension_numbers = #tpu.dot_dimension_numbers<[1], [0], [0], [1], [0, 0, 1, 1], [], []>} : vector<32x128xf32>, vector<128x128xf32>, vector<32x128xf32> -> vector<32x128xf32>
    %427 = vector.broadcast %378 : vector<1x128xf32> to vector<32x128xf32>
    %428 = arith.addf %426, %427 : vector<32x128xf32>
    %429 = arith.addf %368, %428 : vector<32x128xf32>
    %c24 = arith.constant 24 : index
    %c0_120 = arith.constant 0 : index
    %430 = vector.load %arg3[%c24, %c0_120] : memref<35x384xf32, #tpu.memory_space<vmem>>, vector<1x128xf32>
    %c25 = arith.constant 25 : index
    %c0_121 = arith.constant 0 : index
    %431 = vector.load %arg3[%c25, %c0_121] : memref<35x384xf32, #tpu.memory_space<vmem>>, vector<1x128xf32>
    %cst_122 = arith.constant dense<0.000000e+00> : vector<32xf32>
    %432 = vector.multi_reduction <add>, %429, %cst_122 [1] : vector<32x128xf32> to vector<32xf32>
    %433 = vector.shape_cast %432 : vector<32xf32> to vector<32x1xf32>
    %cst_123 = arith.constant 1.280000e+02 : f32
    %434 = vector.broadcast %cst_123 : f32 to vector<32x1xf32>
    %435 = arith.divf %433, %434 : vector<32x1xf32>
    %436 = vector.broadcast %435 : vector<32x1xf32> to vector<32x128xf32>
    %437 = arith.subf %429, %436 : vector<32x128xf32>
    %438 = arith.mulf %437, %437 : vector<32x128xf32>
    %cst_124 = arith.constant dense<0.000000e+00> : vector<32xf32>
    %439 = vector.multi_reduction <add>, %438, %cst_124 [1] : vector<32x128xf32> to vector<32xf32>
    %440 = vector.shape_cast %439 : vector<32xf32> to vector<32x1xf32>
    %cst_125 = arith.constant 1.280000e+02 : f32
    %441 = vector.broadcast %cst_125 : f32 to vector<32x1xf32>
    %442 = arith.divf %440, %441 : vector<32x1xf32>
    %443 = vector.broadcast %435 : vector<32x1xf32> to vector<32x128xf32>
    %444 = arith.subf %429, %443 : vector<32x128xf32>
    %cst_126 = arith.constant 9.99999974E-6 : f32
    %445 = vector.broadcast %cst_126 : f32 to vector<32x1xf32>
    %446 = arith.addf %442, %445 : vector<32x1xf32>
    %447 = math.rsqrt %446 : vector<32x1xf32>
    %448 = vector.broadcast %447 : vector<32x1xf32> to vector<32x128xf32>
    %449 = arith.mulf %444, %448 : vector<32x128xf32>
    %450 = vector.broadcast %430 : vector<1x128xf32> to vector<32x128xf32>
    %451 = arith.mulf %449, %450 : vector<32x128xf32>
    %452 = vector.broadcast %431 : vector<1x128xf32> to vector<32x128xf32>
    %453 = arith.addf %451, %452 : vector<32x128xf32>
    %c2432 = arith.constant 2432 : index
    %c0_127 = arith.constant 0 : index
    %454 = vector.load %arg2[%c2432, %c0_127] : memref<3072x384xf32, #tpu.memory_space<vmem>>, vector<128x128xf32>
    %cst_128 = arith.constant dense<0.000000e+00> : vector<32x128xf32>
    %455 = tpu.matmul %453, %454, %cst_128 {dimension_numbers = #tpu.dot_dimension_numbers<[1], [0], [0], [1], [0, 0, 1, 1], [], []>} : vector<32x128xf32>, vector<128x128xf32>, vector<32x128xf32> -> vector<32x128xf32>
    %c26 = arith.constant 26 : index
    %c0_129 = arith.constant 0 : index
    %456 = vector.load %arg3[%c26, %c0_129] : memref<35x384xf32, #tpu.memory_space<vmem>>, vector<1x128xf32>
    %457 = vector.broadcast %456 : vector<1x128xf32> to vector<32x128xf32>
    %458 = arith.addf %455, %457 : vector<32x128xf32>
    %c2560 = arith.constant 2560 : index
    %c0_130 = arith.constant 0 : index
    %459 = vector.load %arg2[%c2560, %c0_130] : memref<3072x384xf32, #tpu.memory_space<vmem>>, vector<128x256xf32>
    %cst_131 = arith.constant dense<0.000000e+00> : vector<32x256xf32>
    %460 = tpu.matmul %79, %459, %cst_131 {dimension_numbers = #tpu.dot_dimension_numbers<[1], [0], [0], [1], [0, 0, 1, 1], [], []>} : vector<32x128xf32>, vector<128x256xf32>, vector<32x256xf32> -> vector<32x256xf32>
    %c27 = arith.constant 27 : index
    %c0_132 = arith.constant 0 : index
    %461 = vector.load %arg3[%c27, %c0_132] : memref<35x384xf32, #tpu.memory_space<vmem>>, vector<1x256xf32>
    %462 = vector.broadcast %461 : vector<1x256xf32> to vector<32x256xf32>
    %463 = arith.addf %460, %462 : vector<32x256xf32>
    %464 = vector.extract_strided_slice %463 {offsets = [0, 0], sizes = [32, 128], strides = [1, 1]} : vector<32x256xf32> to vector<32x128xf32>
    %465 = vector.extract_strided_slice %463 {offsets = [0, 128], sizes = [32, 128], strides = [1, 1]} : vector<32x256xf32> to vector<32x128xf32>
    %c2688 = arith.constant 2688 : index
    %c0_133 = arith.constant 0 : index
    %466 = vector.load %arg2[%c2688, %c0_133] : memref<3072x384xf32, #tpu.memory_space<vmem>>, vector<128x128xf32>
    %c28 = arith.constant 28 : index
    %c0_134 = arith.constant 0 : index
    %467 = vector.load %arg3[%c28, %c0_134] : memref<35x384xf32, #tpu.memory_space<vmem>>, vector<1x128xf32>
    %468 = vector.extract_strided_slice %458 {offsets = [0, 0], sizes = [16, 128], strides = [1, 1]} : vector<32x128xf32> to vector<16x128xf32>
    %469 = vector.extract_strided_slice %464 {offsets = [0, 0], sizes = [16, 128], strides = [1, 1]} : vector<32x128xf32> to vector<16x128xf32>
    %470 = arith.mulf %468, %469 : vector<16x128xf32>
    %cst_135 = arith.constant dense<0.000000e+00> : vector<16x4xf32>
    %471 = tpu.matmul %470, %62, %cst_135 {dimension_numbers = #tpu.dot_dimension_numbers<[1], [0], [0], [1], [0, 0, 1, 1], [], []>} : vector<16x128xf32>, vector<128x4xf32>, vector<16x4xf32> -> vector<16x4xf32>
    %472 = vector.extract_strided_slice %464 {offsets = [16, 0], sizes = [16, 128], strides = [1, 1]} : vector<32x128xf32> to vector<16x128xf32>
    %473 = arith.mulf %468, %472 : vector<16x128xf32>
    %cst_136 = arith.constant dense<0.000000e+00> : vector<16x4xf32>
    %474 = tpu.matmul %473, %62, %cst_136 {dimension_numbers = #tpu.dot_dimension_numbers<[1], [0], [0], [1], [0, 0, 1, 1], [], []>} : vector<16x128xf32>, vector<128x4xf32>, vector<16x4xf32> -> vector<16x4xf32>
    %475 = arith.maximumf %471, %474 : vector<16x4xf32>
    %476 = arith.subf %471, %475 : vector<16x4xf32>
    %477 = math.exp %476 : vector<16x4xf32>
    %478 = arith.subf %474, %475 : vector<16x4xf32>
    %479 = math.exp %478 : vector<16x4xf32>
    %480 = arith.addf %477, %479 : vector<16x4xf32>
    %481 = tpu.reciprocal %480 {approx = true} : vector<16x4xf32> -> vector<16x4xf32>
    %482 = arith.mulf %477, %481 : vector<16x4xf32>
    %cst_137 = arith.constant dense<0.000000e+00> : vector<16x128xf32>
    %483 = tpu.matmul %482, %77, %cst_137 {dimension_numbers = #tpu.dot_dimension_numbers<[1], [0], [0], [1], [0, 0, 1, 1], [], []>} : vector<16x4xf32>, vector<4x128xf32>, vector<16x128xf32> -> vector<16x128xf32>
    %484 = vector.extract_strided_slice %465 {offsets = [0, 0], sizes = [16, 128], strides = [1, 1]} : vector<32x128xf32> to vector<16x128xf32>
    %485 = arith.mulf %483, %484 : vector<16x128xf32>
    %486 = arith.mulf %479, %481 : vector<16x4xf32>
    %cst_138 = arith.constant dense<0.000000e+00> : vector<16x128xf32>
    %487 = tpu.matmul %486, %77, %cst_138 {dimension_numbers = #tpu.dot_dimension_numbers<[1], [0], [0], [1], [0, 0, 1, 1], [], []>} : vector<16x4xf32>, vector<4x128xf32>, vector<16x128xf32> -> vector<16x128xf32>
    %488 = vector.extract_strided_slice %465 {offsets = [16, 0], sizes = [16, 128], strides = [1, 1]} : vector<32x128xf32> to vector<16x128xf32>
    %489 = arith.mulf %487, %488 : vector<16x128xf32>
    %490 = arith.addf %485, %489 : vector<16x128xf32>
    %491 = vector.extract_strided_slice %458 {offsets = [16, 0], sizes = [16, 128], strides = [1, 1]} : vector<32x128xf32> to vector<16x128xf32>
    %492 = vector.extract_strided_slice %464 {offsets = [0, 0], sizes = [16, 128], strides = [1, 1]} : vector<32x128xf32> to vector<16x128xf32>
    %493 = arith.mulf %491, %492 : vector<16x128xf32>
    %cst_139 = arith.constant dense<0.000000e+00> : vector<16x4xf32>
    %494 = tpu.matmul %493, %62, %cst_139 {dimension_numbers = #tpu.dot_dimension_numbers<[1], [0], [0], [1], [0, 0, 1, 1], [], []>} : vector<16x128xf32>, vector<128x4xf32>, vector<16x4xf32> -> vector<16x4xf32>
    %495 = vector.extract_strided_slice %464 {offsets = [16, 0], sizes = [16, 128], strides = [1, 1]} : vector<32x128xf32> to vector<16x128xf32>
    %496 = arith.mulf %491, %495 : vector<16x128xf32>
    %cst_140 = arith.constant dense<0.000000e+00> : vector<16x4xf32>
    %497 = tpu.matmul %496, %62, %cst_140 {dimension_numbers = #tpu.dot_dimension_numbers<[1], [0], [0], [1], [0, 0, 1, 1], [], []>} : vector<16x128xf32>, vector<128x4xf32>, vector<16x4xf32> -> vector<16x4xf32>
    %498 = arith.maximumf %494, %497 : vector<16x4xf32>
    %499 = arith.subf %494, %498 : vector<16x4xf32>
    %500 = math.exp %499 : vector<16x4xf32>
    %501 = arith.subf %497, %498 : vector<16x4xf32>
    %502 = math.exp %501 : vector<16x4xf32>
    %503 = arith.addf %500, %502 : vector<16x4xf32>
    %504 = tpu.reciprocal %503 {approx = true} : vector<16x4xf32> -> vector<16x4xf32>
    %505 = arith.mulf %500, %504 : vector<16x4xf32>
    %cst_141 = arith.constant dense<0.000000e+00> : vector<16x128xf32>
    %506 = tpu.matmul %505, %77, %cst_141 {dimension_numbers = #tpu.dot_dimension_numbers<[1], [0], [0], [1], [0, 0, 1, 1], [], []>} : vector<16x4xf32>, vector<4x128xf32>, vector<16x128xf32> -> vector<16x128xf32>
    %507 = vector.extract_strided_slice %465 {offsets = [0, 0], sizes = [16, 128], strides = [1, 1]} : vector<32x128xf32> to vector<16x128xf32>
    %508 = arith.mulf %506, %507 : vector<16x128xf32>
    %509 = arith.mulf %502, %504 : vector<16x4xf32>
    %cst_142 = arith.constant dense<0.000000e+00> : vector<16x128xf32>
    %510 = tpu.matmul %509, %77, %cst_142 {dimension_numbers = #tpu.dot_dimension_numbers<[1], [0], [0], [1], [0, 0, 1, 1], [], []>} : vector<16x4xf32>, vector<4x128xf32>, vector<16x128xf32> -> vector<16x128xf32>
    %511 = vector.extract_strided_slice %465 {offsets = [16, 0], sizes = [16, 128], strides = [1, 1]} : vector<32x128xf32> to vector<16x128xf32>
    %512 = arith.mulf %510, %511 : vector<16x128xf32>
    %513 = arith.addf %508, %512 : vector<16x128xf32>
    %514 = tpu.concatenate %490, %513 in 0 : vector<16x128xf32>, vector<16x128xf32> -> vector<32x128xf32>
    %cst_143 = arith.constant dense<0.000000e+00> : vector<32x128xf32>
    %515 = tpu.matmul %514, %466, %cst_143 {dimension_numbers = #tpu.dot_dimension_numbers<[1], [0], [0], [1], [0, 0, 1, 1], [], []>} : vector<32x128xf32>, vector<128x128xf32>, vector<32x128xf32> -> vector<32x128xf32>
    %516 = vector.broadcast %467 : vector<1x128xf32> to vector<32x128xf32>
    %517 = arith.addf %515, %516 : vector<32x128xf32>
    %518 = arith.addf %453, %517 : vector<32x128xf32>
    %c29 = arith.constant 29 : index
    %c0_144 = arith.constant 0 : index
    %519 = vector.load %arg3[%c29, %c0_144] : memref<35x384xf32, #tpu.memory_space<vmem>>, vector<1x128xf32>
    %c30 = arith.constant 30 : index
    %c0_145 = arith.constant 0 : index
    %520 = vector.load %arg3[%c30, %c0_145] : memref<35x384xf32, #tpu.memory_space<vmem>>, vector<1x128xf32>
    %cst_146 = arith.constant dense<0.000000e+00> : vector<32xf32>
    %521 = vector.multi_reduction <add>, %518, %cst_146 [1] : vector<32x128xf32> to vector<32xf32>
    %522 = vector.shape_cast %521 : vector<32xf32> to vector<32x1xf32>
    %cst_147 = arith.constant 1.280000e+02 : f32
    %523 = vector.broadcast %cst_147 : f32 to vector<32x1xf32>
    %524 = arith.divf %522, %523 : vector<32x1xf32>
    %525 = vector.broadcast %524 : vector<32x1xf32> to vector<32x128xf32>
    %526 = arith.subf %518, %525 : vector<32x128xf32>
    %527 = arith.mulf %526, %526 : vector<32x128xf32>
    %cst_148 = arith.constant dense<0.000000e+00> : vector<32xf32>
    %528 = vector.multi_reduction <add>, %527, %cst_148 [1] : vector<32x128xf32> to vector<32xf32>
    %529 = vector.shape_cast %528 : vector<32xf32> to vector<32x1xf32>
    %cst_149 = arith.constant 1.280000e+02 : f32
    %530 = vector.broadcast %cst_149 : f32 to vector<32x1xf32>
    %531 = arith.divf %529, %530 : vector<32x1xf32>
    %532 = vector.broadcast %524 : vector<32x1xf32> to vector<32x128xf32>
    %533 = arith.subf %518, %532 : vector<32x128xf32>
    %cst_150 = arith.constant 9.99999974E-6 : f32
    %534 = vector.broadcast %cst_150 : f32 to vector<32x1xf32>
    %535 = arith.addf %531, %534 : vector<32x1xf32>
    %536 = math.rsqrt %535 : vector<32x1xf32>
    %537 = vector.broadcast %536 : vector<32x1xf32> to vector<32x128xf32>
    %538 = arith.mulf %533, %537 : vector<32x128xf32>
    %539 = vector.broadcast %519 : vector<1x128xf32> to vector<32x128xf32>
    %540 = arith.mulf %538, %539 : vector<32x128xf32>
    %541 = vector.broadcast %520 : vector<1x128xf32> to vector<32x128xf32>
    %542 = arith.addf %540, %541 : vector<32x128xf32>
    %c2816 = arith.constant 2816 : index
    %c0_151 = arith.constant 0 : index
    %543 = vector.load %arg2[%c2816, %c0_151] : memref<3072x384xf32, #tpu.memory_space<vmem>>, vector<128x128xf32>
    %cst_152 = arith.constant dense<0.000000e+00> : vector<32x128xf32>
    %544 = tpu.matmul %542, %543, %cst_152 {dimension_numbers = #tpu.dot_dimension_numbers<[1], [0], [0], [1], [0, 0, 1, 1], [], []>} : vector<32x128xf32>, vector<128x128xf32>, vector<32x128xf32> -> vector<32x128xf32>
    %c31 = arith.constant 31 : index
    %c0_153 = arith.constant 0 : index
    %545 = vector.load %arg3[%c31, %c0_153] : memref<35x384xf32, #tpu.memory_space<vmem>>, vector<1x128xf32>
    %546 = vector.broadcast %545 : vector<1x128xf32> to vector<32x128xf32>
    %547 = arith.addf %544, %546 : vector<32x128xf32>
    %cst_154 = arith.constant 0.000000e+00 : f32
    %548 = vector.broadcast %cst_154 : f32 to vector<32x128xf32>
    %549 = arith.maximumf %547, %548 : vector<32x128xf32>
    %c2944 = arith.constant 2944 : index
    %c0_155 = arith.constant 0 : index
    %550 = vector.load %arg2[%c2944, %c0_155] : memref<3072x384xf32, #tpu.memory_space<vmem>>, vector<128x128xf32>
    %cst_156 = arith.constant dense<0.000000e+00> : vector<32x128xf32>
    %551 = tpu.matmul %549, %550, %cst_156 {dimension_numbers = #tpu.dot_dimension_numbers<[1], [0], [0], [1], [0, 0, 1, 1], [], []>} : vector<32x128xf32>, vector<128x128xf32>, vector<32x128xf32> -> vector<32x128xf32>
    %c32 = arith.constant 32 : index
    %c0_157 = arith.constant 0 : index
    %552 = vector.load %arg3[%c32, %c0_157] : memref<35x384xf32, #tpu.memory_space<vmem>>, vector<1x128xf32>
    %553 = vector.broadcast %552 : vector<1x128xf32> to vector<32x128xf32>
    %554 = arith.addf %551, %553 : vector<32x128xf32>
    %555 = arith.addf %542, %554 : vector<32x128xf32>
    %c33 = arith.constant 33 : index
    %c0_158 = arith.constant 0 : index
    %556 = vector.load %arg3[%c33, %c0_158] : memref<35x384xf32, #tpu.memory_space<vmem>>, vector<1x128xf32>
    %c34 = arith.constant 34 : index
    %c0_159 = arith.constant 0 : index
    %557 = vector.load %arg3[%c34, %c0_159] : memref<35x384xf32, #tpu.memory_space<vmem>>, vector<1x128xf32>
    %cst_160 = arith.constant dense<0.000000e+00> : vector<32xf32>
    %558 = vector.multi_reduction <add>, %555, %cst_160 [1] : vector<32x128xf32> to vector<32xf32>
    %559 = vector.shape_cast %558 : vector<32xf32> to vector<32x1xf32>
    %cst_161 = arith.constant 1.280000e+02 : f32
    %560 = vector.broadcast %cst_161 : f32 to vector<32x1xf32>
    %561 = arith.divf %559, %560 : vector<32x1xf32>
    %562 = vector.broadcast %561 : vector<32x1xf32> to vector<32x128xf32>
    %563 = arith.subf %555, %562 : vector<32x128xf32>
    %564 = arith.mulf %563, %563 : vector<32x128xf32>
    %cst_162 = arith.constant dense<0.000000e+00> : vector<32xf32>
    %565 = vector.multi_reduction <add>, %564, %cst_162 [1] : vector<32x128xf32> to vector<32xf32>
    %566 = vector.shape_cast %565 : vector<32xf32> to vector<32x1xf32>
    %cst_163 = arith.constant 1.280000e+02 : f32
    %567 = vector.broadcast %cst_163 : f32 to vector<32x1xf32>
    %568 = arith.divf %566, %567 : vector<32x1xf32>
    %569 = vector.broadcast %561 : vector<32x1xf32> to vector<32x128xf32>
    %570 = arith.subf %555, %569 : vector<32x128xf32>
    %cst_164 = arith.constant 9.99999974E-6 : f32
    %571 = vector.broadcast %cst_164 : f32 to vector<32x1xf32>
    %572 = arith.addf %568, %571 : vector<32x1xf32>
    %573 = math.rsqrt %572 : vector<32x1xf32>
    %574 = vector.broadcast %573 : vector<32x1xf32> to vector<32x128xf32>
    %575 = arith.mulf %570, %574 : vector<32x128xf32>
    %576 = vector.broadcast %556 : vector<1x128xf32> to vector<32x128xf32>
    %577 = arith.mulf %575, %576 : vector<32x128xf32>
    %578 = vector.broadcast %557 : vector<1x128xf32> to vector<32x128xf32>
    %579 = arith.addf %577, %578 : vector<32x128xf32>
    %c4_165 = arith.constant 4 : index
    %c0_166 = arith.constant 0 : index
    %580 = vector.load %arg3[%c4_165, %c0_166] : memref<35x384xf32, #tpu.memory_space<vmem>>, vector<1x128xf32>
    %c5_167 = arith.constant 5 : index
    %c0_168 = arith.constant 0 : index
    %581 = vector.load %arg3[%c5_167, %c0_168] : memref<35x384xf32, #tpu.memory_space<vmem>>, vector<1x128xf32>
    %cst_169 = arith.constant dense<0.000000e+00> : vector<32xf32>
    %582 = vector.multi_reduction <add>, %579, %cst_169 [1] : vector<32x128xf32> to vector<32xf32>
    %583 = vector.shape_cast %582 : vector<32xf32> to vector<32x1xf32>
    %cst_170 = arith.constant 1.280000e+02 : f32
    %584 = vector.broadcast %cst_170 : f32 to vector<32x1xf32>
    %585 = arith.divf %583, %584 : vector<32x1xf32>
    %586 = vector.broadcast %585 : vector<32x1xf32> to vector<32x128xf32>
    %587 = arith.subf %579, %586 : vector<32x128xf32>
    %588 = arith.mulf %587, %587 : vector<32x128xf32>
    %cst_171 = arith.constant dense<0.000000e+00> : vector<32xf32>
    %589 = vector.multi_reduction <add>, %588, %cst_171 [1] : vector<32x128xf32> to vector<32xf32>
    %590 = vector.shape_cast %589 : vector<32xf32> to vector<32x1xf32>
    %cst_172 = arith.constant 1.280000e+02 : f32
    %591 = vector.broadcast %cst_172 : f32 to vector<32x1xf32>
    %592 = arith.divf %590, %591 : vector<32x1xf32>
    %593 = vector.broadcast %585 : vector<32x1xf32> to vector<32x128xf32>
    %594 = arith.subf %579, %593 : vector<32x128xf32>
    %cst_173 = arith.constant 9.99999974E-6 : f32
    %595 = vector.broadcast %cst_173 : f32 to vector<32x1xf32>
    %596 = arith.addf %592, %595 : vector<32x1xf32>
    %597 = math.rsqrt %596 : vector<32x1xf32>
    %598 = vector.broadcast %597 : vector<32x1xf32> to vector<32x128xf32>
    %599 = arith.mulf %594, %598 : vector<32x128xf32>
    %600 = vector.broadcast %580 : vector<1x128xf32> to vector<32x128xf32>
    %601 = arith.mulf %599, %600 : vector<32x128xf32>
    %602 = vector.broadcast %581 : vector<1x128xf32> to vector<32x128xf32>
    %603 = arith.addf %601, %602 : vector<32x128xf32>
    %cst_174 = arith.constant 0.000000e+00 : f32
    %604 = vector.broadcast %cst_174 : f32 to vector<32x128xf32>
    %605 = arith.maximumf %603, %604 : vector<32x128xf32>
    %c12_i32 = arith.constant 12 : i32
    %606 = vector.broadcast %c12_i32 : i32 to vector<32x1xi32>
    %607 = arith.cmpi slt, %3, %606 : vector<32x1xi32>
    %608 = arith.extui %607 : vector<32x1xi1> to vector<32x1xi32>
    %609 = arith.sitofp %608 : vector<32x1xi32> to vector<32x1xf32>
    %610 = vector.broadcast %609 : vector<32x1xf32> to vector<32x128xf32>
    %611 = arith.mulf %605, %610 : vector<32x128xf32>
    %c576 = arith.constant 576 : index
    %c0_175 = arith.constant 0 : index
    %612 = vector.load %arg2[%c576, %c0_175] : memref<3072x384xf32, #tpu.memory_space<vmem>>, vector<128x64xf32>
    %c704 = arith.constant 704 : index
    %c0_176 = arith.constant 0 : index
    %613 = vector.load %arg2[%c704, %c0_176] : memref<3072x384xf32, #tpu.memory_space<vmem>>, vector<128x64xf32>
    %c832 = arith.constant 832 : index
    %c0_177 = arith.constant 0 : index
    %614 = vector.load %arg2[%c832, %c0_177] : memref<3072x384xf32, #tpu.memory_space<vmem>>, vector<128x64xf32>
    %c6 = arith.constant 6 : index
    %c0_178 = arith.constant 0 : index
    %615 = vector.load %arg3[%c6, %c0_178] : memref<35x384xf32, #tpu.memory_space<vmem>>, vector<1x64xf32>
    %cst_179 = arith.constant dense<0.000000e+00> : vector<32x64xf32>
    %616 = tpu.matmul %611, %612, %cst_179 {dimension_numbers = #tpu.dot_dimension_numbers<[1], [0], [0], [1], [0, 0, 1, 1], [], []>} : vector<32x128xf32>, vector<128x64xf32>, vector<32x64xf32> -> vector<32x64xf32>
    %cst_180 = arith.constant dense<0.000000e+00> : vector<32x64xf32>
    %617 = tpu.matmul %611, %613, %cst_180 {dimension_numbers = #tpu.dot_dimension_numbers<[1], [0], [0], [1], [0, 0, 1, 1], [], []>} : vector<32x128xf32>, vector<128x64xf32>, vector<32x64xf32> -> vector<32x64xf32>
    %cst_181 = arith.constant dense<0.000000e+00> : vector<32x64xf32>
    %618 = tpu.matmul %36, %617, %cst_181 {dimension_numbers = #tpu.dot_dimension_numbers<[1], [0], [0], [1], [0, 0, 1, 1], [], []>} : vector<32x32xf32>, vector<32x64xf32>, vector<32x64xf32> -> vector<32x64xf32>
    %619 = arith.addf %616, %618 : vector<32x64xf32>
    %cst_182 = arith.constant dense<0.000000e+00> : vector<32x64xf32>
    %620 = tpu.matmul %611, %614, %cst_182 {dimension_numbers = #tpu.dot_dimension_numbers<[1], [0], [0], [1], [0, 0, 1, 1], [], []>} : vector<32x128xf32>, vector<128x64xf32>, vector<32x64xf32> -> vector<32x64xf32>
    %cst_183 = arith.constant dense<0.000000e+00> : vector<32x64xf32>
    %621 = tpu.matmul %47, %620, %cst_183 {dimension_numbers = #tpu.dot_dimension_numbers<[1], [0], [0], [1], [0, 0, 1, 1], [], []>} : vector<32x32xf32>, vector<32x64xf32>, vector<32x64xf32> -> vector<32x64xf32>
    %622 = arith.addf %619, %621 : vector<32x64xf32>
    %623 = vector.broadcast %615 : vector<1x64xf32> to vector<32x64xf32>
    %624 = arith.addf %622, %623 : vector<32x64xf32>
    %c2_184 = arith.constant 2 : index
    %c0_185 = arith.constant 0 : index
    %625 = vector.load %arg3[%c2_184, %c0_185] : memref<35x384xf32, #tpu.memory_space<vmem>>, vector<1x64xf32>
    %c3_186 = arith.constant 3 : index
    %c0_187 = arith.constant 0 : index
    %626 = vector.load %arg3[%c3_186, %c0_187] : memref<35x384xf32, #tpu.memory_space<vmem>>, vector<1x64xf32>
    %cst_188 = arith.constant dense<0.000000e+00> : vector<32xf32>
    %627 = vector.multi_reduction <add>, %624, %cst_188 [1] : vector<32x64xf32> to vector<32xf32>
    %628 = vector.shape_cast %627 : vector<32xf32> to vector<32x1xf32>
    %cst_189 = arith.constant 6.400000e+01 : f32
    %629 = vector.broadcast %cst_189 : f32 to vector<32x1xf32>
    %630 = arith.divf %628, %629 : vector<32x1xf32>
    %631 = vector.broadcast %630 : vector<32x1xf32> to vector<32x64xf32>
    %632 = arith.subf %624, %631 : vector<32x64xf32>
    %633 = arith.mulf %632, %632 : vector<32x64xf32>
    %cst_190 = arith.constant dense<0.000000e+00> : vector<32xf32>
    %634 = vector.multi_reduction <add>, %633, %cst_190 [1] : vector<32x64xf32> to vector<32xf32>
    %635 = vector.shape_cast %634 : vector<32xf32> to vector<32x1xf32>
    %cst_191 = arith.constant 6.400000e+01 : f32
    %636 = vector.broadcast %cst_191 : f32 to vector<32x1xf32>
    %637 = arith.divf %635, %636 : vector<32x1xf32>
    %638 = vector.broadcast %630 : vector<32x1xf32> to vector<32x64xf32>
    %639 = arith.subf %624, %638 : vector<32x64xf32>
    %cst_192 = arith.constant 9.99999974E-6 : f32
    %640 = vector.broadcast %cst_192 : f32 to vector<32x1xf32>
    %641 = arith.addf %637, %640 : vector<32x1xf32>
    %642 = math.rsqrt %641 : vector<32x1xf32>
    %643 = vector.broadcast %642 : vector<32x1xf32> to vector<32x64xf32>
    %644 = arith.mulf %639, %643 : vector<32x64xf32>
    %645 = vector.broadcast %625 : vector<1x64xf32> to vector<32x64xf32>
    %646 = arith.mulf %644, %645 : vector<32x64xf32>
    %647 = vector.broadcast %626 : vector<1x64xf32> to vector<32x64xf32>
    %648 = arith.addf %646, %647 : vector<32x64xf32>
    %cst_193 = arith.constant 0.000000e+00 : f32
    %649 = vector.broadcast %cst_193 : f32 to vector<32x64xf32>
    %650 = arith.maximumf %648, %649 : vector<32x64xf32>
    %c14_i32_194 = arith.constant 14 : i32
    %651 = vector.broadcast %c14_i32_194 : i32 to vector<32x1xi32>
    %652 = arith.cmpi slt, %3, %651 : vector<32x1xi32>
    %653 = arith.extui %652 : vector<32x1xi1> to vector<32x1xi32>
    %654 = arith.sitofp %653 : vector<32x1xi32> to vector<32x1xf32>
    %655 = vector.broadcast %654 : vector<32x1xf32> to vector<32x64xf32>
    %656 = arith.mulf %650, %655 : vector<32x64xf32>
    %c960 = arith.constant 960 : index
    %c0_195 = arith.constant 0 : index
    %657 = vector.load %arg2[%c960, %c0_195] : memref<3072x384xf32, #tpu.memory_space<vmem>>, vector<64x128xf32>
    %c1024 = arith.constant 1024 : index
    %c0_196 = arith.constant 0 : index
    %658 = vector.load %arg2[%c1024, %c0_196] : memref<3072x384xf32, #tpu.memory_space<vmem>>, vector<64x128xf32>
    %c1088 = arith.constant 1088 : index
    %c0_197 = arith.constant 0 : index
    %659 = vector.load %arg2[%c1088, %c0_197] : memref<3072x384xf32, #tpu.memory_space<vmem>>, vector<64x128xf32>
    %c7 = arith.constant 7 : index
    %c0_198 = arith.constant 0 : index
    %660 = vector.load %arg3[%c7, %c0_198] : memref<35x384xf32, #tpu.memory_space<vmem>>, vector<1x128xf32>
    %cst_199 = arith.constant dense<0.000000e+00> : vector<32x128xf32>
    %661 = tpu.matmul %656, %657, %cst_199 {dimension_numbers = #tpu.dot_dimension_numbers<[1], [0], [0], [1], [0, 0, 1, 1], [], []>} : vector<32x64xf32>, vector<64x128xf32>, vector<32x128xf32> -> vector<32x128xf32>
    %cst_200 = arith.constant dense<0.000000e+00> : vector<32x128xf32>
    %662 = tpu.matmul %656, %658, %cst_200 {dimension_numbers = #tpu.dot_dimension_numbers<[1], [0], [0], [1], [0, 0, 1, 1], [], []>} : vector<32x64xf32>, vector<64x128xf32>, vector<32x128xf32> -> vector<32x128xf32>
    %cst_201 = arith.constant dense<0.000000e+00> : vector<32x128xf32>
    %663 = tpu.matmul %36, %662, %cst_201 {dimension_numbers = #tpu.dot_dimension_numbers<[1], [0], [0], [1], [0, 0, 1, 1], [], []>} : vector<32x32xf32>, vector<32x128xf32>, vector<32x128xf32> -> vector<32x128xf32>
    %664 = arith.addf %661, %663 : vector<32x128xf32>
    %cst_202 = arith.constant dense<0.000000e+00> : vector<32x128xf32>
    %665 = tpu.matmul %656, %659, %cst_202 {dimension_numbers = #tpu.dot_dimension_numbers<[1], [0], [0], [1], [0, 0, 1, 1], [], []>} : vector<32x64xf32>, vector<64x128xf32>, vector<32x128xf32> -> vector<32x128xf32>
    %cst_203 = arith.constant dense<0.000000e+00> : vector<32x128xf32>
    %666 = tpu.matmul %47, %665, %cst_203 {dimension_numbers = #tpu.dot_dimension_numbers<[1], [0], [0], [1], [0, 0, 1, 1], [], []>} : vector<32x32xf32>, vector<32x128xf32>, vector<32x128xf32> -> vector<32x128xf32>
    %667 = arith.addf %664, %666 : vector<32x128xf32>
    %668 = vector.broadcast %660 : vector<1x128xf32> to vector<32x128xf32>
    %669 = arith.addf %667, %668 : vector<32x128xf32>
    %c1152 = arith.constant 1152 : index
    %c0_204 = arith.constant 0 : index
    %670 = vector.load %arg2[%c1152, %c0_204] : memref<3072x384xf32, #tpu.memory_space<vmem>>, vector<128x128xf32>
    %cst_205 = arith.constant dense<0.000000e+00> : vector<32x128xf32>
    %671 = tpu.matmul %669, %670, %cst_205 {dimension_numbers = #tpu.dot_dimension_numbers<[1], [0], [0], [1], [0, 0, 1, 1], [], []>} : vector<32x128xf32>, vector<128x128xf32>, vector<32x128xf32> -> vector<32x128xf32>
    %c8 = arith.constant 8 : index
    %c0_206 = arith.constant 0 : index
    %672 = vector.load %arg3[%c8, %c0_206] : memref<35x384xf32, #tpu.memory_space<vmem>>, vector<1x128xf32>
    %673 = vector.broadcast %672 : vector<1x128xf32> to vector<32x128xf32>
    %674 = arith.addf %671, %673 : vector<32x128xf32>
    %c0_207 = arith.constant 0 : index
    %c0_208 = arith.constant 0 : index
    %675 = vector.load %arg4[%c0_207, %c0_208] : memref<32x128xf32, #tpu.memory_space<vmem>>, vector<32x128xf32>
    tpu.vector_store %arg4[%c0_207, %c0_208], %674 {strides = array<i32>} : memref<32x128xf32, #tpu.memory_space<vmem>>, vector<32x128xf32>,
    return
  }
}

</mosaic_0001>

<llo_original>
// kernel: tpu_custom_call.1
$region0: #{tpu_custom_call.1}
  #allocation0 [shape = 'u32[]', space=smem, size = 0x4, offset = 0x4, fixed_abs, tag = 'smem constant byte address 0x4 - core index']
  #allocation1 [shape = 'u32[144,128]{1,0:T(1,128)}', space=vmem, size = 0x12000, scoped, tag = 'internal scratch']
  %s0 = inlined_call_operand.hbm [shape: f32[32,128], index: 0, kind: input, shape index: {}]
  %s1 = inlined_call_operand.hbm [shape: f32[32,128], index: 1, kind: input, shape index: {}]
  %s2 = inlined_call_operand.hbm [shape: f32[3072,384], index: 2, kind: input, shape index: {}]
  %s3 = inlined_call_operand.hbm [shape: f32[35,384], index: 3, kind: input, shape index: {}]
  %s4 = inlined_call_operand.hbm [shape: f32[32,128], index: 4, kind: output, shape index: {}]
  %s5 = sld [smem:[#allocation0]]
  $region42: #{tpu_custom_call.1} parent=0
    _
  %s7 = ssub.s32 1, %s5
  %s8 = scalar_select 0, %s7, %s5
  $region1: #{tpu_custom_call.1} parent=0
    #allocation2 [shape = 'u8[16384]{0}', space=vmem, size = 0x4000, scoped, tag = 'input window, operand 0, single buffered']
    #allocation3 [shape = 's32[1]{0}', space=sflag, size = 0x4, scoped, tag = 'scoped memory for tpu_custom_call.1']
    #allocation4 [shape = 's32[1]{0}', space=sflag, size = 0x4, scoped, tag = 'scoped memory for tpu_custom_call.1']
    #allocation5 [shape = 'u8[16384]{0}', space=vmem, size = 0x4000, scoped, tag = 'input window, operand 1, single buffered']
    #allocation6 [shape = 's32[1]{0}', space=sflag, size = 0x4, scoped, tag = 'scoped memory for tpu_custom_call.1']
    #allocation7 [shape = 'u8[4718592]{0}', space=vmem, size = 0x480000, scoped, tag = 'input window, operand 2, single buffered']
    #allocation8 [shape = 'u8[61440]{0}', space=vmem, size = 0xf000, scoped, tag = 'input window, operand 3, single buffered']
    #allocation9 [shape = 's32[1]{0}', space=sflag, size = 0x4, scoped, tag = 'scoped memory for tpu_custom_call.1']
    #allocation10 [shape = 'u8[16384]{0}', space=vmem, size = 0x4000, scoped, tag = 'output window, operand 0, single buffered']
    %9 = vsyncpa [#allocation3], 0
    %10 = vsyncpa [#allocation6], 0
    %11 = vsyncpa [#allocation9], 0
    %12 = vsyncpa [#allocation4], 0
    // Predicated region
    $region2: #{tpu_custom_call.1} parent=1 // pred_check
      _
    $region3: #{tpu_custom_call.1} parent=1 // pred_check_branch
      %14 = sbr.rel (0) target = $region5
    $region4: #{tpu_custom_call.1} parent=1 // pred_region
      %s16 = ssub.s32 512, 512
      %17 = vsyncadd [#allocation3], %s16
      %s18 = sshll.u32 [#allocation2], 4
      %s19 = int_to_ptr.vmem [resolvable:$true] %s18
      %24 = dma.hbm_to_vmem [thread:$0]  %s0, 512, %s19, [#allocation3], 128, 128, 8
    $region5: #{tpu_custom_call.1} parent=1 // pred_fallthru
      _
    // Predicated region
    $region6: #{tpu_custom_call.1} parent=1 // pred_check
      _
    $region7: #{tpu_custom_call.1} parent=1 // pred_check_branch
      %26 = sbr.rel (0) target = $region9
    $region8: #{tpu_custom_call.1} parent=1 // pred_region
      %s28 = ssub.s32 512, 512
      %29 = vsyncadd [#allocation6], %s28
      %s30 = sshll.u32 [#allocation5], 4
      %s31 = int_to_ptr.vmem [resolvable:$true] %s30
      %36 = dma.hbm_to_vmem [thread:$0]  %s1, 512, %s31, [#allocation6], 128, 128, 8
    $region9: #{tpu_custom_call.1} parent=1 // pred_fallthru
      _
    // Predicated region
    $region10: #{tpu_custom_call.1} parent=1 // pred_check
      _
    $region11: #{tpu_custom_call.1} parent=1 // pred_check_branch
      %38 = sbr.rel (0) target = $region13
    $region12: #{tpu_custom_call.1} parent=1 // pred_region
      %s40 = ssub.s32 147456, 147456
      %41 = vsyncadd [#allocation6], %s40
      %s42 = sshll.u32 [#allocation7], 4
      %s43 = int_to_ptr.vmem [resolvable:$true] %s42
      %48 = dma.hbm_to_vmem [thread:$0]  %s2, 147456, %s43, [#allocation6], 384, 384, 24
    $region13: #{tpu_custom_call.1} parent=1 // pred_fallthru
      _
    // Predicated region
    $region14: #{tpu_custom_call.1} parent=1 // pred_check
      _
    $region15: #{tpu_custom_call.1} parent=1 // pred_check_branch
      %50 = sbr.rel (0) target = $region17
    $region16: #{tpu_custom_call.1} parent=1 // pred_region
      %s52 = ssub.s32 1920, 1920
      %53 = vsyncadd [#allocation9], %s52
      %s54 = sshll.u32 [#allocation8], 4
      %s55 = int_to_ptr.vmem [resolvable:$true] %s54
      %60 = dma.hbm_to_vmem [thread:$0]  %s3, 1920, %s55, [#allocation9], 384, 384, 24
    $region17: #{tpu_custom_call.1} parent=1 // pred_fallthru
      _
    // Predicated region
    $region18: #{tpu_custom_call.1} parent=1 // pred_check
      _
    $region19: #{tpu_custom_call.1} parent=1 // pred_check_branch
      %62 = sbr.rel (0) target = $region21
    $region20: #{tpu_custom_call.1} parent=1 // pred_region
      %63 = dma.done [#allocation3], 512
    $region21: #{tpu_custom_call.1} parent=1 // pred_fallthru
      _
    // Predicated region
    $region22: #{tpu_custom_call.1} parent=1 // pred_check
      _
    $region23: #{tpu_custom_call.1} parent=1 // pred_check_branch
      %65 = sbr.rel (0) target = $region25
    $region24: #{tpu_custom_call.1} parent=1 // pred_region
      %66 = dma.done [#allocation6], 512
    $region25: #{tpu_custom_call.1} parent=1 // pred_fallthru
      _
    // Predicated region
    $region26: #{tpu_custom_call.1} parent=1 // pred_check
      _
    $region27: #{tpu_custom_call.1} parent=1 // pred_check_branch
      %68 = sbr.rel (0) target = $region29
    $region28: #{tpu_custom_call.1} parent=1 // pred_region
      %69 = dma.done [#allocation6], 147456
    $region29: #{tpu_custom_call.1} parent=1 // pred_fallthru
      _
    // Predicated region
    $region30: #{tpu_custom_call.1} parent=1 // pred_check
      _
    $region31: #{tpu_custom_call.1} parent=1 // pred_check_branch
      %71 = sbr.rel (0) target = $region33
    $region32: #{tpu_custom_call.1} parent=1 // pred_region
      %72 = dma.done [#allocation9], 1920
    $region33: #{tpu_custom_call.1} parent=1 // pred_fallthru
      _
    %v73 = vlaneseq
    %v74 = vshrl.u32 %v73, 7
    %v75 = vadd.s32 %v74, 8
    %v76 = vadd.s32 %v74, 16
    %v77 = vadd.s32 %v74, 24
    %v78 = vlaneseq
    %v79 = vand.u32 %v78, 127
    %v80 = vadd.s32 %v74, 1
    %v81 = vadd.s32 %v75, 1
    %v82 = vadd.s32 %v76, 1
    %v83 = vadd.s32 %v77, 1
    %vm84 = vcmp.eq.s32.totalorder %v79, %v80
    %vm85 = vcmp.eq.s32.totalorder %v79, %v81
    %vm86 = vcmp.eq.s32.totalorder %v79, %v82
    %vm87 = vcmp.eq.s32.totalorder %v79, %v83
    %v88 = vsel %vm84, 1, 0
    %v89 = vsel %vm85, 1, 0
    %v90 = vsel %vm86, 1, 0
    %v91 = vsel %vm87, 1, 0
    %v92 = vcvt.s32.f32 %v88
    %v93 = vcvt.s32.f32 %v89
    %v94 = vcvt.s32.f32 %v90
    %v95 = vcvt.s32.f32 %v91
    %vm96 = vcmp.lt.s32.totalorder %v74, 15
    %vm97 = vcmp.lt.s32.totalorder %v75, 15
    %v98 = vsel %vm96, 1, 0
    %v99 = vsel %vm97, 1, 0
    %v100 = vcvt.s32.f32 %v98
    %v101 = vcvt.s32.f32 %v99
    %103 = vset.pattern.permute.xlu0 0
    %104 = vperm.xlu0 %103, %v100
    %v105 = vpop.permute.xlu0 %104
    %108 = vset.pattern.permute.xlu0 0
    %109 = vperm.xlu0 %108, %v101
    %v110 = vpop.permute.xlu0 %109
    %v112 = vmul.f32 %v92, %v105
    %v113 = vmul.f32 %v93, %v110
    %v114 = vmul.f32 %v94, %v105
    %v115 = vmul.f32 %v95, %v110
    %v116 = vadd.s32 %v74, 2
    %v117 = vadd.s32 %v75, 2
    %v118 = vadd.s32 %v76, 2
    %v119 = vadd.s32 %v77, 2
    %vm120 = vcmp.eq.s32.totalorder %v79, %v116
    %vm121 = vcmp.eq.s32.totalorder %v79, %v117
    %vm122 = vcmp.eq.s32.totalorder %v79, %v118
    %vm123 = vcmp.eq.s32.totalorder %v79, %v119
    %v124 = vsel %vm120, 1, 0
    %v125 = vsel %vm121, 1, 0
    %v126 = vsel %vm122, 1, 0
    %v127 = vsel %vm123, 1, 0
    %v128 = vcvt.s32.f32 %v124
    %v129 = vcvt.s32.f32 %v125
    %v130 = vcvt.s32.f32 %v126
    %v131 = vcvt.s32.f32 %v127
    %vm132 = vcmp.lt.s32.totalorder %v74, 14
    %vm133 = vcmp.lt.s32.totalorder %v75, 14
    %v134 = vsel %vm132, 1, 0
    %v135 = vsel %vm133, 1, 0
    %v136 = vcvt.s32.f32 %v134
    %v137 = vcvt.s32.f32 %v135
    %139 = vset.pattern.permute.xlu0 0
    %140 = vperm.xlu0 %139, %v136
    %v141 = vpop.permute.xlu0 %140
    %144 = vset.pattern.permute.xlu0 0
    %145 = vperm.xlu0 %144, %v137
    %v146 = vpop.permute.xlu0 %145
    %v148 = vmul.f32 %v128, %v141
    %v149 = vmul.f32 %v129, %v146
    %v150 = vmul.f32 %v130, %v141
    %v151 = vmul.f32 %v131, %v146
    %v152 = vsub.s32 %v74, 1
    %v153 = vsub.s32 %v75, 1
    %v154 = vsub.s32 %v76, 1
    %v155 = vsub.s32 %v77, 1
    %vm156 = vcmp.eq.s32.totalorder %v79, %v152
    %vm157 = vcmp.eq.s32.totalorder %v79, %v153
    %vm158 = vcmp.eq.s32.totalorder %v79, %v154
    %vm159 = vcmp.eq.s32.totalorder %v79, %v155
    %v160 = vsel %vm156, 1, 0
    %v161 = vsel %vm157, 1, 0
    %v162 = vsel %vm158, 1, 0
    %v163 = vsel %vm159, 1, 0
    %v164 = vcvt.s32.f32 %v160
    %v165 = vcvt.s32.f32 %v161
    %v166 = vcvt.s32.f32 %v162
    %v167 = vcvt.s32.f32 %v163
    %vm168 = vcmp.ge.s32.totalorder %v74, 1
    %vm169 = vcmp.ge.s32.totalorder %v75, 1
    %v170 = vsel %vm168, 1, 0
    %v171 = vsel %vm169, 1, 0
    %v172 = vcvt.s32.f32 %v170
    %v173 = vcvt.s32.f32 %v171
    %175 = vset.pattern.permute.xlu0 0
    %176 = vperm.xlu0 %175, %v172
    %v177 = vpop.permute.xlu0 %176
    %180 = vset.pattern.permute.xlu0 0
    %181 = vperm.xlu0 %180, %v173
    %v182 = vpop.permute.xlu0 %181
    %v184 = vmul.f32 %v164, %v177
    %v185 = vmul.f32 %v165, %v182
    %v186 = vmul.f32 %v166, %v177
    %v187 = vmul.f32 %v167, %v182
    %v188 = vsub.s32 %v74, 2
    %v189 = vsub.s32 %v75, 2
    %v190 = vsub.s32 %v76, 2
    %v191 = vsub.s32 %v77, 2
    %vm192 = vcmp.eq.s32.totalorder %v79, %v188
    %vm193 = vcmp.eq.s32.totalorder %v79, %v189
    %vm194 = vcmp.eq.s32.totalorder %v79, %v190
    %vm195 = vcmp.eq.s32.totalorder %v79, %v191
    %v196 = vsel %vm192, 1, 0
    %v197 = vsel %vm193, 1, 0
    %v198 = vsel %vm194, 1, 0
    %v199 = vsel %vm195, 1, 0
    %v200 = vcvt.s32.f32 %v196
    %v201 = vcvt.s32.f32 %v197
    %v202 = vcvt.s32.f32 %v198
    %v203 = vcvt.s32.f32 %v199
    %vm204 = vcmp.ge.s32.totalorder %v74, 2
    %vm205 = vcmp.ge.s32.totalorder %v75, 2
    %v206 = vsel %vm204, 1, 0
    %v207 = vsel %vm205, 1, 0
    %v208 = vcvt.s32.f32 %v206
    %v209 = vcvt.s32.f32 %v207
    %211 = vset.pattern.permute.xlu0 0
    %212 = vperm.xlu0 %211, %v208
    %v213 = vpop.permute.xlu0 %212
    %216 = vset.pattern.permute.xlu0 0
    %217 = vperm.xlu0 %216, %v209
    %v218 = vpop.permute.xlu0 %217
    %v220 = vmul.f32 %v200, %v213
    %v221 = vmul.f32 %v201, %v218
    %v222 = vmul.f32 %v202, %v213
    %v223 = vmul.f32 %v203, %v218
    %v224 = vadd.s32 %v74, 32
    %v225 = vadd.s32 %v74, 40
    %v226 = vadd.s32 %v74, 48
    %v227 = vadd.s32 %v74, 56
    %v228 = vadd.s32 %v74, 64
    %v229 = vadd.s32 %v74, 72
    %v230 = vadd.s32 %v74, 80
    %v231 = vadd.s32 %v74, 88
    %v232 = vadd.s32 %v74, 96
    %v233 = vadd.s32 %v74, 104
    %v234 = vadd.s32 %v74, 112
    %v235 = vadd.s32 %v74, 120
    %v236 = vmul.u32 %v79, 32
    %vm237 = vcmp.ge.s32.totalorder %v74, %v236
    %vm238 = vcmp.ge.s32.totalorder %v75, %v236
    %vm239 = vcmp.ge.s32.totalorder %v76, %v236
    %vm240 = vcmp.ge.s32.totalorder %v77, %v236
    %vm241 = vcmp.ge.s32.totalorder %v224, %v236
    %vm242 = vcmp.ge.s32.totalorder %v225, %v236
    %vm243 = vcmp.ge.s32.totalorder %v226, %v236
    %vm244 = vcmp.ge.s32.totalorder %v227, %v236
    %vm245 = vcmp.ge.s32.totalorder %v228, %v236
    %vm246 = vcmp.ge.s32.totalorder %v229, %v236
    %vm247 = vcmp.ge.s32.totalorder %v230, %v236
    %vm248 = vcmp.ge.s32.totalorder %v231, %v236
    %vm249 = vcmp.ge.s32.totalorder %v232, %v236
    %vm250 = vcmp.ge.s32.totalorder %v233, %v236
    %vm251 = vcmp.ge.s32.totalorder %v234, %v236
    %vm252 = vcmp.ge.s32.totalorder %v235, %v236
    %v253 = vsel %vm237, 1, 0
    %v254 = vsel %vm238, 1, 0
    %v255 = vsel %vm239, 1, 0
    %v256 = vsel %vm240, 1, 0
    %v257 = vsel %vm241, 1, 0
    %v258 = vsel %vm242, 1, 0
    %v259 = vsel %vm243, 1, 0
    %v260 = vsel %vm244, 1, 0
    %v261 = vsel %vm245, 1, 0
    %v262 = vsel %vm246, 1, 0
    %v263 = vsel %vm247, 1, 0
    %v264 = vsel %vm248, 1, 0
    %v265 = vsel %vm249, 1, 0
    %v266 = vsel %vm250, 1, 0
    %v267 = vsel %vm251, 1, 0
    %v268 = vsel %vm252, 1, 0
    %v269 = vcvt.s32.f32 %v253
    %v270 = vcvt.s32.f32 %v254
    %v271 = vcvt.s32.f32 %v255
    %v272 = vcvt.s32.f32 %v256
    %v273 = vcvt.s32.f32 %v257
    %v274 = vcvt.s32.f32 %v258
    %v275 = vcvt.s32.f32 %v259
    %v276 = vcvt.s32.f32 %v260
    %v277 = vcvt.s32.f32 %v261
    %v278 = vcvt.s32.f32 %v262
    %v279 = vcvt.s32.f32 %v263
    %v280 = vcvt.s32.f32 %v264
    %v281 = vcvt.s32.f32 %v265
    %v282 = vcvt.s32.f32 %v266
    %v283 = vcvt.s32.f32 %v267
    %v284 = vcvt.s32.f32 %v268
    %v285 = vadd.s32 %v79, 1
    %v286 = vmul.u32 %v285, 32
    %vm287 = vcmp.lt.s32.totalorder %v74, %v286
    %vm288 = vcmp.lt.s32.totalorder %v75, %v286
    %vm289 = vcmp.lt.s32.totalorder %v76, %v286
    %vm290 = vcmp.lt.s32.totalorder %v77, %v286
    %vm291 = vcmp.lt.s32.totalorder %v224, %v286
    %vm292 = vcmp.lt.s32.totalorder %v225, %v286
    %vm293 = vcmp.lt.s32.totalorder %v226, %v286
    %vm294 = vcmp.lt.s32.totalorder %v227, %v286
    %vm295 = vcmp.lt.s32.totalorder %v228, %v286
    %vm296 = vcmp.lt.s32.totalorder %v229, %v286
    %vm297 = vcmp.lt.s32.totalorder %v230, %v286
    %vm298 = vcmp.lt.s32.totalorder %v231, %v286
    %vm299 = vcmp.lt.s32.totalorder %v232, %v286
    %vm300 = vcmp.lt.s32.totalorder %v233, %v286
    %vm301 = vcmp.lt.s32.totalorder %v234, %v286
    %vm302 = vcmp.lt.s32.totalorder %v235, %v286
    %v303 = vsel %vm287, 1, 0
    %v304 = vsel %vm288, 1, 0
    %v305 = vsel %vm289, 1, 0
    %v306 = vsel %vm290, 1, 0
    %v307 = vsel %vm291, 1, 0
    %v308 = vsel %vm292, 1, 0
    %v309 = vsel %vm293, 1, 0
    %v310 = vsel %vm294, 1, 0
    %v311 = vsel %vm295, 1, 0
    %v312 = vsel %vm296, 1, 0
    %v313 = vsel %vm297, 1, 0
    %v314 = vsel %vm298, 1, 0
    %v315 = vsel %vm299, 1, 0
    %v316 = vsel %vm300, 1, 0
    %v317 = vsel %vm301, 1, 0
    %v318 = vsel %vm302, 1, 0
    %v319 = vcvt.s32.f32 %v303
    %v320 = vcvt.s32.f32 %v304
    %v321 = vcvt.s32.f32 %v305
    %v322 = vcvt.s32.f32 %v306
    %v323 = vcvt.s32.f32 %v307
    %v324 = vcvt.s32.f32 %v308
    %v325 = vcvt.s32.f32 %v309
    %v326 = vcvt.s32.f32 %v310
    %v327 = vcvt.s32.f32 %v311
    %v328 = vcvt.s32.f32 %v312
    %v329 = vcvt.s32.f32 %v313
    %v330 = vcvt.s32.f32 %v314
    %v331 = vcvt.s32.f32 %v315
    %v332 = vcvt.s32.f32 %v316
    %v333 = vcvt.s32.f32 %v317
    %v334 = vcvt.s32.f32 %v318
    %v335 = vmul.f32 %v269, %v319
    %v336 = vmul.f32 %v270, %v320
    %v337 = vmul.f32 %v271, %v321
    %v338 = vmul.f32 %v272, %v322
    %v339 = vmul.f32 %v273, %v323
    %v340 = vmul.f32 %v274, %v324
    %v341 = vmul.f32 %v275, %v325
    %v342 = vmul.f32 %v276, %v326
    %v343 = vmul.f32 %v277, %v327
    %v344 = vmul.f32 %v278, %v328
    %v345 = vmul.f32 %v279, %v329
    %v346 = vmul.f32 %v280, %v330
    %v347 = vmul.f32 %v281, %v331
    %v348 = vmul.f32 %v282, %v332
    %v349 = vmul.f32 %v283, %v333
    %v350 = vmul.f32 %v284, %v334
    %v351 = vmul.u32 %v74, 32
    %vm352 = vcmp.ge.s32.totalorder %v79, %v351
    %v353 = vsel %vm352, 1, 0
    %v354 = vcvt.s32.f32 %v353
    %v355 = vmul.u32 %v80, 32
    %vm356 = vcmp.lt.s32.totalorder %v79, %v355
    %v357 = vsel %vm356, 1, 0
    %v358 = vcvt.s32.f32 %v357
    %v359 = vmul.f32 %v354, %v358
    %v360 = vld [vmem:[#allocation2] sm:$0xff]
    %v361 = vld [vmem:[#allocation2 + $0x8] sm:$0xff]
    %v362 = vld [vmem:[#allocation2 + $0x10] sm:$0xff]
    %v363 = vld [vmem:[#allocation2 + $0x18] sm:$0xff]
    %v364 = vld [vmem:[#allocation5] sm:$0xff]
    %v365 = vld [vmem:[#allocation5 + $0x8] sm:$0xff]
    %v366 = vld [vmem:[#allocation5 + $0x10] sm:$0xff]
    %v367 = vld [vmem:[#allocation5 + $0x18] sm:$0xff]
    %v368 = vld [vmem:[#allocation7] sm:$0xff]
    %v369 = vld [vmem:[#allocation7 + $0x18] sm:$0xff]
    %v370 = vld [vmem:[#allocation7 + $0x30] sm:$0xff]
    %v371 = vld [vmem:[#allocation7 + $0x48] sm:$0xff]
    %v372 = vld [vmem:[#allocation7 + $0x60] sm:$0xff]
    %v373 = vld [vmem:[#allocation7 + $0x78] sm:$0xff]
    %v374 = vld [vmem:[#allocation7 + $0x90] sm:$0xff]
    %v375 = vld [vmem:[#allocation7 + $0xa8] sm:$0xff]
    %v376 = vld [vmem:[#allocation7 + $0xc0] sm:$0xff]
    %v377 = vld [vmem:[#allocation7 + $0xd8] sm:$0xff]
    %v378 = vld [vmem:[#allocation7 + $0xf0] sm:$0xff]
    %v379 = vld [vmem:[#allocation7 + $0x108] sm:$0xff]
    %v380 = vld [vmem:[#allocation7 + $0x120] sm:$0xff]
    %v381 = vld [vmem:[#allocation7 + $0x138] sm:$0xff]
    %v382 = vld [vmem:[#allocation7 + $0x150] sm:$0xff]
    %v383 = vld [vmem:[#allocation7 + $0x168] sm:$0xff]
    %v384 = vld [vmem:[#allocation7 + $0x180] sm:$0xff]
    %v385 = vld [vmem:[#allocation7 + $0x198] sm:$0xff]
    %v386 = vld [vmem:[#allocation7 + $0x1b0] sm:$0xff]
    %v387 = vld [vmem:[#allocation7 + $0x1c8] sm:$0xff]
    %v388 = vld [vmem:[#allocation7 + $0x1e0] sm:$0xff]
    %v389 = vld [vmem:[#allocation7 + $0x1f8] sm:$0xff]
    %v390 = vld [vmem:[#allocation7 + $0x210] sm:$0xff]
    %v391 = vld [vmem:[#allocation7 + $0x228] sm:$0xff]
    %v392 = vld [vmem:[#allocation7 + $0x240] sm:$0xff]
    %v393 = vld [vmem:[#allocation7 + $0x258] sm:$0xff]
    %v394 = vld [vmem:[#allocation7 + $0x270] sm:$0xff]
    %v395 = vld [vmem:[#allocation7 + $0x288] sm:$0xff]
    %v396 = vld [vmem:[#allocation7 + $0x2a0] sm:$0xff]
    %v397 = vld [vmem:[#allocation7 + $0x2b8] sm:$0xff]
    %v398 = vld [vmem:[#allocation7 + $0x2d0] sm:$0xff]
    %v399 = vld [vmem:[#allocation7 + $0x2e8] sm:$0xff]
    %v400 = vld [vmem:[#allocation7 + $0x300] sm:$0xff]
    %v401 = vld [vmem:[#allocation7 + $0x318] sm:$0xff]
    %v402 = vld [vmem:[#allocation7 + $0x330] sm:$0xff]
    %v403 = vld [vmem:[#allocation7 + $0x348] sm:$0xff]
    %v404 = vld [vmem:[#allocation7 + $0x360] sm:$0xff]
    %v405 = vld [vmem:[#allocation7 + $0x378] sm:$0xff]
    %v406 = vld [vmem:[#allocation7 + $0x390] sm:$0xff]
    %v407 = vld [vmem:[#allocation7 + $0x3a8] sm:$0xff]
    %v408 = vld [vmem:[#allocation7 + $0x3c0] sm:$0xff]
    %v409 = vld [vmem:[#allocation7 + $0x3d8] sm:$0xff]
    %v410 = vld [vmem:[#allocation7 + $0x3f0] sm:$0xff]
    %v411 = vld [vmem:[#allocation7 + $0x408] sm:$0xff]
    %v412 = vld [vmem:[#allocation7 + $0x420] sm:$0xff]
    %v413 = vld [vmem:[#allocation7 + $0x438] sm:$0xff]
    %v414 = vld [vmem:[#allocation7 + $0x450] sm:$0xff]
    %v415 = vld [vmem:[#allocation7 + $0x468] sm:$0xff]
    %v416 = vld [vmem:[#allocation8] ss:$0 sm:$0xff]
    %417 = vmatprep.subr.mxu0 0.0
    %418 = vmatpush1.msra.mxu0 %v384
    %419 = vmatprep.subr.mxu0 0.0
    %420 = vmatpush1.msra.mxu0 %v385
    %421 = vmatprep.subr.mxu0 0.0
    %422 = vmatpush1.msra.mxu0 %v386
    %423 = vmatprep.subr.mxu0 0.0
    %424 = vmatpush1.msra.mxu0 %v387
    %425 = vmatprep.subr.mxu0 0.0
    %426 = vmatpush1.msra.mxu0 %v388
    %427 = vmatprep.subr.mxu0 0.0
    %428 = vmatpush1.msra.mxu0 %v389
    %429 = vmatprep.subr.mxu0 0.0
    %430 = vmatpush1.msra.mxu0 %v390
    %431 = vmatprep.subr.mxu0 0.0
    %432 = vmatpush1.msra.mxu0 %v391
    %433 = vmatprep.subr.mxu0 0.0
    %434 = vmatpush1.msra.mxu0 %v392
    %435 = vmatprep.subr.mxu0 0.0
    %436 = vmatpush1.msra.mxu0 %v393
    %437 = vmatprep.subr.mxu0 0.0
    %438 = vmatpush1.msra.mxu0 %v394
    %439 = vmatprep.subr.mxu0 0.0
    %440 = vmatpush1.msra.mxu0 %v395
    %441 = vmatprep.subr.mxu0 0.0
    %442 = vmatpush1.msra.mxu0 %v396
    %443 = vmatprep.subr.mxu0 0.0
    %444 = vmatpush1.msra.mxu0 %v397
    %445 = vmatprep.subr.mxu0 0.0
    %446 = vmatpush1.msra.mxu0 %v398
    %447 = vmatprep.subr.mxu0 0.0
    %448 = vmatpush1.msra.mxu0 %v399
    %449 = vmatprep.subr.mxu0 0.0
    %450 = vmatpush1.msra.mxu0 0.0
    %451 = vmatprep.subr.mxu0 0.0
    %452 = vmatpush1.msra.mxu0 0.0
    %453 = vmatprep.subr.mxu0 0.0
    %454 = vmatpush1.msra.mxu0 0.0
    %455 = vmatprep.subr.mxu0 0.0
    %456 = vmatpush1.msra.mxu0 0.0
    %457 = vmatprep.subr.mxu0 0.0
    %458 = vmatpush1.msra.mxu0 0.0
    %459 = vmatprep.subr.mxu0 0.0
    %460 = vmatpush1.msra.mxu0 0.0
    %461 = vmatprep.subr.mxu0 0.0
    %462 = vmatpush1.msra.mxu0 0.0
    %463 = vmatprep.subr.mxu0 0.0
    %464 = vmatpush1.msra.mxu0 0.0
    %465 = vmatprep.subr.mxu0 0.0
    %466 = vmatpush1.msra.mxu0 0.0
    %467 = vmatprep.subr.mxu0 0.0
    %468 = vmatpush1.msra.mxu0 0.0
    %469 = vmatprep.subr.mxu0 0.0
    %470 = vmatpush1.msra.mxu0 0.0
    %471 = vmatprep.subr.mxu0 0.0
    %472 = vmatpush1.msra.mxu0 0.0
    %473 = vmatprep.subr.mxu0 0.0
    %474 = vmatpush1.msra.mxu0 0.0
    %475 = vmatprep.subr.mxu0 0.0
    %476 = vmatpush1.msra.mxu0 0.0
    %477 = vmatprep.subr.mxu0 0.0
    %478 = vmatpush1.msra.mxu0 0.0
    %479 = vmatprep.subr.mxu0 0.0
    %480 = vmatpush1.msra.mxu0 0.0
    %481 = vmatprep.mubr.f32.mxu0 0.0
    %482 = vmatmul.mubr.f32.gmra.mrb[0].mxu0 %v360
    %v483 = vpop.f32.mrb[0].mxu0
    %v484 = vadd.f32 0.0, %v483
    %v485 = vpop.f32.mrb[0].mxu0
    %486 = vmatprep.mubr.f32.mxu0 0.0
    %487 = vmatmul.mubr.f32.gmra.mrb[0].mxu0 %v361
    %v488 = vpop.f32.mrb[0].mxu0
    %v489 = vadd.f32 0.0, %v488
    %v490 = vpop.f32.mrb[0].mxu0
    %491 = vmatprep.mubr.f32.mxu0 0.0
    %492 = vmatmul.mubr.f32.gmra.mrb[0].mxu0 %v362
    %v493 = vpop.f32.mrb[0].mxu0
    %v494 = vadd.f32 0.0, %v493
    %v495 = vpop.f32.mrb[0].mxu0
    %496 = vmatprep.mubr.f32.mxu0 0.0
    %497 = vmatmul.mubr.f32.gmra.mrb[0].mxu0 %v363
    %v498 = vpop.f32.mrb[0].mxu0
    %v499 = vadd.f32 0.0, %v498
    %v500 = vpop.f32.mrb[0].mxu0
    %501 = vdwg.mxu0
    %vm502 = vcmask 261120
    %v504 = vsel %vm502, %v112, 0
    %v507 = vsel %vm502, %v113, 0
    %v510 = vsel %vm502, %v114, 0
    %v513 = vsel %vm502, %v115, 0
    %515 = vmatprep.subr.mxu0 0.0
    %516 = vmatpush1.msra.mxu0 %v484
    %517 = vmatprep.subr.mxu0 0.0
    %518 = vmatpush1.msra.mxu0 %v489
    %519 = vmatprep.subr.mxu0 0.0
    %520 = vmatpush1.msra.mxu0 %v494
    %521 = vmatprep.subr.mxu0 0.0
    %522 = vmatpush1.msra.mxu0 %v499
    %523 = vmatprep.subr.mxu0 0.0
    %524 = vmatpush1.msra.mxu0 0.0
    %525 = vmatprep.subr.mxu0 0.0
    %526 = vmatpush1.msra.mxu0 0.0
    %527 = vmatprep.subr.mxu0 0.0
    %528 = vmatpush1.msra.mxu0 0.0
    %529 = vmatprep.subr.mxu0 0.0
    %530 = vmatpush1.msra.mxu0 0.0
    %531 = vmatprep.subr.mxu0 0.0
    %532 = vmatpush1.msra.mxu0 0.0
    %533 = vmatprep.subr.mxu0 0.0
    %534 = vmatpush1.msra.mxu0 0.0
    %535 = vmatprep.subr.mxu0 0.0
    %536 = vmatpush1.msra.mxu0 0.0
    %537 = vmatprep.subr.mxu0 0.0
    %538 = vmatpush1.msra.mxu0 0.0
    %539 = vmatprep.subr.mxu0 0.0
    %540 = vmatpush1.msra.mxu0 0.0
    %541 = vmatprep.subr.mxu0 0.0
    %542 = vmatpush1.msra.mxu0 0.0
    %543 = vmatprep.subr.mxu0 0.0
    %544 = vmatpush1.msra.mxu0 0.0
    %545 = vmatprep.subr.mxu0 0.0
    %546 = vmatpush1.msra.mxu0 0.0
    %547 = vmatprep.subr.mxu0 0.0
    %548 = vmatpush1.msra.mxu0 0.0
    %549 = vmatprep.subr.mxu0 0.0
    %550 = vmatpush1.msra.mxu0 0.0
    %551 = vmatprep.subr.mxu0 0.0
    %552 = vmatpush1.msra.mxu0 0.0
    %553 = vmatprep.subr.mxu0 0.0
    %554 = vmatpush1.msra.mxu0 0.0
    %555 = vmatprep.subr.mxu0 0.0
    %556 = vmatpush1.msra.mxu0 0.0
    %557 = vmatprep.subr.mxu0 0.0
    %558 = vmatpush1.msra.mxu0 0.0
    %559 = vmatprep.subr.mxu0 0.0
    %560 = vmatpush1.msra.mxu0 0.0
    %561 = vmatprep.subr.mxu0 0.0
    %562 = vmatpush1.msra.mxu0 0.0
    %563 = vmatprep.subr.mxu0 0.0
    %564 = vmatpush1.msra.mxu0 0.0
    %565 = vmatprep.subr.mxu0 0.0
    %566 = vmatpush1.msra.mxu0 0.0
    %567 = vmatprep.subr.mxu0 0.0
    %568 = vmatpush1.msra.mxu0 0.0
    %569 = vmatprep.subr.mxu0 0.0
    %570 = vmatpush1.msra.mxu0 0.0
    %571 = vmatprep.subr.mxu0 0.0
    %572 = vmatpush1.msra.mxu0 0.0
    %573 = vmatprep.subr.mxu0 0.0
    %574 = vmatpush1.msra.mxu0 0.0
    %575 = vmatprep.subr.mxu0 0.0
    %576 = vmatpush1.msra.mxu0 0.0
    %577 = vmatprep.subr.mxu0 0.0
    %578 = vmatpush1.msra.mxu0 0.0
    %579 = vmatprep.mubr.f32.mxu0 0.0
    %580 = vmatmul.mubr.f32.gmra.mrb[0].mxu0 %v504
    %v581 = vpop.f32.mrb[0].mxu0
    %v582 = vadd.f32 0.0, %v581
    %v583 = vpop.f32.mrb[0].mxu0
    %584 = vmatprep.mubr.f32.mxu0 0.0
    %585 = vmatmul.mubr.f32.gmra.mrb[0].mxu0 %v507
    %v586 = vpop.f32.mrb[0].mxu0
    %v587 = vadd.f32 0.0, %v586
    %v588 = vpop.f32.mrb[0].mxu0
    %589 = vmatprep.mubr.f32.mxu0 0.0
    %590 = vmatmul.mubr.f32.gmra.mrb[0].mxu0 %v510
    %v591 = vpop.f32.mrb[0].mxu0
    %v592 = vadd.f32 0.0, %v591
    %v593 = vpop.f32.mrb[0].mxu0
    %594 = vmatprep.mubr.f32.mxu0 0.0
    %595 = vmatmul.mubr.f32.gmra.mrb[0].mxu0 %v513
    %v596 = vpop.f32.mrb[0].mxu0
    %v597 = vadd.f32 0.0, %v596
    %v598 = vpop.f32.mrb[0].mxu0
    %599 = vdwg.mxu0
    %600 = vmatprep.subr.mxu0 0.0
    %601 = vmatpush1.msra.mxu0 %v368
    %602 = vmatprep.subr.mxu0 0.0
    %603 = vmatpush1.msra.mxu0 %v369
    %604 = vmatprep.subr.mxu0 0.0
    %605 = vmatpush1.msra.mxu0 %v370
    %606 = vmatprep.subr.mxu0 0.0
    %607 = vmatpush1.msra.mxu0 %v371
    %608 = vmatprep.subr.mxu0 0.0
    %609 = vmatpush1.msra.mxu0 %v372
    %610 = vmatprep.subr.mxu0 0.0
    %611 = vmatpush1.msra.mxu0 %v373
    %612 = vmatprep.subr.mxu0 0.0
    %613 = vmatpush1.msra.mxu0 %v374
    %614 = vmatprep.subr.mxu0 0.0
    %615 = vmatpush1.msra.mxu0 %v375
    %616 = vmatprep.subr.mxu0 0.0
    %617 = vmatpush1.msra.mxu0 %v376
    %618 = vmatprep.subr.mxu0 0.0
    %619 = vmatpush1.msra.mxu0 %v377
    %620 = vmatprep.subr.mxu0 0.0
    %621 = vmatpush1.msra.mxu0 %v378
    %622 = vmatprep.subr.mxu0 0.0
    %623 = vmatpush1.msra.mxu0 %v379
    %624 = vmatprep.subr.mxu0 0.0
    %625 = vmatpush1.msra.mxu0 %v380
    %626 = vmatprep.subr.mxu0 0.0
    %627 = vmatpush1.msra.mxu0 %v381
    %628 = vmatprep.subr.mxu0 0.0
    %629 = vmatpush1.msra.mxu0 %v382
    %630 = vmatprep.subr.mxu0 0.0
    %631 = vmatpush1.msra.mxu0 %v383
    %632 = vmatprep.subr.mxu0 0.0
    %633 = vmatpush1.msra.mxu0 0.0
    %634 = vmatprep.subr.mxu0 0.0
    %635 = vmatpush1.msra.mxu0 0.0
    %636 = vmatprep.subr.mxu0 0.0
    %637 = vmatpush1.msra.mxu0 0.0
    %638 = vmatprep.subr.mxu0 0.0
    %639 = vmatpush1.msra.mxu0 0.0
    %640 = vmatprep.subr.mxu0 0.0
    %641 = vmatpush1.msra.mxu0 0.0
    %642 = vmatprep.subr.mxu0 0.0
    %643 = vmatpush1.msra.mxu0 0.0
    %644 = vmatprep.subr.mxu0 0.0
    %645 = vmatpush1.msra.mxu0 0.0
    %646 = vmatprep.subr.mxu0 0.0
    %647 = vmatpush1.msra.mxu0 0.0
    %648 = vmatprep.subr.mxu0 0.0
    %649 = vmatpush1.msra.mxu0 0.0
    %650 = vmatprep.subr.mxu0 0.0
    %651 = vmatpush1.msra.mxu0 0.0
    %652 = vmatprep.subr.mxu0 0.0
    %653 = vmatpush1.msra.mxu0 0.0
    %654 = vmatprep.subr.mxu0 0.0
    %655 = vmatpush1.msra.mxu0 0.0
    %656 = vmatprep.subr.mxu0 0.0
    %657 = vmatpush1.msra.mxu0 0.0
    %658 = vmatprep.subr.mxu0 0.0
    %659 = vmatpush1.msra.mxu0 0.0
    %660 = vmatprep.subr.mxu0 0.0
    %661 = vmatpush1.msra.mxu0 0.0
    %662 = vmatprep.subr.mxu0 0.0
    %663 = vmatpush1.msra.mxu0 0.0
    %664 = vmatprep.mubr.f32.mxu0 0.0
    %665 = vmatmul.mubr.f32.gmra.mrb[0].mxu0 %v360
    %v666 = vpop.f32.mrb[0].mxu0
    %v667 = vadd.f32 %v582, %v666
    %v668 = vpop.f32.mrb[0].mxu0
    %669 = vmatprep.mubr.f32.mxu0 0.0
    %670 = vmatmul.mubr.f32.gmra.mrb[0].mxu0 %v361
    %v671 = vpop.f32.mrb[0].mxu0
    %v672 = vadd.f32 %v587, %v671
    %v673 = vpop.f32.mrb[0].mxu0
    %674 = vmatprep.mubr.f32.mxu0 0.0
    %675 = vmatmul.mubr.f32.gmra.mrb[0].mxu0 %v362
    %v676 = vpop.f32.mrb[0].mxu0
    %v677 = vadd.f32 %v592, %v676
    %v678 = vpop.f32.mrb[0].mxu0
    %679 = vmatprep.mubr.f32.mxu0 0.0
    %680 = vmatmul.mubr.f32.gmra.mrb[0].mxu0 %v363
    %v681 = vpop.f32.mrb[0].mxu0
    %v682 = vadd.f32 %v597, %v681
    %v683 = vpop.f32.mrb[0].mxu0
    %684 = vdwg.mxu0
    %685 = vmatprep.subr.mxu0 0.0
    %686 = vmatpush1.msra.mxu0 %v400
    %687 = vmatprep.subr.mxu0 0.0
    %688 = vmatpush1.msra.mxu0 %v401
    %689 = vmatprep.subr.mxu0 0.0
    %690 = vmatpush1.msra.mxu0 %v402
    %691 = vmatprep.subr.mxu0 0.0
    %692 = vmatpush1.msra.mxu0 %v403
    %693 = vmatprep.subr.mxu0 0.0
    %694 = vmatpush1.msra.mxu0 %v404
    %695 = vmatprep.subr.mxu0 0.0
    %696 = vmatpush1.msra.mxu0 %v405
    %697 = vmatprep.subr.mxu0 0.0
    %698 = vmatpush1.msra.mxu0 %v406
    %699 = vmatprep.subr.mxu0 0.0
    %700 = vmatpush1.msra.mxu0 %v407
    %701 = vmatprep.subr.mxu0 0.0
    %702 = vmatpush1.msra.mxu0 %v408
    %703 = vmatprep.subr.mxu0 0.0
    %704 = vmatpush1.msra.mxu0 %v409
    %705 = vmatprep.subr.mxu0 0.0
    %706 = vmatpush1.msra.mxu0 %v410
    %707 = vmatprep.subr.mxu0 0.0
    %708 = vmatpush1.msra.mxu0 %v411
    %709 = vmatprep.subr.mxu0 0.0
    %710 = vmatpush1.msra.mxu0 %v412
    %711 = vmatprep.subr.mxu0 0.0
    %712 = vmatpush1.msra.mxu0 %v413
    %713 = vmatprep.subr.mxu0 0.0
    %714 = vmatpush1.msra.mxu0 %v414
    %715 = vmatprep.subr.mxu0 0.0
    %716 = vmatpush1.msra.mxu0 %v415
    %717 = vmatprep.subr.mxu0 0.0
    %718 = vmatpush1.msra.mxu0 0.0
    %719 = vmatprep.subr.mxu0 0.0
    %720 = vmatpush1.msra.mxu0 0.0
    %721 = vmatprep.subr.mxu0 0.0
    %722 = vmatpush1.msra.mxu0 0.0
    %723 = vmatprep.subr.mxu0 0.0
    %724 = vmatpush1.msra.mxu0 0.0
    %725 = vmatprep.subr.mxu0 0.0
    %726 = vmatpush1.msra.mxu0 0.0
    %727 = vmatprep.subr.mxu0 0.0
    %728 = vmatpush1.msra.mxu0 0.0
    %729 = vmatprep.subr.mxu0 0.0
    %730 = vmatpush1.msra.mxu0 0.0
    %731 = vmatprep.subr.mxu0 0.0
    %732 = vmatpush1.msra.mxu0 0.0
    %733 = vmatprep.subr.mxu0 0.0
    %734 = vmatpush1.msra.mxu0 0.0
    %735 = vmatprep.subr.mxu0 0.0
    %736 = vmatpush1.msra.mxu0 0.0
    %737 = vmatprep.subr.mxu0 0.0
    %738 = vmatpush1.msra.mxu0 0.0
    %739 = vmatprep.subr.mxu0 0.0
    %740 = vmatpush1.msra.mxu0 0.0
    %741 = vmatprep.subr.mxu0 0.0
    %742 = vmatpush1.msra.mxu0 0.0
    %743 = vmatprep.subr.mxu0 0.0
    %744 = vmatpush1.msra.mxu0 0.0
    %745 = vmatprep.subr.mxu0 0.0
    %746 = vmatpush1.msra.mxu0 0.0
    %747 = vmatprep.subr.mxu0 0.0
    %748 = vmatpush1.msra.mxu0 0.0
    %749 = vmatprep.mubr.f32.mxu0 0.0
    %750 = vmatmul.mubr.f32.gmra.mrb[0].mxu0 %v360
    %v751 = vpop.f32.mrb[0].mxu0
    %v752 = vadd.f32 0.0, %v751
    %v753 = vpop.f32.mrb[0].mxu0
    %754 = vmatprep.mubr.f32.mxu0 0.0
    %755 = vmatmul.mubr.f32.gmra.mrb[0].mxu0 %v361
    %v756 = vpop.f32.mrb[0].mxu0
    %v757 = vadd.f32 0.0, %v756
    %v758 = vpop.f32.mrb[0].mxu0
    %759 = vmatprep.mubr.f32.mxu0 0.0
    %760 = vmatmul.mubr.f32.gmra.mrb[0].mxu0 %v362
    %v761 = vpop.f32.mrb[0].mxu0
    %v762 = vadd.f32 0.0, %v761
    %v763 = vpop.f32.mrb[0].mxu0
    %764 = vmatprep.mubr.f32.mxu0 0.0
    %765 = vmatmul.mubr.f32.gmra.mrb[0].mxu0 %v363
    %v766 = vpop.f32.mrb[0].mxu0
    %v767 = vadd.f32 0.0, %v766
    %v768 = vpop.f32.mrb[0].mxu0
    %769 = vdwg.mxu0
    %v771 = vsel %vm502, %v148, 0
    %v774 = vsel %vm502, %v149, 0
    %v777 = vsel %vm502, %v150, 0
    %v780 = vsel %vm502, %v151, 0
    %782 = vmatprep.subr.mxu0 0.0
    %783 = vmatpush1.msra.mxu0 %v752
    %784 = vmatprep.subr.mxu0 0.0
    %785 = vmatpush1.msra.mxu0 %v757
    %786 = vmatprep.subr.mxu0 0.0
    %787 = vmatpush1.msra.mxu0 %v762
    %788 = vmatprep.subr.mxu0 0.0
    %789 = vmatpush1.msra.mxu0 %v767
    %790 = vmatprep.subr.mxu0 0.0
    %791 = vmatpush1.msra.mxu0 0.0
    %792 = vmatprep.subr.mxu0 0.0
    %793 = vmatpush1.msra.mxu0 0.0
    %794 = vmatprep.subr.mxu0 0.0
    %795 = vmatpush1.msra.mxu0 0.0
    %796 = vmatprep.subr.mxu0 0.0
    %797 = vmatpush1.msra.mxu0 0.0
    %798 = vmatprep.subr.mxu0 0.0
    %799 = vmatpush1.msra.mxu0 0.0
    %800 = vmatprep.subr.mxu0 0.0
    %801 = vmatpush1.msra.mxu0 0.0
    %802 = vmatprep.subr.mxu0 0.0
    %803 = vmatpush1.msra.mxu0 0.0
    %804 = vmatprep.subr.mxu0 0.0
    %805 = vmatpush1.msra.mxu0 0.0
    %806 = vmatprep.subr.mxu0 0.0
    %807 = vmatpush1.msra.mxu0 0.0
    %808 = vmatprep.subr.mxu0 0.0
    %809 = vmatpush1.msra.mxu0 0.0
    %810 = vmatprep.subr.mxu0 0.0
    %811 = vmatpush1.msra.mxu0 0.0
    %812 = vmatprep.subr.mxu0 0.0
    %813 = vmatpush1.msra.mxu0 0.0
    %814 = vmatprep.subr.mxu0 0.0
    %815 = vmatpush1.msra.mxu0 0.0
    %816 = vmatprep.subr.mxu0 0.0
    %817 = vmatpush1.msra.mxu0 0.0
    %818 = vmatprep.subr.mxu0 0.0
    %819 = vmatpush1.msra.mxu0 0.0
    %820 = vmatprep.subr.mxu0 0.0
    %821 = vmatpush1.msra.mxu0 0.0
    %822 = vmatprep.subr.mxu0 0.0
    %823 = vmatpush1.msra.mxu0 0.0
    %824 = vmatprep.subr.mxu0 0.0
    %825 = vmatpush1.msra.mxu0 0.0
    %826 = vmatprep.subr.mxu0 0.0
    %827 = vmatpush1.msra.mxu0 0.0
    %828 = vmatprep.subr.mxu0 0.0
    %829 = vmatpush1.msra.mxu0 0.0
    %830 = vmatprep.subr.mxu0 0.0
    %831 = vmatpush1.msra.mxu0 0.0
    %832 = vmatprep.subr.mxu0 0.0
    %833 = vmatpush1.msra.mxu0 0.0
    %834 = vmatprep.subr.mxu0 0.0
    %835 = vmatpush1.msra.mxu0 0.0
    %836 = vmatprep.subr.mxu0 0.0
    %837 = vmatpush1.msra.mxu0 0.0
    %838 = vmatprep.subr.mxu0 0.0
    %839 = vmatpush1.msra.mxu0 0.0
    %840 = vmatprep.subr.mxu0 0.0
    %841 = vmatpush1.msra.mxu0 0.0
    %842 = vmatprep.subr.mxu0 0.0
    %843 = vmatpush1.msra.mxu0 0.0
    %844 = vmatprep.subr.mxu0 0.0
    %845 = vmatpush1.msra.mxu0 0.0
    %846 = vmatprep.mubr.f32.mxu0 0.0
    %847 = vmatmul.mubr.f32.gmra.mrb[0].mxu0 %v771
    %v848 = vpop.f32.mrb[0].mxu0
    %v849 = vadd.f32 0.0, %v848
    %v850 = vpop.f32.mrb[0].mxu0
    %851 = vmatprep.mubr.f32.mxu0 0.0
    %852 = vmatmul.mubr.f32.gmra.mrb[0].mxu0 %v774
    %v853 = vpop.f32.mrb[0].mxu0
    %v854 = vadd.f32 0.0, %v853
    %v855 = vpop.f32.mrb[0].mxu0
    %856 = vmatprep.mubr.f32.mxu0 0.0
    %857 = vmatmul.mubr.f32.gmra.mrb[0].mxu0 %v777
    %v858 = vpop.f32.mrb[0].mxu0
    %v859 = vadd.f32 0.0, %v858
    %v860 = vpop.f32.mrb[0].mxu0
    %861 = vmatprep.mubr.f32.mxu0 0.0
    %862 = vmatmul.mubr.f32.gmra.mrb[0].mxu0 %v780
    %v863 = vpop.f32.mrb[0].mxu0
    %v864 = vadd.f32 0.0, %v863
    %v865 = vpop.f32.mrb[0].mxu0
    %866 = vdwg.mxu0
    %v867 = vadd.f32 %v667, %v849
    %v868 = vadd.f32 %v672, %v854
    %v869 = vadd.f32 %v677, %v859
    %v870 = vadd.f32 %v682, %v864
    %v871 = vadd.f32 %v867, %v416
    %v872 = vadd.f32 %v868, %v416
    %v873 = vadd.f32 %v869, %v416
    %v874 = vadd.f32 %v870, %v416
    %v875 = vld [vmem:[#allocation8 + $0x2] ss:$0 sm:$0xff]
    %v876 = vld [vmem:[#allocation8 + $0x3] ss:$0 sm:$0xff]
    %vm877 = vcmask 523264
    %v878 = vsel %vm877, %v871, 0.0
    %879 = vadd.xlane.f32.xlu0 %v878
    %v880 = vpop.xlane.xlu0 %879
    %v881 = vsel %vm877, %v872, 0.0
    %882 = vadd.xlane.f32.xlu0 %v881
    %v883 = vpop.xlane.xlu0 %882
    %v884 = vsel %vm877, %v873, 0.0
    %885 = vadd.xlane.f32.xlu0 %v884
    %v886 = vpop.xlane.xlu0 %885
    %v887 = vsel %vm877, %v874, 0.0
    %888 = vadd.xlane.f32.xlu0 %v887
    %v889 = vpop.xlane.xlu0 %888
    %v890 = vrcp.pop 64.0
    %v891 = vmul.f32 %v880, %v890
    %v892 = vmul.f32 %v883, %v890
    %v893 = vmul.f32 %v886, %v890
    %v894 = vmul.f32 %v889, %v890
    %v895 = vsub.f32 %v871, %v891
    %v896 = vsub.f32 %v872, %v892
    %v897 = vsub.f32 %v873, %v893
    %v898 = vsub.f32 %v874, %v894
    %v899 = vmul.f32 %v895, %v895
    %v900 = vmul.f32 %v896, %v896
    %v901 = vmul.f32 %v897, %v897
    %v902 = vmul.f32 %v898, %v898
    %v903 = vsel %vm877, %v899, 0.0
    %904 = vadd.xlane.f32.xlu0 %v903
    %v905 = vpop.xlane.xlu0 %904
    %v906 = vsel %vm877, %v900, 0.0
    %907 = vadd.xlane.f32.xlu0 %v906
    %v908 = vpop.xlane.xlu0 %907
    %v909 = vsel %vm877, %v901, 0.0
    %910 = vadd.xlane.f32.xlu0 %v909
    %v911 = vpop.xlane.xlu0 %910
    %v912 = vsel %vm877, %v902, 0.0
    %913 = vadd.xlane.f32.xlu0 %v912
    %v914 = vpop.xlane.xlu0 %913
    %v915 = vmul.f32 %v905, %v890
    %v916 = vmul.f32 %v908, %v890
    %v917 = vmul.f32 %v911, %v890
    %v918 = vmul.f32 %v914, %v890
    %v919 = vadd.f32 %v915, 1e-05
    %v920 = vadd.f32 %v916, 1e-05
    %v921 = vadd.f32 %v917, 1e-05
    %v922 = vadd.f32 %v918, 1e-05
    %v923 = vrsqrt.pop %v919
    %v924 = vrsqrt.pop %v920
    %v925 = vrsqrt.pop %v921
    %v926 = vrsqrt.pop %v922
    %v927 = vmul.f32 %v895, %v923
    %v928 = vmul.f32 %v896, %v924
    %v929 = vmul.f32 %v897, %v925
    %v930 = vmul.f32 %v898, %v926
    %v931 = vmul.f32 %v927, %v875
    %v932 = vmul.f32 %v928, %v875
    %v933 = vmul.f32 %v929, %v875
    %v934 = vmul.f32 %v930, %v875
    %v935 = vadd.f32 %v931, %v876
    %v936 = vadd.f32 %v932, %v876
    %v937 = vadd.f32 %v933, %v876
    %v938 = vadd.f32 %v934, %v876
    %v939 = vmax.f32 %v935, 0.0
    %v940 = vmax.f32 %v936, 0.0
    %v941 = vmax.f32 %v937, 0.0
    %v942 = vmax.f32 %v938, 0.0
    %v943 = vld [vmem:[#allocation7 + $0x480] sm:$0xff]
    %v944 = vld [vmem:[#allocation7 + $0x498] sm:$0xff]
    %v945 = vld [vmem:[#allocation7 + $0x4b0] sm:$0xff]
    %v946 = vld [vmem:[#allocation7 + $0x4c8] sm:$0xff]
    %v947 = vld [vmem:[#allocation7 + $0x4e0] sm:$0xff]
    %v948 = vld [vmem:[#allocation7 + $0x4f8] sm:$0xff]
    %v949 = vld [vmem:[#allocation7 + $0x510] sm:$0xff]
    %v950 = vld [vmem:[#allocation7 + $0x528] sm:$0xff]
    %v951 = vld [vmem:[#allocation7 + $0x540] sm:$0xff]
    %v952 = vld [vmem:[#allocation7 + $0x558] sm:$0xff]
    %v953 = vld [vmem:[#allocation7 + $0x570] sm:$0xff]
    %v954 = vld [vmem:[#allocation7 + $0x588] sm:$0xff]
    %v955 = vld [vmem:[#allocation7 + $0x5a0] sm:$0xff]
    %v956 = vld [vmem:[#allocation7 + $0x5b8] sm:$0xff]
    %v957 = vld [vmem:[#allocation7 + $0x5d0] sm:$0xff]
    %v958 = vld [vmem:[#allocation7 + $0x5e8] sm:$0xff]
    %v959 = vld [vmem:[#allocation7 + $0x600] sm:$0xff]
    %v960 = vld [vmem:[#allocation7 + $0x618] sm:$0xff]
    %v961 = vld [vmem:[#allocation7 + $0x630] sm:$0xff]
    %v962 = vld [vmem:[#allocation7 + $0x648] sm:$0xff]
    %v963 = vld [vmem:[#allocation7 + $0x660] sm:$0xff]
    %v964 = vld [vmem:[#allocation7 + $0x678] sm:$0xff]
    %v965 = vld [vmem:[#allocation7 + $0x690] sm:$0xff]
    %v966 = vld [vmem:[#allocation7 + $0x6a8] sm:$0xff]
    %v967 = vld [vmem:[#allocation8 + $0x1] ss:$0 sm:$0xff]
    %v969 = vsel %vm877, %v939, 0
    %v972 = vsel %vm877, %v940, 0
    %v975 = vsel %vm877, %v941, 0
    %v978 = vsel %vm877, %v942, 0
    %980 = vmatprep.subr.mxu0 0.0
    %981 = vmatpush1.msra.mxu0 %v951
    %982 = vmatprep.subr.mxu0 0.0
    %983 = vmatpush1.msra.mxu0 %v952
    %984 = vmatprep.subr.mxu0 0.0
    %985 = vmatpush1.msra.mxu0 %v953
    %986 = vmatprep.subr.mxu0 0.0
    %987 = vmatpush1.msra.mxu0 %v954
    %988 = vmatprep.subr.mxu0 0.0
    %989 = vmatpush1.msra.mxu0 %v955
    %990 = vmatprep.subr.mxu0 0.0
    %991 = vmatpush1.msra.mxu0 %v956
    %992 = vmatprep.subr.mxu0 0.0
    %993 = vmatpush1.msra.mxu0 %v957
    %994 = vmatprep.subr.mxu0 0.0
    %995 = vmatpush1.msra.mxu0 %v958
    %996 = vmatprep.subr.mxu0 0.0
    %997 = vmatpush1.msra.mxu0 0.0
    %998 = vmatprep.subr.mxu0 0.0
    %999 = vmatpush1.msra.mxu0 0.0
    %1000 = vmatprep.subr.mxu0 0.0
    %1001 = vmatpush1.msra.mxu0 0.0
    %1002 = vmatprep.subr.mxu0 0.0
    %1003 = vmatpush1.msra.mxu0 0.0
    %1004 = vmatprep.subr.mxu0 0.0
    %1005 = vmatpush1.msra.mxu0 0.0
    %1006 = vmatprep.subr.mxu0 0.0
    %1007 = vmatpush1.msra.mxu0 0.0
    %1008 = vmatprep.subr.mxu0 0.0
    %1009 = vmatpush1.msra.mxu0 0.0
    %1010 = vmatprep.subr.mxu0 0.0
    %1011 = vmatpush1.msra.mxu0 0.0
    %1012 = vmatprep.subr.mxu0 0.0
    %1013 = vmatpush1.msra.mxu0 0.0
    %1014 = vmatprep.subr.mxu0 0.0
    %1015 = vmatpush1.msra.mxu0 0.0
    %1016 = vmatprep.subr.mxu0 0.0
    %1017 = vmatpush1.msra.mxu0 0.0
    %1018 = vmatprep.subr.mxu0 0.0
    %1019 = vmatpush1.msra.mxu0 0.0
    %1020 = vmatprep.subr.mxu0 0.0
    %1021 = vmatpush1.msra.mxu0 0.0
    %1022 = vmatprep.subr.mxu0 0.0
    %1023 = vmatpush1.msra.mxu0 0.0
    %1024 = vmatprep.subr.mxu0 0.0
    %1025 = vmatpush1.msra.mxu0 0.0
    %1026 = vmatprep.subr.mxu0 0.0
    %1027 = vmatpush1.msra.mxu0 0.0
    %1028 = vmatprep.subr.mxu0 0.0
    %1029 = vmatpush1.msra.mxu0 0.0
    %1030 = vmatprep.subr.mxu0 0.0
    %1031 = vmatpush1.msra.mxu0 0.0
    %1032 = vmatprep.subr.mxu0 0.0
    %1033 = vmatpush1.msra.mxu0 0.0
    %1034 = vmatprep.subr.mxu0 0.0
    %1035 = vmatpush1.msra.mxu0 0.0
    %1036 = vmatprep.subr.mxu0 0.0
    %1037 = vmatpush1.msra.mxu0 0.0
    %1038 = vmatprep.subr.mxu0 0.0
    %1039 = vmatpush1.msra.mxu0 0.0
    %1040 = vmatprep.subr.mxu0 0.0
    %1041 = vmatpush1.msra.mxu0 0.0
    %1042 = vmatprep.subr.mxu0 0.0
    %1043 = vmatpush1.msra.mxu0 0.0
    %1044 = vmatprep.mubr.f32.mxu0 0.0
    %1045 = vmatmul.mubr.f32.gmra.mrb[0].mxu0 %v969
    %v1046 = vpop.f32.mrb[0].mxu0
    %v1047 = vadd.f32 0.0, %v1046
    %v1048 = vpop.f32.mrb[0].mxu0
    %1049 = vmatprep.mubr.f32.mxu0 0.0
    %1050 = vmatmul.mubr.f32.gmra.mrb[0].mxu0 %v972
    %v1051 = vpop.f32.mrb[0].mxu0
    %v1052 = vadd.f32 0.0, %v1051
    %v1053 = vpop.f32.mrb[0].mxu0
    %1054 = vmatprep.mubr.f32.mxu0 0.0
    %1055 = vmatmul.mubr.f32.gmra.mrb[0].mxu0 %v975
    %v1056 = vpop.f32.mrb[0].mxu0
    %v1057 = vadd.f32 0.0, %v1056
    %v1058 = vpop.f32.mrb[0].mxu0
    %1059 = vmatprep.mubr.f32.mxu0 0.0
    %1060 = vmatmul.mubr.f32.gmra.mrb[0].mxu0 %v978
    %v1061 = vpop.f32.mrb[0].mxu0
    %v1062 = vadd.f32 0.0, %v1061
    %v1063 = vpop.f32.mrb[0].mxu0
    %1064 = vdwg.mxu0
    %1065 = vmatprep.subr.mxu0 0.0
    %1066 = vmatpush1.msra.mxu0 %v1047
    %1067 = vmatprep.subr.mxu0 0.0
    %1068 = vmatpush1.msra.mxu0 %v1052
    %1069 = vmatprep.subr.mxu0 0.0
    %1070 = vmatpush1.msra.mxu0 %v1057
    %1071 = vmatprep.subr.mxu0 0.0
    %1072 = vmatpush1.msra.mxu0 %v1062
    %1073 = vmatprep.subr.mxu0 0.0
    %1074 = vmatpush1.msra.mxu0 0.0
    %1075 = vmatprep.subr.mxu0 0.0
    %1076 = vmatpush1.msra.mxu0 0.0
    %1077 = vmatprep.subr.mxu0 0.0
    %1078 = vmatpush1.msra.mxu0 0.0
    %1079 = vmatprep.subr.mxu0 0.0
    %1080 = vmatpush1.msra.mxu0 0.0
    %1081 = vmatprep.subr.mxu0 0.0
    %1082 = vmatpush1.msra.mxu0 0.0
    %1083 = vmatprep.subr.mxu0 0.0
    %1084 = vmatpush1.msra.mxu0 0.0
    %1085 = vmatprep.subr.mxu0 0.0
    %1086 = vmatpush1.msra.mxu0 0.0
    %1087 = vmatprep.subr.mxu0 0.0
    %1088 = vmatpush1.msra.mxu0 0.0
    %1089 = vmatprep.subr.mxu0 0.0
    %1090 = vmatpush1.msra.mxu0 0.0
    %1091 = vmatprep.subr.mxu0 0.0
    %1092 = vmatpush1.msra.mxu0 0.0
    %1093 = vmatprep.subr.mxu0 0.0
    %1094 = vmatpush1.msra.mxu0 0.0
    %1095 = vmatprep.subr.mxu0 0.0
    %1096 = vmatpush1.msra.mxu0 0.0
    %1097 = vmatprep.subr.mxu0 0.0
    %1098 = vmatpush1.msra.mxu0 0.0
    %1099 = vmatprep.subr.mxu0 0.0
    %1100 = vmatpush1.msra.mxu0 0.0
    %1101 = vmatprep.subr.mxu0 0.0
    %1102 = vmatpush1.msra.mxu0 0.0
    %1103 = vmatprep.subr.mxu0 0.0
    %1104 = vmatpush1.msra.mxu0 0.0
    %1105 = vmatprep.subr.mxu0 0.0
    %1106 = vmatpush1.msra.mxu0 0.0
    %1107 = vmatprep.subr.mxu0 0.0
    %1108 = vmatpush1.msra.mxu0 0.0
    %1109 = vmatprep.subr.mxu0 0.0
    %1110 = vmatpush1.msra.mxu0 0.0
    %1111 = vmatprep.subr.mxu0 0.0
    %1112 = vmatpush1.msra.mxu0 0.0
    %1113 = vmatprep.subr.mxu0 0.0
    %1114 = vmatpush1.msra.mxu0 0.0
    %1115 = vmatprep.subr.mxu0 0.0
    %1116 = vmatpush1.msra.mxu0 0.0
    %1117 = vmatprep.subr.mxu0 0.0
    %1118 = vmatpush1.msra.mxu0 0.0
    %1119 = vmatprep.subr.mxu0 0.0
    %1120 = vmatpush1.msra.mxu0 0.0
    %1121 = vmatprep.subr.mxu0 0.0
    %1122 = vmatpush1.msra.mxu0 0.0
    %1123 = vmatprep.subr.mxu0 0.0
    %1124 = vmatpush1.msra.mxu0 0.0
    %1125 = vmatprep.subr.mxu0 0.0
    %1126 = vmatpush1.msra.mxu0 0.0
    %1127 = vmatprep.subr.mxu0 0.0
    %1128 = vmatpush1.msra.mxu0 0.0
    %1129 = vmatprep.mubr.f32.mxu0 0.0
    %1130 = vmatmul.mubr.f32.gmra.mrb[0].mxu0 %v504
    %v1131 = vpop.f32.mrb[0].mxu0
    %v1132 = vadd.f32 0.0, %v1131
    %v1133 = vpop.f32.mrb[0].mxu0
    %1134 = vmatprep.mubr.f32.mxu0 0.0
    %1135 = vmatmul.mubr.f32.gmra.mrb[0].mxu0 %v507
    %v1136 = vpop.f32.mrb[0].mxu0
    %v1137 = vadd.f32 0.0, %v1136
    %v1138 = vpop.f32.mrb[0].mxu0
    %1139 = vmatprep.mubr.f32.mxu0 0.0
    %1140 = vmatmul.mubr.f32.gmra.mrb[0].mxu0 %v510
    %v1141 = vpop.f32.mrb[0].mxu0
    %v1142 = vadd.f32 0.0, %v1141
    %v1143 = vpop.f32.mrb[0].mxu0
    %1144 = vmatprep.mubr.f32.mxu0 0.0
    %1145 = vmatmul.mubr.f32.gmra.mrb[0].mxu0 %v513
    %v1146 = vpop.f32.mrb[0].mxu0
    %v1147 = vadd.f32 0.0, %v1146
    %v1148 = vpop.f32.mrb[0].mxu0
    %1149 = vdwg.mxu0
    %1150 = vmatprep.subr.mxu0 0.0
    %1151 = vmatpush1.msra.mxu0 %v943
    %1152 = vmatprep.subr.mxu0 0.0
    %1153 = vmatpush1.msra.mxu0 %v944
    %1154 = vmatprep.subr.mxu0 0.0
    %1155 = vmatpush1.msra.mxu0 %v945
    %1156 = vmatprep.subr.mxu0 0.0
    %1157 = vmatpush1.msra.mxu0 %v946
    %1158 = vmatprep.subr.mxu0 0.0
    %1159 = vmatpush1.msra.mxu0 %v947
    %1160 = vmatprep.subr.mxu0 0.0
    %1161 = vmatpush1.msra.mxu0 %v948
    %1162 = vmatprep.subr.mxu0 0.0
    %1163 = vmatpush1.msra.mxu0 %v949
    %1164 = vmatprep.subr.mxu0 0.0
    %1165 = vmatpush1.msra.mxu0 %v950
    %1166 = vmatprep.subr.mxu0 0.0
    %1167 = vmatpush1.msra.mxu0 0.0
    %1168 = vmatprep.subr.mxu0 0.0
    %1169 = vmatpush1.msra.mxu0 0.0
    %1170 = vmatprep.subr.mxu0 0.0
    %1171 = vmatpush1.msra.mxu0 0.0
    %1172 = vmatprep.subr.mxu0 0.0
    %1173 = vmatpush1.msra.mxu0 0.0
    %1174 = vmatprep.subr.mxu0 0.0
    %1175 = vmatpush1.msra.mxu0 0.0
    %1176 = vmatprep.subr.mxu0 0.0
    %1177 = vmatpush1.msra.mxu0 0.0
    %1178 = vmatprep.subr.mxu0 0.0
    %1179 = vmatpush1.msra.mxu0 0.0
    %1180 = vmatprep.subr.mxu0 0.0
    %1181 = vmatpush1.msra.mxu0 0.0
    %1182 = vmatprep.subr.mxu0 0.0
    %1183 = vmatpush1.msra.mxu0 0.0
    %1184 = vmatprep.subr.mxu0 0.0
    %1185 = vmatpush1.msra.mxu0 0.0
    %1186 = vmatprep.subr.mxu0 0.0
    %1187 = vmatpush1.msra.mxu0 0.0
    %1188 = vmatprep.subr.mxu0 0.0
    %1189 = vmatpush1.msra.mxu0 0.0
    %1190 = vmatprep.subr.mxu0 0.0
    %1191 = vmatpush1.msra.mxu0 0.0
    %1192 = vmatprep.subr.mxu0 0.0
    %1193 = vmatpush1.msra.mxu0 0.0
    %1194 = vmatprep.subr.mxu0 0.0
    %1195 = vmatpush1.msra.mxu0 0.0
    %1196 = vmatprep.subr.mxu0 0.0
    %1197 = vmatpush1.msra.mxu0 0.0
    %1198 = vmatprep.subr.mxu0 0.0
    %1199 = vmatpush1.msra.mxu0 0.0
    %1200 = vmatprep.subr.mxu0 0.0
    %1201 = vmatpush1.msra.mxu0 0.0
    %1202 = vmatprep.subr.mxu0 0.0
    %1203 = vmatpush1.msra.mxu0 0.0
    %1204 = vmatprep.subr.mxu0 0.0
    %1205 = vmatpush1.msra.mxu0 0.0
    %1206 = vmatprep.subr.mxu0 0.0
    %1207 = vmatpush1.msra.mxu0 0.0
    %1208 = vmatprep.subr.mxu0 0.0
    %1209 = vmatpush1.msra.mxu0 0.0
    %1210 = vmatprep.subr.mxu0 0.0
    %1211 = vmatpush1.msra.mxu0 0.0
    %1212 = vmatprep.subr.mxu0 0.0
    %1213 = vmatpush1.msra.mxu0 0.0
    %1214 = vmatprep.mubr.f32.mxu0 0.0
    %1215 = vmatmul.mubr.f32.gmra.mrb[0].mxu0 %v969
    %v1216 = vpop.f32.mrb[0].mxu0
    %v1217 = vadd.f32 %v1132, %v1216
    %v1218 = vpop.f32.mrb[0].mxu0
    %1219 = vmatprep.mubr.f32.mxu0 0.0
    %1220 = vmatmul.mubr.f32.gmra.mrb[0].mxu0 %v972
    %v1221 = vpop.f32.mrb[0].mxu0
    %v1222 = vadd.f32 %v1137, %v1221
    %v1223 = vpop.f32.mrb[0].mxu0
    %1224 = vmatprep.mubr.f32.mxu0 0.0
    %1225 = vmatmul.mubr.f32.gmra.mrb[0].mxu0 %v975
    %v1226 = vpop.f32.mrb[0].mxu0
    %v1227 = vadd.f32 %v1142, %v1226
    %v1228 = vpop.f32.mrb[0].mxu0
    %1229 = vmatprep.mubr.f32.mxu0 0.0
    %1230 = vmatmul.mubr.f32.gmra.mrb[0].mxu0 %v978
    %v1231 = vpop.f32.mrb[0].mxu0
    %v1232 = vadd.f32 %v1147, %v1231
    %v1233 = vpop.f32.mrb[0].mxu0
    %1234 = vdwg.mxu0
    %1235 = vmatprep.subr.mxu0 0.0
    %1236 = vmatpush1.msra.mxu0 %v959
    %1237 = vmatprep.subr.mxu0 0.0
    %1238 = vmatpush1.msra.mxu0 %v960
    %1239 = vmatprep.subr.mxu0 0.0
    %1240 = vmatpush1.msra.mxu0 %v961
    %1241 = vmatprep.subr.mxu0 0.0
    %1242 = vmatpush1.msra.mxu0 %v962
    %1243 = vmatprep.subr.mxu0 0.0
    %1244 = vmatpush1.msra.mxu0 %v963
    %1245 = vmatprep.subr.mxu0 0.0
    %1246 = vmatpush1.msra.mxu0 %v964
    %1247 = vmatprep.subr.mxu0 0.0
    %1248 = vmatpush1.msra.mxu0 %v965
    %1249 = vmatprep.subr.mxu0 0.0
    %1250 = vmatpush1.msra.mxu0 %v966
    %1251 = vmatprep.subr.mxu0 0.0
    %1252 = vmatpush1.msra.mxu0 0.0
    %1253 = vmatprep.subr.mxu0 0.0
    %1254 = vmatpush1.msra.mxu0 0.0
    %1255 = vmatprep.subr.mxu0 0.0
    %1256 = vmatpush1.msra.mxu0 0.0
    %1257 = vmatprep.subr.mxu0 0.0
    %1258 = vmatpush1.msra.mxu0 0.0
    %1259 = vmatprep.subr.mxu0 0.0
    %1260 = vmatpush1.msra.mxu0 0.0
    %1261 = vmatprep.subr.mxu0 0.0
    %1262 = vmatpush1.msra.mxu0 0.0
    %1263 = vmatprep.subr.mxu0 0.0
    %1264 = vmatpush1.msra.mxu0 0.0
    %1265 = vmatprep.subr.mxu0 0.0
    %1266 = vmatpush1.msra.mxu0 0.0
    %1267 = vmatprep.subr.mxu0 0.0
    %1268 = vmatpush1.msra.mxu0 0.0
    %1269 = vmatprep.subr.mxu0 0.0
    %1270 = vmatpush1.msra.mxu0 0.0
    %1271 = vmatprep.subr.mxu0 0.0
    %1272 = vmatpush1.msra.mxu0 0.0
    %1273 = vmatprep.subr.mxu0 0.0
    %1274 = vmatpush1.msra.mxu0 0.0
    %1275 = vmatprep.subr.mxu0 0.0
    %1276 = vmatpush1.msra.mxu0 0.0
    %1277 = vmatprep.subr.mxu0 0.0
    %1278 = vmatpush1.msra.mxu0 0.0
    %1279 = vmatprep.subr.mxu0 0.0
    %1280 = vmatpush1.msra.mxu0 0.0
    %1281 = vmatprep.subr.mxu0 0.0
    %1282 = vmatpush1.msra.mxu0 0.0
    %1283 = vmatprep.subr.mxu0 0.0
    %1284 = vmatpush1.msra.mxu0 0.0
    %1285 = vmatprep.subr.mxu0 0.0
    %1286 = vmatpush1.msra.mxu0 0.0
    %1287 = vmatprep.subr.mxu0 0.0
    %1288 = vmatpush1.msra.mxu0 0.0
    %1289 = vmatprep.subr.mxu0 0.0
    %1290 = vmatpush1.msra.mxu0 0.0
    %1291 = vmatprep.subr.mxu0 0.0
    %1292 = vmatpush1.msra.mxu0 0.0
    %1293 = vmatprep.subr.mxu0 0.0
    %1294 = vmatpush1.msra.mxu0 0.0
    %1295 = vmatprep.subr.mxu0 0.0
    %1296 = vmatpush1.msra.mxu0 0.0
    %1297 = vmatprep.subr.mxu0 0.0
    %1298 = vmatpush1.msra.mxu0 0.0
    %1299 = vmatprep.mubr.f32.mxu0 0.0
    %1300 = vmatmul.mubr.f32.gmra.mrb[0].mxu0 %v969
    %v1301 = vpop.f32.mrb[0].mxu0
    %v1302 = vadd.f32 0.0, %v1301
    %v1303 = vpop.f32.mrb[0].mxu0
    %1304 = vmatprep.mubr.f32.mxu0 0.0
    %1305 = vmatmul.mubr.f32.gmra.mrb[0].mxu0 %v972
    %v1306 = vpop.f32.mrb[0].mxu0
    %v1307 = vadd.f32 0.0, %v1306
    %v1308 = vpop.f32.mrb[0].mxu0
    %1309 = vmatprep.mubr.f32.mxu0 0.0
    %1310 = vmatmul.mubr.f32.gmra.mrb[0].mxu0 %v975
    %v1311 = vpop.f32.mrb[0].mxu0
    %v1312 = vadd.f32 0.0, %v1311
    %v1313 = vpop.f32.mrb[0].mxu0
    %1314 = vmatprep.mubr.f32.mxu0 0.0
    %1315 = vmatmul.mubr.f32.gmra.mrb[0].mxu0 %v978
    %v1316 = vpop.f32.mrb[0].mxu0
    %v1317 = vadd.f32 0.0, %v1316
    %v1318 = vpop.f32.mrb[0].mxu0
    %1319 = vdwg.mxu0
    %1320 = vmatprep.subr.mxu0 0.0
    %1321 = vmatpush1.msra.mxu0 %v1302
    %1322 = vmatprep.subr.mxu0 0.0
    %1323 = vmatpush1.msra.mxu0 %v1307
    %1324 = vmatprep.subr.mxu0 0.0
    %1325 = vmatpush1.msra.mxu0 %v1312
    %1326 = vmatprep.subr.mxu0 0.0
    %1327 = vmatpush1.msra.mxu0 %v1317
    %1328 = vmatprep.subr.mxu0 0.0
    %1329 = vmatpush1.msra.mxu0 0.0
    %1330 = vmatprep.subr.mxu0 0.0
    %1331 = vmatpush1.msra.mxu0 0.0
    %1332 = vmatprep.subr.mxu0 0.0
    %1333 = vmatpush1.msra.mxu0 0.0
    %1334 = vmatprep.subr.mxu0 0.0
    %1335 = vmatpush1.msra.mxu0 0.0
    %1336 = vmatprep.subr.mxu0 0.0
    %1337 = vmatpush1.msra.mxu0 0.0
    %1338 = vmatprep.subr.mxu0 0.0
    %1339 = vmatpush1.msra.mxu0 0.0
    %1340 = vmatprep.subr.mxu0 0.0
    %1341 = vmatpush1.msra.mxu0 0.0
    %1342 = vmatprep.subr.mxu0 0.0
    %1343 = vmatpush1.msra.mxu0 0.0
    %1344 = vmatprep.subr.mxu0 0.0
    %1345 = vmatpush1.msra.mxu0 0.0
    %1346 = vmatprep.subr.mxu0 0.0
    %1347 = vmatpush1.msra.mxu0 0.0
    %1348 = vmatprep.subr.mxu0 0.0
    %1349 = vmatpush1.msra.mxu0 0.0
    %1350 = vmatprep.subr.mxu0 0.0
    %1351 = vmatpush1.msra.mxu0 0.0
    %1352 = vmatprep.subr.mxu0 0.0
    %1353 = vmatpush1.msra.mxu0 0.0
    %1354 = vmatprep.subr.mxu0 0.0
    %1355 = vmatpush1.msra.mxu0 0.0
    %1356 = vmatprep.subr.mxu0 0.0
    %1357 = vmatpush1.msra.mxu0 0.0
    %1358 = vmatprep.subr.mxu0 0.0
    %1359 = vmatpush1.msra.mxu0 0.0
    %1360 = vmatprep.subr.mxu0 0.0
    %1361 = vmatpush1.msra.mxu0 0.0
    %1362 = vmatprep.subr.mxu0 0.0
    %1363 = vmatpush1.msra.mxu0 0.0
    %1364 = vmatprep.subr.mxu0 0.0
    %1365 = vmatpush1.msra.mxu0 0.0
    %1366 = vmatprep.subr.mxu0 0.0
    %1367 = vmatpush1.msra.mxu0 0.0
    %1368 = vmatprep.subr.mxu0 0.0
    %1369 = vmatpush1.msra.mxu0 0.0
    %1370 = vmatprep.subr.mxu0 0.0
    %1371 = vmatpush1.msra.mxu0 0.0
    %1372 = vmatprep.subr.mxu0 0.0
    %1373 = vmatpush1.msra.mxu0 0.0
    %1374 = vmatprep.subr.mxu0 0.0
    %1375 = vmatpush1.msra.mxu0 0.0
    %1376 = vmatprep.subr.mxu0 0.0
    %1377 = vmatpush1.msra.mxu0 0.0
    %1378 = vmatprep.subr.mxu0 0.0
    %1379 = vmatpush1.msra.mxu0 0.0
    %1380 = vmatprep.subr.mxu0 0.0
    %1381 = vmatpush1.msra.mxu0 0.0
    %1382 = vmatprep.subr.mxu0 0.0
    %1383 = vmatpush1.msra.mxu0 0.0
    %1384 = vmatprep.mubr.f32.mxu0 0.0
    %1385 = vmatmul.mubr.f32.gmra.mrb[0].mxu0 %v771
    %v1386 = vpop.f32.mrb[0].mxu0
    %v1387 = vadd.f32 0.0, %v1386
    %v1388 = vpop.f32.mrb[0].mxu0
    %1389 = vmatprep.mubr.f32.mxu0 0.0
    %1390 = vmatmul.mubr.f32.gmra.mrb[0].mxu0 %v774
    %v1391 = vpop.f32.mrb[0].mxu0
    %v1392 = vadd.f32 0.0, %v1391
    %v1393 = vpop.f32.mrb[0].mxu0
    %1394 = vmatprep.mubr.f32.mxu0 0.0
    %1395 = vmatmul.mubr.f32.gmra.mrb[0].mxu0 %v777
    %v1396 = vpop.f32.mrb[0].mxu0
    %v1397 = vadd.f32 0.0, %v1396
    %v1398 = vpop.f32.mrb[0].mxu0
    %1399 = vmatprep.mubr.f32.mxu0 0.0
    %1400 = vmatmul.mubr.f32.gmra.mrb[0].mxu0 %v780
    %v1401 = vpop.f32.mrb[0].mxu0
    %v1402 = vadd.f32 0.0, %v1401
    %v1403 = vpop.f32.mrb[0].mxu0
    %1404 = vdwg.mxu0
    %v1405 = vadd.f32 %v1217, %v1387
    %v1406 = vadd.f32 %v1222, %v1392
    %v1407 = vadd.f32 %v1227, %v1397
    %v1408 = vadd.f32 %v1232, %v1402
    %v1409 = vadd.f32 %v1405, %v967
    %v1410 = vadd.f32 %v1406, %v967
    %v1411 = vadd.f32 %v1407, %v967
    %v1412 = vadd.f32 %v1408, %v967
    %v1413 = vld [vmem:[#allocation8 + $0x4] ss:$0 sm:$0xff]
    %v1414 = vld [vmem:[#allocation8 + $0x5] ss:$0 sm:$0xff]
    %1415 = vadd.xlane.f32.xlu0 %v1409
    %v1416 = vpop.xlane.xlu0 %1415
    %1417 = vadd.xlane.f32.xlu0 %v1410
    %v1418 = vpop.xlane.xlu0 %1417
    %1419 = vadd.xlane.f32.xlu0 %v1411
    %v1420 = vpop.xlane.xlu0 %1419
    %1421 = vadd.xlane.f32.xlu0 %v1412
    %v1422 = vpop.xlane.xlu0 %1421
    %v1423 = vrcp.pop 128.0
    %v1424 = vmul.f32 %v1416, %v1423
    %v1425 = vmul.f32 %v1418, %v1423
    %v1426 = vmul.f32 %v1420, %v1423
    %v1427 = vmul.f32 %v1422, %v1423
    %v1428 = vsub.f32 %v1409, %v1424
    %v1429 = vsub.f32 %v1410, %v1425
    %v1430 = vsub.f32 %v1411, %v1426
    %v1431 = vsub.f32 %v1412, %v1427
    %v1432 = vmul.f32 %v1428, %v1428
    %v1433 = vmul.f32 %v1429, %v1429
    %v1434 = vmul.f32 %v1430, %v1430
    %v1435 = vmul.f32 %v1431, %v1431
    %1436 = vadd.xlane.f32.xlu0 %v1432
    %v1437 = vpop.xlane.xlu0 %1436
    %1438 = vadd.xlane.f32.xlu0 %v1433
    %v1439 = vpop.xlane.xlu0 %1438
    %1440 = vadd.xlane.f32.xlu0 %v1434
    %v1441 = vpop.xlane.xlu0 %1440
    %1442 = vadd.xlane.f32.xlu0 %v1435
    %v1443 = vpop.xlane.xlu0 %1442
    %v1444 = vmul.f32 %v1437, %v1423
    %v1445 = vmul.f32 %v1439, %v1423
    %v1446 = vmul.f32 %v1441, %v1423
    %v1447 = vmul.f32 %v1443, %v1423
    %v1448 = vadd.f32 %v1444, 1e-05
    %v1449 = vadd.f32 %v1445, 1e-05
    %v1450 = vadd.f32 %v1446, 1e-05
    %v1451 = vadd.f32 %v1447, 1e-05
    %v1452 = vrsqrt.pop %v1448
    %v1453 = vrsqrt.pop %v1449
    %v1454 = vrsqrt.pop %v1450
    %v1455 = vrsqrt.pop %v1451
    %v1456 = vmul.f32 %v1428, %v1452
    %v1457 = vmul.f32 %v1429, %v1453
    %v1458 = vmul.f32 %v1430, %v1454
    %v1459 = vmul.f32 %v1431, %v1455
    %v1460 = vmul.f32 %v1456, %v1413
    %v1461 = vmul.f32 %v1457, %v1413
    %v1462 = vmul.f32 %v1458, %v1413
    %v1463 = vmul.f32 %v1459, %v1413
    %v1464 = vadd.f32 %v1460, %v1414
    %v1465 = vadd.f32 %v1461, %v1414
    %v1466 = vadd.f32 %v1462, %v1414
    %v1467 = vadd.f32 %v1463, %v1414
    %v1468 = vmax.f32 %v1464, 0.0
    %v1469 = vmax.f32 %v1465, 0.0
    %v1470 = vmax.f32 %v1466, 0.0
    %v1471 = vmax.f32 %v1467, 0.0
    %v1472 = vld [vmem:[#allocation7 + $0xf00] sm:$0xff]
    %v1473 = vld [vmem:[#allocation7 + $0xf08] sm:$0xff]
    %v1474 = vld [vmem:[#allocation7 + $0xf10] sm:$0xff]
    %v1475 = vld [vmem:[#allocation7 + $0xf18] sm:$0xff]
    %v1476 = vld [vmem:[#allocation7 + $0xf20] sm:$0xff]
    %v1477 = vld [vmem:[#allocation7 + $0xf28] sm:$0xff]
    %v1478 = vld [vmem:[#allocation7 + $0xf30] sm:$0xff]
    %v1479 = vld [vmem:[#allocation7 + $0xf38] sm:$0xff]
    %v1480 = vld [vmem:[#allocation7 + $0xf40] sm:$0xff]
    %v1481 = vld [vmem:[#allocation7 + $0xf48] sm:$0xff]
    %v1482 = vld [vmem:[#allocation7 + $0xf50] sm:$0xff]
    %v1483 = vld [vmem:[#allocation7 + $0xf58] sm:$0xff]
    %v1484 = vld [vmem:[#allocation7 + $0xf60] sm:$0xff]
    %v1485 = vld [vmem:[#allocation7 + $0xf68] sm:$0xff]
    %v1486 = vld [vmem:[#allocation7 + $0xf70] sm:$0xff]
    %v1487 = vld [vmem:[#allocation7 + $0xf78] sm:$0xff]
    %v1488 = vld [vmem:[#allocation7 + $0xf80] sm:$0xff]
    %v1489 = vld [vmem:[#allocation7 + $0xf88] sm:$0xff]
    %v1490 = vld [vmem:[#allocation7 + $0xf90] sm:$0xff]
    %v1491 = vld [vmem:[#allocation7 + $0xf98] sm:$0xff]
    %v1492 = vld [vmem:[#allocation7 + $0xfa0] sm:$0xff]
    %v1493 = vld [vmem:[#allocation7 + $0xfa8] sm:$0xff]
    %v1494 = vld [vmem:[#allocation7 + $0xfb0] sm:$0xff]
    %v1495 = vld [vmem:[#allocation7 + $0xfb8] sm:$0xff]
    %v1496 = vld [vmem:[#allocation7 + $0xfc0] sm:$0xff]
    %v1497 = vld [vmem:[#allocation7 + $0xfc8] sm:$0xff]
    %v1498 = vld [vmem:[#allocation7 + $0xfd0] sm:$0xff]
    %v1499 = vld [vmem:[#allocation7 + $0xfd8] sm:$0xff]
    %v1500 = vld [vmem:[#allocation7 + $0xfe0] sm:$0xff]
    %v1501 = vld [vmem:[#allocation7 + $0xfe8] sm:$0xff]
    %v1502 = vld [vmem:[#allocation7 + $0xff0] sm:$0xff]
    %v1503 = vld [vmem:[#allocation7 + $0xff8] sm:$0xff]
    %v1504 = vld [vmem:[#allocation7 + $0x1000] sm:$0xff]
    %v1505 = vld [vmem:[#allocation7 + $0x1008] sm:$0xff]
    %v1506 = vld [vmem:[#allocation7 + $0x1010] sm:$0xff]
    %v1507 = vld [vmem:[#allocation7 + $0x1018] sm:$0xff]
    %v1508 = vld [vmem:[#allocation7 + $0x1020] sm:$0xff]
    %v1509 = vld [vmem:[#allocation7 + $0x1028] sm:$0xff]
    %v1510 = vld [vmem:[#allocation7 + $0x1030] sm:$0xff]
    %v1511 = vld [vmem:[#allocation7 + $0x1038] sm:$0xff]
    %v1512 = vld [vmem:[#allocation7 + $0x1040] sm:$0xff]
    %v1513 = vld [vmem:[#allocation7 + $0x1048] sm:$0xff]
    %v1514 = vld [vmem:[#allocation7 + $0x1050] sm:$0xff]
    %v1515 = vld [vmem:[#allocation7 + $0x1058] sm:$0xff]
    %v1516 = vld [vmem:[#allocation7 + $0x1060] sm:$0xff]
    %v1517 = vld [vmem:[#allocation7 + $0x1068] sm:$0xff]
    %v1518 = vld [vmem:[#allocation7 + $0x1070] sm:$0xff]
    %v1519 = vld [vmem:[#allocation7 + $0x1078] sm:$0xff]
    %s1520 = scalar_lea.vmem [#allocation8], 25
    %v1521 = vld [vmem:[%s1520] ss:$8 sm:$0x7]
    %v1523 = vlaneseq
    %v1524 = vshrl.u32 %v1523, 7
    %v1525 = vsub.s32 0, %v1524
    %v1526 = vrot.slane %v1521, %v1525
    %v1527 = vlaneseq
    %v1528 = vshrl.u32 %v1527, 7
    %v1529 = vsub.s32 1, %v1528
    %v1530 = vrot.slane %v1521, %v1529
    %v1531 = vlaneseq
    %v1532 = vshrl.u32 %v1531, 7
    %v1533 = vsub.s32 2, %v1532
    %v1534 = vrot.slane %v1521, %v1533
    %1538 = vmatprep.subr.mxu0 %v1473
    %1539 = vmatpush1.msra.mxu0 %v1472
    %1540 = vmatprep.subr.mxu0 %v1476
    %1541 = vmatpush1.msra.mxu0 %v1475
    %1542 = vmatprep.subr.mxu0 %v1479
    %1543 = vmatpush1.msra.mxu0 %v1478
    %1544 = vmatprep.subr.mxu0 %v1482
    %1545 = vmatpush1.msra.mxu0 %v1481
    %1546 = vmatprep.subr.mxu0 %v1485
    %1547 = vmatpush1.msra.mxu0 %v1484
    %1548 = vmatprep.subr.mxu0 %v1488
    %1549 = vmatpush1.msra.mxu0 %v1487
    %1550 = vmatprep.subr.mxu0 %v1491
    %1551 = vmatpush1.msra.mxu0 %v1490
    %1552 = vmatprep.subr.mxu0 %v1494
    %1553 = vmatpush1.msra.mxu0 %v1493
    %1554 = vmatprep.subr.mxu0 %v1497
    %1555 = vmatpush1.msra.mxu0 %v1496
    %1556 = vmatprep.subr.mxu0 %v1500
    %1557 = vmatpush1.msra.mxu0 %v1499
    %1558 = vmatprep.subr.mxu0 %v1503
    %1559 = vmatpush1.msra.mxu0 %v1502
    %1560 = vmatprep.subr.mxu0 %v1506
    %1561 = vmatpush1.msra.mxu0 %v1505
    %1562 = vmatprep.subr.mxu0 %v1509
    %1563 = vmatpush1.msra.mxu0 %v1508
    %1564 = vmatprep.subr.mxu0 %v1512
    %1565 = vmatpush1.msra.mxu0 %v1511
    %1566 = vmatprep.subr.mxu0 %v1515
    %1567 = vmatpush1.msra.mxu0 %v1514
    %1568 = vmatprep.subr.mxu0 %v1518
    %1569 = vmatpush1.msra.mxu0 %v1517
    %1570 = vmatprep.subr.mxu0 0.0
    %1571 = vmatpush1.msra.mxu0 0.0
    %1572 = vmatprep.subr.mxu0 0.0
    %1573 = vmatpush1.msra.mxu0 0.0
    %1574 = vmatprep.subr.mxu0 0.0
    %1575 = vmatpush1.msra.mxu0 0.0
    %1576 = vmatprep.subr.mxu0 0.0
    %1577 = vmatpush1.msra.mxu0 0.0
    %1578 = vmatprep.subr.mxu0 0.0
    %1579 = vmatpush1.msra.mxu0 0.0
    %1580 = vmatprep.subr.mxu0 0.0
    %1581 = vmatpush1.msra.mxu0 0.0
    %1582 = vmatprep.subr.mxu0 0.0
    %1583 = vmatpush1.msra.mxu0 0.0
    %1584 = vmatprep.subr.mxu0 0.0
    %1585 = vmatpush1.msra.mxu0 0.0
    %1586 = vmatprep.subr.mxu0 0.0
    %1587 = vmatpush1.msra.mxu0 0.0
    %1588 = vmatprep.subr.mxu0 0.0
    %1589 = vmatpush1.msra.mxu0 0.0
    %1590 = vmatprep.subr.mxu0 0.0
    %1591 = vmatpush1.msra.mxu0 0.0
    %1592 = vmatprep.subr.mxu0 0.0
    %1593 = vmatpush1.msra.mxu0 0.0
    %1594 = vmatprep.subr.mxu0 0.0
    %1595 = vmatpush1.msra.mxu0 0.0
    %1596 = vmatprep.subr.mxu0 0.0
    %1597 = vmatpush1.msra.mxu0 0.0
    %1598 = vmatprep.subr.mxu0 0.0
    %1599 = vmatpush1.msra.mxu0 0.0
    %1600 = vmatprep.subr.mxu0 0.0
    %1601 = vmatpush1.msra.mxu0 0.0
    %1602 = vmatprep.mubr.f32.mxu0 0.0
    %1603 = vmatmul.mubr.f32.gmra.mrb[0].mxu0 %v1468
    %v1604 = vpop.f32.mrb[0].mxu0
    %v1605 = vadd.f32 %v1526, %v1604
    %v1606 = vpop.f32.mrb[0].mxu0
    %v1607 = vadd.f32 %v1530, %v1606
    %1608 = vmatprep.mubr.f32.mxu0 0.0
    %1609 = vmatmul.mubr.f32.gmra.mrb[0].mxu0 %v1469
    %v1610 = vpop.f32.mrb[0].mxu0
    %v1611 = vadd.f32 %v1526, %v1610
    %v1612 = vpop.f32.mrb[0].mxu0
    %v1613 = vadd.f32 %v1530, %v1612
    %1614 = vmatprep.mubr.f32.mxu0 0.0
    %1615 = vmatmul.mubr.f32.gmra.mrb[0].mxu0 %v1470
    %v1616 = vpop.f32.mrb[0].mxu0
    %v1617 = vadd.f32 %v1526, %v1616
    %v1618 = vpop.f32.mrb[0].mxu0
    %v1619 = vadd.f32 %v1530, %v1618
    %1620 = vmatprep.mubr.f32.mxu0 0.0
    %1621 = vmatmul.mubr.f32.gmra.mrb[0].mxu0 %v1471
    %v1622 = vpop.f32.mrb[0].mxu0
    %v1623 = vadd.f32 %v1526, %v1622
    %v1624 = vpop.f32.mrb[0].mxu0
    %v1625 = vadd.f32 %v1530, %v1624
    %1626 = vdwg.mxu0
    %1627 = vmatprep.subr.mxu0 0.0
    %1628 = vmatpush1.msra.mxu0 %v1474
    %1629 = vmatprep.subr.mxu0 0.0
    %1630 = vmatpush1.msra.mxu0 %v1477
    %1631 = vmatprep.subr.mxu0 0.0
    %1632 = vmatpush1.msra.mxu0 %v1480
    %1633 = vmatprep.subr.mxu0 0.0
    %1634 = vmatpush1.msra.mxu0 %v1483
    %1635 = vmatprep.subr.mxu0 0.0
    %1636 = vmatpush1.msra.mxu0 %v1486
    %1637 = vmatprep.subr.mxu0 0.0
    %1638 = vmatpush1.msra.mxu0 %v1489
    %1639 = vmatprep.subr.mxu0 0.0
    %1640 = vmatpush1.msra.mxu0 %v1492
    %1641 = vmatprep.subr.mxu0 0.0
    %1642 = vmatpush1.msra.mxu0 %v1495
    %1643 = vmatprep.subr.mxu0 0.0
    %1644 = vmatpush1.msra.mxu0 %v1498
    %1645 = vmatprep.subr.mxu0 0.0
    %1646 = vmatpush1.msra.mxu0 %v1501
    %1647 = vmatprep.subr.mxu0 0.0
    %1648 = vmatpush1.msra.mxu0 %v1504
    %1649 = vmatprep.subr.mxu0 0.0
    %1650 = vmatpush1.msra.mxu0 %v1507
    %1651 = vmatprep.subr.mxu0 0.0
    %1652 = vmatpush1.msra.mxu0 %v1510
    %1653 = vmatprep.subr.mxu0 0.0
    %1654 = vmatpush1.msra.mxu0 %v1513
    %1655 = vmatprep.subr.mxu0 0.0
    %1656 = vmatpush1.msra.mxu0 %v1516
    %1657 = vmatprep.subr.mxu0 0.0
    %1658 = vmatpush1.msra.mxu0 %v1519
    %1659 = vmatprep.subr.mxu0 0.0
    %1660 = vmatpush1.msra.mxu0 0.0
    %1661 = vmatprep.subr.mxu0 0.0
    %1662 = vmatpush1.msra.mxu0 0.0
    %1663 = vmatprep.subr.mxu0 0.0
    %1664 = vmatpush1.msra.mxu0 0.0
    %1665 = vmatprep.subr.mxu0 0.0
    %1666 = vmatpush1.msra.mxu0 0.0
    %1667 = vmatprep.subr.mxu0 0.0
    %1668 = vmatpush1.msra.mxu0 0.0
    %1669 = vmatprep.subr.mxu0 0.0
    %1670 = vmatpush1.msra.mxu0 0.0
    %1671 = vmatprep.subr.mxu0 0.0
    %1672 = vmatpush1.msra.mxu0 0.0
    %1673 = vmatprep.subr.mxu0 0.0
    %1674 = vmatpush1.msra.mxu0 0.0
    %1675 = vmatprep.subr.mxu0 0.0
    %1676 = vmatpush1.msra.mxu0 0.0
    %1677 = vmatprep.subr.mxu0 0.0
    %1678 = vmatpush1.msra.mxu0 0.0
    %1679 = vmatprep.subr.mxu0 0.0
    %1680 = vmatpush1.msra.mxu0 0.0
    %1681 = vmatprep.subr.mxu0 0.0
    %1682 = vmatpush1.msra.mxu0 0.0
    %1683 = vmatprep.subr.mxu0 0.0
    %1684 = vmatpush1.msra.mxu0 0.0
    %1685 = vmatprep.subr.mxu0 0.0
    %1686 = vmatpush1.msra.mxu0 0.0
    %1687 = vmatprep.subr.mxu0 0.0
    %1688 = vmatpush1.msra.mxu0 0.0
    %1689 = vmatprep.subr.mxu0 0.0
    %1690 = vmatpush1.msra.mxu0 0.0
    %1691 = vmatprep.mubr.f32.mxu0 0.0
    %1692 = vmatmul.mubr.f32.gmra.mrb[0].mxu0 %v1468
    %v1693 = vpop.f32.mrb[0].mxu0
    %v1694 = vadd.f32 %v1534, %v1693
    %v1695 = vpop.f32.mrb[0].mxu0
    %1696 = vmatprep.mubr.f32.mxu0 0.0
    %1697 = vmatmul.mubr.f32.gmra.mrb[0].mxu0 %v1469
    %v1698 = vpop.f32.mrb[0].mxu0
    %v1699 = vadd.f32 %v1534, %v1698
    %v1700 = vpop.f32.mrb[0].mxu0
    %1701 = vmatprep.mubr.f32.mxu0 0.0
    %1702 = vmatmul.mubr.f32.gmra.mrb[0].mxu0 %v1470
    %v1703 = vpop.f32.mrb[0].mxu0
    %v1704 = vadd.f32 %v1534, %v1703
    %v1705 = vpop.f32.mrb[0].mxu0
    %1706 = vmatprep.mubr.f32.mxu0 0.0
    %1707 = vmatmul.mubr.f32.gmra.mrb[0].mxu0 %v1471
    %v1708 = vpop.f32.mrb[0].mxu0
    %v1709 = vadd.f32 %v1534, %v1708
    %v1710 = vpop.f32.mrb[0].mxu0
    %1711 = vdwg.mxu0
    %v1712 = vld [vmem:[#allocation7 + $0x1080] sm:$0xff]
    %v1713 = vld [vmem:[#allocation7 + $0x1098] sm:$0xff]
    %v1714 = vld [vmem:[#allocation7 + $0x10b0] sm:$0xff]
    %v1715 = vld [vmem:[#allocation7 + $0x10c8] sm:$0xff]
    %v1716 = vld [vmem:[#allocation7 + $0x10e0] sm:$0xff]
    %v1717 = vld [vmem:[#allocation7 + $0x10f8] sm:$0xff]
    %v1718 = vld [vmem:[#allocation7 + $0x1110] sm:$0xff]
    %v1719 = vld [vmem:[#allocation7 + $0x1128] sm:$0xff]
    %v1720 = vld [vmem:[#allocation7 + $0x1140] sm:$0xff]
    %v1721 = vld [vmem:[#allocation7 + $0x1158] sm:$0xff]
    %v1722 = vld [vmem:[#allocation7 + $0x1170] sm:$0xff]
    %v1723 = vld [vmem:[#allocation7 + $0x1188] sm:$0xff]
    %v1724 = vld [vmem:[#allocation7 + $0x11a0] sm:$0xff]
    %v1725 = vld [vmem:[#allocation7 + $0x11b8] sm:$0xff]
    %v1726 = vld [vmem:[#allocation7 + $0x11d0] sm:$0xff]
    %v1727 = vld [vmem:[#allocation7 + $0x11e8] sm:$0xff]
    %v1728 = vld [vmem:[#allocation8 + $0x1a] ss:$0 sm:$0xff]
    %v1729 = vmul.f32 %v1605, %v1607
    %v1730 = vmul.f32 %v1611, %v1613
    %1731 = vmatprep.subr.mxu0 0.0
    %1732 = vmatpush1.msra.mxu0 %v335
    %1733 = vmatprep.subr.mxu0 0.0
    %1734 = vmatpush1.msra.mxu0 %v336
    %1735 = vmatprep.subr.mxu0 0.0
    %1736 = vmatpush1.msra.mxu0 %v337
    %1737 = vmatprep.subr.mxu0 0.0
    %1738 = vmatpush1.msra.mxu0 %v338
    %1739 = vmatprep.subr.mxu0 0.0
    %1740 = vmatpush1.msra.mxu0 %v339
    %1741 = vmatprep.subr.mxu0 0.0
    %1742 = vmatpush1.msra.mxu0 %v340
    %1743 = vmatprep.subr.mxu0 0.0
    %1744 = vmatpush1.msra.mxu0 %v341
    %1745 = vmatprep.subr.mxu0 0.0
    %1746 = vmatpush1.msra.mxu0 %v342
    %1747 = vmatprep.subr.mxu0 0.0
    %1748 = vmatpush1.msra.mxu0 %v343
    %1749 = vmatprep.subr.mxu0 0.0
    %1750 = vmatpush1.msra.mxu0 %v344
    %1751 = vmatprep.subr.mxu0 0.0
    %1752 = vmatpush1.msra.mxu0 %v345
    %1753 = vmatprep.subr.mxu0 0.0
    %1754 = vmatpush1.msra.mxu0 %v346
    %1755 = vmatprep.subr.mxu0 0.0
    %1756 = vmatpush1.msra.mxu0 %v347
    %1757 = vmatprep.subr.mxu0 0.0
    %1758 = vmatpush1.msra.mxu0 %v348
    %1759 = vmatprep.subr.mxu0 0.0
    %1760 = vmatpush1.msra.mxu0 %v349
    %1761 = vmatprep.subr.mxu0 0.0
    %1762 = vmatpush1.msra.mxu0 %v350
    %1763 = vmatprep.subr.mxu0 0.0
    %1764 = vmatpush1.msra.mxu0 0.0
    %1765 = vmatprep.subr.mxu0 0.0
    %1766 = vmatpush1.msra.mxu0 0.0
    %1767 = vmatprep.subr.mxu0 0.0
    %1768 = vmatpush1.msra.mxu0 0.0
    %1769 = vmatprep.subr.mxu0 0.0
    %1770 = vmatpush1.msra.mxu0 0.0
    %1771 = vmatprep.subr.mxu0 0.0
    %1772 = vmatpush1.msra.mxu0 0.0
    %1773 = vmatprep.subr.mxu0 0.0
    %1774 = vmatpush1.msra.mxu0 0.0
    %1775 = vmatprep.subr.mxu0 0.0
    %1776 = vmatpush1.msra.mxu0 0.0
    %1777 = vmatprep.subr.mxu0 0.0
    %1778 = vmatpush1.msra.mxu0 0.0
    %1779 = vmatprep.subr.mxu0 0.0
    %1780 = vmatpush1.msra.mxu0 0.0
    %1781 = vmatprep.subr.mxu0 0.0
    %1782 = vmatpush1.msra.mxu0 0.0
    %1783 = vmatprep.subr.mxu0 0.0
    %1784 = vmatpush1.msra.mxu0 0.0
    %1785 = vmatprep.subr.mxu0 0.0
    %1786 = vmatpush1.msra.mxu0 0.0
    %1787 = vmatprep.subr.mxu0 0.0
    %1788 = vmatpush1.msra.mxu0 0.0
    %1789 = vmatprep.subr.mxu0 0.0
    %1790 = vmatpush1.msra.mxu0 0.0
    %1791 = vmatprep.subr.mxu0 0.0
    %1792 = vmatpush1.msra.mxu0 0.0
    %1793 = vmatprep.subr.mxu0 0.0
    %1794 = vmatpush1.msra.mxu0 0.0
    %1795 = vmatprep.mubr.f32.mxu0 0.0
    %1796 = vmatmul.mubr.f32.gmra.mrb[0].mxu0 %v1729
    %v1797 = vpop.f32.mrb[0].mxu0
    %v1798 = vadd.f32 0.0, %v1797
    %v1799 = vpop.f32.mrb[0].mxu0
    %1800 = vmatprep.mubr.f32.mxu0 0.0
    %1801 = vmatmul.mubr.f32.gmra.mrb[0].mxu0 %v1730
    %v1802 = vpop.f32.mrb[0].mxu0
    %v1803 = vadd.f32 0.0, %v1802
    %v1804 = vpop.f32.mrb[0].mxu0
    %1805 = vdwg.mxu0
    %v1806 = vmul.f32 %v1605, %v1619
    %v1807 = vmul.f32 %v1611, %v1625
    %1808 = vmatprep.subr.mxu0 0.0
    %1809 = vmatpush1.msra.mxu0 %v335
    %1810 = vmatprep.subr.mxu0 0.0
    %1811 = vmatpush1.msra.mxu0 %v336
    %1812 = vmatprep.subr.mxu0 0.0
    %1813 = vmatpush1.msra.mxu0 %v337
    %1814 = vmatprep.subr.mxu0 0.0
    %1815 = vmatpush1.msra.mxu0 %v338
    %1816 = vmatprep.subr.mxu0 0.0
    %1817 = vmatpush1.msra.mxu0 %v339
    %1818 = vmatprep.subr.mxu0 0.0
    %1819 = vmatpush1.msra.mxu0 %v340
    %1820 = vmatprep.subr.mxu0 0.0
    %1821 = vmatpush1.msra.mxu0 %v341
    %1822 = vmatprep.subr.mxu0 0.0
    %1823 = vmatpush1.msra.mxu0 %v342
    %1824 = vmatprep.subr.mxu0 0.0
    %1825 = vmatpush1.msra.mxu0 %v343
    %1826 = vmatprep.subr.mxu0 0.0
    %1827 = vmatpush1.msra.mxu0 %v344
    %1828 = vmatprep.subr.mxu0 0.0
    %1829 = vmatpush1.msra.mxu0 %v345
    %1830 = vmatprep.subr.mxu0 0.0
    %1831 = vmatpush1.msra.mxu0 %v346
    %1832 = vmatprep.subr.mxu0 0.0
    %1833 = vmatpush1.msra.mxu0 %v347
    %1834 = vmatprep.subr.mxu0 0.0
    %1835 = vmatpush1.msra.mxu0 %v348
    %1836 = vmatprep.subr.mxu0 0.0
    %1837 = vmatpush1.msra.mxu0 %v349
    %1838 = vmatprep.subr.mxu0 0.0
    %1839 = vmatpush1.msra.mxu0 %v350
    %1840 = vmatprep.subr.mxu0 0.0
    %1841 = vmatpush1.msra.mxu0 0.0
    %1842 = vmatprep.subr.mxu0 0.0
    %1843 = vmatpush1.msra.mxu0 0.0
    %1844 = vmatprep.subr.mxu0 0.0
    %1845 = vmatpush1.msra.mxu0 0.0
    %1846 = vmatprep.subr.mxu0 0.0
    %1847 = vmatpush1.msra.mxu0 0.0
    %1848 = vmatprep.subr.mxu0 0.0
    %1849 = vmatpush1.msra.mxu0 0.0
    %1850 = vmatprep.subr.mxu0 0.0
    %1851 = vmatpush1.msra.mxu0 0.0
    %1852 = vmatprep.subr.mxu0 0.0
    %1853 = vmatpush1.msra.mxu0 0.0
    %1854 = vmatprep.subr.mxu0 0.0
    %1855 = vmatpush1.msra.mxu0 0.0
    %1856 = vmatprep.subr.mxu0 0.0
    %1857 = vmatpush1.msra.mxu0 0.0
    %1858 = vmatprep.subr.mxu0 0.0
    %1859 = vmatpush1.msra.mxu0 0.0
    %1860 = vmatprep.subr.mxu0 0.0
    %1861 = vmatpush1.msra.mxu0 0.0
    %1862 = vmatprep.subr.mxu0 0.0
    %1863 = vmatpush1.msra.mxu0 0.0
    %1864 = vmatprep.subr.mxu0 0.0
    %1865 = vmatpush1.msra.mxu0 0.0
    %1866 = vmatprep.subr.mxu0 0.0
    %1867 = vmatpush1.msra.mxu0 0.0
    %1868 = vmatprep.subr.mxu0 0.0
    %1869 = vmatpush1.msra.mxu0 0.0
    %1870 = vmatprep.subr.mxu0 0.0
    %1871 = vmatpush1.msra.mxu0 0.0
    %1872 = vmatprep.mubr.f32.mxu0 0.0
    %1873 = vmatmul.mubr.f32.gmra.mrb[0].mxu0 %v1806
    %v1874 = vpop.f32.mrb[0].mxu0
    %v1875 = vadd.f32 0.0, %v1874
    %v1876 = vpop.f32.mrb[0].mxu0
    %1877 = vmatprep.mubr.f32.mxu0 0.0
    %1878 = vmatmul.mubr.f32.gmra.mrb[0].mxu0 %v1807
    %v1879 = vpop.f32.mrb[0].mxu0
    %v1880 = vadd.f32 0.0, %v1879
    %v1881 = vpop.f32.mrb[0].mxu0
    %1882 = vdwg.mxu0
    %v1883 = vmax.f32 %v1798, %v1875
    %v1884 = vmax.f32 %v1803, %v1880
    %v1885 = vsub.f32 %v1798, %v1883
    %v1886 = vsub.f32 %v1803, %v1884
    %v1887 = vmul.f32 %v1885, 1.442695
    %v1888 = vpow.pop %v1887
    %v1889 = vmul.f32 %v1886, 1.442695
    %v1890 = vpow.pop %v1889
    %v1891 = vsub.f32 %v1875, %v1883
    %v1892 = vsub.f32 %v1880, %v1884
    %v1893 = vmul.f32 %v1891, 1.442695
    %v1894 = vpow.pop %v1893
    %v1895 = vmul.f32 %v1892, 1.442695
    %v1896 = vpow.pop %v1895
    %v1897 = vadd.f32 %v1888, %v1894
    %v1898 = vadd.f32 %v1890, %v1896
    %v1899 = vrcp.pop %v1897
    %v1900 = vrcp.pop %v1898
    %v1901 = vmul.f32 %v1888, %v1899
    %v1902 = vmul.f32 %v1890, %v1900
    %vm1903 = vcmask 31744
    %v1905 = vsel %vm1903, %v1901, 0
    %v1908 = vsel %vm1903, %v1902, 0
    %vm1910 = vcmask 1043456
    %v1912 = vsel %vm1910, %v359, 0
    %1914 = vmatprep.subr.mxu0 0.0
    %1915 = vmatpush1.msra.mxu0 %v1912
    %1916 = vmatprep.subr.mxu0 0.0
    %1917 = vmatpush1.msra.mxu0 0.0
    %1918 = vmatprep.subr.mxu0 0.0
    %1919 = vmatpush1.msra.mxu0 0.0
    %1920 = vmatprep.subr.mxu0 0.0
    %1921 = vmatpush1.msra.mxu0 0.0
    %1922 = vmatprep.subr.mxu0 0.0
    %1923 = vmatpush1.msra.mxu0 0.0
    %1924 = vmatprep.subr.mxu0 0.0
    %1925 = vmatpush1.msra.mxu0 0.0
    %1926 = vmatprep.subr.mxu0 0.0
    %1927 = vmatpush1.msra.mxu0 0.0
    %1928 = vmatprep.subr.mxu0 0.0
    %1929 = vmatpush1.msra.mxu0 0.0
    %1930 = vmatprep.subr.mxu0 0.0
    %1931 = vmatpush1.msra.mxu0 0.0
    %1932 = vmatprep.subr.mxu0 0.0
    %1933 = vmatpush1.msra.mxu0 0.0
    %1934 = vmatprep.subr.mxu0 0.0
    %1935 = vmatpush1.msra.mxu0 0.0
    %1936 = vmatprep.subr.mxu0 0.0
    %1937 = vmatpush1.msra.mxu0 0.0
    %1938 = vmatprep.subr.mxu0 0.0
    %1939 = vmatpush1.msra.mxu0 0.0
    %1940 = vmatprep.subr.mxu0 0.0
    %1941 = vmatpush1.msra.mxu0 0.0
    %1942 = vmatprep.subr.mxu0 0.0
    %1943 = vmatpush1.msra.mxu0 0.0
    %1944 = vmatprep.subr.mxu0 0.0
    %1945 = vmatpush1.msra.mxu0 0.0
    %1946 = vmatprep.subr.mxu0 0.0
    %1947 = vmatpush1.msra.mxu0 0.0
    %1948 = vmatprep.subr.mxu0 0.0
    %1949 = vmatpush1.msra.mxu0 0.0
    %1950 = vmatprep.subr.mxu0 0.0
    %1951 = vmatpush1.msra.mxu0 0.0
    %1952 = vmatprep.subr.mxu0 0.0
    %1953 = vmatpush1.msra.mxu0 0.0
    %1954 = vmatprep.subr.mxu0 0.0
    %1955 = vmatpush1.msra.mxu0 0.0
    %1956 = vmatprep.subr.mxu0 0.0
    %1957 = vmatpush1.msra.mxu0 0.0
    %1958 = vmatprep.subr.mxu0 0.0
    %1959 = vmatpush1.msra.mxu0 0.0
    %1960 = vmatprep.subr.mxu0 0.0
    %1961 = vmatpush1.msra.mxu0 0.0
    %1962 = vmatprep.subr.mxu0 0.0
    %1963 = vmatpush1.msra.mxu0 0.0
    %1964 = vmatprep.subr.mxu0 0.0
    %1965 = vmatpush1.msra.mxu0 0.0
    %1966 = vmatprep.subr.mxu0 0.0
    %1967 = vmatpush1.msra.mxu0 0.0
    %1968 = vmatprep.subr.mxu0 0.0
    %1969 = vmatpush1.msra.mxu0 0.0
    %1970 = vmatprep.subr.mxu0 0.0
    %1971 = vmatpush1.msra.mxu0 0.0
    %1972 = vmatprep.subr.mxu0 0.0
    %1973 = vmatpush1.msra.mxu0 0.0
    %1974 = vmatprep.subr.mxu0 0.0
    %1975 = vmatpush1.msra.mxu0 0.0
    %1976 = vmatprep.subr.mxu0 0.0
    %1977 = vmatpush1.msra.mxu0 0.0
    %1978 = vmatprep.mubr.f32.mxu0 0.0
    %1979 = vmatmul.mubr.f32.gmra.mrb[0].mxu0 %v1905
    %v1980 = vpop.f32.mrb[0].mxu0
    %v1981 = vadd.f32 0.0, %v1980
    %v1982 = vpop.f32.mrb[0].mxu0
    %1983 = vmatprep.mubr.f32.mxu0 0.0
    %1984 = vmatmul.mubr.f32.gmra.mrb[0].mxu0 %v1908
    %v1985 = vpop.f32.mrb[0].mxu0
    %v1986 = vadd.f32 0.0, %v1985
    %v1987 = vpop.f32.mrb[0].mxu0
    %1988 = vdwg.mxu0
    %v1989 = vmul.f32 %v1981, %v1694
    %v1990 = vmul.f32 %v1986, %v1699
    %v1991 = vmul.f32 %v1894, %v1899
    %v1992 = vmul.f32 %v1896, %v1900
    %v1994 = vsel %vm1903, %v1991, 0
    %v1997 = vsel %vm1903, %v1992, 0
    %1999 = vmatprep.subr.mxu0 0.0
    %2000 = vmatpush1.msra.mxu0 %v1912
    %2001 = vmatprep.subr.mxu0 0.0
    %2002 = vmatpush1.msra.mxu0 0.0
    %2003 = vmatprep.subr.mxu0 0.0
    %2004 = vmatpush1.msra.mxu0 0.0
    %2005 = vmatprep.subr.mxu0 0.0
    %2006 = vmatpush1.msra.mxu0 0.0
    %2007 = vmatprep.subr.mxu0 0.0
    %2008 = vmatpush1.msra.mxu0 0.0
    %2009 = vmatprep.subr.mxu0 0.0
    %2010 = vmatpush1.msra.mxu0 0.0
    %2011 = vmatprep.subr.mxu0 0.0
    %2012 = vmatpush1.msra.mxu0 0.0
    %2013 = vmatprep.subr.mxu0 0.0
    %2014 = vmatpush1.msra.mxu0 0.0
    %2015 = vmatprep.subr.mxu0 0.0
    %2016 = vmatpush1.msra.mxu0 0.0
    %2017 = vmatprep.subr.mxu0 0.0
    %2018 = vmatpush1.msra.mxu0 0.0
    %2019 = vmatprep.subr.mxu0 0.0
    %2020 = vmatpush1.msra.mxu0 0.0
    %2021 = vmatprep.subr.mxu0 0.0
    %2022 = vmatpush1.msra.mxu0 0.0
    %2023 = vmatprep.subr.mxu0 0.0
    %2024 = vmatpush1.msra.mxu0 0.0
    %2025 = vmatprep.subr.mxu0 0.0
    %2026 = vmatpush1.msra.mxu0 0.0
    %2027 = vmatprep.subr.mxu0 0.0
    %2028 = vmatpush1.msra.mxu0 0.0
    %2029 = vmatprep.subr.mxu0 0.0
    %2030 = vmatpush1.msra.mxu0 0.0
    %2031 = vmatprep.subr.mxu0 0.0
    %2032 = vmatpush1.msra.mxu0 0.0
    %2033 = vmatprep.subr.mxu0 0.0
    %2034 = vmatpush1.msra.mxu0 0.0
    %2035 = vmatprep.subr.mxu0 0.0
    %2036 = vmatpush1.msra.mxu0 0.0
    %2037 = vmatprep.subr.mxu0 0.0
    %2038 = vmatpush1.msra.mxu0 0.0
    %2039 = vmatprep.subr.mxu0 0.0
    %2040 = vmatpush1.msra.mxu0 0.0
    %2041 = vmatprep.subr.mxu0 0.0
    %2042 = vmatpush1.msra.mxu0 0.0
    %2043 = vmatprep.subr.mxu0 0.0
    %2044 = vmatpush1.msra.mxu0 0.0
    %2045 = vmatprep.subr.mxu0 0.0
    %2046 = vmatpush1.msra.mxu0 0.0
    %2047 = vmatprep.subr.mxu0 0.0
    %2048 = vmatpush1.msra.mxu0 0.0
    %2049 = vmatprep.subr.mxu0 0.0
    %2050 = vmatpush1.msra.mxu0 0.0
    %2051 = vmatprep.subr.mxu0 0.0
    %2052 = vmatpush1.msra.mxu0 0.0
    %2053 = vmatprep.subr.mxu0 0.0
    %2054 = vmatpush1.msra.mxu0 0.0
    %2055 = vmatprep.subr.mxu0 0.0
    %2056 = vmatpush1.msra.mxu0 0.0
    %2057 = vmatprep.subr.mxu0 0.0
    %2058 = vmatpush1.msra.mxu0 0.0
    %2059 = vmatprep.subr.mxu0 0.0
    %2060 = vmatpush1.msra.mxu0 0.0
    %2061 = vmatprep.subr.mxu0 0.0
    %2062 = vmatpush1.msra.mxu0 0.0
    %2063 = vmatprep.mubr.f32.mxu0 0.0
    %2064 = vmatmul.mubr.f32.gmra.mrb[0].mxu0 %v1994
    %v2065 = vpop.f32.mrb[0].mxu0
    %v2066 = vadd.f32 0.0, %v2065
    %v2067 = vpop.f32.mrb[0].mxu0
    %2068 = vmatprep.mubr.f32.mxu0 0.0
    %2069 = vmatmul.mubr.f32.gmra.mrb[0].mxu0 %v1997
    %v2070 = vpop.f32.mrb[0].mxu0
    %v2071 = vadd.f32 0.0, %v2070
    %v2072 = vpop.f32.mrb[0].mxu0
    %2073 = vdwg.mxu0
    %v2074 = vmul.f32 %v2066, %v1704
    %v2075 = vmul.f32 %v2071, %v1709
    %v2076 = vadd.f32 %v1989, %v2074
    %v2077 = vadd.f32 %v1990, %v2075
    %v2078 = vmul.f32 %v1617, %v1607
    %v2079 = vmul.f32 %v1623, %v1613
    %2080 = vmatprep.subr.mxu0 0.0
    %2081 = vmatpush1.msra.mxu0 %v335
    %2082 = vmatprep.subr.mxu0 0.0
    %2083 = vmatpush1.msra.mxu0 %v336
    %2084 = vmatprep.subr.mxu0 0.0
    %2085 = vmatpush1.msra.mxu0 %v337
    %2086 = vmatprep.subr.mxu0 0.0
    %2087 = vmatpush1.msra.mxu0 %v338
    %2088 = vmatprep.subr.mxu0 0.0
    %2089 = vmatpush1.msra.mxu0 %v339
    %2090 = vmatprep.subr.mxu0 0.0
    %2091 = vmatpush1.msra.mxu0 %v340
    %2092 = vmatprep.subr.mxu0 0.0
    %2093 = vmatpush1.msra.mxu0 %v341
    %2094 = vmatprep.subr.mxu0 0.0
    %2095 = vmatpush1.msra.mxu0 %v342
    %2096 = vmatprep.subr.mxu0 0.0
    %2097 = vmatpush1.msra.mxu0 %v343
    %2098 = vmatprep.subr.mxu0 0.0
    %2099 = vmatpush1.msra.mxu0 %v344
    %2100 = vmatprep.subr.mxu0 0.0
    %2101 = vmatpush1.msra.mxu0 %v345
    %2102 = vmatprep.subr.mxu0 0.0
    %2103 = vmatpush1.msra.mxu0 %v346
    %2104 = vmatprep.subr.mxu0 0.0
    %2105 = vmatpush1.msra.mxu0 %v347
    %2106 = vmatprep.subr.mxu0 0.0
    %2107 = vmatpush1.msra.mxu0 %v348
    %2108 = vmatprep.subr.mxu0 0.0
    %2109 = vmatpush1.msra.mxu0 %v349
    %2110 = vmatprep.subr.mxu0 0.0
    %2111 = vmatpush1.msra.mxu0 %v350
    %2112 = vmatprep.subr.mxu0 0.0
    %2113 = vmatpush1.msra.mxu0 0.0
    %2114 = vmatprep.subr.mxu0 0.0
    %2115 = vmatpush1.msra.mxu0 0.0
    %2116 = vmatprep.subr.mxu0 0.0
    %2117 = vmatpush1.msra.mxu0 0.0
    %2118 = vmatprep.subr.mxu0 0.0
    %2119 = vmatpush1.msra.mxu0 0.0
    %2120 = vmatprep.subr.mxu0 0.0
    %2121 = vmatpush1.msra.mxu0 0.0
    %2122 = vmatprep.subr.mxu0 0.0
    %2123 = vmatpush1.msra.mxu0 0.0
    %2124 = vmatprep.subr.mxu0 0.0
    %2125 = vmatpush1.msra.mxu0 0.0
    %2126 = vmatprep.subr.mxu0 0.0
    %2127 = vmatpush1.msra.mxu0 0.0
    %2128 = vmatprep.subr.mxu0 0.0
    %2129 = vmatpush1.msra.mxu0 0.0
    %2130 = vmatprep.subr.mxu0 0.0
    %2131 = vmatpush1.msra.mxu0 0.0
    %2132 = vmatprep.subr.mxu0 0.0
    %2133 = vmatpush1.msra.mxu0 0.0
    %2134 = vmatprep.subr.mxu0 0.0
    %2135 = vmatpush1.msra.mxu0 0.0
    %2136 = vmatprep.subr.mxu0 0.0
    %2137 = vmatpush1.msra.mxu0 0.0
    %2138 = vmatprep.subr.mxu0 0.0
    %2139 = vmatpush1.msra.mxu0 0.0
    %2140 = vmatprep.subr.mxu0 0.0
    %2141 = vmatpush1.msra.mxu0 0.0
    %2142 = vmatprep.subr.mxu0 0.0
    %2143 = vmatpush1.msra.mxu0 0.0
    %2144 = vmatprep.mubr.f32.mxu0 0.0
    %2145 = vmatmul.mubr.f32.gmra.mrb[0].mxu0 %v2078
    %v2146 = vpop.f32.mrb[0].mxu0
    %v2147 = vadd.f32 0.0, %v2146
    %v2148 = vpop.f32.mrb[0].mxu0
    %2149 = vmatprep.mubr.f32.mxu0 0.0
    %2150 = vmatmul.mubr.f32.gmra.mrb[0].mxu0 %v2079
    %v2151 = vpop.f32.mrb[0].mxu0
    %v2152 = vadd.f32 0.0, %v2151
    %v2153 = vpop.f32.mrb[0].mxu0
    %2154 = vdwg.mxu0
    %v2155 = vmul.f32 %v1617, %v1619
    %v2156 = vmul.f32 %v1623, %v1625
    %2157 = vmatprep.subr.mxu0 0.0
    %2158 = vmatpush1.msra.mxu0 %v335
    %2159 = vmatprep.subr.mxu0 0.0
    %2160 = vmatpush1.msra.mxu0 %v336
    %2161 = vmatprep.subr.mxu0 0.0
    %2162 = vmatpush1.msra.mxu0 %v337
    %2163 = vmatprep.subr.mxu0 0.0
    %2164 = vmatpush1.msra.mxu0 %v338
    %2165 = vmatprep.subr.mxu0 0.0
    %2166 = vmatpush1.msra.mxu0 %v339
    %2167 = vmatprep.subr.mxu0 0.0
    %2168 = vmatpush1.msra.mxu0 %v340
    %2169 = vmatprep.subr.mxu0 0.0
    %2170 = vmatpush1.msra.mxu0 %v341
    %2171 = vmatprep.subr.mxu0 0.0
    %2172 = vmatpush1.msra.mxu0 %v342
    %2173 = vmatprep.subr.mxu0 0.0
    %2174 = vmatpush1.msra.mxu0 %v343
    %2175 = vmatprep.subr.mxu0 0.0
    %2176 = vmatpush1.msra.mxu0 %v344
    %2177 = vmatprep.subr.mxu0 0.0
    %2178 = vmatpush1.msra.mxu0 %v345
    %2179 = vmatprep.subr.mxu0 0.0
    %2180 = vmatpush1.msra.mxu0 %v346
    %2181 = vmatprep.subr.mxu0 0.0
    %2182 = vmatpush1.msra.mxu0 %v347
    %2183 = vmatprep.subr.mxu0 0.0
    %2184 = vmatpush1.msra.mxu0 %v348
    %2185 = vmatprep.subr.mxu0 0.0
    %2186 = vmatpush1.msra.mxu0 %v349
    %2187 = vmatprep.subr.mxu0 0.0
    %2188 = vmatpush1.msra.mxu0 %v350
    %2189 = vmatprep.subr.mxu0 0.0
    %2190 = vmatpush1.msra.mxu0 0.0
    %2191 = vmatprep.subr.mxu0 0.0
    %2192 = vmatpush1.msra.mxu0 0.0
    %2193 = vmatprep.subr.mxu0 0.0
    %2194 = vmatpush1.msra.mxu0 0.0
    %2195 = vmatprep.subr.mxu0 0.0
    %2196 = vmatpush1.msra.mxu0 0.0
    %2197 = vmatprep.subr.mxu0 0.0
    %2198 = vmatpush1.msra.mxu0 0.0
    %2199 = vmatprep.subr.mxu0 0.0
    %2200 = vmatpush1.msra.mxu0 0.0
    %2201 = vmatprep.subr.mxu0 0.0
    %2202 = vmatpush1.msra.mxu0 0.0
    %2203 = vmatprep.subr.mxu0 0.0
    %2204 = vmatpush1.msra.mxu0 0.0
    %2205 = vmatprep.subr.mxu0 0.0
    %2206 = vmatpush1.msra.mxu0 0.0
    %2207 = vmatprep.subr.mxu0 0.0
    %2208 = vmatpush1.msra.mxu0 0.0
    %2209 = vmatprep.subr.mxu0 0.0
    %2210 = vmatpush1.msra.mxu0 0.0
    %2211 = vmatprep.subr.mxu0 0.0
    %2212 = vmatpush1.msra.mxu0 0.0
    %2213 = vmatprep.subr.mxu0 0.0
    %2214 = vmatpush1.msra.mxu0 0.0
    %2215 = vmatprep.subr.mxu0 0.0
    %2216 = vmatpush1.msra.mxu0 0.0
    %2217 = vmatprep.subr.mxu0 0.0
    %2218 = vmatpush1.msra.mxu0 0.0
    %2219 = vmatprep.subr.mxu0 0.0
    %2220 = vmatpush1.msra.mxu0 0.0
    %2221 = vmatprep.mubr.f32.mxu0 0.0
    %2222 = vmatmul.mubr.f32.gmra.mrb[0].mxu0 %v2155
    %v2223 = vpop.f32.mrb[0].mxu0
    %v2224 = vadd.f32 0.0, %v2223
    %v2225 = vpop.f32.mrb[0].mxu0
    %2226 = vmatprep.mubr.f32.mxu0 0.0
    %2227 = vmatmul.mubr.f32.gmra.mrb[0].mxu0 %v2156
    %v2228 = vpop.f32.mrb[0].mxu0
    %v2229 = vadd.f32 0.0, %v2228
    %v2230 = vpop.f32.mrb[0].mxu0
    %2231 = vdwg.mxu0
    %v2232 = vmax.f32 %v2147, %v2224
    %v2233 = vmax.f32 %v2152, %v2229
    %v2234 = vsub.f32 %v2147, %v2232
    %v2235 = vsub.f32 %v2152, %v2233
    %v2236 = vmul.f32 %v2234, 1.442695
    %v2237 = vpow.pop %v2236
    %v2238 = vmul.f32 %v2235, 1.442695
    %v2239 = vpow.pop %v2238
    %v2240 = vsub.f32 %v2224, %v2232
    %v2241 = vsub.f32 %v2229, %v2233
    %v2242 = vmul.f32 %v2240, 1.442695
    %v2243 = vpow.pop %v2242
    %v2244 = vmul.f32 %v2241, 1.442695
    %v2245 = vpow.pop %v2244
    %v2246 = vadd.f32 %v2237, %v2243
    %v2247 = vadd.f32 %v2239, %v2245
    %v2248 = vrcp.pop %v2246
    %v2249 = vrcp.pop %v2247
    %v2250 = vmul.f32 %v2237, %v2248
    %v2251 = vmul.f32 %v2239, %v2249
    %v2253 = vsel %vm1903, %v2250, 0
    %v2256 = vsel %vm1903, %v2251, 0
    %2258 = vmatprep.subr.mxu0 0.0
    %2259 = vmatpush1.msra.mxu0 %v1912
    %2260 = vmatprep.subr.mxu0 0.0
    %2261 = vmatpush1.msra.mxu0 0.0
    %2262 = vmatprep.subr.mxu0 0.0
    %2263 = vmatpush1.msra.mxu0 0.0
    %2264 = vmatprep.subr.mxu0 0.0
    %2265 = vmatpush1.msra.mxu0 0.0
    %2266 = vmatprep.subr.mxu0 0.0
    %2267 = vmatpush1.msra.mxu0 0.0
    %2268 = vmatprep.subr.mxu0 0.0
    %2269 = vmatpush1.msra.mxu0 0.0
    %2270 = vmatprep.subr.mxu0 0.0
    %2271 = vmatpush1.msra.mxu0 0.0
    %2272 = vmatprep.subr.mxu0 0.0
    %2273 = vmatpush1.msra.mxu0 0.0
    %2274 = vmatprep.subr.mxu0 0.0
    %2275 = vmatpush1.msra.mxu0 0.0
    %2276 = vmatprep.subr.mxu0 0.0
    %2277 = vmatpush1.msra.mxu0 0.0
    %2278 = vmatprep.subr.mxu0 0.0
    %2279 = vmatpush1.msra.mxu0 0.0
    %2280 = vmatprep.subr.mxu0 0.0
    %2281 = vmatpush1.msra.mxu0 0.0
    %2282 = vmatprep.subr.mxu0 0.0
    %2283 = vmatpush1.msra.mxu0 0.0
    %2284 = vmatprep.subr.mxu0 0.0
    %2285 = vmatpush1.msra.mxu0 0.0
    %2286 = vmatprep.subr.mxu0 0.0
    %2287 = vmatpush1.msra.mxu0 0.0
    %2288 = vmatprep.subr.mxu0 0.0
    %2289 = vmatpush1.msra.mxu0 0.0
    %2290 = vmatprep.subr.mxu0 0.0
    %2291 = vmatpush1.msra.mxu0 0.0
    %2292 = vmatprep.subr.mxu0 0.0
    %2293 = vmatpush1.msra.mxu0 0.0
    %2294 = vmatprep.subr.mxu0 0.0
    %2295 = vmatpush1.msra.mxu0 0.0
    %2296 = vmatprep.subr.mxu0 0.0
    %2297 = vmatpush1.msra.mxu0 0.0
    %2298 = vmatprep.subr.mxu0 0.0
    %2299 = vmatpush1.msra.mxu0 0.0
    %2300 = vmatprep.subr.mxu0 0.0
    %2301 = vmatpush1.msra.mxu0 0.0
    %2302 = vmatprep.subr.mxu0 0.0
    %2303 = vmatpush1.msra.mxu0 0.0
    %2304 = vmatprep.subr.mxu0 0.0
    %2305 = vmatpush1.msra.mxu0 0.0
    %2306 = vmatprep.subr.mxu0 0.0
    %2307 = vmatpush1.msra.mxu0 0.0
    %2308 = vmatprep.subr.mxu0 0.0
    %2309 = vmatpush1.msra.mxu0 0.0
    %2310 = vmatprep.subr.mxu0 0.0
    %2311 = vmatpush1.msra.mxu0 0.0
    %2312 = vmatprep.subr.mxu0 0.0
    %2313 = vmatpush1.msra.mxu0 0.0
    %2314 = vmatprep.subr.mxu0 0.0
    %2315 = vmatpush1.msra.mxu0 0.0
    %2316 = vmatprep.subr.mxu0 0.0
    %2317 = vmatpush1.msra.mxu0 0.0
    %2318 = vmatprep.subr.mxu0 0.0
    %2319 = vmatpush1.msra.mxu0 0.0
    %2320 = vmatprep.subr.mxu0 0.0
    %2321 = vmatpush1.msra.mxu0 0.0
    %2322 = vmatprep.mubr.f32.mxu0 0.0
    %2323 = vmatmul.mubr.f32.gmra.mrb[0].mxu0 %v2253
    %v2324 = vpop.f32.mrb[0].mxu0
    %v2325 = vadd.f32 0.0, %v2324
    %v2326 = vpop.f32.mrb[0].mxu0
    %2327 = vmatprep.mubr.f32.mxu0 0.0
    %2328 = vmatmul.mubr.f32.gmra.mrb[0].mxu0 %v2256
    %v2329 = vpop.f32.mrb[0].mxu0
    %v2330 = vadd.f32 0.0, %v2329
    %v2331 = vpop.f32.mrb[0].mxu0
    %2332 = vdwg.mxu0
    %v2333 = vmul.f32 %v2325, %v1694
    %v2334 = vmul.f32 %v2330, %v1699
    %v2335 = vmul.f32 %v2243, %v2248
    %v2336 = vmul.f32 %v2245, %v2249
    %v2338 = vsel %vm1903, %v2335, 0
    %v2341 = vsel %vm1903, %v2336, 0
    %2343 = vmatprep.subr.mxu0 0.0
    %2344 = vmatpush1.msra.mxu0 %v1912
    %2345 = vmatprep.subr.mxu0 0.0
    %2346 = vmatpush1.msra.mxu0 0.0
    %2347 = vmatprep.subr.mxu0 0.0
    %2348 = vmatpush1.msra.mxu0 0.0
    %2349 = vmatprep.subr.mxu0 0.0
    %2350 = vmatpush1.msra.mxu0 0.0
    %2351 = vmatprep.subr.mxu0 0.0
    %2352 = vmatpush1.msra.mxu0 0.0
    %2353 = vmatprep.subr.mxu0 0.0
    %2354 = vmatpush1.msra.mxu0 0.0
    %2355 = vmatprep.subr.mxu0 0.0
    %2356 = vmatpush1.msra.mxu0 0.0
    %2357 = vmatprep.subr.mxu0 0.0
    %2358 = vmatpush1.msra.mxu0 0.0
    %2359 = vmatprep.subr.mxu0 0.0
    %2360 = vmatpush1.msra.mxu0 0.0
    %2361 = vmatprep.subr.mxu0 0.0
    %2362 = vmatpush1.msra.mxu0 0.0
    %2363 = vmatprep.subr.mxu0 0.0
    %2364 = vmatpush1.msra.mxu0 0.0
    %2365 = vmatprep.subr.mxu0 0.0
    %2366 = vmatpush1.msra.mxu0 0.0
    %2367 = vmatprep.subr.mxu0 0.0
    %2368 = vmatpush1.msra.mxu0 0.0
    %2369 = vmatprep.subr.mxu0 0.0
    %2370 = vmatpush1.msra.mxu0 0.0
    %2371 = vmatprep.subr.mxu0 0.0
    %2372 = vmatpush1.msra.mxu0 0.0
    %2373 = vmatprep.subr.mxu0 0.0
    %2374 = vmatpush1.msra.mxu0 0.0
    %2375 = vmatprep.subr.mxu0 0.0
    %2376 = vmatpush1.msra.mxu0 0.0
    %2377 = vmatprep.subr.mxu0 0.0
    %2378 = vmatpush1.msra.mxu0 0.0
    %2379 = vmatprep.subr.mxu0 0.0
    %2380 = vmatpush1.msra.mxu0 0.0
    %2381 = vmatprep.subr.mxu0 0.0
    %2382 = vmatpush1.msra.mxu0 0.0
    %2383 = vmatprep.subr.mxu0 0.0
    %2384 = vmatpush1.msra.mxu0 0.0
    %2385 = vmatprep.subr.mxu0 0.0
    %2386 = vmatpush1.msra.mxu0 0.0
    %2387 = vmatprep.subr.mxu0 0.0
    %2388 = vmatpush1.msra.mxu0 0.0
    %2389 = vmatprep.subr.mxu0 0.0
    %2390 = vmatpush1.msra.mxu0 0.0
    %2391 = vmatprep.subr.mxu0 0.0
    %2392 = vmatpush1.msra.mxu0 0.0
    %2393 = vmatprep.subr.mxu0 0.0
    %2394 = vmatpush1.msra.mxu0 0.0
    %2395 = vmatprep.subr.mxu0 0.0
    %2396 = vmatpush1.msra.mxu0 0.0
    %2397 = vmatprep.subr.mxu0 0.0
    %2398 = vmatpush1.msra.mxu0 0.0
    %2399 = vmatprep.subr.mxu0 0.0
    %2400 = vmatpush1.msra.mxu0 0.0
    %2401 = vmatprep.subr.mxu0 0.0
    %2402 = vmatpush1.msra.mxu0 0.0
    %2403 = vmatprep.subr.mxu0 0.0
    %2404 = vmatpush1.msra.mxu0 0.0
    %2405 = vmatprep.subr.mxu0 0.0
    %2406 = vmatpush1.msra.mxu0 0.0
    %2407 = vmatprep.mubr.f32.mxu0 0.0
    %2408 = vmatmul.mubr.f32.gmra.mrb[0].mxu0 %v2338
    %v2409 = vpop.f32.mrb[0].mxu0
    %v2410 = vadd.f32 0.0, %v2409
    %v2411 = vpop.f32.mrb[0].mxu0
    %2412 = vmatprep.mubr.f32.mxu0 0.0
    %2413 = vmatmul.mubr.f32.gmra.mrb[0].mxu0 %v2341
    %v2414 = vpop.f32.mrb[0].mxu0
    %v2415 = vadd.f32 0.0, %v2414
    %v2416 = vpop.f32.mrb[0].mxu0
    %2417 = vdwg.mxu0
    %v2418 = vmul.f32 %v2410, %v1704
    %v2419 = vmul.f32 %v2415, %v1709
    %v2420 = vadd.f32 %v2333, %v2418
    %v2421 = vadd.f32 %v2334, %v2419
    %2422 = vmatprep.subr.mxu0 0.0
    %2423 = vmatpush1.msra.mxu0 %v1712
    %2424 = vmatprep.subr.mxu0 0.0
    %2425 = vmatpush1.msra.mxu0 %v1713
    %2426 = vmatprep.subr.mxu0 0.0
    %2427 = vmatpush1.msra.mxu0 %v1714
    %2428 = vmatprep.subr.mxu0 0.0
    %2429 = vmatpush1.msra.mxu0 %v1715
    %2430 = vmatprep.subr.mxu0 0.0
    %2431 = vmatpush1.msra.mxu0 %v1716
    %2432 = vmatprep.subr.mxu0 0.0
    %2433 = vmatpush1.msra.mxu0 %v1717
    %2434 = vmatprep.subr.mxu0 0.0
    %2435 = vmatpush1.msra.mxu0 %v1718
    %2436 = vmatprep.subr.mxu0 0.0
    %2437 = vmatpush1.msra.mxu0 %v1719
    %2438 = vmatprep.subr.mxu0 0.0
    %2439 = vmatpush1.msra.mxu0 %v1720
    %2440 = vmatprep.subr.mxu0 0.0
    %2441 = vmatpush1.msra.mxu0 %v1721
    %2442 = vmatprep.subr.mxu0 0.0
    %2443 = vmatpush1.msra.mxu0 %v1722
    %2444 = vmatprep.subr.mxu0 0.0
    %2445 = vmatpush1.msra.mxu0 %v1723
    %2446 = vmatprep.subr.mxu0 0.0
    %2447 = vmatpush1.msra.mxu0 %v1724
    %2448 = vmatprep.subr.mxu0 0.0
    %2449 = vmatpush1.msra.mxu0 %v1725
    %2450 = vmatprep.subr.mxu0 0.0
    %2451 = vmatpush1.msra.mxu0 %v1726
    %2452 = vmatprep.subr.mxu0 0.0
    %2453 = vmatpush1.msra.mxu0 %v1727
    %2454 = vmatprep.subr.mxu0 0.0
    %2455 = vmatpush1.msra.mxu0 0.0
    %2456 = vmatprep.subr.mxu0 0.0
    %2457 = vmatpush1.msra.mxu0 0.0
    %2458 = vmatprep.subr.mxu0 0.0
    %2459 = vmatpush1.msra.mxu0 0.0
    %2460 = vmatprep.subr.mxu0 0.0
    %2461 = vmatpush1.msra.mxu0 0.0
    %2462 = vmatprep.subr.mxu0 0.0
    %2463 = vmatpush1.msra.mxu0 0.0
    %2464 = vmatprep.subr.mxu0 0.0
    %2465 = vmatpush1.msra.mxu0 0.0
    %2466 = vmatprep.subr.mxu0 0.0
    %2467 = vmatpush1.msra.mxu0 0.0
    %2468 = vmatprep.subr.mxu0 0.0
    %2469 = vmatpush1.msra.mxu0 0.0
    %2470 = vmatprep.subr.mxu0 0.0
    %2471 = vmatpush1.msra.mxu0 0.0
    %2472 = vmatprep.subr.mxu0 0.0
    %2473 = vmatpush1.msra.mxu0 0.0
    %2474 = vmatprep.subr.mxu0 0.0
    %2475 = vmatpush1.msra.mxu0 0.0
    %2476 = vmatprep.subr.mxu0 0.0
    %2477 = vmatpush1.msra.mxu0 0.0
    %2478 = vmatprep.subr.mxu0 0.0
    %2479 = vmatpush1.msra.mxu0 0.0
    %2480 = vmatprep.subr.mxu0 0.0
    %2481 = vmatpush1.msra.mxu0 0.0
    %2482 = vmatprep.subr.mxu0 0.0
    %2483 = vmatpush1.msra.mxu0 0.0
    %2484 = vmatprep.subr.mxu0 0.0
    %2485 = vmatpush1.msra.mxu0 0.0
    %2486 = vmatprep.mubr.f32.mxu0 0.0
    %2487 = vmatmul.mubr.f32.gmra.mrb[0].mxu0 %v2076
    %v2488 = vpop.f32.mrb[0].mxu0
    %v2489 = vadd.f32 %v1728, %v2488
    %v2490 = vpop.f32.mrb[0].mxu0
    %2491 = vmatprep.mubr.f32.mxu0 0.0
    %2492 = vmatmul.mubr.f32.gmra.mrb[0].mxu0 %v2077
    %v2493 = vpop.f32.mrb[0].mxu0
    %v2494 = vadd.f32 %v1728, %v2493
    %v2495 = vpop.f32.mrb[0].mxu0
    %2496 = vmatprep.mubr.f32.mxu0 0.0
    %2497 = vmatmul.mubr.f32.gmra.mrb[0].mxu0 %v2420
    %v2498 = vpop.f32.mrb[0].mxu0
    %v2499 = vadd.f32 %v1728, %v2498
    %v2500 = vpop.f32.mrb[0].mxu0
    %2501 = vmatprep.mubr.f32.mxu0 0.0
    %2502 = vmatmul.mubr.f32.gmra.mrb[0].mxu0 %v2421
    %v2503 = vpop.f32.mrb[0].mxu0
    %v2504 = vadd.f32 %v1728, %v2503
    %v2505 = vpop.f32.mrb[0].mxu0
    %2506 = vdwg.mxu0
    %v2507 = vadd.f32 %v1468, %v2489
    %v2508 = vadd.f32 %v1469, %v2494
    %v2509 = vadd.f32 %v1470, %v2499
    %v2510 = vadd.f32 %v1471, %v2504
    %v2511 = vld [vmem:[#allocation8 + $0x1b] ss:$0 sm:$0xff]
    %v2512 = vld [vmem:[#allocation8 + $0x1c] ss:$0 sm:$0xff]
    %2513 = vadd.xlane.f32.xlu0 %v2507
    %v2514 = vpop.xlane.xlu0 %2513
    %2515 = vadd.xlane.f32.xlu0 %v2508
    %v2516 = vpop.xlane.xlu0 %2515
    %2517 = vadd.xlane.f32.xlu0 %v2509
    %v2518 = vpop.xlane.xlu0 %2517
    %2519 = vadd.xlane.f32.xlu0 %v2510
    %v2520 = vpop.xlane.xlu0 %2519
    %v2521 = vmul.f32 %v2514, %v1423
    %v2522 = vmul.f32 %v2516, %v1423
    %v2523 = vmul.f32 %v2518, %v1423
    %v2524 = vmul.f32 %v2520, %v1423
    %v2525 = vsub.f32 %v2507, %v2521
    %v2526 = vsub.f32 %v2508, %v2522
    %v2527 = vsub.f32 %v2509, %v2523
    %v2528 = vsub.f32 %v2510, %v2524
    %v2529 = vmul.f32 %v2525, %v2525
    %v2530 = vmul.f32 %v2526, %v2526
    %v2531 = vmul.f32 %v2527, %v2527
    %v2532 = vmul.f32 %v2528, %v2528
    %2533 = vadd.xlane.f32.xlu0 %v2529
    %v2534 = vpop.xlane.xlu0 %2533
    %2535 = vadd.xlane.f32.xlu0 %v2530
    %v2536 = vpop.xlane.xlu0 %2535
    %2537 = vadd.xlane.f32.xlu0 %v2531
    %v2538 = vpop.xlane.xlu0 %2537
    %2539 = vadd.xlane.f32.xlu0 %v2532
    %v2540 = vpop.xlane.xlu0 %2539
    %v2541 = vmul.f32 %v2534, %v1423
    %v2542 = vmul.f32 %v2536, %v1423
    %v2543 = vmul.f32 %v2538, %v1423
    %v2544 = vmul.f32 %v2540, %v1423
    %v2545 = vadd.f32 %v2541, 1e-05
    %v2546 = vadd.f32 %v2542, 1e-05
    %v2547 = vadd.f32 %v2543, 1e-05
    %v2548 = vadd.f32 %v2544, 1e-05
    %v2549 = vrsqrt.pop %v2545
    %v2550 = vrsqrt.pop %v2546
    %v2551 = vrsqrt.pop %v2547
    %v2552 = vrsqrt.pop %v2548
    %v2553 = vmul.f32 %v2525, %v2549
    %v2554 = vmul.f32 %v2526, %v2550
    %v2555 = vmul.f32 %v2527, %v2551
    %v2556 = vmul.f32 %v2528, %v2552
    %v2557 = vmul.f32 %v2553, %v2511
    %v2558 = vmul.f32 %v2554, %v2511
    %v2559 = vmul.f32 %v2555, %v2511
    %v2560 = vmul.f32 %v2556, %v2511
    %v2561 = vadd.f32 %v2557, %v2512
    %v2562 = vadd.f32 %v2558, %v2512
    %v2563 = vadd.f32 %v2559, %v2512
    %v2564 = vadd.f32 %v2560, %v2512
    %v2565 = vld [vmem:[#allocation7 + $0x1200] sm:$0xff]
    %v2566 = vld [vmem:[#allocation7 + $0x1218] sm:$0xff]
    %v2567 = vld [vmem:[#allocation7 + $0x1230] sm:$0xff]
    %v2568 = vld [vmem:[#allocation7 + $0x1248] sm:$0xff]
    %v2569 = vld [vmem:[#allocation7 + $0x1260] sm:$0xff]
    %v2570 = vld [vmem:[#allocation7 + $0x1278] sm:$0xff]
    %v2571 = vld [vmem:[#allocation7 + $0x1290] sm:$0xff]
    %v2572 = vld [vmem:[#allocation7 + $0x12a8] sm:$0xff]
    %v2573 = vld [vmem:[#allocation7 + $0x12c0] sm:$0xff]
    %v2574 = vld [vmem:[#allocation7 + $0x12d8] sm:$0xff]
    %v2575 = vld [vmem:[#allocation7 + $0x12f0] sm:$0xff]
    %v2576 = vld [vmem:[#allocation7 + $0x1308] sm:$0xff]
    %v2577 = vld [vmem:[#allocation7 + $0x1320] sm:$0xff]
    %v2578 = vld [vmem:[#allocation7 + $0x1338] sm:$0xff]
    %v2579 = vld [vmem:[#allocation7 + $0x1350] sm:$0xff]
    %v2580 = vld [vmem:[#allocation7 + $0x1368] sm:$0xff]
    %v2581 = vld [vmem:[#allocation8 + $0x1d] ss:$0 sm:$0xff]
    %2582 = vmatprep.subr.mxu0 0.0
    %2583 = vmatpush1.msra.mxu0 %v2565
    %2584 = vmatprep.subr.mxu0 0.0
    %2585 = vmatpush1.msra.mxu0 %v2566
    %2586 = vmatprep.subr.mxu0 0.0
    %2587 = vmatpush1.msra.mxu0 %v2567
    %2588 = vmatprep.subr.mxu0 0.0
    %2589 = vmatpush1.msra.mxu0 %v2568
    %2590 = vmatprep.subr.mxu0 0.0
    %2591 = vmatpush1.msra.mxu0 %v2569
    %2592 = vmatprep.subr.mxu0 0.0
    %2593 = vmatpush1.msra.mxu0 %v2570
    %2594 = vmatprep.subr.mxu0 0.0
    %2595 = vmatpush1.msra.mxu0 %v2571
    %2596 = vmatprep.subr.mxu0 0.0
    %2597 = vmatpush1.msra.mxu0 %v2572
    %2598 = vmatprep.subr.mxu0 0.0
    %2599 = vmatpush1.msra.mxu0 %v2573
    %2600 = vmatprep.subr.mxu0 0.0
    %2601 = vmatpush1.msra.mxu0 %v2574
    %2602 = vmatprep.subr.mxu0 0.0
    %2603 = vmatpush1.msra.mxu0 %v2575
    %2604 = vmatprep.subr.mxu0 0.0
    %2605 = vmatpush1.msra.mxu0 %v2576
    %2606 = vmatprep.subr.mxu0 0.0
    %2607 = vmatpush1.msra.mxu0 %v2577
    %2608 = vmatprep.subr.mxu0 0.0
    %2609 = vmatpush1.msra.mxu0 %v2578
    %2610 = vmatprep.subr.mxu0 0.0
    %2611 = vmatpush1.msra.mxu0 %v2579
    %2612 = vmatprep.subr.mxu0 0.0
    %2613 = vmatpush1.msra.mxu0 %v2580
    %2614 = vmatprep.subr.mxu0 0.0
    %2615 = vmatpush1.msra.mxu0 0.0
    %2616 = vmatprep.subr.mxu0 0.0
    %2617 = vmatpush1.msra.mxu0 0.0
    %2618 = vmatprep.subr.mxu0 0.0
    %2619 = vmatpush1.msra.mxu0 0.0
    %2620 = vmatprep.subr.mxu0 0.0
    %2621 = vmatpush1.msra.mxu0 0.0
    %2622 = vmatprep.subr.mxu0 0.0
    %2623 = vmatpush1.msra.mxu0 0.0
    %2624 = vmatprep.subr.mxu0 0.0
    %2625 = vmatpush1.msra.mxu0 0.0
    %2626 = vmatprep.subr.mxu0 0.0
    %2627 = vmatpush1.msra.mxu0 0.0
    %2628 = vmatprep.subr.mxu0 0.0
    %2629 = vmatpush1.msra.mxu0 0.0
    %2630 = vmatprep.subr.mxu0 0.0
    %2631 = vmatpush1.msra.mxu0 0.0
    %2632 = vmatprep.subr.mxu0 0.0
    %2633 = vmatpush1.msra.mxu0 0.0
    %2634 = vmatprep.subr.mxu0 0.0
    %2635 = vmatpush1.msra.mxu0 0.0
    %2636 = vmatprep.subr.mxu0 0.0
    %2637 = vmatpush1.msra.mxu0 0.0
    %2638 = vmatprep.subr.mxu0 0.0
    %2639 = vmatpush1.msra.mxu0 0.0
    %2640 = vmatprep.subr.mxu0 0.0
    %2641 = vmatpush1.msra.mxu0 0.0
    %2642 = vmatprep.subr.mxu0 0.0
    %2643 = vmatpush1.msra.mxu0 0.0
    %2644 = vmatprep.subr.mxu0 0.0
    %2645 = vmatpush1.msra.mxu0 0.0
    %2646 = vmatprep.mubr.f32.mxu0 0.0
    %2647 = vmatmul.mubr.f32.gmra.mrb[0].mxu0 %v2561
    %v2648 = vpop.f32.mrb[0].mxu0
    %v2649 = vadd.f32 %v2581, %v2648
    %v2650 = vpop.f32.mrb[0].mxu0
    %2651 = vmatprep.mubr.f32.mxu0 0.0
    %2652 = vmatmul.mubr.f32.gmra.mrb[0].mxu0 %v2562
    %v2653 = vpop.f32.mrb[0].mxu0
    %v2654 = vadd.f32 %v2581, %v2653
    %v2655 = vpop.f32.mrb[0].mxu0
    %2656 = vmatprep.mubr.f32.mxu0 0.0
    %2657 = vmatmul.mubr.f32.gmra.mrb[0].mxu0 %v2563
    %v2658 = vpop.f32.mrb[0].mxu0
    %v2659 = vadd.f32 %v2581, %v2658
    %v2660 = vpop.f32.mrb[0].mxu0
    %2661 = vmatprep.mubr.f32.mxu0 0.0
    %2662 = vmatmul.mubr.f32.gmra.mrb[0].mxu0 %v2564
    %v2663 = vpop.f32.mrb[0].mxu0
    %v2664 = vadd.f32 %v2581, %v2663
    %v2665 = vpop.f32.mrb[0].mxu0
    %2666 = vdwg.mxu0
    %v2667 = vld [vmem:[#allocation7 + $0x1380] sm:$0xff]
    %v2668 = vld [vmem:[#allocation7 + $0x1388] sm:$0xff]
    %v2669 = vld [vmem:[#allocation7 + $0x1398] sm:$0xff]
    %v2670 = vld [vmem:[#allocation7 + $0x13a0] sm:$0xff]
    %v2671 = vld [vmem:[#allocation7 + $0x13b0] sm:$0xff]
    %v2672 = vld [vmem:[#allocation7 + $0x13b8] sm:$0xff]
    %v2673 = vld [vmem:[#allocation7 + $0x13c8] sm:$0xff]
    %v2674 = vld [vmem:[#allocation7 + $0x13d0] sm:$0xff]
    %v2675 = vld [vmem:[#allocation7 + $0x13e0] sm:$0xff]
    %v2676 = vld [vmem:[#allocation7 + $0x13e8] sm:$0xff]
    %v2677 = vld [vmem:[#allocation7 + $0x13f8] sm:$0xff]
    %v2678 = vld [vmem:[#allocation7 + $0x1400] sm:$0xff]
    %v2679 = vld [vmem:[#allocation7 + $0x1410] sm:$0xff]
    %v2680 = vld [vmem:[#allocation7 + $0x1418] sm:$0xff]
    %v2681 = vld [vmem:[#allocation7 + $0x1428] sm:$0xff]
    %v2682 = vld [vmem:[#allocation7 + $0x1430] sm:$0xff]
    %v2683 = vld [vmem:[#allocation7 + $0x1440] sm:$0xff]
    %v2684 = vld [vmem:[#allocation7 + $0x1448] sm:$0xff]
    %v2685 = vld [vmem:[#allocation7 + $0x1458] sm:$0xff]
    %v2686 = vld [vmem:[#allocation7 + $0x1460] sm:$0xff]
    %v2687 = vld [vmem:[#allocation7 + $0x1470] sm:$0xff]
    %v2688 = vld [vmem:[#allocation7 + $0x1478] sm:$0xff]
    %v2689 = vld [vmem:[#allocation7 + $0x1488] sm:$0xff]
    %v2690 = vld [vmem:[#allocation7 + $0x1490] sm:$0xff]
    %v2691 = vld [vmem:[#allocation7 + $0x14a0] sm:$0xff]
    %v2692 = vld [vmem:[#allocation7 + $0x14a8] sm:$0xff]
    %v2693 = vld [vmem:[#allocation7 + $0x14b8] sm:$0xff]
    %v2694 = vld [vmem:[#allocation7 + $0x14c0] sm:$0xff]
    %v2695 = vld [vmem:[#allocation7 + $0x14d0] sm:$0xff]
    %v2696 = vld [vmem:[#allocation7 + $0x14d8] sm:$0xff]
    %v2697 = vld [vmem:[#allocation7 + $0x14e8] sm:$0xff]
    %v2698 = vld [vmem:[#allocation7 + $0x14f0] sm:$0xff]
    %s2699 = scalar_lea.vmem [#allocation8], 30
    %v2700 = vld [vmem:[%s2699] ss:$8 sm:$0x3]
    %v2702 = vlaneseq
    %v2703 = vshrl.u32 %v2702, 7
    %v2704 = vsub.s32 0, %v2703
    %v2705 = vrot.slane %v2700, %v2704
    %v2706 = vlaneseq
    %v2707 = vshrl.u32 %v2706, 7
    %v2708 = vsub.s32 1, %v2707
    %v2709 = vrot.slane %v2700, %v2708
    %2712 = vmatprep.subr.mxu0 %v2668
    %2713 = vmatpush1.msra.mxu0 %v2667
    %2714 = vmatprep.subr.mxu0 %v2670
    %2715 = vmatpush1.msra.mxu0 %v2669
    %2716 = vmatprep.subr.mxu0 %v2672
    %2717 = vmatpush1.msra.mxu0 %v2671
    %2718 = vmatprep.subr.mxu0 %v2674
    %2719 = vmatpush1.msra.mxu0 %v2673
    %2720 = vmatprep.subr.mxu0 %v2676
    %2721 = vmatpush1.msra.mxu0 %v2675
    %2722 = vmatprep.subr.mxu0 %v2678
    %2723 = vmatpush1.msra.mxu0 %v2677
    %2724 = vmatprep.subr.mxu0 %v2680
    %2725 = vmatpush1.msra.mxu0 %v2679
    %2726 = vmatprep.subr.mxu0 %v2682
    %2727 = vmatpush1.msra.mxu0 %v2681
    %2728 = vmatprep.subr.mxu0 %v2684
    %2729 = vmatpush1.msra.mxu0 %v2683
    %2730 = vmatprep.subr.mxu0 %v2686
    %2731 = vmatpush1.msra.mxu0 %v2685
    %2732 = vmatprep.subr.mxu0 %v2688
    %2733 = vmatpush1.msra.mxu0 %v2687
    %2734 = vmatprep.subr.mxu0 %v2690
    %2735 = vmatpush1.msra.mxu0 %v2689
    %2736 = vmatprep.subr.mxu0 %v2692
    %2737 = vmatpush1.msra.mxu0 %v2691
    %2738 = vmatprep.subr.mxu0 %v2694
    %2739 = vmatpush1.msra.mxu0 %v2693
    %2740 = vmatprep.subr.mxu0 %v2696
    %2741 = vmatpush1.msra.mxu0 %v2695
    %2742 = vmatprep.subr.mxu0 %v2698
    %2743 = vmatpush1.msra.mxu0 %v2697
    %2744 = vmatprep.subr.mxu0 0.0
    %2745 = vmatpush1.msra.mxu0 0.0
    %2746 = vmatprep.subr.mxu0 0.0
    %2747 = vmatpush1.msra.mxu0 0.0
    %2748 = vmatprep.subr.mxu0 0.0
    %2749 = vmatpush1.msra.mxu0 0.0
    %2750 = vmatprep.subr.mxu0 0.0
    %2751 = vmatpush1.msra.mxu0 0.0
    %2752 = vmatprep.subr.mxu0 0.0
    %2753 = vmatpush1.msra.mxu0 0.0
    %2754 = vmatprep.subr.mxu0 0.0
    %2755 = vmatpush1.msra.mxu0 0.0
    %2756 = vmatprep.subr.mxu0 0.0
    %2757 = vmatpush1.msra.mxu0 0.0
    %2758 = vmatprep.subr.mxu0 0.0
    %2759 = vmatpush1.msra.mxu0 0.0
    %2760 = vmatprep.subr.mxu0 0.0
    %2761 = vmatpush1.msra.mxu0 0.0
    %2762 = vmatprep.subr.mxu0 0.0
    %2763 = vmatpush1.msra.mxu0 0.0
    %2764 = vmatprep.subr.mxu0 0.0
    %2765 = vmatpush1.msra.mxu0 0.0
    %2766 = vmatprep.subr.mxu0 0.0
    %2767 = vmatpush1.msra.mxu0 0.0
    %2768 = vmatprep.subr.mxu0 0.0
    %2769 = vmatpush1.msra.mxu0 0.0
    %2770 = vmatprep.subr.mxu0 0.0
    %2771 = vmatpush1.msra.mxu0 0.0
    %2772 = vmatprep.subr.mxu0 0.0
    %2773 = vmatpush1.msra.mxu0 0.0
    %2774 = vmatprep.subr.mxu0 0.0
    %2775 = vmatpush1.msra.mxu0 0.0
    %2776 = vmatprep.mubr.f32.mxu0 0.0
    %2777 = vmatmul.mubr.f32.gmra.mrb[0].mxu0 %v364
    %v2778 = vpop.f32.mrb[0].mxu0
    %v2779 = vadd.f32 %v2705, %v2778
    %v2780 = vpop.f32.mrb[0].mxu0
    %v2781 = vadd.f32 %v2709, %v2780
    %2782 = vmatprep.mubr.f32.mxu0 0.0
    %2783 = vmatmul.mubr.f32.gmra.mrb[0].mxu0 %v365
    %v2784 = vpop.f32.mrb[0].mxu0
    %v2785 = vadd.f32 %v2705, %v2784
    %v2786 = vpop.f32.mrb[0].mxu0
    %v2787 = vadd.f32 %v2709, %v2786
    %2788 = vmatprep.mubr.f32.mxu0 0.0
    %2789 = vmatmul.mubr.f32.gmra.mrb[0].mxu0 %v366
    %v2790 = vpop.f32.mrb[0].mxu0
    %v2791 = vadd.f32 %v2705, %v2790
    %v2792 = vpop.f32.mrb[0].mxu0
    %v2793 = vadd.f32 %v2709, %v2792
    %2794 = vmatprep.mubr.f32.mxu0 0.0
    %2795 = vmatmul.mubr.f32.gmra.mrb[0].mxu0 %v367
    %v2796 = vpop.f32.mrb[0].mxu0
    %v2797 = vadd.f32 %v2705, %v2796
    %v2798 = vpop.f32.mrb[0].mxu0
    %v2799 = vadd.f32 %v2709, %v2798
    %2800 = vdwg.mxu0
    %v2801 = vld [vmem:[#allocation7 + $0x1500] sm:$0xff]
    %v2802 = vld [vmem:[#allocation7 + $0x1518] sm:$0xff]
    %v2803 = vld [vmem:[#allocation7 + $0x1530] sm:$0xff]
    %v2804 = vld [vmem:[#allocation7 + $0x1548] sm:$0xff]
    %v2805 = vld [vmem:[#allocation7 + $0x1560] sm:$0xff]
    %v2806 = vld [vmem:[#allocation7 + $0x1578] sm:$0xff]
    %v2807 = vld [vmem:[#allocation7 + $0x1590] sm:$0xff]
    %v2808 = vld [vmem:[#allocation7 + $0x15a8] sm:$0xff]
    %v2809 = vld [vmem:[#allocation7 + $0x15c0] sm:$0xff]
    %v2810 = vld [vmem:[#allocation7 + $0x15d8] sm:$0xff]
    %v2811 = vld [vmem:[#allocation7 + $0x15f0] sm:$0xff]
    %v2812 = vld [vmem:[#allocation7 + $0x1608] sm:$0xff]
    %v2813 = vld [vmem:[#allocation7 + $0x1620] sm:$0xff]
    %v2814 = vld [vmem:[#allocation7 + $0x1638] sm:$0xff]
    %v2815 = vld [vmem:[#allocation7 + $0x1650] sm:$0xff]
    %v2816 = vld [vmem:[#allocation7 + $0x1668] sm:$0xff]
    %v2817 = vld [vmem:[#allocation8 + $0x1f] ss:$0 sm:$0xff]
    %v2818 = vmul.f32 %v2649, %v2779
    %v2819 = vmul.f32 %v2654, %v2785
    %2820 = vmatprep.subr.mxu0 0.0
    %2821 = vmatpush1.msra.mxu0 %v335
    %2822 = vmatprep.subr.mxu0 0.0
    %2823 = vmatpush1.msra.mxu0 %v336
    %2824 = vmatprep.subr.mxu0 0.0
    %2825 = vmatpush1.msra.mxu0 %v337
    %2826 = vmatprep.subr.mxu0 0.0
    %2827 = vmatpush1.msra.mxu0 %v338
    %2828 = vmatprep.subr.mxu0 0.0
    %2829 = vmatpush1.msra.mxu0 %v339
    %2830 = vmatprep.subr.mxu0 0.0
    %2831 = vmatpush1.msra.mxu0 %v340
    %2832 = vmatprep.subr.mxu0 0.0
    %2833 = vmatpush1.msra.mxu0 %v341
    %2834 = vmatprep.subr.mxu0 0.0
    %2835 = vmatpush1.msra.mxu0 %v342
    %2836 = vmatprep.subr.mxu0 0.0
    %2837 = vmatpush1.msra.mxu0 %v343
    %2838 = vmatprep.subr.mxu0 0.0
    %2839 = vmatpush1.msra.mxu0 %v344
    %2840 = vmatprep.subr.mxu0 0.0
    %2841 = vmatpush1.msra.mxu0 %v345
    %2842 = vmatprep.subr.mxu0 0.0
    %2843 = vmatpush1.msra.mxu0 %v346
    %2844 = vmatprep.subr.mxu0 0.0
    %2845 = vmatpush1.msra.mxu0 %v347
    %2846 = vmatprep.subr.mxu0 0.0
    %2847 = vmatpush1.msra.mxu0 %v348
    %2848 = vmatprep.subr.mxu0 0.0
    %2849 = vmatpush1.msra.mxu0 %v349
    %2850 = vmatprep.subr.mxu0 0.0
    %2851 = vmatpush1.msra.mxu0 %v350
    %2852 = vmatprep.subr.mxu0 0.0
    %2853 = vmatpush1.msra.mxu0 0.0
    %2854 = vmatprep.subr.mxu0 0.0
    %2855 = vmatpush1.msra.mxu0 0.0
    %2856 = vmatprep.subr.mxu0 0.0
    %2857 = vmatpush1.msra.mxu0 0.0
    %2858 = vmatprep.subr.mxu0 0.0
    %2859 = vmatpush1.msra.mxu0 0.0
    %2860 = vmatprep.subr.mxu0 0.0
    %2861 = vmatpush1.msra.mxu0 0.0
    %2862 = vmatprep.subr.mxu0 0.0
    %2863 = vmatpush1.msra.mxu0 0.0
    %2864 = vmatprep.subr.mxu0 0.0
    %2865 = vmatpush1.msra.mxu0 0.0
    %2866 = vmatprep.subr.mxu0 0.0
    %2867 = vmatpush1.msra.mxu0 0.0
    %2868 = vmatprep.subr.mxu0 0.0
    %2869 = vmatpush1.msra.mxu0 0.0
    %2870 = vmatprep.subr.mxu0 0.0
    %2871 = vmatpush1.msra.mxu0 0.0
    %2872 = vmatprep.subr.mxu0 0.0
    %2873 = vmatpush1.msra.mxu0 0.0
    %2874 = vmatprep.subr.mxu0 0.0
    %2875 = vmatpush1.msra.mxu0 0.0
    %2876 = vmatprep.subr.mxu0 0.0
    %2877 = vmatpush1.msra.mxu0 0.0
    %2878 = vmatprep.subr.mxu0 0.0
    %2879 = vmatpush1.msra.mxu0 0.0
    %2880 = vmatprep.subr.mxu0 0.0
    %2881 = vmatpush1.msra.mxu0 0.0
    %2882 = vmatprep.subr.mxu0 0.0
    %2883 = vmatpush1.msra.mxu0 0.0
    %2884 = vmatprep.mubr.f32.mxu0 0.0
    %2885 = vmatmul.mubr.f32.gmra.mrb[0].mxu0 %v2818
    %v2886 = vpop.f32.mrb[0].mxu0
    %v2887 = vadd.f32 0.0, %v2886
    %v2888 = vpop.f32.mrb[0].mxu0
    %2889 = vmatprep.mubr.f32.mxu0 0.0
    %2890 = vmatmul.mubr.f32.gmra.mrb[0].mxu0 %v2819
    %v2891 = vpop.f32.mrb[0].mxu0
    %v2892 = vadd.f32 0.0, %v2891
    %v2893 = vpop.f32.mrb[0].mxu0
    %2894 = vdwg.mxu0
    %v2895 = vmul.f32 %v2649, %v2791
    %v2896 = vmul.f32 %v2654, %v2797
    %2897 = vmatprep.subr.mxu0 0.0
    %2898 = vmatpush1.msra.mxu0 %v335
    %2899 = vmatprep.subr.mxu0 0.0
    %2900 = vmatpush1.msra.mxu0 %v336
    %2901 = vmatprep.subr.mxu0 0.0
    %2902 = vmatpush1.msra.mxu0 %v337
    %2903 = vmatprep.subr.mxu0 0.0
    %2904 = vmatpush1.msra.mxu0 %v338
    %2905 = vmatprep.subr.mxu0 0.0
    %2906 = vmatpush1.msra.mxu0 %v339
    %2907 = vmatprep.subr.mxu0 0.0
    %2908 = vmatpush1.msra.mxu0 %v340
    %2909 = vmatprep.subr.mxu0 0.0
    %2910 = vmatpush1.msra.mxu0 %v341
    %2911 = vmatprep.subr.mxu0 0.0
    %2912 = vmatpush1.msra.mxu0 %v342
    %2913 = vmatprep.subr.mxu0 0.0
    %2914 = vmatpush1.msra.mxu0 %v343
    %2915 = vmatprep.subr.mxu0 0.0
    %2916 = vmatpush1.msra.mxu0 %v344
    %2917 = vmatprep.subr.mxu0 0.0
    %2918 = vmatpush1.msra.mxu0 %v345
    %2919 = vmatprep.subr.mxu0 0.0
    %2920 = vmatpush1.msra.mxu0 %v346
    %2921 = vmatprep.subr.mxu0 0.0
    %2922 = vmatpush1.msra.mxu0 %v347
    %2923 = vmatprep.subr.mxu0 0.0
    %2924 = vmatpush1.msra.mxu0 %v348
    %2925 = vmatprep.subr.mxu0 0.0
    %2926 = vmatpush1.msra.mxu0 %v349
    %2927 = vmatprep.subr.mxu0 0.0
    %2928 = vmatpush1.msra.mxu0 %v350
    %2929 = vmatprep.subr.mxu0 0.0
    %2930 = vmatpush1.msra.mxu0 0.0
    %2931 = vmatprep.subr.mxu0 0.0
    %2932 = vmatpush1.msra.mxu0 0.0
    %2933 = vmatprep.subr.mxu0 0.0
    %2934 = vmatpush1.msra.mxu0 0.0
    %2935 = vmatprep.subr.mxu0 0.0
    %2936 = vmatpush1.msra.mxu0 0.0
    %2937 = vmatprep.subr.mxu0 0.0
    %2938 = vmatpush1.msra.mxu0 0.0
    %2939 = vmatprep.subr.mxu0 0.0
    %2940 = vmatpush1.msra.mxu0 0.0
    %2941 = vmatprep.subr.mxu0 0.0
    %2942 = vmatpush1.msra.mxu0 0.0
    %2943 = vmatprep.subr.mxu0 0.0
    %2944 = vmatpush1.msra.mxu0 0.0
    %2945 = vmatprep.subr.mxu0 0.0
    %2946 = vmatpush1.msra.mxu0 0.0
    %2947 = vmatprep.subr.mxu0 0.0
    %2948 = vmatpush1.msra.mxu0 0.0
    %2949 = vmatprep.subr.mxu0 0.0
    %2950 = vmatpush1.msra.mxu0 0.0
    %2951 = vmatprep.subr.mxu0 0.0
    %2952 = vmatpush1.msra.mxu0 0.0
    %2953 = vmatprep.subr.mxu0 0.0
    %2954 = vmatpush1.msra.mxu0 0.0
    %2955 = vmatprep.subr.mxu0 0.0
    %2956 = vmatpush1.msra.mxu0 0.0
    %2957 = vmatprep.subr.mxu0 0.0
    %2958 = vmatpush1.msra.mxu0 0.0
    %2959 = vmatprep.subr.mxu0 0.0
    %2960 = vmatpush1.msra.mxu0 0.0
    %2961 = vmatprep.mubr.f32.mxu0 0.0
    %2962 = vmatmul.mubr.f32.gmra.mrb[0].mxu0 %v2895
    %v2963 = vpop.f32.mrb[0].mxu0
    %v2964 = vadd.f32 0.0, %v2963
    %v2965 = vpop.f32.mrb[0].mxu0
    %2966 = vmatprep.mubr.f32.mxu0 0.0
    %2967 = vmatmul.mubr.f32.gmra.mrb[0].mxu0 %v2896
    %v2968 = vpop.f32.mrb[0].mxu0
    %v2969 = vadd.f32 0.0, %v2968
    %v2970 = vpop.f32.mrb[0].mxu0
    %2971 = vdwg.mxu0
    %v2972 = vmax.f32 %v2887, %v2964
    %v2973 = vmax.f32 %v2892, %v2969
    %v2974 = vsub.f32 %v2887, %v2972
    %v2975 = vsub.f32 %v2892, %v2973
    %v2976 = vmul.f32 %v2974, 1.442695
    %v2977 = vpow.pop %v2976
    %v2978 = vmul.f32 %v2975, 1.442695
    %v2979 = vpow.pop %v2978
    %v2980 = vsub.f32 %v2964, %v2972
    %v2981 = vsub.f32 %v2969, %v2973
    %v2982 = vmul.f32 %v2980, 1.442695
    %v2983 = vpow.pop %v2982
    %v2984 = vmul.f32 %v2981, 1.442695
    %v2985 = vpow.pop %v2984
    %v2986 = vadd.f32 %v2977, %v2983
    %v2987 = vadd.f32 %v2979, %v2985
    %v2988 = vrcp.pop %v2986
    %v2989 = vrcp.pop %v2987
    %v2990 = vmul.f32 %v2977, %v2988
    %v2991 = vmul.f32 %v2979, %v2989
    %v2993 = vsel %vm1903, %v2990, 0
    %v2996 = vsel %vm1903, %v2991, 0
    %2998 = vmatprep.subr.mxu0 0.0
    %2999 = vmatpush1.msra.mxu0 %v1912
    %3000 = vmatprep.subr.mxu0 0.0
    %3001 = vmatpush1.msra.mxu0 0.0
    %3002 = vmatprep.subr.mxu0 0.0
    %3003 = vmatpush1.msra.mxu0 0.0
    %3004 = vmatprep.subr.mxu0 0.0
    %3005 = vmatpush1.msra.mxu0 0.0
    %3006 = vmatprep.subr.mxu0 0.0
    %3007 = vmatpush1.msra.mxu0 0.0
    %3008 = vmatprep.subr.mxu0 0.0
    %3009 = vmatpush1.msra.mxu0 0.0
    %3010 = vmatprep.subr.mxu0 0.0
    %3011 = vmatpush1.msra.mxu0 0.0
    %3012 = vmatprep.subr.mxu0 0.0
    %3013 = vmatpush1.msra.mxu0 0.0
    %3014 = vmatprep.subr.mxu0 0.0
    %3015 = vmatpush1.msra.mxu0 0.0
    %3016 = vmatprep.subr.mxu0 0.0
    %3017 = vmatpush1.msra.mxu0 0.0
    %3018 = vmatprep.subr.mxu0 0.0
    %3019 = vmatpush1.msra.mxu0 0.0
    %3020 = vmatprep.subr.mxu0 0.0
    %3021 = vmatpush1.msra.mxu0 0.0
    %3022 = vmatprep.subr.mxu0 0.0
    %3023 = vmatpush1.msra.mxu0 0.0
    %3024 = vmatprep.subr.mxu0 0.0
    %3025 = vmatpush1.msra.mxu0 0.0
    %3026 = vmatprep.subr.mxu0 0.0
    %3027 = vmatpush1.msra.mxu0 0.0
    %3028 = vmatprep.subr.mxu0 0.0
    %3029 = vmatpush1.msra.mxu0 0.0
    %3030 = vmatprep.subr.mxu0 0.0
    %3031 = vmatpush1.msra.mxu0 0.0
    %3032 = vmatprep.subr.mxu0 0.0
    %3033 = vmatpush1.msra.mxu0 0.0
    %3034 = vmatprep.subr.mxu0 0.0
    %3035 = vmatpush1.msra.mxu0 0.0
    %3036 = vmatprep.subr.mxu0 0.0
    %3037 = vmatpush1.msra.mxu0 0.0
    %3038 = vmatprep.subr.mxu0 0.0
    %3039 = vmatpush1.msra.mxu0 0.0
    %3040 = vmatprep.subr.mxu0 0.0
    %3041 = vmatpush1.msra.mxu0 0.0
    %3042 = vmatprep.subr.mxu0 0.0
    %3043 = vmatpush1.msra.mxu0 0.0
    %3044 = vmatprep.subr.mxu0 0.0
    %3045 = vmatpush1.msra.mxu0 0.0
    %3046 = vmatprep.subr.mxu0 0.0
    %3047 = vmatpush1.msra.mxu0 0.0
    %3048 = vmatprep.subr.mxu0 0.0
    %3049 = vmatpush1.msra.mxu0 0.0
    %3050 = vmatprep.subr.mxu0 0.0
    %3051 = vmatpush1.msra.mxu0 0.0
    %3052 = vmatprep.subr.mxu0 0.0
    %3053 = vmatpush1.msra.mxu0 0.0
    %3054 = vmatprep.subr.mxu0 0.0
    %3055 = vmatpush1.msra.mxu0 0.0
    %3056 = vmatprep.subr.mxu0 0.0
    %3057 = vmatpush1.msra.mxu0 0.0
    %3058 = vmatprep.subr.mxu0 0.0
    %3059 = vmatpush1.msra.mxu0 0.0
    %3060 = vmatprep.subr.mxu0 0.0
    %3061 = vmatpush1.msra.mxu0 0.0
    %3062 = vmatprep.mubr.f32.mxu0 0.0
    %3063 = vmatmul.mubr.f32.gmra.mrb[0].mxu0 %v2993
    %v3064 = vpop.f32.mrb[0].mxu0
    %v3065 = vadd.f32 0.0, %v3064
    %v3066 = vpop.f32.mrb[0].mxu0
    %3067 = vmatprep.mubr.f32.mxu0 0.0
    %3068 = vmatmul.mubr.f32.gmra.mrb[0].mxu0 %v2996
    %v3069 = vpop.f32.mrb[0].mxu0
    %v3070 = vadd.f32 0.0, %v3069
    %v3071 = vpop.f32.mrb[0].mxu0
    %3072 = vdwg.mxu0
    %v3073 = vmul.f32 %v3065, %v2781
    %v3074 = vmul.f32 %v3070, %v2787
    %v3075 = vmul.f32 %v2983, %v2988
    %v3076 = vmul.f32 %v2985, %v2989
    %v3078 = vsel %vm1903, %v3075, 0
    %v3081 = vsel %vm1903, %v3076, 0
    %3083 = vmatprep.subr.mxu0 0.0
    %3084 = vmatpush1.msra.mxu0 %v1912
    %3085 = vmatprep.subr.mxu0 0.0
    %3086 = vmatpush1.msra.mxu0 0.0
    %3087 = vmatprep.subr.mxu0 0.0
    %3088 = vmatpush1.msra.mxu0 0.0
    %3089 = vmatprep.subr.mxu0 0.0
    %3090 = vmatpush1.msra.mxu0 0.0
    %3091 = vmatprep.subr.mxu0 0.0
    %3092 = vmatpush1.msra.mxu0 0.0
    %3093 = vmatprep.subr.mxu0 0.0
    %3094 = vmatpush1.msra.mxu0 0.0
    %3095 = vmatprep.subr.mxu0 0.0
    %3096 = vmatpush1.msra.mxu0 0.0
    %3097 = vmatprep.subr.mxu0 0.0
    %3098 = vmatpush1.msra.mxu0 0.0
    %3099 = vmatprep.subr.mxu0 0.0
    %3100 = vmatpush1.msra.mxu0 0.0
    %3101 = vmatprep.subr.mxu0 0.0
    %3102 = vmatpush1.msra.mxu0 0.0
    %3103 = vmatprep.subr.mxu0 0.0
    %3104 = vmatpush1.msra.mxu0 0.0
    %3105 = vmatprep.subr.mxu0 0.0
    %3106 = vmatpush1.msra.mxu0 0.0
    %3107 = vmatprep.subr.mxu0 0.0
    %3108 = vmatpush1.msra.mxu0 0.0
    %3109 = vmatprep.subr.mxu0 0.0
    %3110 = vmatpush1.msra.mxu0 0.0
    %3111 = vmatprep.subr.mxu0 0.0
    %3112 = vmatpush1.msra.mxu0 0.0
    %3113 = vmatprep.subr.mxu0 0.0
    %3114 = vmatpush1.msra.mxu0 0.0
    %3115 = vmatprep.subr.mxu0 0.0
    %3116 = vmatpush1.msra.mxu0 0.0
    %3117 = vmatprep.subr.mxu0 0.0
    %3118 = vmatpush1.msra.mxu0 0.0
    %3119 = vmatprep.subr.mxu0 0.0
    %3120 = vmatpush1.msra.mxu0 0.0
    %3121 = vmatprep.subr.mxu0 0.0
    %3122 = vmatpush1.msra.mxu0 0.0
    %3123 = vmatprep.subr.mxu0 0.0
    %3124 = vmatpush1.msra.mxu0 0.0
    %3125 = vmatprep.subr.mxu0 0.0
    %3126 = vmatpush1.msra.mxu0 0.0
    %3127 = vmatprep.subr.mxu0 0.0
    %3128 = vmatpush1.msra.mxu0 0.0
    %3129 = vmatprep.subr.mxu0 0.0
    %3130 = vmatpush1.msra.mxu0 0.0
    %3131 = vmatprep.subr.mxu0 0.0
    %3132 = vmatpush1.msra.mxu0 0.0
    %3133 = vmatprep.subr.mxu0 0.0
    %3134 = vmatpush1.msra.mxu0 0.0
    %3135 = vmatprep.subr.mxu0 0.0
    %3136 = vmatpush1.msra.mxu0 0.0
    %3137 = vmatprep.subr.mxu0 0.0
    %3138 = vmatpush1.msra.mxu0 0.0
    %3139 = vmatprep.subr.mxu0 0.0
    %3140 = vmatpush1.msra.mxu0 0.0
    %3141 = vmatprep.subr.mxu0 0.0
    %3142 = vmatpush1.msra.mxu0 0.0
    %3143 = vmatprep.subr.mxu0 0.0
    %3144 = vmatpush1.msra.mxu0 0.0
    %3145 = vmatprep.subr.mxu0 0.0
    %3146 = vmatpush1.msra.mxu0 0.0
    %3147 = vmatprep.mubr.f32.mxu0 0.0
    %3148 = vmatmul.mubr.f32.gmra.mrb[0].mxu0 %v3078
    %v3149 = vpop.f32.mrb[0].mxu0
    %v3150 = vadd.f32 0.0, %v3149
    %v3151 = vpop.f32.mrb[0].mxu0
    %3152 = vmatprep.mubr.f32.mxu0 0.0
    %3153 = vmatmul.mubr.f32.gmra.mrb[0].mxu0 %v3081
    %v3154 = vpop.f32.mrb[0].mxu0
    %v3155 = vadd.f32 0.0, %v3154
    %v3156 = vpop.f32.mrb[0].mxu0
    %3157 = vdwg.mxu0
    %v3158 = vmul.f32 %v3150, %v2793
    %v3159 = vmul.f32 %v3155, %v2799
    %v3160 = vadd.f32 %v3073, %v3158
    %v3161 = vadd.f32 %v3074, %v3159
    %v3162 = vmul.f32 %v2659, %v2779
    %v3163 = vmul.f32 %v2664, %v2785
    %3164 = vmatprep.subr.mxu0 0.0
    %3165 = vmatpush1.msra.mxu0 %v335
    %3166 = vmatprep.subr.mxu0 0.0
    %3167 = vmatpush1.msra.mxu0 %v336
    %3168 = vmatprep.subr.mxu0 0.0
    %3169 = vmatpush1.msra.mxu0 %v337
    %3170 = vmatprep.subr.mxu0 0.0
    %3171 = vmatpush1.msra.mxu0 %v338
    %3172 = vmatprep.subr.mxu0 0.0
    %3173 = vmatpush1.msra.mxu0 %v339
    %3174 = vmatprep.subr.mxu0 0.0
    %3175 = vmatpush1.msra.mxu0 %v340
    %3176 = vmatprep.subr.mxu0 0.0
    %3177 = vmatpush1.msra.mxu0 %v341
    %3178 = vmatprep.subr.mxu0 0.0
    %3179 = vmatpush1.msra.mxu0 %v342
    %3180 = vmatprep.subr.mxu0 0.0
    %3181 = vmatpush1.msra.mxu0 %v343
    %3182 = vmatprep.subr.mxu0 0.0
    %3183 = vmatpush1.msra.mxu0 %v344
    %3184 = vmatprep.subr.mxu0 0.0
    %3185 = vmatpush1.msra.mxu0 %v345
    %3186 = vmatprep.subr.mxu0 0.0
    %3187 = vmatpush1.msra.mxu0 %v346
    %3188 = vmatprep.subr.mxu0 0.0
    %3189 = vmatpush1.msra.mxu0 %v347
    %3190 = vmatprep.subr.mxu0 0.0
    %3191 = vmatpush1.msra.mxu0 %v348
    %3192 = vmatprep.subr.mxu0 0.0
    %3193 = vmatpush1.msra.mxu0 %v349
    %3194 = vmatprep.subr.mxu0 0.0
    %3195 = vmatpush1.msra.mxu0 %v350
    %3196 = vmatprep.subr.mxu0 0.0
    %3197 = vmatpush1.msra.mxu0 0.0
    %3198 = vmatprep.subr.mxu0 0.0
    %3199 = vmatpush1.msra.mxu0 0.0
    %3200 = vmatprep.subr.mxu0 0.0
    %3201 = vmatpush1.msra.mxu0 0.0
    %3202 = vmatprep.subr.mxu0 0.0
    %3203 = vmatpush1.msra.mxu0 0.0
    %3204 = vmatprep.subr.mxu0 0.0
    %3205 = vmatpush1.msra.mxu0 0.0
    %3206 = vmatprep.subr.mxu0 0.0
    %3207 = vmatpush1.msra.mxu0 0.0
    %3208 = vmatprep.subr.mxu0 0.0
    %3209 = vmatpush1.msra.mxu0 0.0
    %3210 = vmatprep.subr.mxu0 0.0
    %3211 = vmatpush1.msra.mxu0 0.0
    %3212 = vmatprep.subr.mxu0 0.0
    %3213 = vmatpush1.msra.mxu0 0.0
    %3214 = vmatprep.subr.mxu0 0.0
    %3215 = vmatpush1.msra.mxu0 0.0
    %3216 = vmatprep.subr.mxu0 0.0
    %3217 = vmatpush1.msra.mxu0 0.0
    %3218 = vmatprep.subr.mxu0 0.0
    %3219 = vmatpush1.msra.mxu0 0.0
    %3220 = vmatprep.subr.mxu0 0.0
    %3221 = vmatpush1.msra.mxu0 0.0
    %3222 = vmatprep.subr.mxu0 0.0
    %3223 = vmatpush1.msra.mxu0 0.0
    %3224 = vmatprep.subr.mxu0 0.0
    %3225 = vmatpush1.msra.mxu0 0.0
    %3226 = vmatprep.subr.mxu0 0.0
    %3227 = vmatpush1.msra.mxu0 0.0
    %3228 = vmatprep.mubr.f32.mxu0 0.0
    %3229 = vmatmul.mubr.f32.gmra.mrb[0].mxu0 %v3162
    %v3230 = vpop.f32.mrb[0].mxu0
    %v3231 = vadd.f32 0.0, %v3230
    %v3232 = vpop.f32.mrb[0].mxu0
    %3233 = vmatprep.mubr.f32.mxu0 0.0
    %3234 = vmatmul.mubr.f32.gmra.mrb[0].mxu0 %v3163
    %v3235 = vpop.f32.mrb[0].mxu0
    %v3236 = vadd.f32 0.0, %v3235
    %v3237 = vpop.f32.mrb[0].mxu0
    %3238 = vdwg.mxu0
    %v3239 = vmul.f32 %v2659, %v2791
    %v3240 = vmul.f32 %v2664, %v2797
    %3241 = vmatprep.subr.mxu0 0.0
    %3242 = vmatpush1.msra.mxu0 %v335
    %3243 = vmatprep.subr.mxu0 0.0
    %3244 = vmatpush1.msra.mxu0 %v336
    %3245 = vmatprep.subr.mxu0 0.0
    %3246 = vmatpush1.msra.mxu0 %v337
    %3247 = vmatprep.subr.mxu0 0.0
    %3248 = vmatpush1.msra.mxu0 %v338
    %3249 = vmatprep.subr.mxu0 0.0
    %3250 = vmatpush1.msra.mxu0 %v339
    %3251 = vmatprep.subr.mxu0 0.0
    %3252 = vmatpush1.msra.mxu0 %v340
    %3253 = vmatprep.subr.mxu0 0.0
    %3254 = vmatpush1.msra.mxu0 %v341
    %3255 = vmatprep.subr.mxu0 0.0
    %3256 = vmatpush1.msra.mxu0 %v342
    %3257 = vmatprep.subr.mxu0 0.0
    %3258 = vmatpush1.msra.mxu0 %v343
    %3259 = vmatprep.subr.mxu0 0.0
    %3260 = vmatpush1.msra.mxu0 %v344
    %3261 = vmatprep.subr.mxu0 0.0
    %3262 = vmatpush1.msra.mxu0 %v345
    %3263 = vmatprep.subr.mxu0 0.0
    %3264 = vmatpush1.msra.mxu0 %v346
    %3265 = vmatprep.subr.mxu0 0.0
    %3266 = vmatpush1.msra.mxu0 %v347
    %3267 = vmatprep.subr.mxu0 0.0
    %3268 = vmatpush1.msra.mxu0 %v348
    %3269 = vmatprep.subr.mxu0 0.0
    %3270 = vmatpush1.msra.mxu0 %v349
    %3271 = vmatprep.subr.mxu0 0.0
    %3272 = vmatpush1.msra.mxu0 %v350
    %3273 = vmatprep.subr.mxu0 0.0
    %3274 = vmatpush1.msra.mxu0 0.0
    %3275 = vmatprep.subr.mxu0 0.0
    %3276 = vmatpush1.msra.mxu0 0.0
    %3277 = vmatprep.subr.mxu0 0.0
    %3278 = vmatpush1.msra.mxu0 0.0
    %3279 = vmatprep.subr.mxu0 0.0
    %3280 = vmatpush1.msra.mxu0 0.0
    %3281 = vmatprep.subr.mxu0 0.0
    %3282 = vmatpush1.msra.mxu0 0.0
    %3283 = vmatprep.subr.mxu0 0.0
    %3284 = vmatpush1.msra.mxu0 0.0
    %3285 = vmatprep.subr.mxu0 0.0
    %3286 = vmatpush1.msra.mxu0 0.0
    %3287 = vmatprep.subr.mxu0 0.0
    %3288 = vmatpush1.msra.mxu0 0.0
    %3289 = vmatprep.subr.mxu0 0.0
    %3290 = vmatpush1.msra.mxu0 0.0
    %3291 = vmatprep.subr.mxu0 0.0
    %3292 = vmatpush1.msra.mxu0 0.0
    %3293 = vmatprep.subr.mxu0 0.0
    %3294 = vmatpush1.msra.mxu0 0.0
    %3295 = vmatprep.subr.mxu0 0.0
    %3296 = vmatpush1.msra.mxu0 0.0
    %3297 = vmatprep.subr.mxu0 0.0
    %3298 = vmatpush1.msra.mxu0 0.0
    %3299 = vmatprep.subr.mxu0 0.0
    %3300 = vmatpush1.msra.mxu0 0.0
    %3301 = vmatprep.subr.mxu0 0.0
    %3302 = vmatpush1.msra.mxu0 0.0
    %3303 = vmatprep.subr.mxu0 0.0
    %3304 = vmatpush1.msra.mxu0 0.0
    %3305 = vmatprep.mubr.f32.mxu0 0.0
    %3306 = vmatmul.mubr.f32.gmra.mrb[0].mxu0 %v3239
    %v3307 = vpop.f32.mrb[0].mxu0
    %v3308 = vadd.f32 0.0, %v3307
    %v3309 = vpop.f32.mrb[0].mxu0
    %3310 = vmatprep.mubr.f32.mxu0 0.0
    %3311 = vmatmul.mubr.f32.gmra.mrb[0].mxu0 %v3240
    %v3312 = vpop.f32.mrb[0].mxu0
    %v3313 = vadd.f32 0.0, %v3312
    %v3314 = vpop.f32.mrb[0].mxu0
    %3315 = vdwg.mxu0
    %v3316 = vmax.f32 %v3231, %v3308
    %v3317 = vmax.f32 %v3236, %v3313
    %v3318 = vsub.f32 %v3231, %v3316
    %v3319 = vsub.f32 %v3236, %v3317
    %v3320 = vmul.f32 %v3318, 1.442695
    %v3321 = vpow.pop %v3320
    %v3322 = vmul.f32 %v3319, 1.442695
    %v3323 = vpow.pop %v3322
    %v3324 = vsub.f32 %v3308, %v3316
    %v3325 = vsub.f32 %v3313, %v3317
    %v3326 = vmul.f32 %v3324, 1.442695
    %v3327 = vpow.pop %v3326
    %v3328 = vmul.f32 %v3325, 1.442695
    %v3329 = vpow.pop %v3328
    %v3330 = vadd.f32 %v3321, %v3327
    %v3331 = vadd.f32 %v3323, %v3329
    %v3332 = vrcp.pop %v3330
    %v3333 = vrcp.pop %v3331
    %v3334 = vmul.f32 %v3321, %v3332
    %v3335 = vmul.f32 %v3323, %v3333
    %v3337 = vsel %vm1903, %v3334, 0
    %v3340 = vsel %vm1903, %v3335, 0
    %3342 = vmatprep.subr.mxu0 0.0
    %3343 = vmatpush1.msra.mxu0 %v1912
    %3344 = vmatprep.subr.mxu0 0.0
    %3345 = vmatpush1.msra.mxu0 0.0
    %3346 = vmatprep.subr.mxu0 0.0
    %3347 = vmatpush1.msra.mxu0 0.0
    %3348 = vmatprep.subr.mxu0 0.0
    %3349 = vmatpush1.msra.mxu0 0.0
    %3350 = vmatprep.subr.mxu0 0.0
    %3351 = vmatpush1.msra.mxu0 0.0
    %3352 = vmatprep.subr.mxu0 0.0
    %3353 = vmatpush1.msra.mxu0 0.0
    %3354 = vmatprep.subr.mxu0 0.0
    %3355 = vmatpush1.msra.mxu0 0.0
    %3356 = vmatprep.subr.mxu0 0.0
    %3357 = vmatpush1.msra.mxu0 0.0
    %3358 = vmatprep.subr.mxu0 0.0
    %3359 = vmatpush1.msra.mxu0 0.0
    %3360 = vmatprep.subr.mxu0 0.0
    %3361 = vmatpush1.msra.mxu0 0.0
    %3362 = vmatprep.subr.mxu0 0.0
    %3363 = vmatpush1.msra.mxu0 0.0
    %3364 = vmatprep.subr.mxu0 0.0
    %3365 = vmatpush1.msra.mxu0 0.0
    %3366 = vmatprep.subr.mxu0 0.0
    %3367 = vmatpush1.msra.mxu0 0.0
    %3368 = vmatprep.subr.mxu0 0.0
    %3369 = vmatpush1.msra.mxu0 0.0
    %3370 = vmatprep.subr.mxu0 0.0
    %3371 = vmatpush1.msra.mxu0 0.0
    %3372 = vmatprep.subr.mxu0 0.0
    %3373 = vmatpush1.msra.mxu0 0.0
    %3374 = vmatprep.subr.mxu0 0.0
    %3375 = vmatpush1.msra.mxu0 0.0
    %3376 = vmatprep.subr.mxu0 0.0
    %3377 = vmatpush1.msra.mxu0 0.0
    %3378 = vmatprep.subr.mxu0 0.0
    %3379 = vmatpush1.msra.mxu0 0.0
    %3380 = vmatprep.subr.mxu0 0.0
    %3381 = vmatpush1.msra.mxu0 0.0
    %3382 = vmatprep.subr.mxu0 0.0
    %3383 = vmatpush1.msra.mxu0 0.0
    %3384 = vmatprep.subr.mxu0 0.0
    %3385 = vmatpush1.msra.mxu0 0.0
    %3386 = vmatprep.subr.mxu0 0.0
    %3387 = vmatpush1.msra.mxu0 0.0
    %3388 = vmatprep.subr.mxu0 0.0
    %3389 = vmatpush1.msra.mxu0 0.0
    %3390 = vmatprep.subr.mxu0 0.0
    %3391 = vmatpush1.msra.mxu0 0.0
    %3392 = vmatprep.subr.mxu0 0.0
    %3393 = vmatpush1.msra.mxu0 0.0
    %3394 = vmatprep.subr.mxu0 0.0
    %3395 = vmatpush1.msra.mxu0 0.0
    %3396 = vmatprep.subr.mxu0 0.0
    %3397 = vmatpush1.msra.mxu0 0.0
    %3398 = vmatprep.subr.mxu0 0.0
    %3399 = vmatpush1.msra.mxu0 0.0
    %3400 = vmatprep.subr.mxu0 0.0
    %3401 = vmatpush1.msra.mxu0 0.0
    %3402 = vmatprep.subr.mxu0 0.0
    %3403 = vmatpush1.msra.mxu0 0.0
    %3404 = vmatprep.subr.mxu0 0.0
    %3405 = vmatpush1.msra.mxu0 0.0
    %3406 = vmatprep.mubr.f32.mxu0 0.0
    %3407 = vmatmul.mubr.f32.gmra.mrb[0].mxu0 %v3337
    %v3408 = vpop.f32.mrb[0].mxu0
    %v3409 = vadd.f32 0.0, %v3408
    %v3410 = vpop.f32.mrb[0].mxu0
    %3411 = vmatprep.mubr.f32.mxu0 0.0
    %3412 = vmatmul.mubr.f32.gmra.mrb[0].mxu0 %v3340
    %v3413 = vpop.f32.mrb[0].mxu0
    %v3414 = vadd.f32 0.0, %v3413
    %v3415 = vpop.f32.mrb[0].mxu0
    %3416 = vdwg.mxu0
    %v3417 = vmul.f32 %v3409, %v2781
    %v3418 = vmul.f32 %v3414, %v2787
    %v3419 = vmul.f32 %v3327, %v3332
    %v3420 = vmul.f32 %v3329, %v3333
    %v3422 = vsel %vm1903, %v3419, 0
    %v3425 = vsel %vm1903, %v3420, 0
    %3427 = vmatprep.subr.mxu0 0.0
    %3428 = vmatpush1.msra.mxu0 %v1912
    %3429 = vmatprep.subr.mxu0 0.0
    %3430 = vmatpush1.msra.mxu0 0.0
    %3431 = vmatprep.subr.mxu0 0.0
    %3432 = vmatpush1.msra.mxu0 0.0
    %3433 = vmatprep.subr.mxu0 0.0
    %3434 = vmatpush1.msra.mxu0 0.0
    %3435 = vmatprep.subr.mxu0 0.0
    %3436 = vmatpush1.msra.mxu0 0.0
    %3437 = vmatprep.subr.mxu0 0.0
    %3438 = vmatpush1.msra.mxu0 0.0
    %3439 = vmatprep.subr.mxu0 0.0
    %3440 = vmatpush1.msra.mxu0 0.0
    %3441 = vmatprep.subr.mxu0 0.0
    %3442 = vmatpush1.msra.mxu0 0.0
    %3443 = vmatprep.subr.mxu0 0.0
    %3444 = vmatpush1.msra.mxu0 0.0
    %3445 = vmatprep.subr.mxu0 0.0
    %3446 = vmatpush1.msra.mxu0 0.0
    %3447 = vmatprep.subr.mxu0 0.0
    %3448 = vmatpush1.msra.mxu0 0.0
    %3449 = vmatprep.subr.mxu0 0.0
    %3450 = vmatpush1.msra.mxu0 0.0
    %3451 = vmatprep.subr.mxu0 0.0
    %3452 = vmatpush1.msra.mxu0 0.0
    %3453 = vmatprep.subr.mxu0 0.0
    %3454 = vmatpush1.msra.mxu0 0.0
    %3455 = vmatprep.subr.mxu0 0.0
    %3456 = vmatpush1.msra.mxu0 0.0
    %3457 = vmatprep.subr.mxu0 0.0
    %3458 = vmatpush1.msra.mxu0 0.0
    %3459 = vmatprep.subr.mxu0 0.0
    %3460 = vmatpush1.msra.mxu0 0.0
    %3461 = vmatprep.subr.mxu0 0.0
    %3462 = vmatpush1.msra.mxu0 0.0
    %3463 = vmatprep.subr.mxu0 0.0
    %3464 = vmatpush1.msra.mxu0 0.0
    %3465 = vmatprep.subr.mxu0 0.0
    %3466 = vmatpush1.msra.mxu0 0.0
    %3467 = vmatprep.subr.mxu0 0.0
    %3468 = vmatpush1.msra.mxu0 0.0
    %3469 = vmatprep.subr.mxu0 0.0
    %3470 = vmatpush1.msra.mxu0 0.0
    %3471 = vmatprep.subr.mxu0 0.0
    %3472 = vmatpush1.msra.mxu0 0.0
    %3473 = vmatprep.subr.mxu0 0.0
    %3474 = vmatpush1.msra.mxu0 0.0
    %3475 = vmatprep.subr.mxu0 0.0
    %3476 = vmatpush1.msra.mxu0 0.0
    %3477 = vmatprep.subr.mxu0 0.0
    %3478 = vmatpush1.msra.mxu0 0.0
    %3479 = vmatprep.subr.mxu0 0.0
    %3480 = vmatpush1.msra.mxu0 0.0
    %3481 = vmatprep.subr.mxu0 0.0
    %3482 = vmatpush1.msra.mxu0 0.0
    %3483 = vmatprep.subr.mxu0 0.0
    %3484 = vmatpush1.msra.mxu0 0.0
    %3485 = vmatprep.subr.mxu0 0.0
    %3486 = vmatpush1.msra.mxu0 0.0
    %3487 = vmatprep.subr.mxu0 0.0
    %3488 = vmatpush1.msra.mxu0 0.0
    %3489 = vmatprep.subr.mxu0 0.0
    %3490 = vmatpush1.msra.mxu0 0.0
    %3491 = vmatprep.mubr.f32.mxu0 0.0
    %3492 = vmatmul.mubr.f32.gmra.mrb[0].mxu0 %v3422
    %v3493 = vpop.f32.mrb[0].mxu0
    %v3494 = vadd.f32 0.0, %v3493
    %v3495 = vpop.f32.mrb[0].mxu0
    %3496 = vmatprep.mubr.f32.mxu0 0.0
    %3497 = vmatmul.mubr.f32.gmra.mrb[0].mxu0 %v3425
    %v3498 = vpop.f32.mrb[0].mxu0
    %v3499 = vadd.f32 0.0, %v3498
    %v3500 = vpop.f32.mrb[0].mxu0
    %3501 = vdwg.mxu0
    %v3502 = vmul.f32 %v3494, %v2793
    %v3503 = vmul.f32 %v3499, %v2799
    %v3504 = vadd.f32 %v3417, %v3502
    %v3505 = vadd.f32 %v3418, %v3503
    %3506 = vmatprep.subr.mxu0 0.0
    %3507 = vmatpush1.msra.mxu0 %v2801
    %3508 = vmatprep.subr.mxu0 0.0
    %3509 = vmatpush1.msra.mxu0 %v2802
    %3510 = vmatprep.subr.mxu0 0.0
    %3511 = vmatpush1.msra.mxu0 %v2803
    %3512 = vmatprep.subr.mxu0 0.0
    %3513 = vmatpush1.msra.mxu0 %v2804
    %3514 = vmatprep.subr.mxu0 0.0
    %3515 = vmatpush1.msra.mxu0 %v2805
    %3516 = vmatprep.subr.mxu0 0.0
    %3517 = vmatpush1.msra.mxu0 %v2806
    %3518 = vmatprep.subr.mxu0 0.0
    %3519 = vmatpush1.msra.mxu0 %v2807
    %3520 = vmatprep.subr.mxu0 0.0
    %3521 = vmatpush1.msra.mxu0 %v2808
    %3522 = vmatprep.subr.mxu0 0.0
    %3523 = vmatpush1.msra.mxu0 %v2809
    %3524 = vmatprep.subr.mxu0 0.0
    %3525 = vmatpush1.msra.mxu0 %v2810
    %3526 = vmatprep.subr.mxu0 0.0
    %3527 = vmatpush1.msra.mxu0 %v2811
    %3528 = vmatprep.subr.mxu0 0.0
    %3529 = vmatpush1.msra.mxu0 %v2812
    %3530 = vmatprep.subr.mxu0 0.0
    %3531 = vmatpush1.msra.mxu0 %v2813
    %3532 = vmatprep.subr.mxu0 0.0
    %3533 = vmatpush1.msra.mxu0 %v2814
    %3534 = vmatprep.subr.mxu0 0.0
    %3535 = vmatpush1.msra.mxu0 %v2815
    %3536 = vmatprep.subr.mxu0 0.0
    %3537 = vmatpush1.msra.mxu0 %v2816
    %3538 = vmatprep.subr.mxu0 0.0
    %3539 = vmatpush1.msra.mxu0 0.0
    %3540 = vmatprep.subr.mxu0 0.0
    %3541 = vmatpush1.msra.mxu0 0.0
    %3542 = vmatprep.subr.mxu0 0.0
    %3543 = vmatpush1.msra.mxu0 0.0
    %3544 = vmatprep.subr.mxu0 0.0
    %3545 = vmatpush1.msra.mxu0 0.0
    %3546 = vmatprep.subr.mxu0 0.0
    %3547 = vmatpush1.msra.mxu0 0.0
    %3548 = vmatprep.subr.mxu0 0.0
    %3549 = vmatpush1.msra.mxu0 0.0
    %3550 = vmatprep.subr.mxu0 0.0
    %3551 = vmatpush1.msra.mxu0 0.0
    %3552 = vmatprep.subr.mxu0 0.0
    %3553 = vmatpush1.msra.mxu0 0.0
    %3554 = vmatprep.subr.mxu0 0.0
    %3555 = vmatpush1.msra.mxu0 0.0
    %3556 = vmatprep.subr.mxu0 0.0
    %3557 = vmatpush1.msra.mxu0 0.0
    %3558 = vmatprep.subr.mxu0 0.0
    %3559 = vmatpush1.msra.mxu0 0.0
    %3560 = vmatprep.subr.mxu0 0.0
    %3561 = vmatpush1.msra.mxu0 0.0
    %3562 = vmatprep.subr.mxu0 0.0
    %3563 = vmatpush1.msra.mxu0 0.0
    %3564 = vmatprep.subr.mxu0 0.0
    %3565 = vmatpush1.msra.mxu0 0.0
    %3566 = vmatprep.subr.mxu0 0.0
    %3567 = vmatpush1.msra.mxu0 0.0
    %3568 = vmatprep.subr.mxu0 0.0
    %3569 = vmatpush1.msra.mxu0 0.0
    %3570 = vmatprep.mubr.f32.mxu0 0.0
    %3571 = vmatmul.mubr.f32.gmra.mrb[0].mxu0 %v3160
    %v3572 = vpop.f32.mrb[0].mxu0
    %v3573 = vadd.f32 %v2817, %v3572
    %v3574 = vpop.f32.mrb[0].mxu0
    %3575 = vmatprep.mubr.f32.mxu0 0.0
    %3576 = vmatmul.mubr.f32.gmra.mrb[0].mxu0 %v3161
    %v3577 = vpop.f32.mrb[0].mxu0
    %v3578 = vadd.f32 %v2817, %v3577
    %v3579 = vpop.f32.mrb[0].mxu0
    %3580 = vmatprep.mubr.f32.mxu0 0.0
    %3581 = vmatmul.mubr.f32.gmra.mrb[0].mxu0 %v3504
    %v3582 = vpop.f32.mrb[0].mxu0
    %v3583 = vadd.f32 %v2817, %v3582
    %v3584 = vpop.f32.mrb[0].mxu0
    %3585 = vmatprep.mubr.f32.mxu0 0.0
    %3586 = vmatmul.mubr.f32.gmra.mrb[0].mxu0 %v3505
    %v3587 = vpop.f32.mrb[0].mxu0
    %v3588 = vadd.f32 %v2817, %v3587
    %v3589 = vpop.f32.mrb[0].mxu0
    %3590 = vdwg.mxu0
    %v3591 = vadd.f32 %v2561, %v3573
    %v3592 = vadd.f32 %v2562, %v3578
    %v3593 = vadd.f32 %v2563, %v3583
    %v3594 = vadd.f32 %v2564, %v3588
    %v3595 = vld [vmem:[#allocation8 + $0x30] ss:$0 sm:$0xff]
    %v3596 = vld [vmem:[#allocation8 + $0x31] ss:$0 sm:$0xff]
    %3597 = vadd.xlane.f32.xlu0 %v3591
    %v3598 = vpop.xlane.xlu0 %3597
    %3599 = vadd.xlane.f32.xlu0 %v3592
    %v3600 = vpop.xlane.xlu0 %3599
    %3601 = vadd.xlane.f32.xlu0 %v3593
    %v3602 = vpop.xlane.xlu0 %3601
    %3603 = vadd.xlane.f32.xlu0 %v3594
    %v3604 = vpop.xlane.xlu0 %3603
    %v3605 = vmul.f32 %v3598, %v1423
    %v3606 = vmul.f32 %v3600, %v1423
    %v3607 = vmul.f32 %v3602, %v1423
    %v3608 = vmul.f32 %v3604, %v1423
    %v3609 = vsub.f32 %v3591, %v3605
    %v3610 = vsub.f32 %v3592, %v3606
    %v3611 = vsub.f32 %v3593, %v3607
    %v3612 = vsub.f32 %v3594, %v3608
    %v3613 = vmul.f32 %v3609, %v3609
    %v3614 = vmul.f32 %v3610, %v3610
    %v3615 = vmul.f32 %v3611, %v3611
    %v3616 = vmul.f32 %v3612, %v3612
    %3617 = vadd.xlane.f32.xlu0 %v3613
    %v3618 = vpop.xlane.xlu0 %3617
    %3619 = vadd.xlane.f32.xlu0 %v3614
    %v3620 = vpop.xlane.xlu0 %3619
    %3621 = vadd.xlane.f32.xlu0 %v3615
    %v3622 = vpop.xlane.xlu0 %3621
    %3623 = vadd.xlane.f32.xlu0 %v3616
    %v3624 = vpop.xlane.xlu0 %3623
    %v3625 = vmul.f32 %v3618, %v1423
    %v3626 = vmul.f32 %v3620, %v1423
    %v3627 = vmul.f32 %v3622, %v1423
    %v3628 = vmul.f32 %v3624, %v1423
    %v3629 = vadd.f32 %v3625, 1e-05
    %v3630 = vadd.f32 %v3626, 1e-05
    %v3631 = vadd.f32 %v3627, 1e-05
    %v3632 = vadd.f32 %v3628, 1e-05
    %v3633 = vrsqrt.pop %v3629
    %v3634 = vrsqrt.pop %v3630
    %v3635 = vrsqrt.pop %v3631
    %v3636 = vrsqrt.pop %v3632
    %v3637 = vmul.f32 %v3609, %v3633
    %v3638 = vmul.f32 %v3610, %v3634
    %v3639 = vmul.f32 %v3611, %v3635
    %v3640 = vmul.f32 %v3612, %v3636
    %v3641 = vmul.f32 %v3637, %v3595
    %v3642 = vmul.f32 %v3638, %v3595
    %v3643 = vmul.f32 %v3639, %v3595
    %v3644 = vmul.f32 %v3640, %v3595
    %v3645 = vadd.f32 %v3641, %v3596
    %v3646 = vadd.f32 %v3642, %v3596
    %v3647 = vadd.f32 %v3643, %v3596
    %v3648 = vadd.f32 %v3644, %v3596
    %v3649 = vld [vmem:[#allocation7 + $0x1680] sm:$0xff]
    %v3650 = vld [vmem:[#allocation7 + $0x1698] sm:$0xff]
    %v3651 = vld [vmem:[#allocation7 + $0x16b0] sm:$0xff]
    %v3652 = vld [vmem:[#allocation7 + $0x16c8] sm:$0xff]
    %v3653 = vld [vmem:[#allocation7 + $0x16e0] sm:$0xff]
    %v3654 = vld [vmem:[#allocation7 + $0x16f8] sm:$0xff]
    %v3655 = vld [vmem:[#allocation7 + $0x1710] sm:$0xff]
    %v3656 = vld [vmem:[#allocation7 + $0x1728] sm:$0xff]
    %v3657 = vld [vmem:[#allocation7 + $0x1740] sm:$0xff]
    %v3658 = vld [vmem:[#allocation7 + $0x1758] sm:$0xff]
    %v3659 = vld [vmem:[#allocation7 + $0x1770] sm:$0xff]
    %v3660 = vld [vmem:[#allocation7 + $0x1788] sm:$0xff]
    %v3661 = vld [vmem:[#allocation7 + $0x17a0] sm:$0xff]
    %v3662 = vld [vmem:[#allocation7 + $0x17b8] sm:$0xff]
    %v3663 = vld [vmem:[#allocation7 + $0x17d0] sm:$0xff]
    %v3664 = vld [vmem:[#allocation7 + $0x17e8] sm:$0xff]
    %v3665 = vld [vmem:[#allocation8 + $0x32] ss:$0 sm:$0xff]
    %3666 = vmatprep.subr.mxu0 0.0
    %3667 = vmatpush1.msra.mxu0 %v3649
    %3668 = vmatprep.subr.mxu0 0.0
    %3669 = vmatpush1.msra.mxu0 %v3650
    %3670 = vmatprep.subr.mxu0 0.0
    %3671 = vmatpush1.msra.mxu0 %v3651
    %3672 = vmatprep.subr.mxu0 0.0
    %3673 = vmatpush1.msra.mxu0 %v3652
    %3674 = vmatprep.subr.mxu0 0.0
    %3675 = vmatpush1.msra.mxu0 %v3653
    %3676 = vmatprep.subr.mxu0 0.0
    %3677 = vmatpush1.msra.mxu0 %v3654
    %3678 = vmatprep.subr.mxu0 0.0
    %3679 = vmatpush1.msra.mxu0 %v3655
    %3680 = vmatprep.subr.mxu0 0.0
    %3681 = vmatpush1.msra.mxu0 %v3656
    %3682 = vmatprep.subr.mxu0 0.0
    %3683 = vmatpush1.msra.mxu0 %v3657
    %3684 = vmatprep.subr.mxu0 0.0
    %3685 = vmatpush1.msra.mxu0 %v3658
    %3686 = vmatprep.subr.mxu0 0.0
    %3687 = vmatpush1.msra.mxu0 %v3659
    %3688 = vmatprep.subr.mxu0 0.0
    %3689 = vmatpush1.msra.mxu0 %v3660
    %3690 = vmatprep.subr.mxu0 0.0
    %3691 = vmatpush1.msra.mxu0 %v3661
    %3692 = vmatprep.subr.mxu0 0.0
    %3693 = vmatpush1.msra.mxu0 %v3662
    %3694 = vmatprep.subr.mxu0 0.0
    %3695 = vmatpush1.msra.mxu0 %v3663
    %3696 = vmatprep.subr.mxu0 0.0
    %3697 = vmatpush1.msra.mxu0 %v3664
    %3698 = vmatprep.subr.mxu0 0.0
    %3699 = vmatpush1.msra.mxu0 0.0
    %3700 = vmatprep.subr.mxu0 0.0
    %3701 = vmatpush1.msra.mxu0 0.0
    %3702 = vmatprep.subr.mxu0 0.0
    %3703 = vmatpush1.msra.mxu0 0.0
    %3704 = vmatprep.subr.mxu0 0.0
    %3705 = vmatpush1.msra.mxu0 0.0
    %3706 = vmatprep.subr.mxu0 0.0
    %3707 = vmatpush1.msra.mxu0 0.0
    %3708 = vmatprep.subr.mxu0 0.0
    %3709 = vmatpush1.msra.mxu0 0.0
    %3710 = vmatprep.subr.mxu0 0.0
    %3711 = vmatpush1.msra.mxu0 0.0
    %3712 = vmatprep.subr.mxu0 0.0
    %3713 = vmatpush1.msra.mxu0 0.0
    %3714 = vmatprep.subr.mxu0 0.0
    %3715 = vmatpush1.msra.mxu0 0.0
    %3716 = vmatprep.subr.mxu0 0.0
    %3717 = vmatpush1.msra.mxu0 0.0
    %3718 = vmatprep.subr.mxu0 0.0
    %3719 = vmatpush1.msra.mxu0 0.0
    %3720 = vmatprep.subr.mxu0 0.0
    %3721 = vmatpush1.msra.mxu0 0.0
    %3722 = vmatprep.subr.mxu0 0.0
    %3723 = vmatpush1.msra.mxu0 0.0
    %3724 = vmatprep.subr.mxu0 0.0
    %3725 = vmatpush1.msra.mxu0 0.0
    %3726 = vmatprep.subr.mxu0 0.0
    %3727 = vmatpush1.msra.mxu0 0.0
    %3728 = vmatprep.subr.mxu0 0.0
    %3729 = vmatpush1.msra.mxu0 0.0
    %3730 = vmatprep.mubr.f32.mxu0 0.0
    %3731 = vmatmul.mubr.f32.gmra.mrb[0].mxu0 %v3645
    %v3732 = vpop.f32.mrb[0].mxu0
    %v3733 = vadd.f32 %v3665, %v3732
    %v3734 = vpop.f32.mrb[0].mxu0
    %3735 = vmatprep.mubr.f32.mxu0 0.0
    %3736 = vmatmul.mubr.f32.gmra.mrb[0].mxu0 %v3646
    %v3737 = vpop.f32.mrb[0].mxu0
    %v3738 = vadd.f32 %v3665, %v3737
    %v3739 = vpop.f32.mrb[0].mxu0
    %3740 = vmatprep.mubr.f32.mxu0 0.0
    %3741 = vmatmul.mubr.f32.gmra.mrb[0].mxu0 %v3647
    %v3742 = vpop.f32.mrb[0].mxu0
    %v3743 = vadd.f32 %v3665, %v3742
    %v3744 = vpop.f32.mrb[0].mxu0
    %3745 = vmatprep.mubr.f32.mxu0 0.0
    %3746 = vmatmul.mubr.f32.gmra.mrb[0].mxu0 %v3648
    %v3747 = vpop.f32.mrb[0].mxu0
    %v3748 = vadd.f32 %v3665, %v3747
    %v3749 = vpop.f32.mrb[0].mxu0
    %3750 = vdwg.mxu0
    %v3751 = vmax.f32 %v3733, 0.0
    %v3752 = vmax.f32 %v3738, 0.0
    %v3753 = vmax.f32 %v3743, 0.0
    %v3754 = vmax.f32 %v3748, 0.0
    %v3755 = vld [vmem:[#allocation7 + $0x1800] sm:$0xff]
    %v3756 = vld [vmem:[#allocation7 + $0x1818] sm:$0xff]
    %v3757 = vld [vmem:[#allocation7 + $0x1830] sm:$0xff]
    %v3758 = vld [vmem:[#allocation7 + $0x1848] sm:$0xff]
    %v3759 = vld [vmem:[#allocation7 + $0x1860] sm:$0xff]
    %v3760 = vld [vmem:[#allocation7 + $0x1878] sm:$0xff]
    %v3761 = vld [vmem:[#allocation7 + $0x1890] sm:$0xff]
    %v3762 = vld [vmem:[#allocation7 + $0x18a8] sm:$0xff]
    %v3763 = vld [vmem:[#allocation7 + $0x18c0] sm:$0xff]
    %v3764 = vld [vmem:[#allocation7 + $0x18d8] sm:$0xff]
    %v3765 = vld [vmem:[#allocation7 + $0x18f0] sm:$0xff]
    %v3766 = vld [vmem:[#allocation7 + $0x1908] sm:$0xff]
    %v3767 = vld [vmem:[#allocation7 + $0x1920] sm:$0xff]
    %v3768 = vld [vmem:[#allocation7 + $0x1938] sm:$0xff]
    %v3769 = vld [vmem:[#allocation7 + $0x1950] sm:$0xff]
    %v3770 = vld [vmem:[#allocation7 + $0x1968] sm:$0xff]
    %v3771 = vld [vmem:[#allocation8 + $0x33] ss:$0 sm:$0xff]
    %3772 = vmatprep.subr.mxu0 0.0
    %3773 = vmatpush1.msra.mxu0 %v3755
    %3774 = vmatprep.subr.mxu0 0.0
    %3775 = vmatpush1.msra.mxu0 %v3756
    %3776 = vmatprep.subr.mxu0 0.0
    %3777 = vmatpush1.msra.mxu0 %v3757
    %3778 = vmatprep.subr.mxu0 0.0
    %3779 = vmatpush1.msra.mxu0 %v3758
    %3780 = vmatprep.subr.mxu0 0.0
    %3781 = vmatpush1.msra.mxu0 %v3759
    %3782 = vmatprep.subr.mxu0 0.0
    %3783 = vmatpush1.msra.mxu0 %v3760
    %3784 = vmatprep.subr.mxu0 0.0
    %3785 = vmatpush1.msra.mxu0 %v3761
    %3786 = vmatprep.subr.mxu0 0.0
    %3787 = vmatpush1.msra.mxu0 %v3762
    %3788 = vmatprep.subr.mxu0 0.0
    %3789 = vmatpush1.msra.mxu0 %v3763
    %3790 = vmatprep.subr.mxu0 0.0
    %3791 = vmatpush1.msra.mxu0 %v3764
    %3792 = vmatprep.subr.mxu0 0.0
    %3793 = vmatpush1.msra.mxu0 %v3765
    %3794 = vmatprep.subr.mxu0 0.0
    %3795 = vmatpush1.msra.mxu0 %v3766
    %3796 = vmatprep.subr.mxu0 0.0
    %3797 = vmatpush1.msra.mxu0 %v3767
    %3798 = vmatprep.subr.mxu0 0.0
    %3799 = vmatpush1.msra.mxu0 %v3768
    %3800 = vmatprep.subr.mxu0 0.0
    %3801 = vmatpush1.msra.mxu0 %v3769
    %3802 = vmatprep.subr.mxu0 0.0
    %3803 = vmatpush1.msra.mxu0 %v3770
    %3804 = vmatprep.subr.mxu0 0.0
    %3805 = vmatpush1.msra.mxu0 0.0
    %3806 = vmatprep.subr.mxu0 0.0
    %3807 = vmatpush1.msra.mxu0 0.0
    %3808 = vmatprep.subr.mxu0 0.0
    %3809 = vmatpush1.msra.mxu0 0.0
    %3810 = vmatprep.subr.mxu0 0.0
    %3811 = vmatpush1.msra.mxu0 0.0
    %3812 = vmatprep.subr.mxu0 0.0
    %3813 = vmatpush1.msra.mxu0 0.0
    %3814 = vmatprep.subr.mxu0 0.0
    %3815 = vmatpush1.msra.mxu0 0.0
    %3816 = vmatprep.subr.mxu0 0.0
    %3817 = vmatpush1.msra.mxu0 0.0
    %3818 = vmatprep.subr.mxu0 0.0
    %3819 = vmatpush1.msra.mxu0 0.0
    %3820 = vmatprep.subr.mxu0 0.0
    %3821 = vmatpush1.msra.mxu0 0.0
    %3822 = vmatprep.subr.mxu0 0.0
    %3823 = vmatpush1.msra.mxu0 0.0
    %3824 = vmatprep.subr.mxu0 0.0
    %3825 = vmatpush1.msra.mxu0 0.0
    %3826 = vmatprep.subr.mxu0 0.0
    %3827 = vmatpush1.msra.mxu0 0.0
    %3828 = vmatprep.subr.mxu0 0.0
    %3829 = vmatpush1.msra.mxu0 0.0
    %3830 = vmatprep.subr.mxu0 0.0
    %3831 = vmatpush1.msra.mxu0 0.0
    %3832 = vmatprep.subr.mxu0 0.0
    %3833 = vmatpush1.msra.mxu0 0.0
    %3834 = vmatprep.subr.mxu0 0.0
    %3835 = vmatpush1.msra.mxu0 0.0
    %3836 = vmatprep.mubr.f32.mxu0 0.0
    %3837 = vmatmul.mubr.f32.gmra.mrb[0].mxu0 %v3751
    %v3838 = vpop.f32.mrb[0].mxu0
    %v3839 = vadd.f32 %v3771, %v3838
    %v3840 = vpop.f32.mrb[0].mxu0
    %3841 = vmatprep.mubr.f32.mxu0 0.0
    %3842 = vmatmul.mubr.f32.gmra.mrb[0].mxu0 %v3752
    %v3843 = vpop.f32.mrb[0].mxu0
    %v3844 = vadd.f32 %v3771, %v3843
    %v3845 = vpop.f32.mrb[0].mxu0
    %3846 = vmatprep.mubr.f32.mxu0 0.0
    %3847 = vmatmul.mubr.f32.gmra.mrb[0].mxu0 %v3753
    %v3848 = vpop.f32.mrb[0].mxu0
    %v3849 = vadd.f32 %v3771, %v3848
    %v3850 = vpop.f32.mrb[0].mxu0
    %3851 = vmatprep.mubr.f32.mxu0 0.0
    %3852 = vmatmul.mubr.f32.gmra.mrb[0].mxu0 %v3754
    %v3853 = vpop.f32.mrb[0].mxu0
    %v3854 = vadd.f32 %v3771, %v3853
    %v3855 = vpop.f32.mrb[0].mxu0
    %3856 = vdwg.mxu0
    %v3857 = vadd.f32 %v3645, %v3839
    %v3858 = vadd.f32 %v3646, %v3844
    %v3859 = vadd.f32 %v3647, %v3849
    %v3860 = vadd.f32 %v3648, %v3854
    %v3861 = vld [vmem:[#allocation8 + $0x34] ss:$0 sm:$0xff]
    %v3862 = vld [vmem:[#allocation8 + $0x35] ss:$0 sm:$0xff]
    %3863 = vadd.xlane.f32.xlu0 %v3857
    %v3864 = vpop.xlane.xlu0 %3863
    %3865 = vadd.xlane.f32.xlu0 %v3858
    %v3866 = vpop.xlane.xlu0 %3865
    %3867 = vadd.xlane.f32.xlu0 %v3859
    %v3868 = vpop.xlane.xlu0 %3867
    %3869 = vadd.xlane.f32.xlu0 %v3860
    %v3870 = vpop.xlane.xlu0 %3869
    %v3871 = vmul.f32 %v3864, %v1423
    %v3872 = vmul.f32 %v3866, %v1423
    %v3873 = vmul.f32 %v3868, %v1423
    %v3874 = vmul.f32 %v3870, %v1423
    %v3875 = vsub.f32 %v3857, %v3871
    %v3876 = vsub.f32 %v3858, %v3872
    %v3877 = vsub.f32 %v3859, %v3873
    %v3878 = vsub.f32 %v3860, %v3874
    %v3879 = vmul.f32 %v3875, %v3875
    %v3880 = vmul.f32 %v3876, %v3876
    %v3881 = vmul.f32 %v3877, %v3877
    %v3882 = vmul.f32 %v3878, %v3878
    %3883 = vadd.xlane.f32.xlu0 %v3879
    %v3884 = vpop.xlane.xlu0 %3883
    %3885 = vadd.xlane.f32.xlu0 %v3880
    %v3886 = vpop.xlane.xlu0 %3885
    %3887 = vadd.xlane.f32.xlu0 %v3881
    %v3888 = vpop.xlane.xlu0 %3887
    %3889 = vadd.xlane.f32.xlu0 %v3882
    %v3890 = vpop.xlane.xlu0 %3889
    %v3891 = vmul.f32 %v3884, %v1423
    %v3892 = vmul.f32 %v3886, %v1423
    %v3893 = vmul.f32 %v3888, %v1423
    %v3894 = vmul.f32 %v3890, %v1423
    %v3895 = vadd.f32 %v3891, 1e-05
    %v3896 = vadd.f32 %v3892, 1e-05
    %v3897 = vadd.f32 %v3893, 1e-05
    %v3898 = vadd.f32 %v3894, 1e-05
    %v3899 = vrsqrt.pop %v3895
    %v3900 = vrsqrt.pop %v3896
    %v3901 = vrsqrt.pop %v3897
    %v3902 = vrsqrt.pop %v3898
    %v3903 = vmul.f32 %v3875, %v3899
    %v3904 = vmul.f32 %v3876, %v3900
    %v3905 = vmul.f32 %v3877, %v3901
    %v3906 = vmul.f32 %v3878, %v3902
    %v3907 = vmul.f32 %v3903, %v3861
    %v3908 = vmul.f32 %v3904, %v3861
    %v3909 = vmul.f32 %v3905, %v3861
    %v3910 = vmul.f32 %v3906, %v3861
    %v3911 = vadd.f32 %v3907, %v3862
    %v3912 = vadd.f32 %v3908, %v3862
    %v3913 = vadd.f32 %v3909, %v3862
    %v3914 = vadd.f32 %v3910, %v3862
    %v3915 = vld [vmem:[#allocation7 + $0x1980] sm:$0xff]
    %v3916 = vld [vmem:[#allocation7 + $0x1988] sm:$0xff]
    %v3917 = vld [vmem:[#allocation7 + $0x1990] sm:$0xff]
    %v3918 = vld [vmem:[#allocation7 + $0x1998] sm:$0xff]
    %v3919 = vld [vmem:[#allocation7 + $0x19a0] sm:$0xff]
    %v3920 = vld [vmem:[#allocation7 + $0x19a8] sm:$0xff]
    %v3921 = vld [vmem:[#allocation7 + $0x19b0] sm:$0xff]
    %v3922 = vld [vmem:[#allocation7 + $0x19b8] sm:$0xff]
    %v3923 = vld [vmem:[#allocation7 + $0x19c0] sm:$0xff]
    %v3924 = vld [vmem:[#allocation7 + $0x19c8] sm:$0xff]
    %v3925 = vld [vmem:[#allocation7 + $0x19d0] sm:$0xff]
    %v3926 = vld [vmem:[#allocation7 + $0x19d8] sm:$0xff]
    %v3927 = vld [vmem:[#allocation7 + $0x19e0] sm:$0xff]
    %v3928 = vld [vmem:[#allocation7 + $0x19e8] sm:$0xff]
    %v3929 = vld [vmem:[#allocation7 + $0x19f0] sm:$0xff]
    %v3930 = vld [vmem:[#allocation7 + $0x19f8] sm:$0xff]
    %v3931 = vld [vmem:[#allocation7 + $0x1a00] sm:$0xff]
    %v3932 = vld [vmem:[#allocation7 + $0x1a08] sm:$0xff]
    %v3933 = vld [vmem:[#allocation7 + $0x1a10] sm:$0xff]
    %v3934 = vld [vmem:[#allocation7 + $0x1a18] sm:$0xff]
    %v3935 = vld [vmem:[#allocation7 + $0x1a20] sm:$0xff]
    %v3936 = vld [vmem:[#allocation7 + $0x1a28] sm:$0xff]
    %v3937 = vld [vmem:[#allocation7 + $0x1a30] sm:$0xff]
    %v3938 = vld [vmem:[#allocation7 + $0x1a38] sm:$0xff]
    %v3939 = vld [vmem:[#allocation7 + $0x1a40] sm:$0xff]
    %v3940 = vld [vmem:[#allocation7 + $0x1a48] sm:$0xff]
    %v3941 = vld [vmem:[#allocation7 + $0x1a50] sm:$0xff]
    %v3942 = vld [vmem:[#allocation7 + $0x1a58] sm:$0xff]
    %v3943 = vld [vmem:[#allocation7 + $0x1a60] sm:$0xff]
    %v3944 = vld [vmem:[#allocation7 + $0x1a68] sm:$0xff]
    %v3945 = vld [vmem:[#allocation7 + $0x1a70] sm:$0xff]
    %v3946 = vld [vmem:[#allocation7 + $0x1a78] sm:$0xff]
    %v3947 = vld [vmem:[#allocation7 + $0x1a80] sm:$0xff]
    %v3948 = vld [vmem:[#allocation7 + $0x1a88] sm:$0xff]
    %v3949 = vld [vmem:[#allocation7 + $0x1a90] sm:$0xff]
    %v3950 = vld [vmem:[#allocation7 + $0x1a98] sm:$0xff]
    %v3951 = vld [vmem:[#allocation7 + $0x1aa0] sm:$0xff]
    %v3952 = vld [vmem:[#allocation7 + $0x1aa8] sm:$0xff]
    %v3953 = vld [vmem:[#allocation7 + $0x1ab0] sm:$0xff]
    %v3954 = vld [vmem:[#allocation7 + $0x1ab8] sm:$0xff]
    %v3955 = vld [vmem:[#allocation7 + $0x1ac0] sm:$0xff]
    %v3956 = vld [vmem:[#allocation7 + $0x1ac8] sm:$0xff]
    %v3957 = vld [vmem:[#allocation7 + $0x1ad0] sm:$0xff]
    %v3958 = vld [vmem:[#allocation7 + $0x1ad8] sm:$0xff]
    %v3959 = vld [vmem:[#allocation7 + $0x1ae0] sm:$0xff]
    %v3960 = vld [vmem:[#allocation7 + $0x1ae8] sm:$0xff]
    %v3961 = vld [vmem:[#allocation7 + $0x1af0] sm:$0xff]
    %v3962 = vld [vmem:[#allocation7 + $0x1af8] sm:$0xff]
    %s3963 = scalar_lea.vmem [#allocation8], 54
    %v3964 = vld [vmem:[%s3963] ss:$8 sm:$0x7]
    %v3966 = vlaneseq
    %v3967 = vshrl.u32 %v3966, 7
    %v3968 = vsub.s32 0, %v3967
    %v3969 = vrot.slane %v3964, %v3968
    %v3970 = vlaneseq
    %v3971 = vshrl.u32 %v3970, 7
    %v3972 = vsub.s32 1, %v3971
    %v3973 = vrot.slane %v3964, %v3972
    %v3974 = vlaneseq
    %v3975 = vshrl.u32 %v3974, 7
    %v3976 = vsub.s32 2, %v3975
    %v3977 = vrot.slane %v3964, %v3976
    %3981 = vmatprep.subr.mxu0 %v3916
    %3982 = vmatpush1.msra.mxu0 %v3915
    %3983 = vmatprep.subr.mxu0 %v3919
    %3984 = vmatpush1.msra.mxu0 %v3918
    %3985 = vmatprep.subr.mxu0 %v3922
    %3986 = vmatpush1.msra.mxu0 %v3921
    %3987 = vmatprep.subr.mxu0 %v3925
    %3988 = vmatpush1.msra.mxu0 %v3924
    %3989 = vmatprep.subr.mxu0 %v3928
    %3990 = vmatpush1.msra.mxu0 %v3927
    %3991 = vmatprep.subr.mxu0 %v3931
    %3992 = vmatpush1.msra.mxu0 %v3930
    %3993 = vmatprep.subr.mxu0 %v3934
    %3994 = vmatpush1.msra.mxu0 %v3933
    %3995 = vmatprep.subr.mxu0 %v3937
    %3996 = vmatpush1.msra.mxu0 %v3936
    %3997 = vmatprep.subr.mxu0 %v3940
    %3998 = vmatpush1.msra.mxu0 %v3939
    %3999 = vmatprep.subr.mxu0 %v3943
    %4000 = vmatpush1.msra.mxu0 %v3942
    %4001 = vmatprep.subr.mxu0 %v3946
    %4002 = vmatpush1.msra.mxu0 %v3945
    %4003 = vmatprep.subr.mxu0 %v3949
    %4004 = vmatpush1.msra.mxu0 %v3948
    %4005 = vmatprep.subr.mxu0 %v3952
    %4006 = vmatpush1.msra.mxu0 %v3951
    %4007 = vmatprep.subr.mxu0 %v3955
    %4008 = vmatpush1.msra.mxu0 %v3954
    %4009 = vmatprep.subr.mxu0 %v3958
    %4010 = vmatpush1.msra.mxu0 %v3957
    %4011 = vmatprep.subr.mxu0 %v3961
    %4012 = vmatpush1.msra.mxu0 %v3960
    %4013 = vmatprep.subr.mxu0 0.0
    %4014 = vmatpush1.msra.mxu0 0.0
    %4015 = vmatprep.subr.mxu0 0.0
    %4016 = vmatpush1.msra.mxu0 0.0
    %4017 = vmatprep.subr.mxu0 0.0
    %4018 = vmatpush1.msra.mxu0 0.0
    %4019 = vmatprep.subr.mxu0 0.0
    %4020 = vmatpush1.msra.mxu0 0.0
    %4021 = vmatprep.subr.mxu0 0.0
    %4022 = vmatpush1.msra.mxu0 0.0
    %4023 = vmatprep.subr.mxu0 0.0
    %4024 = vmatpush1.msra.mxu0 0.0
    %4025 = vmatprep.subr.mxu0 0.0
    %4026 = vmatpush1.msra.mxu0 0.0
    %4027 = vmatprep.subr.mxu0 0.0
    %4028 = vmatpush1.msra.mxu0 0.0
    %4029 = vmatprep.subr.mxu0 0.0
    %4030 = vmatpush1.msra.mxu0 0.0
    %4031 = vmatprep.subr.mxu0 0.0
    %4032 = vmatpush1.msra.mxu0 0.0
    %4033 = vmatprep.subr.mxu0 0.0
    %4034 = vmatpush1.msra.mxu0 0.0
    %4035 = vmatprep.subr.mxu0 0.0
    %4036 = vmatpush1.msra.mxu0 0.0
    %4037 = vmatprep.subr.mxu0 0.0
    %4038 = vmatpush1.msra.mxu0 0.0
    %4039 = vmatprep.subr.mxu0 0.0
    %4040 = vmatpush1.msra.mxu0 0.0
    %4041 = vmatprep.subr.mxu0 0.0
    %4042 = vmatpush1.msra.mxu0 0.0
    %4043 = vmatprep.subr.mxu0 0.0
    %4044 = vmatpush1.msra.mxu0 0.0
    %4045 = vmatprep.mubr.f32.mxu0 0.0
    %4046 = vmatmul.mubr.f32.gmra.mrb[0].mxu0 %v3911
    %v4047 = vpop.f32.mrb[0].mxu0
    %v4048 = vadd.f32 %v3969, %v4047
    %v4049 = vpop.f32.mrb[0].mxu0
    %v4050 = vadd.f32 %v3973, %v4049
    %4051 = vmatprep.mubr.f32.mxu0 0.0
    %4052 = vmatmul.mubr.f32.gmra.mrb[0].mxu0 %v3912
    %v4053 = vpop.f32.mrb[0].mxu0
    %v4054 = vadd.f32 %v3969, %v4053
    %v4055 = vpop.f32.mrb[0].mxu0
    %v4056 = vadd.f32 %v3973, %v4055
    %4057 = vmatprep.mubr.f32.mxu0 0.0
    %4058 = vmatmul.mubr.f32.gmra.mrb[0].mxu0 %v3913
    %v4059 = vpop.f32.mrb[0].mxu0
    %v4060 = vadd.f32 %v3969, %v4059
    %v4061 = vpop.f32.mrb[0].mxu0
    %v4062 = vadd.f32 %v3973, %v4061
    %4063 = vmatprep.mubr.f32.mxu0 0.0
    %4064 = vmatmul.mubr.f32.gmra.mrb[0].mxu0 %v3914
    %v4065 = vpop.f32.mrb[0].mxu0
    %v4066 = vadd.f32 %v3969, %v4065
    %v4067 = vpop.f32.mrb[0].mxu0
    %v4068 = vadd.f32 %v3973, %v4067
    %4069 = vdwg.mxu0
    %4070 = vmatprep.subr.mxu0 0.0
    %4071 = vmatpush1.msra.mxu0 %v3917
    %4072 = vmatprep.subr.mxu0 0.0
    %4073 = vmatpush1.msra.mxu0 %v3920
    %4074 = vmatprep.subr.mxu0 0.0
    %4075 = vmatpush1.msra.mxu0 %v3923
    %4076 = vmatprep.subr.mxu0 0.0
    %4077 = vmatpush1.msra.mxu0 %v3926
    %4078 = vmatprep.subr.mxu0 0.0
    %4079 = vmatpush1.msra.mxu0 %v3929
    %4080 = vmatprep.subr.mxu0 0.0
    %4081 = vmatpush1.msra.mxu0 %v3932
    %4082 = vmatprep.subr.mxu0 0.0
    %4083 = vmatpush1.msra.mxu0 %v3935
    %4084 = vmatprep.subr.mxu0 0.0
    %4085 = vmatpush1.msra.mxu0 %v3938
    %4086 = vmatprep.subr.mxu0 0.0
    %4087 = vmatpush1.msra.mxu0 %v3941
    %4088 = vmatprep.subr.mxu0 0.0
    %4089 = vmatpush1.msra.mxu0 %v3944
    %4090 = vmatprep.subr.mxu0 0.0
    %4091 = vmatpush1.msra.mxu0 %v3947
    %4092 = vmatprep.subr.mxu0 0.0
    %4093 = vmatpush1.msra.mxu0 %v3950
    %4094 = vmatprep.subr.mxu0 0.0
    %4095 = vmatpush1.msra.mxu0 %v3953
    %4096 = vmatprep.subr.mxu0 0.0
    %4097 = vmatpush1.msra.mxu0 %v3956
    %4098 = vmatprep.subr.mxu0 0.0
    %4099 = vmatpush1.msra.mxu0 %v3959
    %4100 = vmatprep.subr.mxu0 0.0
    %4101 = vmatpush1.msra.mxu0 %v3962
    %4102 = vmatprep.subr.mxu0 0.0
    %4103 = vmatpush1.msra.mxu0 0.0
    %4104 = vmatprep.subr.mxu0 0.0
    %4105 = vmatpush1.msra.mxu0 0.0
    %4106 = vmatprep.subr.mxu0 0.0
    %4107 = vmatpush1.msra.mxu0 0.0
    %4108 = vmatprep.subr.mxu0 0.0
    %4109 = vmatpush1.msra.mxu0 0.0
    %4110 = vmatprep.subr.mxu0 0.0
    %4111 = vmatpush1.msra.mxu0 0.0
    %4112 = vmatprep.subr.mxu0 0.0
    %4113 = vmatpush1.msra.mxu0 0.0
    %4114 = vmatprep.subr.mxu0 0.0
    %4115 = vmatpush1.msra.mxu0 0.0
    %4116 = vmatprep.subr.mxu0 0.0
    %4117 = vmatpush1.msra.mxu0 0.0
    %4118 = vmatprep.subr.mxu0 0.0
    %4119 = vmatpush1.msra.mxu0 0.0
    %4120 = vmatprep.subr.mxu0 0.0
    %4121 = vmatpush1.msra.mxu0 0.0
    %4122 = vmatprep.subr.mxu0 0.0
    %4123 = vmatpush1.msra.mxu0 0.0
    %4124 = vmatprep.subr.mxu0 0.0
    %4125 = vmatpush1.msra.mxu0 0.0
    %4126 = vmatprep.subr.mxu0 0.0
    %4127 = vmatpush1.msra.mxu0 0.0
    %4128 = vmatprep.subr.mxu0 0.0
    %4129 = vmatpush1.msra.mxu0 0.0
    %4130 = vmatprep.subr.mxu0 0.0
    %4131 = vmatpush1.msra.mxu0 0.0
    %4132 = vmatprep.subr.mxu0 0.0
    %4133 = vmatpush1.msra.mxu0 0.0
    %4134 = vmatprep.mubr.f32.mxu0 0.0
    %4135 = vmatmul.mubr.f32.gmra.mrb[0].mxu0 %v3911
    %v4136 = vpop.f32.mrb[0].mxu0
    %v4137 = vadd.f32 %v3977, %v4136
    %v4138 = vpop.f32.mrb[0].mxu0
    %4139 = vmatprep.mubr.f32.mxu0 0.0
    %4140 = vmatmul.mubr.f32.gmra.mrb[0].mxu0 %v3912
    %v4141 = vpop.f32.mrb[0].mxu0
    %v4142 = vadd.f32 %v3977, %v4141
    %v4143 = vpop.f32.mrb[0].mxu0
    %4144 = vmatprep.mubr.f32.mxu0 0.0
    %4145 = vmatmul.mubr.f32.gmra.mrb[0].mxu0 %v3913
    %v4146 = vpop.f32.mrb[0].mxu0
    %v4147 = vadd.f32 %v3977, %v4146
    %v4148 = vpop.f32.mrb[0].mxu0
    %4149 = vmatprep.mubr.f32.mxu0 0.0
    %4150 = vmatmul.mubr.f32.gmra.mrb[0].mxu0 %v3914
    %v4151 = vpop.f32.mrb[0].mxu0
    %v4152 = vadd.f32 %v3977, %v4151
    %v4153 = vpop.f32.mrb[0].mxu0
    %4154 = vdwg.mxu0
    %v4155 = vld [vmem:[#allocation7 + $0x1b00] sm:$0xff]
    %v4156 = vld [vmem:[#allocation7 + $0x1b18] sm:$0xff]
    %v4157 = vld [vmem:[#allocation7 + $0x1b30] sm:$0xff]
    %v4158 = vld [vmem:[#allocation7 + $0x1b48] sm:$0xff]
    %v4159 = vld [vmem:[#allocation7 + $0x1b60] sm:$0xff]
    %v4160 = vld [vmem:[#allocation7 + $0x1b78] sm:$0xff]
    %v4161 = vld [vmem:[#allocation7 + $0x1b90] sm:$0xff]
    %v4162 = vld [vmem:[#allocation7 + $0x1ba8] sm:$0xff]
    %v4163 = vld [vmem:[#allocation7 + $0x1bc0] sm:$0xff]
    %v4164 = vld [vmem:[#allocation7 + $0x1bd8] sm:$0xff]
    %v4165 = vld [vmem:[#allocation7 + $0x1bf0] sm:$0xff]
    %v4166 = vld [vmem:[#allocation7 + $0x1c08] sm:$0xff]
    %v4167 = vld [vmem:[#allocation7 + $0x1c20] sm:$0xff]
    %v4168 = vld [vmem:[#allocation7 + $0x1c38] sm:$0xff]
    %v4169 = vld [vmem:[#allocation7 + $0x1c50] sm:$0xff]
    %v4170 = vld [vmem:[#allocation7 + $0x1c68] sm:$0xff]
    %v4171 = vld [vmem:[#allocation8 + $0x37] ss:$0 sm:$0xff]
    %v4172 = vmul.f32 %v4048, %v4050
    %v4173 = vmul.f32 %v4054, %v4056
    %4174 = vmatprep.subr.mxu0 0.0
    %4175 = vmatpush1.msra.mxu0 %v335
    %4176 = vmatprep.subr.mxu0 0.0
    %4177 = vmatpush1.msra.mxu0 %v336
    %4178 = vmatprep.subr.mxu0 0.0
    %4179 = vmatpush1.msra.mxu0 %v337
    %4180 = vmatprep.subr.mxu0 0.0
    %4181 = vmatpush1.msra.mxu0 %v338
    %4182 = vmatprep.subr.mxu0 0.0
    %4183 = vmatpush1.msra.mxu0 %v339
    %4184 = vmatprep.subr.mxu0 0.0
    %4185 = vmatpush1.msra.mxu0 %v340
    %4186 = vmatprep.subr.mxu0 0.0
    %4187 = vmatpush1.msra.mxu0 %v341
    %4188 = vmatprep.subr.mxu0 0.0
    %4189 = vmatpush1.msra.mxu0 %v342
    %4190 = vmatprep.subr.mxu0 0.0
    %4191 = vmatpush1.msra.mxu0 %v343
    %4192 = vmatprep.subr.mxu0 0.0
    %4193 = vmatpush1.msra.mxu0 %v344
    %4194 = vmatprep.subr.mxu0 0.0
    %4195 = vmatpush1.msra.mxu0 %v345
    %4196 = vmatprep.subr.mxu0 0.0
    %4197 = vmatpush1.msra.mxu0 %v346
    %4198 = vmatprep.subr.mxu0 0.0
    %4199 = vmatpush1.msra.mxu0 %v347
    %4200 = vmatprep.subr.mxu0 0.0
    %4201 = vmatpush1.msra.mxu0 %v348
    %4202 = vmatprep.subr.mxu0 0.0
    %4203 = vmatpush1.msra.mxu0 %v349
    %4204 = vmatprep.subr.mxu0 0.0
    %4205 = vmatpush1.msra.mxu0 %v350
    %4206 = vmatprep.subr.mxu0 0.0
    %4207 = vmatpush1.msra.mxu0 0.0
    %4208 = vmatprep.subr.mxu0 0.0
    %4209 = vmatpush1.msra.mxu0 0.0
    %4210 = vmatprep.subr.mxu0 0.0
    %4211 = vmatpush1.msra.mxu0 0.0
    %4212 = vmatprep.subr.mxu0 0.0
    %4213 = vmatpush1.msra.mxu0 0.0
    %4214 = vmatprep.subr.mxu0 0.0
    %4215 = vmatpush1.msra.mxu0 0.0
    %4216 = vmatprep.subr.mxu0 0.0
    %4217 = vmatpush1.msra.mxu0 0.0
    %4218 = vmatprep.subr.mxu0 0.0
    %4219 = vmatpush1.msra.mxu0 0.0
    %4220 = vmatprep.subr.mxu0 0.0
    %4221 = vmatpush1.msra.mxu0 0.0
    %4222 = vmatprep.subr.mxu0 0.0
    %4223 = vmatpush1.msra.mxu0 0.0
    %4224 = vmatprep.subr.mxu0 0.0
    %4225 = vmatpush1.msra.mxu0 0.0
    %4226 = vmatprep.subr.mxu0 0.0
    %4227 = vmatpush1.msra.mxu0 0.0
    %4228 = vmatprep.subr.mxu0 0.0
    %4229 = vmatpush1.msra.mxu0 0.0
    %4230 = vmatprep.subr.mxu0 0.0
    %4231 = vmatpush1.msra.mxu0 0.0
    %4232 = vmatprep.subr.mxu0 0.0
    %4233 = vmatpush1.msra.mxu0 0.0
    %4234 = vmatprep.subr.mxu0 0.0
    %4235 = vmatpush1.msra.mxu0 0.0
    %4236 = vmatprep.subr.mxu0 0.0
    %4237 = vmatpush1.msra.mxu0 0.0
    %4238 = vmatprep.mubr.f32.mxu0 0.0
    %4239 = vmatmul.mubr.f32.gmra.mrb[0].mxu0 %v4172
    %v4240 = vpop.f32.mrb[0].mxu0
    %v4241 = vadd.f32 0.0, %v4240
    %v4242 = vpop.f32.mrb[0].mxu0
    %4243 = vmatprep.mubr.f32.mxu0 0.0
    %4244 = vmatmul.mubr.f32.gmra.mrb[0].mxu0 %v4173
    %v4245 = vpop.f32.mrb[0].mxu0
    %v4246 = vadd.f32 0.0, %v4245
    %v4247 = vpop.f32.mrb[0].mxu0
    %4248 = vdwg.mxu0
    %v4249 = vmul.f32 %v4048, %v4062
    %v4250 = vmul.f32 %v4054, %v4068
    %4251 = vmatprep.subr.mxu0 0.0
    %4252 = vmatpush1.msra.mxu0 %v335
    %4253 = vmatprep.subr.mxu0 0.0
    %4254 = vmatpush1.msra.mxu0 %v336
    %4255 = vmatprep.subr.mxu0 0.0
    %4256 = vmatpush1.msra.mxu0 %v337
    %4257 = vmatprep.subr.mxu0 0.0
    %4258 = vmatpush1.msra.mxu0 %v338
    %4259 = vmatprep.subr.mxu0 0.0
    %4260 = vmatpush1.msra.mxu0 %v339
    %4261 = vmatprep.subr.mxu0 0.0
    %4262 = vmatpush1.msra.mxu0 %v340
    %4263 = vmatprep.subr.mxu0 0.0
    %4264 = vmatpush1.msra.mxu0 %v341
    %4265 = vmatprep.subr.mxu0 0.0
    %4266 = vmatpush1.msra.mxu0 %v342
    %4267 = vmatprep.subr.mxu0 0.0
    %4268 = vmatpush1.msra.mxu0 %v343
    %4269 = vmatprep.subr.mxu0 0.0
    %4270 = vmatpush1.msra.mxu0 %v344
    %4271 = vmatprep.subr.mxu0 0.0
    %4272 = vmatpush1.msra.mxu0 %v345
    %4273 = vmatprep.subr.mxu0 0.0
    %4274 = vmatpush1.msra.mxu0 %v346
    %4275 = vmatprep.subr.mxu0 0.0
    %4276 = vmatpush1.msra.mxu0 %v347
    %4277 = vmatprep.subr.mxu0 0.0
    %4278 = vmatpush1.msra.mxu0 %v348
    %4279 = vmatprep.subr.mxu0 0.0
    %4280 = vmatpush1.msra.mxu0 %v349
    %4281 = vmatprep.subr.mxu0 0.0
    %4282 = vmatpush1.msra.mxu0 %v350
    %4283 = vmatprep.subr.mxu0 0.0
    %4284 = vmatpush1.msra.mxu0 0.0
    %4285 = vmatprep.subr.mxu0 0.0
    %4286 = vmatpush1.msra.mxu0 0.0
    %4287 = vmatprep.subr.mxu0 0.0
    %4288 = vmatpush1.msra.mxu0 0.0
    %4289 = vmatprep.subr.mxu0 0.0
    %4290 = vmatpush1.msra.mxu0 0.0
    %4291 = vmatprep.subr.mxu0 0.0
    %4292 = vmatpush1.msra.mxu0 0.0
    %4293 = vmatprep.subr.mxu0 0.0
    %4294 = vmatpush1.msra.mxu0 0.0
    %4295 = vmatprep.subr.mxu0 0.0
    %4296 = vmatpush1.msra.mxu0 0.0
    %4297 = vmatprep.subr.mxu0 0.0
    %4298 = vmatpush1.msra.mxu0 0.0
    %4299 = vmatprep.subr.mxu0 0.0
    %4300 = vmatpush1.msra.mxu0 0.0
    %4301 = vmatprep.subr.mxu0 0.0
    %4302 = vmatpush1.msra.mxu0 0.0
    %4303 = vmatprep.subr.mxu0 0.0
    %4304 = vmatpush1.msra.mxu0 0.0
    %4305 = vmatprep.subr.mxu0 0.0
    %4306 = vmatpush1.msra.mxu0 0.0
    %4307 = vmatprep.subr.mxu0 0.0
    %4308 = vmatpush1.msra.mxu0 0.0
    %4309 = vmatprep.subr.mxu0 0.0
    %4310 = vmatpush1.msra.mxu0 0.0
    %4311 = vmatprep.subr.mxu0 0.0
    %4312 = vmatpush1.msra.mxu0 0.0
    %4313 = vmatprep.subr.mxu0 0.0
    %4314 = vmatpush1.msra.mxu0 0.0
    %4315 = vmatprep.mubr.f32.mxu0 0.0
    %4316 = vmatmul.mubr.f32.gmra.mrb[0].mxu0 %v4249
    %v4317 = vpop.f32.mrb[0].mxu0
    %v4318 = vadd.f32 0.0, %v4317
    %v4319 = vpop.f32.mrb[0].mxu0
    %4320 = vmatprep.mubr.f32.mxu0 0.0
    %4321 = vmatmul.mubr.f32.gmra.mrb[0].mxu0 %v4250
    %v4322 = vpop.f32.mrb[0].mxu0
    %v4323 = vadd.f32 0.0, %v4322
    %v4324 = vpop.f32.mrb[0].mxu0
    %4325 = vdwg.mxu0
    %v4326 = vmax.f32 %v4241, %v4318
    %v4327 = vmax.f32 %v4246, %v4323
    %v4328 = vsub.f32 %v4241, %v4326
    %v4329 = vsub.f32 %v4246, %v4327
    %v4330 = vmul.f32 %v4328, 1.442695
    %v4331 = vpow.pop %v4330
    %v4332 = vmul.f32 %v4329, 1.442695
    %v4333 = vpow.pop %v4332
    %v4334 = vsub.f32 %v4318, %v4326
    %v4335 = vsub.f32 %v4323, %v4327
    %v4336 = vmul.f32 %v4334, 1.442695
    %v4337 = vpow.pop %v4336
    %v4338 = vmul.f32 %v4335, 1.442695
    %v4339 = vpow.pop %v4338
    %v4340 = vadd.f32 %v4331, %v4337
    %v4341 = vadd.f32 %v4333, %v4339
    %v4342 = vrcp.pop %v4340
    %v4343 = vrcp.pop %v4341
    %v4344 = vmul.f32 %v4331, %v4342
    %v4345 = vmul.f32 %v4333, %v4343
    %v4347 = vsel %vm1903, %v4344, 0
    %v4350 = vsel %vm1903, %v4345, 0
    %4352 = vmatprep.subr.mxu0 0.0
    %4353 = vmatpush1.msra.mxu0 %v1912
    %4354 = vmatprep.subr.mxu0 0.0
    %4355 = vmatpush1.msra.mxu0 0.0
    %4356 = vmatprep.subr.mxu0 0.0
    %4357 = vmatpush1.msra.mxu0 0.0
    %4358 = vmatprep.subr.mxu0 0.0
    %4359 = vmatpush1.msra.mxu0 0.0
    %4360 = vmatprep.subr.mxu0 0.0
    %4361 = vmatpush1.msra.mxu0 0.0
    %4362 = vmatprep.subr.mxu0 0.0
    %4363 = vmatpush1.msra.mxu0 0.0
    %4364 = vmatprep.subr.mxu0 0.0
    %4365 = vmatpush1.msra.mxu0 0.0
    %4366 = vmatprep.subr.mxu0 0.0
    %4367 = vmatpush1.msra.mxu0 0.0
    %4368 = vmatprep.subr.mxu0 0.0
    %4369 = vmatpush1.msra.mxu0 0.0
    %4370 = vmatprep.subr.mxu0 0.0
    %4371 = vmatpush1.msra.mxu0 0.0
    %4372 = vmatprep.subr.mxu0 0.0
    %4373 = vmatpush1.msra.mxu0 0.0
    %4374 = vmatprep.subr.mxu0 0.0
    %4375 = vmatpush1.msra.mxu0 0.0
    %4376 = vmatprep.subr.mxu0 0.0
    %4377 = vmatpush1.msra.mxu0 0.0
    %4378 = vmatprep.subr.mxu0 0.0
    %4379 = vmatpush1.msra.mxu0 0.0
    %4380 = vmatprep.subr.mxu0 0.0
    %4381 = vmatpush1.msra.mxu0 0.0
    %4382 = vmatprep.subr.mxu0 0.0
    %4383 = vmatpush1.msra.mxu0 0.0
    %4384 = vmatprep.subr.mxu0 0.0
    %4385 = vmatpush1.msra.mxu0 0.0
    %4386 = vmatprep.subr.mxu0 0.0
    %4387 = vmatpush1.msra.mxu0 0.0
    %4388 = vmatprep.subr.mxu0 0.0
    %4389 = vmatpush1.msra.mxu0 0.0
    %4390 = vmatprep.subr.mxu0 0.0
    %4391 = vmatpush1.msra.mxu0 0.0
    %4392 = vmatprep.subr.mxu0 0.0
    %4393 = vmatpush1.msra.mxu0 0.0
    %4394 = vmatprep.subr.mxu0 0.0
    %4395 = vmatpush1.msra.mxu0 0.0
    %4396 = vmatprep.subr.mxu0 0.0
    %4397 = vmatpush1.msra.mxu0 0.0
    %4398 = vmatprep.subr.mxu0 0.0
    %4399 = vmatpush1.msra.mxu0 0.0
    %4400 = vmatprep.subr.mxu0 0.0
    %4401 = vmatpush1.msra.mxu0 0.0
    %4402 = vmatprep.subr.mxu0 0.0
    %4403 = vmatpush1.msra.mxu0 0.0
    %4404 = vmatprep.subr.mxu0 0.0
    %4405 = vmatpush1.msra.mxu0 0.0
    %4406 = vmatprep.subr.mxu0 0.0
    %4407 = vmatpush1.msra.mxu0 0.0
    %4408 = vmatprep.subr.mxu0 0.0
    %4409 = vmatpush1.msra.mxu0 0.0
    %4410 = vmatprep.subr.mxu0 0.0
    %4411 = vmatpush1.msra.mxu0 0.0
    %4412 = vmatprep.subr.mxu0 0.0
    %4413 = vmatpush1.msra.mxu0 0.0
    %4414 = vmatprep.subr.mxu0 0.0
    %4415 = vmatpush1.msra.mxu0 0.0
    %4416 = vmatprep.mubr.f32.mxu0 0.0
    %4417 = vmatmul.mubr.f32.gmra.mrb[0].mxu0 %v4347
    %v4418 = vpop.f32.mrb[0].mxu0
    %v4419 = vadd.f32 0.0, %v4418
    %v4420 = vpop.f32.mrb[0].mxu0
    %4421 = vmatprep.mubr.f32.mxu0 0.0
    %4422 = vmatmul.mubr.f32.gmra.mrb[0].mxu0 %v4350
    %v4423 = vpop.f32.mrb[0].mxu0
    %v4424 = vadd.f32 0.0, %v4423
    %v4425 = vpop.f32.mrb[0].mxu0
    %4426 = vdwg.mxu0
    %v4427 = vmul.f32 %v4419, %v4137
    %v4428 = vmul.f32 %v4424, %v4142
    %v4429 = vmul.f32 %v4337, %v4342
    %v4430 = vmul.f32 %v4339, %v4343
    %v4432 = vsel %vm1903, %v4429, 0
    %v4435 = vsel %vm1903, %v4430, 0
    %4437 = vmatprep.subr.mxu0 0.0
    %4438 = vmatpush1.msra.mxu0 %v1912
    %4439 = vmatprep.subr.mxu0 0.0
    %4440 = vmatpush1.msra.mxu0 0.0
    %4441 = vmatprep.subr.mxu0 0.0
    %4442 = vmatpush1.msra.mxu0 0.0
    %4443 = vmatprep.subr.mxu0 0.0
    %4444 = vmatpush1.msra.mxu0 0.0
    %4445 = vmatprep.subr.mxu0 0.0
    %4446 = vmatpush1.msra.mxu0 0.0
    %4447 = vmatprep.subr.mxu0 0.0
    %4448 = vmatpush1.msra.mxu0 0.0
    %4449 = vmatprep.subr.mxu0 0.0
    %4450 = vmatpush1.msra.mxu0 0.0
    %4451 = vmatprep.subr.mxu0 0.0
    %4452 = vmatpush1.msra.mxu0 0.0
    %4453 = vmatprep.subr.mxu0 0.0
    %4454 = vmatpush1.msra.mxu0 0.0
    %4455 = vmatprep.subr.mxu0 0.0
    %4456 = vmatpush1.msra.mxu0 0.0
    %4457 = vmatprep.subr.mxu0 0.0
    %4458 = vmatpush1.msra.mxu0 0.0
    %4459 = vmatprep.subr.mxu0 0.0
    %4460 = vmatpush1.msra.mxu0 0.0
    %4461 = vmatprep.subr.mxu0 0.0
    %4462 = vmatpush1.msra.mxu0 0.0
    %4463 = vmatprep.subr.mxu0 0.0
    %4464 = vmatpush1.msra.mxu0 0.0
    %4465 = vmatprep.subr.mxu0 0.0
    %4466 = vmatpush1.msra.mxu0 0.0
    %4467 = vmatprep.subr.mxu0 0.0
    %4468 = vmatpush1.msra.mxu0 0.0
    %4469 = vmatprep.subr.mxu0 0.0
    %4470 = vmatpush1.msra.mxu0 0.0
    %4471 = vmatprep.subr.mxu0 0.0
    %4472 = vmatpush1.msra.mxu0 0.0
    %4473 = vmatprep.subr.mxu0 0.0
    %4474 = vmatpush1.msra.mxu0 0.0
    %4475 = vmatprep.subr.mxu0 0.0
    %4476 = vmatpush1.msra.mxu0 0.0
    %4477 = vmatprep.subr.mxu0 0.0
    %4478 = vmatpush1.msra.mxu0 0.0
    %4479 = vmatprep.subr.mxu0 0.0
    %4480 = vmatpush1.msra.mxu0 0.0
    %4481 = vmatprep.subr.mxu0 0.0
    %4482 = vmatpush1.msra.mxu0 0.0
    %4483 = vmatprep.subr.mxu0 0.0
    %4484 = vmatpush1.msra.mxu0 0.0
    %4485 = vmatprep.subr.mxu0 0.0
    %4486 = vmatpush1.msra.mxu0 0.0
    %4487 = vmatprep.subr.mxu0 0.0
    %4488 = vmatpush1.msra.mxu0 0.0
    %4489 = vmatprep.subr.mxu0 0.0
    %4490 = vmatpush1.msra.mxu0 0.0
    %4491 = vmatprep.subr.mxu0 0.0
    %4492 = vmatpush1.msra.mxu0 0.0
    %4493 = vmatprep.subr.mxu0 0.0
    %4494 = vmatpush1.msra.mxu0 0.0
    %4495 = vmatprep.subr.mxu0 0.0
    %4496 = vmatpush1.msra.mxu0 0.0
    %4497 = vmatprep.subr.mxu0 0.0
    %4498 = vmatpush1.msra.mxu0 0.0
    %4499 = vmatprep.subr.mxu0 0.0
    %4500 = vmatpush1.msra.mxu0 0.0
    %4501 = vmatprep.mubr.f32.mxu0 0.0
    %4502 = vmatmul.mubr.f32.gmra.mrb[0].mxu0 %v4432
    %v4503 = vpop.f32.mrb[0].mxu0
    %v4504 = vadd.f32 0.0, %v4503
    %v4505 = vpop.f32.mrb[0].mxu0
    %4506 = vmatprep.mubr.f32.mxu0 0.0
    %4507 = vmatmul.mubr.f32.gmra.mrb[0].mxu0 %v4435
    %v4508 = vpop.f32.mrb[0].mxu0
    %v4509 = vadd.f32 0.0, %v4508
    %v4510 = vpop.f32.mrb[0].mxu0
    %4511 = vdwg.mxu0
    %v4512 = vmul.f32 %v4504, %v4147
    %v4513 = vmul.f32 %v4509, %v4152
    %v4514 = vadd.f32 %v4427, %v4512
    %v4515 = vadd.f32 %v4428, %v4513
    %v4516 = vmul.f32 %v4060, %v4050
    %v4517 = vmul.f32 %v4066, %v4056
    %4518 = vmatprep.subr.mxu0 0.0
    %4519 = vmatpush1.msra.mxu0 %v335
    %4520 = vmatprep.subr.mxu0 0.0
    %4521 = vmatpush1.msra.mxu0 %v336
    %4522 = vmatprep.subr.mxu0 0.0
    %4523 = vmatpush1.msra.mxu0 %v337
    %4524 = vmatprep.subr.mxu0 0.0
    %4525 = vmatpush1.msra.mxu0 %v338
    %4526 = vmatprep.subr.mxu0 0.0
    %4527 = vmatpush1.msra.mxu0 %v339
    %4528 = vmatprep.subr.mxu0 0.0
    %4529 = vmatpush1.msra.mxu0 %v340
    %4530 = vmatprep.subr.mxu0 0.0
    %4531 = vmatpush1.msra.mxu0 %v341
    %4532 = vmatprep.subr.mxu0 0.0
    %4533 = vmatpush1.msra.mxu0 %v342
    %4534 = vmatprep.subr.mxu0 0.0
    %4535 = vmatpush1.msra.mxu0 %v343
    %4536 = vmatprep.subr.mxu0 0.0
    %4537 = vmatpush1.msra.mxu0 %v344
    %4538 = vmatprep.subr.mxu0 0.0
    %4539 = vmatpush1.msra.mxu0 %v345
    %4540 = vmatprep.subr.mxu0 0.0
    %4541 = vmatpush1.msra.mxu0 %v346
    %4542 = vmatprep.subr.mxu0 0.0
    %4543 = vmatpush1.msra.mxu0 %v347
    %4544 = vmatprep.subr.mxu0 0.0
    %4545 = vmatpush1.msra.mxu0 %v348
    %4546 = vmatprep.subr.mxu0 0.0
    %4547 = vmatpush1.msra.mxu0 %v349
    %4548 = vmatprep.subr.mxu0 0.0
    %4549 = vmatpush1.msra.mxu0 %v350
    %4550 = vmatprep.subr.mxu0 0.0
    %4551 = vmatpush1.msra.mxu0 0.0
    %4552 = vmatprep.subr.mxu0 0.0
    %4553 = vmatpush1.msra.mxu0 0.0
    %4554 = vmatprep.subr.mxu0 0.0
    %4555 = vmatpush1.msra.mxu0 0.0
    %4556 = vmatprep.subr.mxu0 0.0
    %4557 = vmatpush1.msra.mxu0 0.0
    %4558 = vmatprep.subr.mxu0 0.0
    %4559 = vmatpush1.msra.mxu0 0.0
    %4560 = vmatprep.subr.mxu0 0.0
    %4561 = vmatpush1.msra.mxu0 0.0
    %4562 = vmatprep.subr.mxu0 0.0
    %4563 = vmatpush1.msra.mxu0 0.0
    %4564 = vmatprep.subr.mxu0 0.0
    %4565 = vmatpush1.msra.mxu0 0.0
    %4566 = vmatprep.subr.mxu0 0.0
    %4567 = vmatpush1.msra.mxu0 0.0
    %4568 = vmatprep.subr.mxu0 0.0
    %4569 = vmatpush1.msra.mxu0 0.0
    %4570 = vmatprep.subr.mxu0 0.0
    %4571 = vmatpush1.msra.mxu0 0.0
    %4572 = vmatprep.subr.mxu0 0.0
    %4573 = vmatpush1.msra.mxu0 0.0
    %4574 = vmatprep.subr.mxu0 0.0
    %4575 = vmatpush1.msra.mxu0 0.0
    %4576 = vmatprep.subr.mxu0 0.0
    %4577 = vmatpush1.msra.mxu0 0.0
    %4578 = vmatprep.subr.mxu0 0.0
    %4579 = vmatpush1.msra.mxu0 0.0
    %4580 = vmatprep.subr.mxu0 0.0
    %4581 = vmatpush1.msra.mxu0 0.0
    %4582 = vmatprep.mubr.f32.mxu0 0.0
    %4583 = vmatmul.mubr.f32.gmra.mrb[0].mxu0 %v4516
    %v4584 = vpop.f32.mrb[0].mxu0
    %v4585 = vadd.f32 0.0, %v4584
    %v4586 = vpop.f32.mrb[0].mxu0
    %4587 = vmatprep.mubr.f32.mxu0 0.0
    %4588 = vmatmul.mubr.f32.gmra.mrb[0].mxu0 %v4517
    %v4589 = vpop.f32.mrb[0].mxu0
    %v4590 = vadd.f32 0.0, %v4589
    %v4591 = vpop.f32.mrb[0].mxu0
    %4592 = vdwg.mxu0
    %v4593 = vmul.f32 %v4060, %v4062
    %v4594 = vmul.f32 %v4066, %v4068
    %4595 = vmatprep.subr.mxu0 0.0
    %4596 = vmatpush1.msra.mxu0 %v335
    %4597 = vmatprep.subr.mxu0 0.0
    %4598 = vmatpush1.msra.mxu0 %v336
    %4599 = vmatprep.subr.mxu0 0.0
    %4600 = vmatpush1.msra.mxu0 %v337
    %4601 = vmatprep.subr.mxu0 0.0
    %4602 = vmatpush1.msra.mxu0 %v338
    %4603 = vmatprep.subr.mxu0 0.0
    %4604 = vmatpush1.msra.mxu0 %v339
    %4605 = vmatprep.subr.mxu0 0.0
    %4606 = vmatpush1.msra.mxu0 %v340
    %4607 = vmatprep.subr.mxu0 0.0
    %4608 = vmatpush1.msra.mxu0 %v341
    %4609 = vmatprep.subr.mxu0 0.0
    %4610 = vmatpush1.msra.mxu0 %v342
    %4611 = vmatprep.subr.mxu0 0.0
    %4612 = vmatpush1.msra.mxu0 %v343
    %4613 = vmatprep.subr.mxu0 0.0
    %4614 = vmatpush1.msra.mxu0 %v344
    %4615 = vmatprep.subr.mxu0 0.0
    %4616 = vmatpush1.msra.mxu0 %v345
    %4617 = vmatprep.subr.mxu0 0.0
    %4618 = vmatpush1.msra.mxu0 %v346
    %4619 = vmatprep.subr.mxu0 0.0
    %4620 = vmatpush1.msra.mxu0 %v347
    %4621 = vmatprep.subr.mxu0 0.0
    %4622 = vmatpush1.msra.mxu0 %v348
    %4623 = vmatprep.subr.mxu0 0.0
    %4624 = vmatpush1.msra.mxu0 %v349
    %4625 = vmatprep.subr.mxu0 0.0
    %4626 = vmatpush1.msra.mxu0 %v350
    %4627 = vmatprep.subr.mxu0 0.0
    %4628 = vmatpush1.msra.mxu0 0.0
    %4629 = vmatprep.subr.mxu0 0.0
    %4630 = vmatpush1.msra.mxu0 0.0
    %4631 = vmatprep.subr.mxu0 0.0
    %4632 = vmatpush1.msra.mxu0 0.0
    %4633 = vmatprep.subr.mxu0 0.0
    %4634 = vmatpush1.msra.mxu0 0.0
    %4635 = vmatprep.subr.mxu0 0.0
    %4636 = vmatpush1.msra.mxu0 0.0
    %4637 = vmatprep.subr.mxu0 0.0
    %4638 = vmatpush1.msra.mxu0 0.0
    %4639 = vmatprep.subr.mxu0 0.0
    %4640 = vmatpush1.msra.mxu0 0.0
    %4641 = vmatprep.subr.mxu0 0.0
    %4642 = vmatpush1.msra.mxu0 0.0
    %4643 = vmatprep.subr.mxu0 0.0
    %4644 = vmatpush1.msra.mxu0 0.0
    %4645 = vmatprep.subr.mxu0 0.0
    %4646 = vmatpush1.msra.mxu0 0.0
    %4647 = vmatprep.subr.mxu0 0.0
    %4648 = vmatpush1.msra.mxu0 0.0
    %4649 = vmatprep.subr.mxu0 0.0
    %4650 = vmatpush1.msra.mxu0 0.0
    %4651 = vmatprep.subr.mxu0 0.0
    %4652 = vmatpush1.msra.mxu0 0.0
    %4653 = vmatprep.subr.mxu0 0.0
    %4654 = vmatpush1.msra.mxu0 0.0
    %4655 = vmatprep.subr.mxu0 0.0
    %4656 = vmatpush1.msra.mxu0 0.0
    %4657 = vmatprep.subr.mxu0 0.0
    %4658 = vmatpush1.msra.mxu0 0.0
    %4659 = vmatprep.mubr.f32.mxu0 0.0
    %4660 = vmatmul.mubr.f32.gmra.mrb[0].mxu0 %v4593
    %v4661 = vpop.f32.mrb[0].mxu0
    %v4662 = vadd.f32 0.0, %v4661
    %v4663 = vpop.f32.mrb[0].mxu0
    %4664 = vmatprep.mubr.f32.mxu0 0.0
    %4665 = vmatmul.mubr.f32.gmra.mrb[0].mxu0 %v4594
    %v4666 = vpop.f32.mrb[0].mxu0
    %v4667 = vadd.f32 0.0, %v4666
    %v4668 = vpop.f32.mrb[0].mxu0
    %4669 = vdwg.mxu0
    %v4670 = vmax.f32 %v4585, %v4662
    %v4671 = vmax.f32 %v4590, %v4667
    %v4672 = vsub.f32 %v4585, %v4670
    %v4673 = vsub.f32 %v4590, %v4671
    %v4674 = vmul.f32 %v4672, 1.442695
    %v4675 = vpow.pop %v4674
    %v4676 = vmul.f32 %v4673, 1.442695
    %v4677 = vpow.pop %v4676
    %v4678 = vsub.f32 %v4662, %v4670
    %v4679 = vsub.f32 %v4667, %v4671
    %v4680 = vmul.f32 %v4678, 1.442695
    %v4681 = vpow.pop %v4680
    %v4682 = vmul.f32 %v4679, 1.442695
    %v4683 = vpow.pop %v4682
    %v4684 = vadd.f32 %v4675, %v4681
    %v4685 = vadd.f32 %v4677, %v4683
    %v4686 = vrcp.pop %v4684
    %v4687 = vrcp.pop %v4685
    %v4688 = vmul.f32 %v4675, %v4686
    %v4689 = vmul.f32 %v4677, %v4687
    %v4691 = vsel %vm1903, %v4688, 0
    %v4694 = vsel %vm1903, %v4689, 0
    %4696 = vmatprep.subr.mxu0 0.0
    %4697 = vmatpush1.msra.mxu0 %v1912
    %4698 = vmatprep.subr.mxu0 0.0
    %4699 = vmatpush1.msra.mxu0 0.0
    %4700 = vmatprep.subr.mxu0 0.0
    %4701 = vmatpush1.msra.mxu0 0.0
    %4702 = vmatprep.subr.mxu0 0.0
    %4703 = vmatpush1.msra.mxu0 0.0
    %4704 = vmatprep.subr.mxu0 0.0
    %4705 = vmatpush1.msra.mxu0 0.0
    %4706 = vmatprep.subr.mxu0 0.0
    %4707 = vmatpush1.msra.mxu0 0.0
    %4708 = vmatprep.subr.mxu0 0.0
    %4709 = vmatpush1.msra.mxu0 0.0
    %4710 = vmatprep.subr.mxu0 0.0
    %4711 = vmatpush1.msra.mxu0 0.0
    %4712 = vmatprep.subr.mxu0 0.0
    %4713 = vmatpush1.msra.mxu0 0.0
    %4714 = vmatprep.subr.mxu0 0.0
    %4715 = vmatpush1.msra.mxu0 0.0
    %4716 = vmatprep.subr.mxu0 0.0
    %4717 = vmatpush1.msra.mxu0 0.0
    %4718 = vmatprep.subr.mxu0 0.0
    %4719 = vmatpush1.msra.mxu0 0.0
    %4720 = vmatprep.subr.mxu0 0.0
    %4721 = vmatpush1.msra.mxu0 0.0
    %4722 = vmatprep.subr.mxu0 0.0
    %4723 = vmatpush1.msra.mxu0 0.0
    %4724 = vmatprep.subr.mxu0 0.0
    %4725 = vmatpush1.msra.mxu0 0.0
    %4726 = vmatprep.subr.mxu0 0.0
    %4727 = vmatpush1.msra.mxu0 0.0
    %4728 = vmatprep.subr.mxu0 0.0
    %4729 = vmatpush1.msra.mxu0 0.0
    %4730 = vmatprep.subr.mxu0 0.0
    %4731 = vmatpush1.msra.mxu0 0.0
    %4732 = vmatprep.subr.mxu0 0.0
    %4733 = vmatpush1.msra.mxu0 0.0
    %4734 = vmatprep.subr.mxu0 0.0
    %4735 = vmatpush1.msra.mxu0 0.0
    %4736 = vmatprep.subr.mxu0 0.0
    %4737 = vmatpush1.msra.mxu0 0.0
    %4738 = vmatprep.subr.mxu0 0.0
    %4739 = vmatpush1.msra.mxu0 0.0
    %4740 = vmatprep.subr.mxu0 0.0
    %4741 = vmatpush1.msra.mxu0 0.0
    %4742 = vmatprep.subr.mxu0 0.0
    %4743 = vmatpush1.msra.mxu0 0.0
    %4744 = vmatprep.subr.mxu0 0.0
    %4745 = vmatpush1.msra.mxu0 0.0
    %4746 = vmatprep.subr.mxu0 0.0
    %4747 = vmatpush1.msra.mxu0 0.0
    %4748 = vmatprep.subr.mxu0 0.0
    %4749 = vmatpush1.msra.mxu0 0.0
    %4750 = vmatprep.subr.mxu0 0.0
    %4751 = vmatpush1.msra.mxu0 0.0
    %4752 = vmatprep.subr.mxu0 0.0
    %4753 = vmatpush1.msra.mxu0 0.0
    %4754 = vmatprep.subr.mxu0 0.0
    %4755 = vmatpush1.msra.mxu0 0.0
    %4756 = vmatprep.subr.mxu0 0.0
    %4757 = vmatpush1.msra.mxu0 0.0
    %4758 = vmatprep.subr.mxu0 0.0
    %4759 = vmatpush1.msra.mxu0 0.0
    %4760 = vmatprep.mubr.f32.mxu0 0.0
    %4761 = vmatmul.mubr.f32.gmra.mrb[0].mxu0 %v4691
    %v4762 = vpop.f32.mrb[0].mxu0
    %v4763 = vadd.f32 0.0, %v4762
    %v4764 = vpop.f32.mrb[0].mxu0
    %4765 = vmatprep.mubr.f32.mxu0 0.0
    %4766 = vmatmul.mubr.f32.gmra.mrb[0].mxu0 %v4694
    %v4767 = vpop.f32.mrb[0].mxu0
    %v4768 = vadd.f32 0.0, %v4767
    %v4769 = vpop.f32.mrb[0].mxu0
    %4770 = vdwg.mxu0
    %v4771 = vmul.f32 %v4763, %v4137
    %v4772 = vmul.f32 %v4768, %v4142
    %v4773 = vmul.f32 %v4681, %v4686
    %v4774 = vmul.f32 %v4683, %v4687
    %v4776 = vsel %vm1903, %v4773, 0
    %v4779 = vsel %vm1903, %v4774, 0
    %4781 = vmatprep.subr.mxu0 0.0
    %4782 = vmatpush1.msra.mxu0 %v1912
    %4783 = vmatprep.subr.mxu0 0.0
    %4784 = vmatpush1.msra.mxu0 0.0
    %4785 = vmatprep.subr.mxu0 0.0
    %4786 = vmatpush1.msra.mxu0 0.0
    %4787 = vmatprep.subr.mxu0 0.0
    %4788 = vmatpush1.msra.mxu0 0.0
    %4789 = vmatprep.subr.mxu0 0.0
    %4790 = vmatpush1.msra.mxu0 0.0
    %4791 = vmatprep.subr.mxu0 0.0
    %4792 = vmatpush1.msra.mxu0 0.0
    %4793 = vmatprep.subr.mxu0 0.0
    %4794 = vmatpush1.msra.mxu0 0.0
    %4795 = vmatprep.subr.mxu0 0.0
    %4796 = vmatpush1.msra.mxu0 0.0
    %4797 = vmatprep.subr.mxu0 0.0
    %4798 = vmatpush1.msra.mxu0 0.0
    %4799 = vmatprep.subr.mxu0 0.0
    %4800 = vmatpush1.msra.mxu0 0.0
    %4801 = vmatprep.subr.mxu0 0.0
    %4802 = vmatpush1.msra.mxu0 0.0
    %4803 = vmatprep.subr.mxu0 0.0
    %4804 = vmatpush1.msra.mxu0 0.0
    %4805 = vmatprep.subr.mxu0 0.0
    %4806 = vmatpush1.msra.mxu0 0.0
    %4807 = vmatprep.subr.mxu0 0.0
    %4808 = vmatpush1.msra.mxu0 0.0
    %4809 = vmatprep.subr.mxu0 0.0
    %4810 = vmatpush1.msra.mxu0 0.0
    %4811 = vmatprep.subr.mxu0 0.0
    %4812 = vmatpush1.msra.mxu0 0.0
    %4813 = vmatprep.subr.mxu0 0.0
    %4814 = vmatpush1.msra.mxu0 0.0
    %4815 = vmatprep.subr.mxu0 0.0
    %4816 = vmatpush1.msra.mxu0 0.0
    %4817 = vmatprep.subr.mxu0 0.0
    %4818 = vmatpush1.msra.mxu0 0.0
    %4819 = vmatprep.subr.mxu0 0.0
    %4820 = vmatpush1.msra.mxu0 0.0
    %4821 = vmatprep.subr.mxu0 0.0
    %4822 = vmatpush1.msra.mxu0 0.0
    %4823 = vmatprep.subr.mxu0 0.0
    %4824 = vmatpush1.msra.mxu0 0.0
    %4825 = vmatprep.subr.mxu0 0.0
    %4826 = vmatpush1.msra.mxu0 0.0
    %4827 = vmatprep.subr.mxu0 0.0
    %4828 = vmatpush1.msra.mxu0 0.0
    %4829 = vmatprep.subr.mxu0 0.0
    %4830 = vmatpush1.msra.mxu0 0.0
    %4831 = vmatprep.subr.mxu0 0.0
    %4832 = vmatpush1.msra.mxu0 0.0
    %4833 = vmatprep.subr.mxu0 0.0
    %4834 = vmatpush1.msra.mxu0 0.0
    %4835 = vmatprep.subr.mxu0 0.0
    %4836 = vmatpush1.msra.mxu0 0.0
    %4837 = vmatprep.subr.mxu0 0.0
    %4838 = vmatpush1.msra.mxu0 0.0
    %4839 = vmatprep.subr.mxu0 0.0
    %4840 = vmatpush1.msra.mxu0 0.0
    %4841 = vmatprep.subr.mxu0 0.0
    %4842 = vmatpush1.msra.mxu0 0.0
    %4843 = vmatprep.subr.mxu0 0.0
    %4844 = vmatpush1.msra.mxu0 0.0
    %4845 = vmatprep.mubr.f32.mxu0 0.0
    %4846 = vmatmul.mubr.f32.gmra.mrb[0].mxu0 %v4776
    %v4847 = vpop.f32.mrb[0].mxu0
    %v4848 = vadd.f32 0.0, %v4847
    %v4849 = vpop.f32.mrb[0].mxu0
    %4850 = vmatprep.mubr.f32.mxu0 0.0
    %4851 = vmatmul.mubr.f32.gmra.mrb[0].mxu0 %v4779
    %v4852 = vpop.f32.mrb[0].mxu0
    %v4853 = vadd.f32 0.0, %v4852
    %v4854 = vpop.f32.mrb[0].mxu0
    %4855 = vdwg.mxu0
    %v4856 = vmul.f32 %v4848, %v4147
    %v4857 = vmul.f32 %v4853, %v4152
    %v4858 = vadd.f32 %v4771, %v4856
    %v4859 = vadd.f32 %v4772, %v4857
    %4860 = vmatprep.subr.mxu0 0.0
    %4861 = vmatpush1.msra.mxu0 %v4155
    %4862 = vmatprep.subr.mxu0 0.0
    %4863 = vmatpush1.msra.mxu0 %v4156
    %4864 = vmatprep.subr.mxu0 0.0
    %4865 = vmatpush1.msra.mxu0 %v4157
    %4866 = vmatprep.subr.mxu0 0.0
    %4867 = vmatpush1.msra.mxu0 %v4158
    %4868 = vmatprep.subr.mxu0 0.0
    %4869 = vmatpush1.msra.mxu0 %v4159
    %4870 = vmatprep.subr.mxu0 0.0
    %4871 = vmatpush1.msra.mxu0 %v4160
    %4872 = vmatprep.subr.mxu0 0.0
    %4873 = vmatpush1.msra.mxu0 %v4161
    %4874 = vmatprep.subr.mxu0 0.0
    %4875 = vmatpush1.msra.mxu0 %v4162
    %4876 = vmatprep.subr.mxu0 0.0
    %4877 = vmatpush1.msra.mxu0 %v4163
    %4878 = vmatprep.subr.mxu0 0.0
    %4879 = vmatpush1.msra.mxu0 %v4164
    %4880 = vmatprep.subr.mxu0 0.0
    %4881 = vmatpush1.msra.mxu0 %v4165
    %4882 = vmatprep.subr.mxu0 0.0
    %4883 = vmatpush1.msra.mxu0 %v4166
    %4884 = vmatprep.subr.mxu0 0.0
    %4885 = vmatpush1.msra.mxu0 %v4167
    %4886 = vmatprep.subr.mxu0 0.0
    %4887 = vmatpush1.msra.mxu0 %v4168
    %4888 = vmatprep.subr.mxu0 0.0
    %4889 = vmatpush1.msra.mxu0 %v4169
    %4890 = vmatprep.subr.mxu0 0.0
    %4891 = vmatpush1.msra.mxu0 %v4170
    %4892 = vmatprep.subr.mxu0 0.0
    %4893 = vmatpush1.msra.mxu0 0.0
    %4894 = vmatprep.subr.mxu0 0.0
    %4895 = vmatpush1.msra.mxu0 0.0
    %4896 = vmatprep.subr.mxu0 0.0
    %4897 = vmatpush1.msra.mxu0 0.0
    %4898 = vmatprep.subr.mxu0 0.0
    %4899 = vmatpush1.msra.mxu0 0.0
    %4900 = vmatprep.subr.mxu0 0.0
    %4901 = vmatpush1.msra.mxu0 0.0
    %4902 = vmatprep.subr.mxu0 0.0
    %4903 = vmatpush1.msra.mxu0 0.0
    %4904 = vmatprep.subr.mxu0 0.0
    %4905 = vmatpush1.msra.mxu0 0.0
    %4906 = vmatprep.subr.mxu0 0.0
    %4907 = vmatpush1.msra.mxu0 0.0
    %4908 = vmatprep.subr.mxu0 0.0
    %4909 = vmatpush1.msra.mxu0 0.0
    %4910 = vmatprep.subr.mxu0 0.0
    %4911 = vmatpush1.msra.mxu0 0.0
    %4912 = vmatprep.subr.mxu0 0.0
    %4913 = vmatpush1.msra.mxu0 0.0
    %4914 = vmatprep.subr.mxu0 0.0
    %4915 = vmatpush1.msra.mxu0 0.0
    %4916 = vmatprep.subr.mxu0 0.0
    %4917 = vmatpush1.msra.mxu0 0.0
    %4918 = vmatprep.subr.mxu0 0.0
    %4919 = vmatpush1.msra.mxu0 0.0
    %4920 = vmatprep.subr.mxu0 0.0
    %4921 = vmatpush1.msra.mxu0 0.0
    %4922 = vmatprep.subr.mxu0 0.0
    %4923 = vmatpush1.msra.mxu0 0.0
    %4924 = vmatprep.mubr.f32.mxu0 0.0
    %4925 = vmatmul.mubr.f32.gmra.mrb[0].mxu0 %v4514
    %v4926 = vpop.f32.mrb[0].mxu0
    %v4927 = vadd.f32 %v4171, %v4926
    %v4928 = vpop.f32.mrb[0].mxu0
    %4929 = vmatprep.mubr.f32.mxu0 0.0
    %4930 = vmatmul.mubr.f32.gmra.mrb[0].mxu0 %v4515
    %v4931 = vpop.f32.mrb[0].mxu0
    %v4932 = vadd.f32 %v4171, %v4931
    %v4933 = vpop.f32.mrb[0].mxu0
    %4934 = vmatprep.mubr.f32.mxu0 0.0
    %4935 = vmatmul.mubr.f32.gmra.mrb[0].mxu0 %v4858
    %v4936 = vpop.f32.mrb[0].mxu0
    %v4937 = vadd.f32 %v4171, %v4936
    %v4938 = vpop.f32.mrb[0].mxu0
    %4939 = vmatprep.mubr.f32.mxu0 0.0
    %4940 = vmatmul.mubr.f32.gmra.mrb[0].mxu0 %v4859
    %v4941 = vpop.f32.mrb[0].mxu0
    %v4942 = vadd.f32 %v4171, %v4941
    %v4943 = vpop.f32.mrb[0].mxu0
    %4944 = vdwg.mxu0
    %v4945 = vadd.f32 %v3911, %v4927
    %v4946 = vadd.f32 %v3912, %v4932
    %v4947 = vadd.f32 %v3913, %v4937
    %v4948 = vadd.f32 %v3914, %v4942
    %v4949 = vld [vmem:[#allocation8 + $0x48] ss:$0 sm:$0xff]
    %v4950 = vld [vmem:[#allocation8 + $0x49] ss:$0 sm:$0xff]
    %4951 = vadd.xlane.f32.xlu0 %v4945
    %v4952 = vpop.xlane.xlu0 %4951
    %4953 = vadd.xlane.f32.xlu0 %v4946
    %v4954 = vpop.xlane.xlu0 %4953
    %4955 = vadd.xlane.f32.xlu0 %v4947
    %v4956 = vpop.xlane.xlu0 %4955
    %4957 = vadd.xlane.f32.xlu0 %v4948
    %v4958 = vpop.xlane.xlu0 %4957
    %v4959 = vmul.f32 %v4952, %v1423
    %v4960 = vmul.f32 %v4954, %v1423
    %v4961 = vmul.f32 %v4956, %v1423
    %v4962 = vmul.f32 %v4958, %v1423
    %v4963 = vsub.f32 %v4945, %v4959
    %v4964 = vsub.f32 %v4946, %v4960
    %v4965 = vsub.f32 %v4947, %v4961
    %v4966 = vsub.f32 %v4948, %v4962
    %v4967 = vmul.f32 %v4963, %v4963
    %v4968 = vmul.f32 %v4964, %v4964
    %v4969 = vmul.f32 %v4965, %v4965
    %v4970 = vmul.f32 %v4966, %v4966
    %4971 = vadd.xlane.f32.xlu0 %v4967
    %v4972 = vpop.xlane.xlu0 %4971
    %4973 = vadd.xlane.f32.xlu0 %v4968
    %v4974 = vpop.xlane.xlu0 %4973
    %4975 = vadd.xlane.f32.xlu0 %v4969
    %v4976 = vpop.xlane.xlu0 %4975
    %4977 = vadd.xlane.f32.xlu0 %v4970
    %v4978 = vpop.xlane.xlu0 %4977
    %v4979 = vmul.f32 %v4972, %v1423
    %v4980 = vmul.f32 %v4974, %v1423
    %v4981 = vmul.f32 %v4976, %v1423
    %v4982 = vmul.f32 %v4978, %v1423
    %v4983 = vadd.f32 %v4979, 1e-05
    %v4984 = vadd.f32 %v4980, 1e-05
    %v4985 = vadd.f32 %v4981, 1e-05
    %v4986 = vadd.f32 %v4982, 1e-05
    %v4987 = vrsqrt.pop %v4983
    %v4988 = vrsqrt.pop %v4984
    %v4989 = vrsqrt.pop %v4985
    %v4990 = vrsqrt.pop %v4986
    %v4991 = vmul.f32 %v4963, %v4987
    %v4992 = vmul.f32 %v4964, %v4988
    %v4993 = vmul.f32 %v4965, %v4989
    %v4994 = vmul.f32 %v4966, %v4990
    %v4995 = vmul.f32 %v4991, %v4949
    %v4996 = vmul.f32 %v4992, %v4949
    %v4997 = vmul.f32 %v4993, %v4949
    %v4998 = vmul.f32 %v4994, %v4949
    %v4999 = vadd.f32 %v4995, %v4950
    %v5000 = vadd.f32 %v4996, %v4950
    %v5001 = vadd.f32 %v4997, %v4950
    %v5002 = vadd.f32 %v4998, %v4950
    %v5003 = vld [vmem:[#allocation7 + $0x1c80] sm:$0xff]
    %v5004 = vld [vmem:[#allocation7 + $0x1c98] sm:$0xff]
    %v5005 = vld [vmem:[#allocation7 + $0x1cb0] sm:$0xff]
    %v5006 = vld [vmem:[#allocation7 + $0x1cc8] sm:$0xff]
    %v5007 = vld [vmem:[#allocation7 + $0x1ce0] sm:$0xff]
    %v5008 = vld [vmem:[#allocation7 + $0x1cf8] sm:$0xff]
    %v5009 = vld [vmem:[#allocation7 + $0x1d10] sm:$0xff]
    %v5010 = vld [vmem:[#allocation7 + $0x1d28] sm:$0xff]
    %v5011 = vld [vmem:[#allocation7 + $0x1d40] sm:$0xff]
    %v5012 = vld [vmem:[#allocation7 + $0x1d58] sm:$0xff]
    %v5013 = vld [vmem:[#allocation7 + $0x1d70] sm:$0xff]
    %v5014 = vld [vmem:[#allocation7 + $0x1d88] sm:$0xff]
    %v5015 = vld [vmem:[#allocation7 + $0x1da0] sm:$0xff]
    %v5016 = vld [vmem:[#allocation7 + $0x1db8] sm:$0xff]
    %v5017 = vld [vmem:[#allocation7 + $0x1dd0] sm:$0xff]
    %v5018 = vld [vmem:[#allocation7 + $0x1de8] sm:$0xff]
    %v5019 = vld [vmem:[#allocation8 + $0x4a] ss:$0 sm:$0xff]
    %5020 = vmatprep.subr.mxu0 0.0
    %5021 = vmatpush1.msra.mxu0 %v5003
    %5022 = vmatprep.subr.mxu0 0.0
    %5023 = vmatpush1.msra.mxu0 %v5004
    %5024 = vmatprep.subr.mxu0 0.0
    %5025 = vmatpush1.msra.mxu0 %v5005
    %5026 = vmatprep.subr.mxu0 0.0
    %5027 = vmatpush1.msra.mxu0 %v5006
    %5028 = vmatprep.subr.mxu0 0.0
    %5029 = vmatpush1.msra.mxu0 %v5007
    %5030 = vmatprep.subr.mxu0 0.0
    %5031 = vmatpush1.msra.mxu0 %v5008
    %5032 = vmatprep.subr.mxu0 0.0
    %5033 = vmatpush1.msra.mxu0 %v5009
    %5034 = vmatprep.subr.mxu0 0.0
    %5035 = vmatpush1.msra.mxu0 %v5010
    %5036 = vmatprep.subr.mxu0 0.0
    %5037 = vmatpush1.msra.mxu0 %v5011
    %5038 = vmatprep.subr.mxu0 0.0
    %5039 = vmatpush1.msra.mxu0 %v5012
    %5040 = vmatprep.subr.mxu0 0.0
    %5041 = vmatpush1.msra.mxu0 %v5013
    %5042 = vmatprep.subr.mxu0 0.0
    %5043 = vmatpush1.msra.mxu0 %v5014
    %5044 = vmatprep.subr.mxu0 0.0
    %5045 = vmatpush1.msra.mxu0 %v5015
    %5046 = vmatprep.subr.mxu0 0.0
    %5047 = vmatpush1.msra.mxu0 %v5016
    %5048 = vmatprep.subr.mxu0 0.0
    %5049 = vmatpush1.msra.mxu0 %v5017
    %5050 = vmatprep.subr.mxu0 0.0
    %5051 = vmatpush1.msra.mxu0 %v5018
    %5052 = vmatprep.subr.mxu0 0.0
    %5053 = vmatpush1.msra.mxu0 0.0
    %5054 = vmatprep.subr.mxu0 0.0
    %5055 = vmatpush1.msra.mxu0 0.0
    %5056 = vmatprep.subr.mxu0 0.0
    %5057 = vmatpush1.msra.mxu0 0.0
    %5058 = vmatprep.subr.mxu0 0.0
    %5059 = vmatpush1.msra.mxu0 0.0
    %5060 = vmatprep.subr.mxu0 0.0
    %5061 = vmatpush1.msra.mxu0 0.0
    %5062 = vmatprep.subr.mxu0 0.0
    %5063 = vmatpush1.msra.mxu0 0.0
    %5064 = vmatprep.subr.mxu0 0.0
    %5065 = vmatpush1.msra.mxu0 0.0
    %5066 = vmatprep.subr.mxu0 0.0
    %5067 = vmatpush1.msra.mxu0 0.0
    %5068 = vmatprep.subr.mxu0 0.0
    %5069 = vmatpush1.msra.mxu0 0.0
    %5070 = vmatprep.subr.mxu0 0.0
    %5071 = vmatpush1.msra.mxu0 0.0
    %5072 = vmatprep.subr.mxu0 0.0
    %5073 = vmatpush1.msra.mxu0 0.0
    %5074 = vmatprep.subr.mxu0 0.0
    %5075 = vmatpush1.msra.mxu0 0.0
    %5076 = vmatprep.subr.mxu0 0.0
    %5077 = vmatpush1.msra.mxu0 0.0
    %5078 = vmatprep.subr.mxu0 0.0
    %5079 = vmatpush1.msra.mxu0 0.0
    %5080 = vmatprep.subr.mxu0 0.0
    %5081 = vmatpush1.msra.mxu0 0.0
    %5082 = vmatprep.subr.mxu0 0.0
    %5083 = vmatpush1.msra.mxu0 0.0
    %5084 = vmatprep.mubr.f32.mxu0 0.0
    %5085 = vmatmul.mubr.f32.gmra.mrb[0].mxu0 %v4999
    %v5086 = vpop.f32.mrb[0].mxu0
    %v5087 = vadd.f32 %v5019, %v5086
    %v5088 = vpop.f32.mrb[0].mxu0
    %5089 = vmatprep.mubr.f32.mxu0 0.0
    %5090 = vmatmul.mubr.f32.gmra.mrb[0].mxu0 %v5000
    %v5091 = vpop.f32.mrb[0].mxu0
    %v5092 = vadd.f32 %v5019, %v5091
    %v5093 = vpop.f32.mrb[0].mxu0
    %5094 = vmatprep.mubr.f32.mxu0 0.0
    %5095 = vmatmul.mubr.f32.gmra.mrb[0].mxu0 %v5001
    %v5096 = vpop.f32.mrb[0].mxu0
    %v5097 = vadd.f32 %v5019, %v5096
    %v5098 = vpop.f32.mrb[0].mxu0
    %5099 = vmatprep.mubr.f32.mxu0 0.0
    %5100 = vmatmul.mubr.f32.gmra.mrb[0].mxu0 %v5002
    %v5101 = vpop.f32.mrb[0].mxu0
    %v5102 = vadd.f32 %v5019, %v5101
    %v5103 = vpop.f32.mrb[0].mxu0
    %5104 = vdwg.mxu0
    %v5105 = vld [vmem:[#allocation7 + $0x1e00] sm:$0xff]
    %v5106 = vld [vmem:[#allocation7 + $0x1e08] sm:$0xff]
    %v5107 = vld [vmem:[#allocation7 + $0x1e18] sm:$0xff]
    %v5108 = vld [vmem:[#allocation7 + $0x1e20] sm:$0xff]
    %v5109 = vld [vmem:[#allocation7 + $0x1e30] sm:$0xff]
    %v5110 = vld [vmem:[#allocation7 + $0x1e38] sm:$0xff]
    %v5111 = vld [vmem:[#allocation7 + $0x1e48] sm:$0xff]
    %v5112 = vld [vmem:[#allocation7 + $0x1e50] sm:$0xff]
    %v5113 = vld [vmem:[#allocation7 + $0x1e60] sm:$0xff]
    %v5114 = vld [vmem:[#allocation7 + $0x1e68] sm:$0xff]
    %v5115 = vld [vmem:[#allocation7 + $0x1e78] sm:$0xff]
    %v5116 = vld [vmem:[#allocation7 + $0x1e80] sm:$0xff]
    %v5117 = vld [vmem:[#allocation7 + $0x1e90] sm:$0xff]
    %v5118 = vld [vmem:[#allocation7 + $0x1e98] sm:$0xff]
    %v5119 = vld [vmem:[#allocation7 + $0x1ea8] sm:$0xff]
    %v5120 = vld [vmem:[#allocation7 + $0x1eb0] sm:$0xff]
    %v5121 = vld [vmem:[#allocation7 + $0x1ec0] sm:$0xff]
    %v5122 = vld [vmem:[#allocation7 + $0x1ec8] sm:$0xff]
    %v5123 = vld [vmem:[#allocation7 + $0x1ed8] sm:$0xff]
    %v5124 = vld [vmem:[#allocation7 + $0x1ee0] sm:$0xff]
    %v5125 = vld [vmem:[#allocation7 + $0x1ef0] sm:$0xff]
    %v5126 = vld [vmem:[#allocation7 + $0x1ef8] sm:$0xff]
    %v5127 = vld [vmem:[#allocation7 + $0x1f08] sm:$0xff]
    %v5128 = vld [vmem:[#allocation7 + $0x1f10] sm:$0xff]
    %v5129 = vld [vmem:[#allocation7 + $0x1f20] sm:$0xff]
    %v5130 = vld [vmem:[#allocation7 + $0x1f28] sm:$0xff]
    %v5131 = vld [vmem:[#allocation7 + $0x1f38] sm:$0xff]
    %v5132 = vld [vmem:[#allocation7 + $0x1f40] sm:$0xff]
    %v5133 = vld [vmem:[#allocation7 + $0x1f50] sm:$0xff]
    %v5134 = vld [vmem:[#allocation7 + $0x1f58] sm:$0xff]
    %v5135 = vld [vmem:[#allocation7 + $0x1f68] sm:$0xff]
    %v5136 = vld [vmem:[#allocation7 + $0x1f70] sm:$0xff]
    %s5137 = scalar_lea.vmem [#allocation8], 75
    %v5138 = vld [vmem:[%s5137] ss:$8 sm:$0x3]
    %v5140 = vlaneseq
    %v5141 = vshrl.u32 %v5140, 7
    %v5142 = vsub.s32 0, %v5141
    %v5143 = vrot.slane %v5138, %v5142
    %v5144 = vlaneseq
    %v5145 = vshrl.u32 %v5144, 7
    %v5146 = vsub.s32 1, %v5145
    %v5147 = vrot.slane %v5138, %v5146
    %5150 = vmatprep.subr.mxu0 %v5106
    %5151 = vmatpush1.msra.mxu0 %v5105
    %5152 = vmatprep.subr.mxu0 %v5108
    %5153 = vmatpush1.msra.mxu0 %v5107
    %5154 = vmatprep.subr.mxu0 %v5110
    %5155 = vmatpush1.msra.mxu0 %v5109
    %5156 = vmatprep.subr.mxu0 %v5112
    %5157 = vmatpush1.msra.mxu0 %v5111
    %5158 = vmatprep.subr.mxu0 %v5114
    %5159 = vmatpush1.msra.mxu0 %v5113
    %5160 = vmatprep.subr.mxu0 %v5116
    %5161 = vmatpush1.msra.mxu0 %v5115
    %5162 = vmatprep.subr.mxu0 %v5118
    %5163 = vmatpush1.msra.mxu0 %v5117
    %5164 = vmatprep.subr.mxu0 %v5120
    %5165 = vmatpush1.msra.mxu0 %v5119
    %5166 = vmatprep.subr.mxu0 %v5122
    %5167 = vmatpush1.msra.mxu0 %v5121
    %5168 = vmatprep.subr.mxu0 %v5124
    %5169 = vmatpush1.msra.mxu0 %v5123
    %5170 = vmatprep.subr.mxu0 %v5126
    %5171 = vmatpush1.msra.mxu0 %v5125
    %5172 = vmatprep.subr.mxu0 %v5128
    %5173 = vmatpush1.msra.mxu0 %v5127
    %5174 = vmatprep.subr.mxu0 %v5130
    %5175 = vmatpush1.msra.mxu0 %v5129
    %5176 = vmatprep.subr.mxu0 %v5132
    %5177 = vmatpush1.msra.mxu0 %v5131
    %5178 = vmatprep.subr.mxu0 %v5134
    %5179 = vmatpush1.msra.mxu0 %v5133
    %5180 = vmatprep.subr.mxu0 %v5136
    %5181 = vmatpush1.msra.mxu0 %v5135
    %5182 = vmatprep.subr.mxu0 0.0
    %5183 = vmatpush1.msra.mxu0 0.0
    %5184 = vmatprep.subr.mxu0 0.0
    %5185 = vmatpush1.msra.mxu0 0.0
    %5186 = vmatprep.subr.mxu0 0.0
    %5187 = vmatpush1.msra.mxu0 0.0
    %5188 = vmatprep.subr.mxu0 0.0
    %5189 = vmatpush1.msra.mxu0 0.0
    %5190 = vmatprep.subr.mxu0 0.0
    %5191 = vmatpush1.msra.mxu0 0.0
    %5192 = vmatprep.subr.mxu0 0.0
    %5193 = vmatpush1.msra.mxu0 0.0
    %5194 = vmatprep.subr.mxu0 0.0
    %5195 = vmatpush1.msra.mxu0 0.0
    %5196 = vmatprep.subr.mxu0 0.0
    %5197 = vmatpush1.msra.mxu0 0.0
    %5198 = vmatprep.subr.mxu0 0.0
    %5199 = vmatpush1.msra.mxu0 0.0
    %5200 = vmatprep.subr.mxu0 0.0
    %5201 = vmatpush1.msra.mxu0 0.0
    %5202 = vmatprep.subr.mxu0 0.0
    %5203 = vmatpush1.msra.mxu0 0.0
    %5204 = vmatprep.subr.mxu0 0.0
    %5205 = vmatpush1.msra.mxu0 0.0
    %5206 = vmatprep.subr.mxu0 0.0
    %5207 = vmatpush1.msra.mxu0 0.0
    %5208 = vmatprep.subr.mxu0 0.0
    %5209 = vmatpush1.msra.mxu0 0.0
    %5210 = vmatprep.subr.mxu0 0.0
    %5211 = vmatpush1.msra.mxu0 0.0
    %5212 = vmatprep.subr.mxu0 0.0
    %5213 = vmatpush1.msra.mxu0 0.0
    %5214 = vmatprep.mubr.f32.mxu0 0.0
    %5215 = vmatmul.mubr.f32.gmra.mrb[0].mxu0 %v364
    %v5216 = vpop.f32.mrb[0].mxu0
    %v5217 = vadd.f32 %v5143, %v5216
    %v5218 = vpop.f32.mrb[0].mxu0
    %v5219 = vadd.f32 %v5147, %v5218
    %5220 = vmatprep.mubr.f32.mxu0 0.0
    %5221 = vmatmul.mubr.f32.gmra.mrb[0].mxu0 %v365
    %v5222 = vpop.f32.mrb[0].mxu0
    %v5223 = vadd.f32 %v5143, %v5222
    %v5224 = vpop.f32.mrb[0].mxu0
    %v5225 = vadd.f32 %v5147, %v5224
    %5226 = vmatprep.mubr.f32.mxu0 0.0
    %5227 = vmatmul.mubr.f32.gmra.mrb[0].mxu0 %v366
    %v5228 = vpop.f32.mrb[0].mxu0
    %v5229 = vadd.f32 %v5143, %v5228
    %v5230 = vpop.f32.mrb[0].mxu0
    %v5231 = vadd.f32 %v5147, %v5230
    %5232 = vmatprep.mubr.f32.mxu0 0.0
    %5233 = vmatmul.mubr.f32.gmra.mrb[0].mxu0 %v367
    %v5234 = vpop.f32.mrb[0].mxu0
    %v5235 = vadd.f32 %v5143, %v5234
    %v5236 = vpop.f32.mrb[0].mxu0
    %v5237 = vadd.f32 %v5147, %v5236
    %5238 = vdwg.mxu0
    %v5239 = vld [vmem:[#allocation7 + $0x1f80] sm:$0xff]
    %v5240 = vld [vmem:[#allocation7 + $0x1f98] sm:$0xff]
    %v5241 = vld [vmem:[#allocation7 + $0x1fb0] sm:$0xff]
    %v5242 = vld [vmem:[#allocation7 + $0x1fc8] sm:$0xff]
    %v5243 = vld [vmem:[#allocation7 + $0x1fe0] sm:$0xff]
    %v5244 = vld [vmem:[#allocation7 + $0x1ff8] sm:$0xff]
    %v5245 = vld [vmem:[#allocation7 + $0x2010] sm:$0xff]
    %v5246 = vld [vmem:[#allocation7 + $0x2028] sm:$0xff]
    %v5247 = vld [vmem:[#allocation7 + $0x2040] sm:$0xff]
    %v5248 = vld [vmem:[#allocation7 + $0x2058] sm:$0xff]
    %v5249 = vld [vmem:[#allocation7 + $0x2070] sm:$0xff]
    %v5250 = vld [vmem:[#allocation7 + $0x2088] sm:$0xff]
    %v5251 = vld [vmem:[#allocation7 + $0x20a0] sm:$0xff]
    %v5252 = vld [vmem:[#allocation7 + $0x20b8] sm:$0xff]
    %v5253 = vld [vmem:[#allocation7 + $0x20d0] sm:$0xff]
    %v5254 = vld [vmem:[#allocation7 + $0x20e8] sm:$0xff]
    %v5255 = vld [vmem:[#allocation8 + $0x4c] ss:$0 sm:$0xff]
    %v5256 = vmul.f32 %v5087, %v5217
    %v5257 = vmul.f32 %v5092, %v5223
    %5258 = vmatprep.subr.mxu0 0.0
    %5259 = vmatpush1.msra.mxu0 %v335
    %5260 = vmatprep.subr.mxu0 0.0
    %5261 = vmatpush1.msra.mxu0 %v336
    %5262 = vmatprep.subr.mxu0 0.0
    %5263 = vmatpush1.msra.mxu0 %v337
    %5264 = vmatprep.subr.mxu0 0.0
    %5265 = vmatpush1.msra.mxu0 %v338
    %5266 = vmatprep.subr.mxu0 0.0
    %5267 = vmatpush1.msra.mxu0 %v339
    %5268 = vmatprep.subr.mxu0 0.0
    %5269 = vmatpush1.msra.mxu0 %v340
    %5270 = vmatprep.subr.mxu0 0.0
    %5271 = vmatpush1.msra.mxu0 %v341
    %5272 = vmatprep.subr.mxu0 0.0
    %5273 = vmatpush1.msra.mxu0 %v342
    %5274 = vmatprep.subr.mxu0 0.0
    %5275 = vmatpush1.msra.mxu0 %v343
    %5276 = vmatprep.subr.mxu0 0.0
    %5277 = vmatpush1.msra.mxu0 %v344
    %5278 = vmatprep.subr.mxu0 0.0
    %5279 = vmatpush1.msra.mxu0 %v345
    %5280 = vmatprep.subr.mxu0 0.0
    %5281 = vmatpush1.msra.mxu0 %v346
    %5282 = vmatprep.subr.mxu0 0.0
    %5283 = vmatpush1.msra.mxu0 %v347
    %5284 = vmatprep.subr.mxu0 0.0
    %5285 = vmatpush1.msra.mxu0 %v348
    %5286 = vmatprep.subr.mxu0 0.0
    %5287 = vmatpush1.msra.mxu0 %v349
    %5288 = vmatprep.subr.mxu0 0.0
    %5289 = vmatpush1.msra.mxu0 %v350
    %5290 = vmatprep.subr.mxu0 0.0
    %5291 = vmatpush1.msra.mxu0 0.0
    %5292 = vmatprep.subr.mxu0 0.0
    %5293 = vmatpush1.msra.mxu0 0.0
    %5294 = vmatprep.subr.mxu0 0.0
    %5295 = vmatpush1.msra.mxu0 0.0
    %5296 = vmatprep.subr.mxu0 0.0
    %5297 = vmatpush1.msra.mxu0 0.0
    %5298 = vmatprep.subr.mxu0 0.0
    %5299 = vmatpush1.msra.mxu0 0.0
    %5300 = vmatprep.subr.mxu0 0.0
    %5301 = vmatpush1.msra.mxu0 0.0
    %5302 = vmatprep.subr.mxu0 0.0
    %5303 = vmatpush1.msra.mxu0 0.0
    %5304 = vmatprep.subr.mxu0 0.0
    %5305 = vmatpush1.msra.mxu0 0.0
    %5306 = vmatprep.subr.mxu0 0.0
    %5307 = vmatpush1.msra.mxu0 0.0
    %5308 = vmatprep.subr.mxu0 0.0
    %5309 = vmatpush1.msra.mxu0 0.0
    %5310 = vmatprep.subr.mxu0 0.0
    %5311 = vmatpush1.msra.mxu0 0.0
    %5312 = vmatprep.subr.mxu0 0.0
    %5313 = vmatpush1.msra.mxu0 0.0
    %5314 = vmatprep.subr.mxu0 0.0
    %5315 = vmatpush1.msra.mxu0 0.0
    %5316 = vmatprep.subr.mxu0 0.0
    %5317 = vmatpush1.msra.mxu0 0.0
    %5318 = vmatprep.subr.mxu0 0.0
    %5319 = vmatpush1.msra.mxu0 0.0
    %5320 = vmatprep.subr.mxu0 0.0
    %5321 = vmatpush1.msra.mxu0 0.0
    %5322 = vmatprep.mubr.f32.mxu0 0.0
    %5323 = vmatmul.mubr.f32.gmra.mrb[0].mxu0 %v5256
    %v5324 = vpop.f32.mrb[0].mxu0
    %v5325 = vadd.f32 0.0, %v5324
    %v5326 = vpop.f32.mrb[0].mxu0
    %5327 = vmatprep.mubr.f32.mxu0 0.0
    %5328 = vmatmul.mubr.f32.gmra.mrb[0].mxu0 %v5257
    %v5329 = vpop.f32.mrb[0].mxu0
    %v5330 = vadd.f32 0.0, %v5329
    %v5331 = vpop.f32.mrb[0].mxu0
    %5332 = vdwg.mxu0
    %v5333 = vmul.f32 %v5087, %v5229
    %v5334 = vmul.f32 %v5092, %v5235
    %5335 = vmatprep.subr.mxu0 0.0
    %5336 = vmatpush1.msra.mxu0 %v335
    %5337 = vmatprep.subr.mxu0 0.0
    %5338 = vmatpush1.msra.mxu0 %v336
    %5339 = vmatprep.subr.mxu0 0.0
    %5340 = vmatpush1.msra.mxu0 %v337
    %5341 = vmatprep.subr.mxu0 0.0
    %5342 = vmatpush1.msra.mxu0 %v338
    %5343 = vmatprep.subr.mxu0 0.0
    %5344 = vmatpush1.msra.mxu0 %v339
    %5345 = vmatprep.subr.mxu0 0.0
    %5346 = vmatpush1.msra.mxu0 %v340
    %5347 = vmatprep.subr.mxu0 0.0
    %5348 = vmatpush1.msra.mxu0 %v341
    %5349 = vmatprep.subr.mxu0 0.0
    %5350 = vmatpush1.msra.mxu0 %v342
    %5351 = vmatprep.subr.mxu0 0.0
    %5352 = vmatpush1.msra.mxu0 %v343
    %5353 = vmatprep.subr.mxu0 0.0
    %5354 = vmatpush1.msra.mxu0 %v344
    %5355 = vmatprep.subr.mxu0 0.0
    %5356 = vmatpush1.msra.mxu0 %v345
    %5357 = vmatprep.subr.mxu0 0.0
    %5358 = vmatpush1.msra.mxu0 %v346
    %5359 = vmatprep.subr.mxu0 0.0
    %5360 = vmatpush1.msra.mxu0 %v347
    %5361 = vmatprep.subr.mxu0 0.0
    %5362 = vmatpush1.msra.mxu0 %v348
    %5363 = vmatprep.subr.mxu0 0.0
    %5364 = vmatpush1.msra.mxu0 %v349
    %5365 = vmatprep.subr.mxu0 0.0
    %5366 = vmatpush1.msra.mxu0 %v350
    %5367 = vmatprep.subr.mxu0 0.0
    %5368 = vmatpush1.msra.mxu0 0.0
    %5369 = vmatprep.subr.mxu0 0.0
    %5370 = vmatpush1.msra.mxu0 0.0
    %5371 = vmatprep.subr.mxu0 0.0
    %5372 = vmatpush1.msra.mxu0 0.0
    %5373 = vmatprep.subr.mxu0 0.0
    %5374 = vmatpush1.msra.mxu0 0.0
    %5375 = vmatprep.subr.mxu0 0.0
    %5376 = vmatpush1.msra.mxu0 0.0
    %5377 = vmatprep.subr.mxu0 0.0
    %5378 = vmatpush1.msra.mxu0 0.0
    %5379 = vmatprep.subr.mxu0 0.0
    %5380 = vmatpush1.msra.mxu0 0.0
    %5381 = vmatprep.subr.mxu0 0.0
    %5382 = vmatpush1.msra.mxu0 0.0
    %5383 = vmatprep.subr.mxu0 0.0
    %5384 = vmatpush1.msra.mxu0 0.0
    %5385 = vmatprep.subr.mxu0 0.0
    %5386 = vmatpush1.msra.mxu0 0.0
    %5387 = vmatprep.subr.mxu0 0.0
    %5388 = vmatpush1.msra.mxu0 0.0
    %5389 = vmatprep.subr.mxu0 0.0
    %5390 = vmatpush1.msra.mxu0 0.0
    %5391 = vmatprep.subr.mxu0 0.0
    %5392 = vmatpush1.msra.mxu0 0.0
    %5393 = vmatprep.subr.mxu0 0.0
    %5394 = vmatpush1.msra.mxu0 0.0
    %5395 = vmatprep.subr.mxu0 0.0
    %5396 = vmatpush1.msra.mxu0 0.0
    %5397 = vmatprep.subr.mxu0 0.0
    %5398 = vmatpush1.msra.mxu0 0.0
    %5399 = vmatprep.mubr.f32.mxu0 0.0
    %5400 = vmatmul.mubr.f32.gmra.mrb[0].mxu0 %v5333
    %v5401 = vpop.f32.mrb[0].mxu0
    %v5402 = vadd.f32 0.0, %v5401
    %v5403 = vpop.f32.mrb[0].mxu0
    %5404 = vmatprep.mubr.f32.mxu0 0.0
    %5405 = vmatmul.mubr.f32.gmra.mrb[0].mxu0 %v5334
    %v5406 = vpop.f32.mrb[0].mxu0
    %v5407 = vadd.f32 0.0, %v5406
    %v5408 = vpop.f32.mrb[0].mxu0
    %5409 = vdwg.mxu0
    %v5410 = vmax.f32 %v5325, %v5402
    %v5411 = vmax.f32 %v5330, %v5407
    %v5412 = vsub.f32 %v5325, %v5410
    %v5413 = vsub.f32 %v5330, %v5411
    %v5414 = vmul.f32 %v5412, 1.442695
    %v5415 = vpow.pop %v5414
    %v5416 = vmul.f32 %v5413, 1.442695
    %v5417 = vpow.pop %v5416
    %v5418 = vsub.f32 %v5402, %v5410
    %v5419 = vsub.f32 %v5407, %v5411
    %v5420 = vmul.f32 %v5418, 1.442695
    %v5421 = vpow.pop %v5420
    %v5422 = vmul.f32 %v5419, 1.442695
    %v5423 = vpow.pop %v5422
    %v5424 = vadd.f32 %v5415, %v5421
    %v5425 = vadd.f32 %v5417, %v5423
    %v5426 = vrcp.pop %v5424
    %v5427 = vrcp.pop %v5425
    %v5428 = vmul.f32 %v5415, %v5426
    %v5429 = vmul.f32 %v5417, %v5427
    %v5431 = vsel %vm1903, %v5428, 0
    %v5434 = vsel %vm1903, %v5429, 0
    %5436 = vmatprep.subr.mxu0 0.0
    %5437 = vmatpush1.msra.mxu0 %v1912
    %5438 = vmatprep.subr.mxu0 0.0
    %5439 = vmatpush1.msra.mxu0 0.0
    %5440 = vmatprep.subr.mxu0 0.0
    %5441 = vmatpush1.msra.mxu0 0.0
    %5442 = vmatprep.subr.mxu0 0.0
    %5443 = vmatpush1.msra.mxu0 0.0
    %5444 = vmatprep.subr.mxu0 0.0
    %5445 = vmatpush1.msra.mxu0 0.0
    %5446 = vmatprep.subr.mxu0 0.0
    %5447 = vmatpush1.msra.mxu0 0.0
    %5448 = vmatprep.subr.mxu0 0.0
    %5449 = vmatpush1.msra.mxu0 0.0
    %5450 = vmatprep.subr.mxu0 0.0
    %5451 = vmatpush1.msra.mxu0 0.0
    %5452 = vmatprep.subr.mxu0 0.0
    %5453 = vmatpush1.msra.mxu0 0.0
    %5454 = vmatprep.subr.mxu0 0.0
    %5455 = vmatpush1.msra.mxu0 0.0
    %5456 = vmatprep.subr.mxu0 0.0
    %5457 = vmatpush1.msra.mxu0 0.0
    %5458 = vmatprep.subr.mxu0 0.0
    %5459 = vmatpush1.msra.mxu0 0.0
    %5460 = vmatprep.subr.mxu0 0.0
    %5461 = vmatpush1.msra.mxu0 0.0
    %5462 = vmatprep.subr.mxu0 0.0
    %5463 = vmatpush1.msra.mxu0 0.0
    %5464 = vmatprep.subr.mxu0 0.0
    %5465 = vmatpush1.msra.mxu0 0.0
    %5466 = vmatprep.subr.mxu0 0.0
    %5467 = vmatpush1.msra.mxu0 0.0
    %5468 = vmatprep.subr.mxu0 0.0
    %5469 = vmatpush1.msra.mxu0 0.0
    %5470 = vmatprep.subr.mxu0 0.0
    %5471 = vmatpush1.msra.mxu0 0.0
    %5472 = vmatprep.subr.mxu0 0.0
    %5473 = vmatpush1.msra.mxu0 0.0
    %5474 = vmatprep.subr.mxu0 0.0
    %5475 = vmatpush1.msra.mxu0 0.0
    %5476 = vmatprep.subr.mxu0 0.0
    %5477 = vmatpush1.msra.mxu0 0.0
    %5478 = vmatprep.subr.mxu0 0.0
    %5479 = vmatpush1.msra.mxu0 0.0
    %5480 = vmatprep.subr.mxu0 0.0
    %5481 = vmatpush1.msra.mxu0 0.0
    %5482 = vmatprep.subr.mxu0 0.0
    %5483 = vmatpush1.msra.mxu0 0.0
    %5484 = vmatprep.subr.mxu0 0.0
    %5485 = vmatpush1.msra.mxu0 0.0
    %5486 = vmatprep.subr.mxu0 0.0
    %5487 = vmatpush1.msra.mxu0 0.0
    %5488 = vmatprep.subr.mxu0 0.0
    %5489 = vmatpush1.msra.mxu0 0.0
    %5490 = vmatprep.subr.mxu0 0.0
    %5491 = vmatpush1.msra.mxu0 0.0
    %5492 = vmatprep.subr.mxu0 0.0
    %5493 = vmatpush1.msra.mxu0 0.0
    %5494 = vmatprep.subr.mxu0 0.0
    %5495 = vmatpush1.msra.mxu0 0.0
    %5496 = vmatprep.subr.mxu0 0.0
    %5497 = vmatpush1.msra.mxu0 0.0
    %5498 = vmatprep.subr.mxu0 0.0
    %5499 = vmatpush1.msra.mxu0 0.0
    %5500 = vmatprep.mubr.f32.mxu0 0.0
    %5501 = vmatmul.mubr.f32.gmra.mrb[0].mxu0 %v5431
    %v5502 = vpop.f32.mrb[0].mxu0
    %v5503 = vadd.f32 0.0, %v5502
    %v5504 = vpop.f32.mrb[0].mxu0
    %5505 = vmatprep.mubr.f32.mxu0 0.0
    %5506 = vmatmul.mubr.f32.gmra.mrb[0].mxu0 %v5434
    %v5507 = vpop.f32.mrb[0].mxu0
    %v5508 = vadd.f32 0.0, %v5507
    %v5509 = vpop.f32.mrb[0].mxu0
    %5510 = vdwg.mxu0
    %v5511 = vmul.f32 %v5503, %v5219
    %v5512 = vmul.f32 %v5508, %v5225
    %v5513 = vmul.f32 %v5421, %v5426
    %v5514 = vmul.f32 %v5423, %v5427
    %v5516 = vsel %vm1903, %v5513, 0
    %v5519 = vsel %vm1903, %v5514, 0
    %5521 = vmatprep.subr.mxu0 0.0
    %5522 = vmatpush1.msra.mxu0 %v1912
    %5523 = vmatprep.subr.mxu0 0.0
    %5524 = vmatpush1.msra.mxu0 0.0
    %5525 = vmatprep.subr.mxu0 0.0
    %5526 = vmatpush1.msra.mxu0 0.0
    %5527 = vmatprep.subr.mxu0 0.0
    %5528 = vmatpush1.msra.mxu0 0.0
    %5529 = vmatprep.subr.mxu0 0.0
    %5530 = vmatpush1.msra.mxu0 0.0
    %5531 = vmatprep.subr.mxu0 0.0
    %5532 = vmatpush1.msra.mxu0 0.0
    %5533 = vmatprep.subr.mxu0 0.0
    %5534 = vmatpush1.msra.mxu0 0.0
    %5535 = vmatprep.subr.mxu0 0.0
    %5536 = vmatpush1.msra.mxu0 0.0
    %5537 = vmatprep.subr.mxu0 0.0
    %5538 = vmatpush1.msra.mxu0 0.0
    %5539 = vmatprep.subr.mxu0 0.0
    %5540 = vmatpush1.msra.mxu0 0.0
    %5541 = vmatprep.subr.mxu0 0.0
    %5542 = vmatpush1.msra.mxu0 0.0
    %5543 = vmatprep.subr.mxu0 0.0
    %5544 = vmatpush1.msra.mxu0 0.0
    %5545 = vmatprep.subr.mxu0 0.0
    %5546 = vmatpush1.msra.mxu0 0.0
    %5547 = vmatprep.subr.mxu0 0.0
    %5548 = vmatpush1.msra.mxu0 0.0
    %5549 = vmatprep.subr.mxu0 0.0
    %5550 = vmatpush1.msra.mxu0 0.0
    %5551 = vmatprep.subr.mxu0 0.0
    %5552 = vmatpush1.msra.mxu0 0.0
    %5553 = vmatprep.subr.mxu0 0.0
    %5554 = vmatpush1.msra.mxu0 0.0
    %5555 = vmatprep.subr.mxu0 0.0
    %5556 = vmatpush1.msra.mxu0 0.0
    %5557 = vmatprep.subr.mxu0 0.0
    %5558 = vmatpush1.msra.mxu0 0.0
    %5559 = vmatprep.subr.mxu0 0.0
    %5560 = vmatpush1.msra.mxu0 0.0
    %5561 = vmatprep.subr.mxu0 0.0
    %5562 = vmatpush1.msra.mxu0 0.0
    %5563 = vmatprep.subr.mxu0 0.0
    %5564 = vmatpush1.msra.mxu0 0.0
    %5565 = vmatprep.subr.mxu0 0.0
    %5566 = vmatpush1.msra.mxu0 0.0
    %5567 = vmatprep.subr.mxu0 0.0
    %5568 = vmatpush1.msra.mxu0 0.0
    %5569 = vmatprep.subr.mxu0 0.0
    %5570 = vmatpush1.msra.mxu0 0.0
    %5571 = vmatprep.subr.mxu0 0.0
    %5572 = vmatpush1.msra.mxu0 0.0
    %5573 = vmatprep.subr.mxu0 0.0
    %5574 = vmatpush1.msra.mxu0 0.0
    %5575 = vmatprep.subr.mxu0 0.0
    %5576 = vmatpush1.msra.mxu0 0.0
    %5577 = vmatprep.subr.mxu0 0.0
    %5578 = vmatpush1.msra.mxu0 0.0
    %5579 = vmatprep.subr.mxu0 0.0
    %5580 = vmatpush1.msra.mxu0 0.0
    %5581 = vmatprep.subr.mxu0 0.0
    %5582 = vmatpush1.msra.mxu0 0.0
    %5583 = vmatprep.subr.mxu0 0.0
    %5584 = vmatpush1.msra.mxu0 0.0
    %5585 = vmatprep.mubr.f32.mxu0 0.0
    %5586 = vmatmul.mubr.f32.gmra.mrb[0].mxu0 %v5516
    %v5587 = vpop.f32.mrb[0].mxu0
    %v5588 = vadd.f32 0.0, %v5587
    %v5589 = vpop.f32.mrb[0].mxu0
    %5590 = vmatprep.mubr.f32.mxu0 0.0
    %5591 = vmatmul.mubr.f32.gmra.mrb[0].mxu0 %v5519
    %v5592 = vpop.f32.mrb[0].mxu0
    %v5593 = vadd.f32 0.0, %v5592
    %v5594 = vpop.f32.mrb[0].mxu0
    %5595 = vdwg.mxu0
    %v5596 = vmul.f32 %v5588, %v5231
    %v5597 = vmul.f32 %v5593, %v5237
    %v5598 = vadd.f32 %v5511, %v5596
    %v5599 = vadd.f32 %v5512, %v5597
    %v5600 = vmul.f32 %v5097, %v5217
    %v5601 = vmul.f32 %v5102, %v5223
    %5602 = vmatprep.subr.mxu0 0.0
    %5603 = vmatpush1.msra.mxu0 %v335
    %5604 = vmatprep.subr.mxu0 0.0
    %5605 = vmatpush1.msra.mxu0 %v336
    %5606 = vmatprep.subr.mxu0 0.0
    %5607 = vmatpush1.msra.mxu0 %v337
    %5608 = vmatprep.subr.mxu0 0.0
    %5609 = vmatpush1.msra.mxu0 %v338
    %5610 = vmatprep.subr.mxu0 0.0
    %5611 = vmatpush1.msra.mxu0 %v339
    %5612 = vmatprep.subr.mxu0 0.0
    %5613 = vmatpush1.msra.mxu0 %v340
    %5614 = vmatprep.subr.mxu0 0.0
    %5615 = vmatpush1.msra.mxu0 %v341
    %5616 = vmatprep.subr.mxu0 0.0
    %5617 = vmatpush1.msra.mxu0 %v342
    %5618 = vmatprep.subr.mxu0 0.0
    %5619 = vmatpush1.msra.mxu0 %v343
    %5620 = vmatprep.subr.mxu0 0.0
    %5621 = vmatpush1.msra.mxu0 %v344
    %5622 = vmatprep.subr.mxu0 0.0
    %5623 = vmatpush1.msra.mxu0 %v345
    %5624 = vmatprep.subr.mxu0 0.0
    %5625 = vmatpush1.msra.mxu0 %v346
    %5626 = vmatprep.subr.mxu0 0.0
    %5627 = vmatpush1.msra.mxu0 %v347
    %5628 = vmatprep.subr.mxu0 0.0
    %5629 = vmatpush1.msra.mxu0 %v348
    %5630 = vmatprep.subr.mxu0 0.0
    %5631 = vmatpush1.msra.mxu0 %v349
    %5632 = vmatprep.subr.mxu0 0.0
    %5633 = vmatpush1.msra.mxu0 %v350
    %5634 = vmatprep.subr.mxu0 0.0
    %5635 = vmatpush1.msra.mxu0 0.0
    %5636 = vmatprep.subr.mxu0 0.0
    %5637 = vmatpush1.msra.mxu0 0.0
    %5638 = vmatprep.subr.mxu0 0.0
    %5639 = vmatpush1.msra.mxu0 0.0
    %5640 = vmatprep.subr.mxu0 0.0
    %5641 = vmatpush1.msra.mxu0 0.0
    %5642 = vmatprep.subr.mxu0 0.0
    %5643 = vmatpush1.msra.mxu0 0.0
    %5644 = vmatprep.subr.mxu0 0.0
    %5645 = vmatpush1.msra.mxu0 0.0
    %5646 = vmatprep.subr.mxu0 0.0
    %5647 = vmatpush1.msra.mxu0 0.0
    %5648 = vmatprep.subr.mxu0 0.0
    %5649 = vmatpush1.msra.mxu0 0.0
    %5650 = vmatprep.subr.mxu0 0.0
    %5651 = vmatpush1.msra.mxu0 0.0
    %5652 = vmatprep.subr.mxu0 0.0
    %5653 = vmatpush1.msra.mxu0 0.0
    %5654 = vmatprep.subr.mxu0 0.0
    %5655 = vmatpush1.msra.mxu0 0.0
    %5656 = vmatprep.subr.mxu0 0.0
    %5657 = vmatpush1.msra.mxu0 0.0
    %5658 = vmatprep.subr.mxu0 0.0
    %5659 = vmatpush1.msra.mxu0 0.0
    %5660 = vmatprep.subr.mxu0 0.0
    %5661 = vmatpush1.msra.mxu0 0.0
    %5662 = vmatprep.subr.mxu0 0.0
    %5663 = vmatpush1.msra.mxu0 0.0
    %5664 = vmatprep.subr.mxu0 0.0
    %5665 = vmatpush1.msra.mxu0 0.0
    %5666 = vmatprep.mubr.f32.mxu0 0.0
    %5667 = vmatmul.mubr.f32.gmra.mrb[0].mxu0 %v5600
    %v5668 = vpop.f32.mrb[0].mxu0
    %v5669 = vadd.f32 0.0, %v5668
    %v5670 = vpop.f32.mrb[0].mxu0
    %5671 = vmatprep.mubr.f32.mxu0 0.0
    %5672 = vmatmul.mubr.f32.gmra.mrb[0].mxu0 %v5601
    %v5673 = vpop.f32.mrb[0].mxu0
    %v5674 = vadd.f32 0.0, %v5673
    %v5675 = vpop.f32.mrb[0].mxu0
    %5676 = vdwg.mxu0
    %v5677 = vmul.f32 %v5097, %v5229
    %v5678 = vmul.f32 %v5102, %v5235
    %5679 = vmatprep.subr.mxu0 0.0
    %5680 = vmatpush1.msra.mxu0 %v335
    %5681 = vmatprep.subr.mxu0 0.0
    %5682 = vmatpush1.msra.mxu0 %v336
    %5683 = vmatprep.subr.mxu0 0.0
    %5684 = vmatpush1.msra.mxu0 %v337
    %5685 = vmatprep.subr.mxu0 0.0
    %5686 = vmatpush1.msra.mxu0 %v338
    %5687 = vmatprep.subr.mxu0 0.0
    %5688 = vmatpush1.msra.mxu0 %v339
    %5689 = vmatprep.subr.mxu0 0.0
    %5690 = vmatpush1.msra.mxu0 %v340
    %5691 = vmatprep.subr.mxu0 0.0
    %5692 = vmatpush1.msra.mxu0 %v341
    %5693 = vmatprep.subr.mxu0 0.0
    %5694 = vmatpush1.msra.mxu0 %v342
    %5695 = vmatprep.subr.mxu0 0.0
    %5696 = vmatpush1.msra.mxu0 %v343
    %5697 = vmatprep.subr.mxu0 0.0
    %5698 = vmatpush1.msra.mxu0 %v344
    %5699 = vmatprep.subr.mxu0 0.0
    %5700 = vmatpush1.msra.mxu0 %v345
    %5701 = vmatprep.subr.mxu0 0.0
    %5702 = vmatpush1.msra.mxu0 %v346
    %5703 = vmatprep.subr.mxu0 0.0
    %5704 = vmatpush1.msra.mxu0 %v347
    %5705 = vmatprep.subr.mxu0 0.0
    %5706 = vmatpush1.msra.mxu0 %v348
    %5707 = vmatprep.subr.mxu0 0.0
    %5708 = vmatpush1.msra.mxu0 %v349
    %5709 = vmatprep.subr.mxu0 0.0
    %5710 = vmatpush1.msra.mxu0 %v350
    %5711 = vmatprep.subr.mxu0 0.0
    %5712 = vmatpush1.msra.mxu0 0.0
    %5713 = vmatprep.subr.mxu0 0.0
    %5714 = vmatpush1.msra.mxu0 0.0
    %5715 = vmatprep.subr.mxu0 0.0
    %5716 = vmatpush1.msra.mxu0 0.0
    %5717 = vmatprep.subr.mxu0 0.0
    %5718 = vmatpush1.msra.mxu0 0.0
    %5719 = vmatprep.subr.mxu0 0.0
    %5720 = vmatpush1.msra.mxu0 0.0
    %5721 = vmatprep.subr.mxu0 0.0
    %5722 = vmatpush1.msra.mxu0 0.0
    %5723 = vmatprep.subr.mxu0 0.0
    %5724 = vmatpush1.msra.mxu0 0.0
    %5725 = vmatprep.subr.mxu0 0.0
    %5726 = vmatpush1.msra.mxu0 0.0
    %5727 = vmatprep.subr.mxu0 0.0
    %5728 = vmatpush1.msra.mxu0 0.0
    %5729 = vmatprep.subr.mxu0 0.0
    %5730 = vmatpush1.msra.mxu0 0.0
    %5731 = vmatprep.subr.mxu0 0.0
    %5732 = vmatpush1.msra.mxu0 0.0
    %5733 = vmatprep.subr.mxu0 0.0
    %5734 = vmatpush1.msra.mxu0 0.0
    %5735 = vmatprep.subr.mxu0 0.0
    %5736 = vmatpush1.msra.mxu0 0.0
    %5737 = vmatprep.subr.mxu0 0.0
    %5738 = vmatpush1.msra.mxu0 0.0
    %5739 = vmatprep.subr.mxu0 0.0
    %5740 = vmatpush1.msra.mxu0 0.0
    %5741 = vmatprep.subr.mxu0 0.0
    %5742 = vmatpush1.msra.mxu0 0.0
    %5743 = vmatprep.mubr.f32.mxu0 0.0
    %5744 = vmatmul.mubr.f32.gmra.mrb[0].mxu0 %v5677
    %v5745 = vpop.f32.mrb[0].mxu0
    %v5746 = vadd.f32 0.0, %v5745
    %v5747 = vpop.f32.mrb[0].mxu0
    %5748 = vmatprep.mubr.f32.mxu0 0.0
    %5749 = vmatmul.mubr.f32.gmra.mrb[0].mxu0 %v5678
    %v5750 = vpop.f32.mrb[0].mxu0
    %v5751 = vadd.f32 0.0, %v5750
    %v5752 = vpop.f32.mrb[0].mxu0
    %5753 = vdwg.mxu0
    %v5754 = vmax.f32 %v5669, %v5746
    %v5755 = vmax.f32 %v5674, %v5751
    %v5756 = vsub.f32 %v5669, %v5754
    %v5757 = vsub.f32 %v5674, %v5755
    %v5758 = vmul.f32 %v5756, 1.442695
    %v5759 = vpow.pop %v5758
    %v5760 = vmul.f32 %v5757, 1.442695
    %v5761 = vpow.pop %v5760
    %v5762 = vsub.f32 %v5746, %v5754
    %v5763 = vsub.f32 %v5751, %v5755
    %v5764 = vmul.f32 %v5762, 1.442695
    %v5765 = vpow.pop %v5764
    %v5766 = vmul.f32 %v5763, 1.442695
    %v5767 = vpow.pop %v5766
    %v5768 = vadd.f32 %v5759, %v5765
    %v5769 = vadd.f32 %v5761, %v5767
    %v5770 = vrcp.pop %v5768
    %v5771 = vrcp.pop %v5769
    %v5772 = vmul.f32 %v5759, %v5770
    %v5773 = vmul.f32 %v5761, %v5771
    %v5775 = vsel %vm1903, %v5772, 0
    %v5778 = vsel %vm1903, %v5773, 0
    %5780 = vmatprep.subr.mxu0 0.0
    %5781 = vmatpush1.msra.mxu0 %v1912
    %5782 = vmatprep.subr.mxu0 0.0
    %5783 = vmatpush1.msra.mxu0 0.0
    %5784 = vmatprep.subr.mxu0 0.0
    %5785 = vmatpush1.msra.mxu0 0.0
    %5786 = vmatprep.subr.mxu0 0.0
    %5787 = vmatpush1.msra.mxu0 0.0
    %5788 = vmatprep.subr.mxu0 0.0
    %5789 = vmatpush1.msra.mxu0 0.0
    %5790 = vmatprep.subr.mxu0 0.0
    %5791 = vmatpush1.msra.mxu0 0.0
    %5792 = vmatprep.subr.mxu0 0.0
    %5793 = vmatpush1.msra.mxu0 0.0
    %5794 = vmatprep.subr.mxu0 0.0
    %5795 = vmatpush1.msra.mxu0 0.0
    %5796 = vmatprep.subr.mxu0 0.0
    %5797 = vmatpush1.msra.mxu0 0.0
    %5798 = vmatprep.subr.mxu0 0.0
    %5799 = vmatpush1.msra.mxu0 0.0
    %5800 = vmatprep.subr.mxu0 0.0
    %5801 = vmatpush1.msra.mxu0 0.0
    %5802 = vmatprep.subr.mxu0 0.0
    %5803 = vmatpush1.msra.mxu0 0.0
    %5804 = vmatprep.subr.mxu0 0.0
    %5805 = vmatpush1.msra.mxu0 0.0
    %5806 = vmatprep.subr.mxu0 0.0
    %5807 = vmatpush1.msra.mxu0 0.0
    %5808 = vmatprep.subr.mxu0 0.0
    %5809 = vmatpush1.msra.mxu0 0.0
    %5810 = vmatprep.subr.mxu0 0.0
    %5811 = vmatpush1.msra.mxu0 0.0
    %5812 = vmatprep.subr.mxu0 0.0
    %5813 = vmatpush1.msra.mxu0 0.0
    %5814 = vmatprep.subr.mxu0 0.0
    %5815 = vmatpush1.msra.mxu0 0.0
    %5816 = vmatprep.subr.mxu0 0.0
    %5817 = vmatpush1.msra.mxu0 0.0
    %5818 = vmatprep.subr.mxu0 0.0
    %5819 = vmatpush1.msra.mxu0 0.0
    %5820 = vmatprep.subr.mxu0 0.0
    %5821 = vmatpush1.msra.mxu0 0.0
    %5822 = vmatprep.subr.mxu0 0.0
    %5823 = vmatpush1.msra.mxu0 0.0
    %5824 = vmatprep.subr.mxu0 0.0
    %5825 = vmatpush1.msra.mxu0 0.0
    %5826 = vmatprep.subr.mxu0 0.0
    %5827 = vmatpush1.msra.mxu0 0.0
    %5828 = vmatprep.subr.mxu0 0.0
    %5829 = vmatpush1.msra.mxu0 0.0
    %5830 = vmatprep.subr.mxu0 0.0
    %5831 = vmatpush1.msra.mxu0 0.0
    %5832 = vmatprep.subr.mxu0 0.0
    %5833 = vmatpush1.msra.mxu0 0.0
    %5834 = vmatprep.subr.mxu0 0.0
    %5835 = vmatpush1.msra.mxu0 0.0
    %5836 = vmatprep.subr.mxu0 0.0
    %5837 = vmatpush1.msra.mxu0 0.0
    %5838 = vmatprep.subr.mxu0 0.0
    %5839 = vmatpush1.msra.mxu0 0.0
    %5840 = vmatprep.subr.mxu0 0.0
    %5841 = vmatpush1.msra.mxu0 0.0
    %5842 = vmatprep.subr.mxu0 0.0
    %5843 = vmatpush1.msra.mxu0 0.0
    %5844 = vmatprep.mubr.f32.mxu0 0.0
    %5845 = vmatmul.mubr.f32.gmra.mrb[0].mxu0 %v5775
    %v5846 = vpop.f32.mrb[0].mxu0
    %v5847 = vadd.f32 0.0, %v5846
    %v5848 = vpop.f32.mrb[0].mxu0
    %5849 = vmatprep.mubr.f32.mxu0 0.0
    %5850 = vmatmul.mubr.f32.gmra.mrb[0].mxu0 %v5778
    %v5851 = vpop.f32.mrb[0].mxu0
    %v5852 = vadd.f32 0.0, %v5851
    %v5853 = vpop.f32.mrb[0].mxu0
    %5854 = vdwg.mxu0
    %v5855 = vmul.f32 %v5847, %v5219
    %v5856 = vmul.f32 %v5852, %v5225
    %v5857 = vmul.f32 %v5765, %v5770
    %v5858 = vmul.f32 %v5767, %v5771
    %v5860 = vsel %vm1903, %v5857, 0
    %v5863 = vsel %vm1903, %v5858, 0
    %5865 = vmatprep.subr.mxu0 0.0
    %5866 = vmatpush1.msra.mxu0 %v1912
    %5867 = vmatprep.subr.mxu0 0.0
    %5868 = vmatpush1.msra.mxu0 0.0
    %5869 = vmatprep.subr.mxu0 0.0
    %5870 = vmatpush1.msra.mxu0 0.0
    %5871 = vmatprep.subr.mxu0 0.0
    %5872 = vmatpush1.msra.mxu0 0.0
    %5873 = vmatprep.subr.mxu0 0.0
    %5874 = vmatpush1.msra.mxu0 0.0
    %5875 = vmatprep.subr.mxu0 0.0
    %5876 = vmatpush1.msra.mxu0 0.0
    %5877 = vmatprep.subr.mxu0 0.0
    %5878 = vmatpush1.msra.mxu0 0.0
    %5879 = vmatprep.subr.mxu0 0.0
    %5880 = vmatpush1.msra.mxu0 0.0
    %5881 = vmatprep.subr.mxu0 0.0
    %5882 = vmatpush1.msra.mxu0 0.0
    %5883 = vmatprep.subr.mxu0 0.0
    %5884 = vmatpush1.msra.mxu0 0.0
    %5885 = vmatprep.subr.mxu0 0.0
    %5886 = vmatpush1.msra.mxu0 0.0
    %5887 = vmatprep.subr.mxu0 0.0
    %5888 = vmatpush1.msra.mxu0 0.0
    %5889 = vmatprep.subr.mxu0 0.0
    %5890 = vmatpush1.msra.mxu0 0.0
    %5891 = vmatprep.subr.mxu0 0.0
    %5892 = vmatpush1.msra.mxu0 0.0
    %5893 = vmatprep.subr.mxu0 0.0
    %5894 = vmatpush1.msra.mxu0 0.0
    %5895 = vmatprep.subr.mxu0 0.0
    %5896 = vmatpush1.msra.mxu0 0.0
    %5897 = vmatprep.subr.mxu0 0.0
    %5898 = vmatpush1.msra.mxu0 0.0
    %5899 = vmatprep.subr.mxu0 0.0
    %5900 = vmatpush1.msra.mxu0 0.0
    %5901 = vmatprep.subr.mxu0 0.0
    %5902 = vmatpush1.msra.mxu0 0.0
    %5903 = vmatprep.subr.mxu0 0.0
    %5904 = vmatpush1.msra.mxu0 0.0
    %5905 = vmatprep.subr.mxu0 0.0
    %5906 = vmatpush1.msra.mxu0 0.0
    %5907 = vmatprep.subr.mxu0 0.0
    %5908 = vmatpush1.msra.mxu0 0.0
    %5909 = vmatprep.subr.mxu0 0.0
    %5910 = vmatpush1.msra.mxu0 0.0
    %5911 = vmatprep.subr.mxu0 0.0
    %5912 = vmatpush1.msra.mxu0 0.0
    %5913 = vmatprep.subr.mxu0 0.0
    %5914 = vmatpush1.msra.mxu0 0.0
    %5915 = vmatprep.subr.mxu0 0.0
    %5916 = vmatpush1.msra.mxu0 0.0
    %5917 = vmatprep.subr.mxu0 0.0
    %5918 = vmatpush1.msra.mxu0 0.0
    %5919 = vmatprep.subr.mxu0 0.0
    %5920 = vmatpush1.msra.mxu0 0.0
    %5921 = vmatprep.subr.mxu0 0.0
    %5922 = vmatpush1.msra.mxu0 0.0
    %5923 = vmatprep.subr.mxu0 0.0
    %5924 = vmatpush1.msra.mxu0 0.0
    %5925 = vmatprep.subr.mxu0 0.0
    %5926 = vmatpush1.msra.mxu0 0.0
    %5927 = vmatprep.subr.mxu0 0.0
    %5928 = vmatpush1.msra.mxu0 0.0
    %5929 = vmatprep.mubr.f32.mxu0 0.0
    %5930 = vmatmul.mubr.f32.gmra.mrb[0].mxu0 %v5860
    %v5931 = vpop.f32.mrb[0].mxu0
    %v5932 = vadd.f32 0.0, %v5931
    %v5933 = vpop.f32.mrb[0].mxu0
    %5934 = vmatprep.mubr.f32.mxu0 0.0
    %5935 = vmatmul.mubr.f32.gmra.mrb[0].mxu0 %v5863
    %v5936 = vpop.f32.mrb[0].mxu0
    %v5937 = vadd.f32 0.0, %v5936
    %v5938 = vpop.f32.mrb[0].mxu0
    %5939 = vdwg.mxu0
    %v5940 = vmul.f32 %v5932, %v5231
    %v5941 = vmul.f32 %v5937, %v5237
    %v5942 = vadd.f32 %v5855, %v5940
    %v5943 = vadd.f32 %v5856, %v5941
    %5944 = vmatprep.subr.mxu0 0.0
    %5945 = vmatpush1.msra.mxu0 %v5239
    %5946 = vmatprep.subr.mxu0 0.0
    %5947 = vmatpush1.msra.mxu0 %v5240
    %5948 = vmatprep.subr.mxu0 0.0
    %5949 = vmatpush1.msra.mxu0 %v5241
    %5950 = vmatprep.subr.mxu0 0.0
    %5951 = vmatpush1.msra.mxu0 %v5242
    %5952 = vmatprep.subr.mxu0 0.0
    %5953 = vmatpush1.msra.mxu0 %v5243
    %5954 = vmatprep.subr.mxu0 0.0
    %5955 = vmatpush1.msra.mxu0 %v5244
    %5956 = vmatprep.subr.mxu0 0.0
    %5957 = vmatpush1.msra.mxu0 %v5245
    %5958 = vmatprep.subr.mxu0 0.0
    %5959 = vmatpush1.msra.mxu0 %v5246
    %5960 = vmatprep.subr.mxu0 0.0
    %5961 = vmatpush1.msra.mxu0 %v5247
    %5962 = vmatprep.subr.mxu0 0.0
    %5963 = vmatpush1.msra.mxu0 %v5248
    %5964 = vmatprep.subr.mxu0 0.0
    %5965 = vmatpush1.msra.mxu0 %v5249
    %5966 = vmatprep.subr.mxu0 0.0
    %5967 = vmatpush1.msra.mxu0 %v5250
    %5968 = vmatprep.subr.mxu0 0.0
    %5969 = vmatpush1.msra.mxu0 %v5251
    %5970 = vmatprep.subr.mxu0 0.0
    %5971 = vmatpush1.msra.mxu0 %v5252
    %5972 = vmatprep.subr.mxu0 0.0
    %5973 = vmatpush1.msra.mxu0 %v5253
    %5974 = vmatprep.subr.mxu0 0.0
    %5975 = vmatpush1.msra.mxu0 %v5254
    %5976 = vmatprep.subr.mxu0 0.0
    %5977 = vmatpush1.msra.mxu0 0.0
    %5978 = vmatprep.subr.mxu0 0.0
    %5979 = vmatpush1.msra.mxu0 0.0
    %5980 = vmatprep.subr.mxu0 0.0
    %5981 = vmatpush1.msra.mxu0 0.0
    %5982 = vmatprep.subr.mxu0 0.0
    %5983 = vmatpush1.msra.mxu0 0.0
    %5984 = vmatprep.subr.mxu0 0.0
    %5985 = vmatpush1.msra.mxu0 0.0
    %5986 = vmatprep.subr.mxu0 0.0
    %5987 = vmatpush1.msra.mxu0 0.0
    %5988 = vmatprep.subr.mxu0 0.0
    %5989 = vmatpush1.msra.mxu0 0.0
    %5990 = vmatprep.subr.mxu0 0.0
    %5991 = vmatpush1.msra.mxu0 0.0
    %5992 = vmatprep.subr.mxu0 0.0
    %5993 = vmatpush1.msra.mxu0 0.0
    %5994 = vmatprep.subr.mxu0 0.0
    %5995 = vmatpush1.msra.mxu0 0.0
    %5996 = vmatprep.subr.mxu0 0.0
    %5997 = vmatpush1.msra.mxu0 0.0
    %5998 = vmatprep.subr.mxu0 0.0
    %5999 = vmatpush1.msra.mxu0 0.0
    %6000 = vmatprep.subr.mxu0 0.0
    %6001 = vmatpush1.msra.mxu0 0.0
    %6002 = vmatprep.subr.mxu0 0.0
    %6003 = vmatpush1.msra.mxu0 0.0
    %6004 = vmatprep.subr.mxu0 0.0
    %6005 = vmatpush1.msra.mxu0 0.0
    %6006 = vmatprep.subr.mxu0 0.0
    %6007 = vmatpush1.msra.mxu0 0.0
    %6008 = vmatprep.mubr.f32.mxu0 0.0
    %6009 = vmatmul.mubr.f32.gmra.mrb[0].mxu0 %v5598
    %v6010 = vpop.f32.mrb[0].mxu0
    %v6011 = vadd.f32 %v5255, %v6010
    %v6012 = vpop.f32.mrb[0].mxu0
    %6013 = vmatprep.mubr.f32.mxu0 0.0
    %6014 = vmatmul.mubr.f32.gmra.mrb[0].mxu0 %v5599
    %v6015 = vpop.f32.mrb[0].mxu0
    %v6016 = vadd.f32 %v5255, %v6015
    %v6017 = vpop.f32.mrb[0].mxu0
    %6018 = vmatprep.mubr.f32.mxu0 0.0
    %6019 = vmatmul.mubr.f32.gmra.mrb[0].mxu0 %v5942
    %v6020 = vpop.f32.mrb[0].mxu0
    %v6021 = vadd.f32 %v5255, %v6020
    %v6022 = vpop.f32.mrb[0].mxu0
    %6023 = vmatprep.mubr.f32.mxu0 0.0
    %6024 = vmatmul.mubr.f32.gmra.mrb[0].mxu0 %v5943
    %v6025 = vpop.f32.mrb[0].mxu0
    %v6026 = vadd.f32 %v5255, %v6025
    %v6027 = vpop.f32.mrb[0].mxu0
    %6028 = vdwg.mxu0
    %v6029 = vadd.f32 %v4999, %v6011
    %v6030 = vadd.f32 %v5000, %v6016
    %v6031 = vadd.f32 %v5001, %v6021
    %v6032 = vadd.f32 %v5002, %v6026
    %v6033 = vld [vmem:[#allocation8 + $0x4d] ss:$0 sm:$0xff]
    %v6034 = vld [vmem:[#allocation8 + $0x4e] ss:$0 sm:$0xff]
    %6035 = vadd.xlane.f32.xlu0 %v6029
    %v6036 = vpop.xlane.xlu0 %6035
    %6037 = vadd.xlane.f32.xlu0 %v6030
    %v6038 = vpop.xlane.xlu0 %6037
    %6039 = vadd.xlane.f32.xlu0 %v6031
    %v6040 = vpop.xlane.xlu0 %6039
    %6041 = vadd.xlane.f32.xlu0 %v6032
    %v6042 = vpop.xlane.xlu0 %6041
    %v6043 = vmul.f32 %v6036, %v1423
    %v6044 = vmul.f32 %v6038, %v1423
    %v6045 = vmul.f32 %v6040, %v1423
    %v6046 = vmul.f32 %v6042, %v1423
    %v6047 = vsub.f32 %v6029, %v6043
    %v6048 = vsub.f32 %v6030, %v6044
    %v6049 = vsub.f32 %v6031, %v6045
    %v6050 = vsub.f32 %v6032, %v6046
    %v6051 = vmul.f32 %v6047, %v6047
    %v6052 = vmul.f32 %v6048, %v6048
    %v6053 = vmul.f32 %v6049, %v6049
    %v6054 = vmul.f32 %v6050, %v6050
    %6055 = vadd.xlane.f32.xlu0 %v6051
    %v6056 = vpop.xlane.xlu0 %6055
    %6057 = vadd.xlane.f32.xlu0 %v6052
    %v6058 = vpop.xlane.xlu0 %6057
    %6059 = vadd.xlane.f32.xlu0 %v6053
    %v6060 = vpop.xlane.xlu0 %6059
    %6061 = vadd.xlane.f32.xlu0 %v6054
    %v6062 = vpop.xlane.xlu0 %6061
    %v6063 = vmul.f32 %v6056, %v1423
    %v6064 = vmul.f32 %v6058, %v1423
    %v6065 = vmul.f32 %v6060, %v1423
    %v6066 = vmul.f32 %v6062, %v1423
    %v6067 = vadd.f32 %v6063, 1e-05
    %v6068 = vadd.f32 %v6064, 1e-05
    %v6069 = vadd.f32 %v6065, 1e-05
    %v6070 = vadd.f32 %v6066, 1e-05
    %v6071 = vrsqrt.pop %v6067
    %v6072 = vrsqrt.pop %v6068
    %v6073 = vrsqrt.pop %v6069
    %v6074 = vrsqrt.pop %v6070
    %v6075 = vmul.f32 %v6047, %v6071
    %v6076 = vmul.f32 %v6048, %v6072
    %v6077 = vmul.f32 %v6049, %v6073
    %v6078 = vmul.f32 %v6050, %v6074
    %v6079 = vmul.f32 %v6075, %v6033
    %v6080 = vmul.f32 %v6076, %v6033
    %v6081 = vmul.f32 %v6077, %v6033
    %v6082 = vmul.f32 %v6078, %v6033
    %v6083 = vadd.f32 %v6079, %v6034
    %v6084 = vadd.f32 %v6080, %v6034
    %v6085 = vadd.f32 %v6081, %v6034
    %v6086 = vadd.f32 %v6082, %v6034
    %v6087 = vld [vmem:[#allocation7 + $0x2100] sm:$0xff]
    %v6088 = vld [vmem:[#allocation7 + $0x2118] sm:$0xff]
    %v6089 = vld [vmem:[#allocation7 + $0x2130] sm:$0xff]
    %v6090 = vld [vmem:[#allocation7 + $0x2148] sm:$0xff]
    %v6091 = vld [vmem:[#allocation7 + $0x2160] sm:$0xff]
    %v6092 = vld [vmem:[#allocation7 + $0x2178] sm:$0xff]
    %v6093 = vld [vmem:[#allocation7 + $0x2190] sm:$0xff]
    %v6094 = vld [vmem:[#allocation7 + $0x21a8] sm:$0xff]
    %v6095 = vld [vmem:[#allocation7 + $0x21c0] sm:$0xff]
    %v6096 = vld [vmem:[#allocation7 + $0x21d8] sm:$0xff]
    %v6097 = vld [vmem:[#allocation7 + $0x21f0] sm:$0xff]
    %v6098 = vld [vmem:[#allocation7 + $0x2208] sm:$0xff]
    %v6099 = vld [vmem:[#allocation7 + $0x2220] sm:$0xff]
    %v6100 = vld [vmem:[#allocation7 + $0x2238] sm:$0xff]
    %v6101 = vld [vmem:[#allocation7 + $0x2250] sm:$0xff]
    %v6102 = vld [vmem:[#allocation7 + $0x2268] sm:$0xff]
    %v6103 = vld [vmem:[#allocation8 + $0x4f] ss:$0 sm:$0xff]
    %6104 = vmatprep.subr.mxu0 0.0
    %6105 = vmatpush1.msra.mxu0 %v6087
    %6106 = vmatprep.subr.mxu0 0.0
    %6107 = vmatpush1.msra.mxu0 %v6088
    %6108 = vmatprep.subr.mxu0 0.0
    %6109 = vmatpush1.msra.mxu0 %v6089
    %6110 = vmatprep.subr.mxu0 0.0
    %6111 = vmatpush1.msra.mxu0 %v6090
    %6112 = vmatprep.subr.mxu0 0.0
    %6113 = vmatpush1.msra.mxu0 %v6091
    %6114 = vmatprep.subr.mxu0 0.0
    %6115 = vmatpush1.msra.mxu0 %v6092
    %6116 = vmatprep.subr.mxu0 0.0
    %6117 = vmatpush1.msra.mxu0 %v6093
    %6118 = vmatprep.subr.mxu0 0.0
    %6119 = vmatpush1.msra.mxu0 %v6094
    %6120 = vmatprep.subr.mxu0 0.0
    %6121 = vmatpush1.msra.mxu0 %v6095
    %6122 = vmatprep.subr.mxu0 0.0
    %6123 = vmatpush1.msra.mxu0 %v6096
    %6124 = vmatprep.subr.mxu0 0.0
    %6125 = vmatpush1.msra.mxu0 %v6097
    %6126 = vmatprep.subr.mxu0 0.0
    %6127 = vmatpush1.msra.mxu0 %v6098
    %6128 = vmatprep.subr.mxu0 0.0
    %6129 = vmatpush1.msra.mxu0 %v6099
    %6130 = vmatprep.subr.mxu0 0.0
    %6131 = vmatpush1.msra.mxu0 %v6100
    %6132 = vmatprep.subr.mxu0 0.0
    %6133 = vmatpush1.msra.mxu0 %v6101
    %6134 = vmatprep.subr.mxu0 0.0
    %6135 = vmatpush1.msra.mxu0 %v6102
    %6136 = vmatprep.subr.mxu0 0.0
    %6137 = vmatpush1.msra.mxu0 0.0
    %6138 = vmatprep.subr.mxu0 0.0
    %6139 = vmatpush1.msra.mxu0 0.0
    %6140 = vmatprep.subr.mxu0 0.0
    %6141 = vmatpush1.msra.mxu0 0.0
    %6142 = vmatprep.subr.mxu0 0.0
    %6143 = vmatpush1.msra.mxu0 0.0
    %6144 = vmatprep.subr.mxu0 0.0
    %6145 = vmatpush1.msra.mxu0 0.0
    %6146 = vmatprep.subr.mxu0 0.0
    %6147 = vmatpush1.msra.mxu0 0.0
    %6148 = vmatprep.subr.mxu0 0.0
    %6149 = vmatpush1.msra.mxu0 0.0
    %6150 = vmatprep.subr.mxu0 0.0
    %6151 = vmatpush1.msra.mxu0 0.0
    %6152 = vmatprep.subr.mxu0 0.0
    %6153 = vmatpush1.msra.mxu0 0.0
    %6154 = vmatprep.subr.mxu0 0.0
    %6155 = vmatpush1.msra.mxu0 0.0
    %6156 = vmatprep.subr.mxu0 0.0
    %6157 = vmatpush1.msra.mxu0 0.0
    %6158 = vmatprep.subr.mxu0 0.0
    %6159 = vmatpush1.msra.mxu0 0.0
    %6160 = vmatprep.subr.mxu0 0.0
    %6161 = vmatpush1.msra.mxu0 0.0
    %6162 = vmatprep.subr.mxu0 0.0
    %6163 = vmatpush1.msra.mxu0 0.0
    %6164 = vmatprep.subr.mxu0 0.0
    %6165 = vmatpush1.msra.mxu0 0.0
    %6166 = vmatprep.subr.mxu0 0.0
    %6167 = vmatpush1.msra.mxu0 0.0
    %6168 = vmatprep.mubr.f32.mxu0 0.0
    %6169 = vmatmul.mubr.f32.gmra.mrb[0].mxu0 %v6083
    %v6170 = vpop.f32.mrb[0].mxu0
    %v6171 = vadd.f32 %v6103, %v6170
    %v6172 = vpop.f32.mrb[0].mxu0
    %6173 = vmatprep.mubr.f32.mxu0 0.0
    %6174 = vmatmul.mubr.f32.gmra.mrb[0].mxu0 %v6084
    %v6175 = vpop.f32.mrb[0].mxu0
    %v6176 = vadd.f32 %v6103, %v6175
    %v6177 = vpop.f32.mrb[0].mxu0
    %6178 = vmatprep.mubr.f32.mxu0 0.0
    %6179 = vmatmul.mubr.f32.gmra.mrb[0].mxu0 %v6085
    %v6180 = vpop.f32.mrb[0].mxu0
    %v6181 = vadd.f32 %v6103, %v6180
    %v6182 = vpop.f32.mrb[0].mxu0
    %6183 = vmatprep.mubr.f32.mxu0 0.0
    %6184 = vmatmul.mubr.f32.gmra.mrb[0].mxu0 %v6086
    %v6185 = vpop.f32.mrb[0].mxu0
    %v6186 = vadd.f32 %v6103, %v6185
    %v6187 = vpop.f32.mrb[0].mxu0
    %6188 = vdwg.mxu0
    %v6189 = vmax.f32 %v6171, 0.0
    %v6190 = vmax.f32 %v6176, 0.0
    %v6191 = vmax.f32 %v6181, 0.0
    %v6192 = vmax.f32 %v6186, 0.0
    %v6193 = vld [vmem:[#allocation7 + $0x2280] sm:$0xff]
    %v6194 = vld [vmem:[#allocation7 + $0x2298] sm:$0xff]
    %v6195 = vld [vmem:[#allocation7 + $0x22b0] sm:$0xff]
    %v6196 = vld [vmem:[#allocation7 + $0x22c8] sm:$0xff]
    %v6197 = vld [vmem:[#allocation7 + $0x22e0] sm:$0xff]
    %v6198 = vld [vmem:[#allocation7 + $0x22f8] sm:$0xff]
    %v6199 = vld [vmem:[#allocation7 + $0x2310] sm:$0xff]
    %v6200 = vld [vmem:[#allocation7 + $0x2328] sm:$0xff]
    %v6201 = vld [vmem:[#allocation7 + $0x2340] sm:$0xff]
    %v6202 = vld [vmem:[#allocation7 + $0x2358] sm:$0xff]
    %v6203 = vld [vmem:[#allocation7 + $0x2370] sm:$0xff]
    %v6204 = vld [vmem:[#allocation7 + $0x2388] sm:$0xff]
    %v6205 = vld [vmem:[#allocation7 + $0x23a0] sm:$0xff]
    %v6206 = vld [vmem:[#allocation7 + $0x23b8] sm:$0xff]
    %v6207 = vld [vmem:[#allocation7 + $0x23d0] sm:$0xff]
    %v6208 = vld [vmem:[#allocation7 + $0x23e8] sm:$0xff]
    %v6209 = vld [vmem:[#allocation8 + $0x60] ss:$0 sm:$0xff]
    %6210 = vmatprep.subr.mxu0 0.0
    %6211 = vmatpush1.msra.mxu0 %v6193
    %6212 = vmatprep.subr.mxu0 0.0
    %6213 = vmatpush1.msra.mxu0 %v6194
    %6214 = vmatprep.subr.mxu0 0.0
    %6215 = vmatpush1.msra.mxu0 %v6195
    %6216 = vmatprep.subr.mxu0 0.0
    %6217 = vmatpush1.msra.mxu0 %v6196
    %6218 = vmatprep.subr.mxu0 0.0
    %6219 = vmatpush1.msra.mxu0 %v6197
    %6220 = vmatprep.subr.mxu0 0.0
    %6221 = vmatpush1.msra.mxu0 %v6198
    %6222 = vmatprep.subr.mxu0 0.0
    %6223 = vmatpush1.msra.mxu0 %v6199
    %6224 = vmatprep.subr.mxu0 0.0
    %6225 = vmatpush1.msra.mxu0 %v6200
    %6226 = vmatprep.subr.mxu0 0.0
    %6227 = vmatpush1.msra.mxu0 %v6201
    %6228 = vmatprep.subr.mxu0 0.0
    %6229 = vmatpush1.msra.mxu0 %v6202
    %6230 = vmatprep.subr.mxu0 0.0
    %6231 = vmatpush1.msra.mxu0 %v6203
    %6232 = vmatprep.subr.mxu0 0.0
    %6233 = vmatpush1.msra.mxu0 %v6204
    %6234 = vmatprep.subr.mxu0 0.0
    %6235 = vmatpush1.msra.mxu0 %v6205
    %6236 = vmatprep.subr.mxu0 0.0
    %6237 = vmatpush1.msra.mxu0 %v6206
    %6238 = vmatprep.subr.mxu0 0.0
    %6239 = vmatpush1.msra.mxu0 %v6207
    %6240 = vmatprep.subr.mxu0 0.0
    %6241 = vmatpush1.msra.mxu0 %v6208
    %6242 = vmatprep.subr.mxu0 0.0
    %6243 = vmatpush1.msra.mxu0 0.0
    %6244 = vmatprep.subr.mxu0 0.0
    %6245 = vmatpush1.msra.mxu0 0.0
    %6246 = vmatprep.subr.mxu0 0.0
    %6247 = vmatpush1.msra.mxu0 0.0
    %6248 = vmatprep.subr.mxu0 0.0
    %6249 = vmatpush1.msra.mxu0 0.0
    %6250 = vmatprep.subr.mxu0 0.0
    %6251 = vmatpush1.msra.mxu0 0.0
    %6252 = vmatprep.subr.mxu0 0.0
    %6253 = vmatpush1.msra.mxu0 0.0
    %6254 = vmatprep.subr.mxu0 0.0
    %6255 = vmatpush1.msra.mxu0 0.0
    %6256 = vmatprep.subr.mxu0 0.0
    %6257 = vmatpush1.msra.mxu0 0.0
    %6258 = vmatprep.subr.mxu0 0.0
    %6259 = vmatpush1.msra.mxu0 0.0
    %6260 = vmatprep.subr.mxu0 0.0
    %6261 = vmatpush1.msra.mxu0 0.0
    %6262 = vmatprep.subr.mxu0 0.0
    %6263 = vmatpush1.msra.mxu0 0.0
    %6264 = vmatprep.subr.mxu0 0.0
    %6265 = vmatpush1.msra.mxu0 0.0
    %6266 = vmatprep.subr.mxu0 0.0
    %6267 = vmatpush1.msra.mxu0 0.0
    %6268 = vmatprep.subr.mxu0 0.0
    %6269 = vmatpush1.msra.mxu0 0.0
    %6270 = vmatprep.subr.mxu0 0.0
    %6271 = vmatpush1.msra.mxu0 0.0
    %6272 = vmatprep.subr.mxu0 0.0
    %6273 = vmatpush1.msra.mxu0 0.0
    %6274 = vmatprep.mubr.f32.mxu0 0.0
    %6275 = vmatmul.mubr.f32.gmra.mrb[0].mxu0 %v6189
    %v6276 = vpop.f32.mrb[0].mxu0
    %v6277 = vadd.f32 %v6209, %v6276
    %v6278 = vpop.f32.mrb[0].mxu0
    %6279 = vmatprep.mubr.f32.mxu0 0.0
    %6280 = vmatmul.mubr.f32.gmra.mrb[0].mxu0 %v6190
    %v6281 = vpop.f32.mrb[0].mxu0
    %v6282 = vadd.f32 %v6209, %v6281
    %v6283 = vpop.f32.mrb[0].mxu0
    %6284 = vmatprep.mubr.f32.mxu0 0.0
    %6285 = vmatmul.mubr.f32.gmra.mrb[0].mxu0 %v6191
    %v6286 = vpop.f32.mrb[0].mxu0
    %v6287 = vadd.f32 %v6209, %v6286
    %v6288 = vpop.f32.mrb[0].mxu0
    %6289 = vmatprep.mubr.f32.mxu0 0.0
    %6290 = vmatmul.mubr.f32.gmra.mrb[0].mxu0 %v6192
    %v6291 = vpop.f32.mrb[0].mxu0
    %v6292 = vadd.f32 %v6209, %v6291
    %v6293 = vpop.f32.mrb[0].mxu0
    %6294 = vdwg.mxu0
    %v6295 = vadd.f32 %v6083, %v6277
    %v6296 = vadd.f32 %v6084, %v6282
    %v6297 = vadd.f32 %v6085, %v6287
    %v6298 = vadd.f32 %v6086, %v6292
    %v6299 = vld [vmem:[#allocation8 + $0x61] ss:$0 sm:$0xff]
    %v6300 = vld [vmem:[#allocation8 + $0x62] ss:$0 sm:$0xff]
    %6301 = vadd.xlane.f32.xlu0 %v6295
    %v6302 = vpop.xlane.xlu0 %6301
    %6303 = vadd.xlane.f32.xlu0 %v6296
    %v6304 = vpop.xlane.xlu0 %6303
    %6305 = vadd.xlane.f32.xlu0 %v6297
    %v6306 = vpop.xlane.xlu0 %6305
    %6307 = vadd.xlane.f32.xlu0 %v6298
    %v6308 = vpop.xlane.xlu0 %6307
    %v6309 = vmul.f32 %v6302, %v1423
    %v6310 = vmul.f32 %v6304, %v1423
    %v6311 = vmul.f32 %v6306, %v1423
    %v6312 = vmul.f32 %v6308, %v1423
    %v6313 = vsub.f32 %v6295, %v6309
    %v6314 = vsub.f32 %v6296, %v6310
    %v6315 = vsub.f32 %v6297, %v6311
    %v6316 = vsub.f32 %v6298, %v6312
    %v6317 = vmul.f32 %v6313, %v6313
    %v6318 = vmul.f32 %v6314, %v6314
    %v6319 = vmul.f32 %v6315, %v6315
    %v6320 = vmul.f32 %v6316, %v6316
    %6321 = vadd.xlane.f32.xlu0 %v6317
    %v6322 = vpop.xlane.xlu0 %6321
    %6323 = vadd.xlane.f32.xlu0 %v6318
    %v6324 = vpop.xlane.xlu0 %6323
    %6325 = vadd.xlane.f32.xlu0 %v6319
    %v6326 = vpop.xlane.xlu0 %6325
    %6327 = vadd.xlane.f32.xlu0 %v6320
    %v6328 = vpop.xlane.xlu0 %6327
    %v6329 = vmul.f32 %v6322, %v1423
    %v6330 = vmul.f32 %v6324, %v1423
    %v6331 = vmul.f32 %v6326, %v1423
    %v6332 = vmul.f32 %v6328, %v1423
    %v6333 = vadd.f32 %v6329, 1e-05
    %v6334 = vadd.f32 %v6330, 1e-05
    %v6335 = vadd.f32 %v6331, 1e-05
    %v6336 = vadd.f32 %v6332, 1e-05
    %v6337 = vrsqrt.pop %v6333
    %v6338 = vrsqrt.pop %v6334
    %v6339 = vrsqrt.pop %v6335
    %v6340 = vrsqrt.pop %v6336
    %v6341 = vmul.f32 %v6313, %v6337
    %v6342 = vmul.f32 %v6314, %v6338
    %v6343 = vmul.f32 %v6315, %v6339
    %v6344 = vmul.f32 %v6316, %v6340
    %v6345 = vmul.f32 %v6341, %v6299
    %v6346 = vmul.f32 %v6342, %v6299
    %v6347 = vmul.f32 %v6343, %v6299
    %v6348 = vmul.f32 %v6344, %v6299
    %v6349 = vadd.f32 %v6345, %v6300
    %v6350 = vadd.f32 %v6346, %v6300
    %v6351 = vadd.f32 %v6347, %v6300
    %v6352 = vadd.f32 %v6348, %v6300
    %6353 = vadd.xlane.f32.xlu0 %v6349
    %v6354 = vpop.xlane.xlu0 %6353
    %6355 = vadd.xlane.f32.xlu0 %v6350
    %v6356 = vpop.xlane.xlu0 %6355
    %6357 = vadd.xlane.f32.xlu0 %v6351
    %v6358 = vpop.xlane.xlu0 %6357
    %6359 = vadd.xlane.f32.xlu0 %v6352
    %v6360 = vpop.xlane.xlu0 %6359
    %v6361 = vmul.f32 %v6354, %v1423
    %v6362 = vmul.f32 %v6356, %v1423
    %v6363 = vmul.f32 %v6358, %v1423
    %v6364 = vmul.f32 %v6360, %v1423
    %v6365 = vsub.f32 %v6349, %v6361
    %v6366 = vsub.f32 %v6350, %v6362
    %v6367 = vsub.f32 %v6351, %v6363
    %v6368 = vsub.f32 %v6352, %v6364
    %v6369 = vmul.f32 %v6365, %v6365
    %v6370 = vmul.f32 %v6366, %v6366
    %v6371 = vmul.f32 %v6367, %v6367
    %v6372 = vmul.f32 %v6368, %v6368
    %6373 = vadd.xlane.f32.xlu0 %v6369
    %v6374 = vpop.xlane.xlu0 %6373
    %6375 = vadd.xlane.f32.xlu0 %v6370
    %v6376 = vpop.xlane.xlu0 %6375
    %6377 = vadd.xlane.f32.xlu0 %v6371
    %v6378 = vpop.xlane.xlu0 %6377
    %6379 = vadd.xlane.f32.xlu0 %v6372
    %v6380 = vpop.xlane.xlu0 %6379
    %v6381 = vmul.f32 %v6374, %v1423
    %v6382 = vmul.f32 %v6376, %v1423
    %v6383 = vmul.f32 %v6378, %v1423
    %v6384 = vmul.f32 %v6380, %v1423
    %v6385 = vadd.f32 %v6381, 1e-05
    %v6386 = vadd.f32 %v6382, 1e-05
    %v6387 = vadd.f32 %v6383, 1e-05
    %v6388 = vadd.f32 %v6384, 1e-05
    %v6389 = vrsqrt.pop %v6385
    %v6390 = vrsqrt.pop %v6386
    %v6391 = vrsqrt.pop %v6387
    %v6392 = vrsqrt.pop %v6388
    %v6393 = vmul.f32 %v6365, %v6389
    %v6394 = vmul.f32 %v6366, %v6390
    %v6395 = vmul.f32 %v6367, %v6391
    %v6396 = vmul.f32 %v6368, %v6392
    %v6397 = vmul.f32 %v6393, %v1413
    %v6398 = vmul.f32 %v6394, %v1413
    %v6399 = vmul.f32 %v6395, %v1413
    %v6400 = vmul.f32 %v6396, %v1413
    %v6401 = vadd.f32 %v6397, %v1414
    %v6402 = vadd.f32 %v6398, %v1414
    %v6403 = vadd.f32 %v6399, %v1414
    %v6404 = vadd.f32 %v6400, %v1414
    %v6405 = vmax.f32 %v6401, 0.0
    %v6406 = vmax.f32 %v6402, 0.0
    %v6407 = vmax.f32 %v6403, 0.0
    %v6408 = vmax.f32 %v6404, 0.0
    %vm6409 = vcmp.lt.s32.totalorder %v74, 12
    %vm6410 = vcmp.lt.s32.totalorder %v75, 12
    %v6411 = vsel %vm6409, 1, 0
    %v6412 = vsel %vm6410, 1, 0
    %v6413 = vcvt.s32.f32 %v6411
    %v6414 = vcvt.s32.f32 %v6412
    %6416 = vset.pattern.permute.xlu0 0
    %6417 = vperm.xlu0 %6416, %v6413
    %v6418 = vpop.permute.xlu0 %6417
    %6421 = vset.pattern.permute.xlu0 0
    %6422 = vperm.xlu0 %6421, %v6414
    %v6423 = vpop.permute.xlu0 %6422
    %v6425 = vmul.f32 %v6405, %v6418
    %v6426 = vmul.f32 %v6406, %v6423
    %v6427 = vmul.f32 %v6407, %v6418
    %v6428 = vmul.f32 %v6408, %v6423
    %v6429 = vld [vmem:[#allocation7 + $0x6c0] sm:$0xff]
    %v6430 = vld [vmem:[#allocation7 + $0x6d8] sm:$0xff]
    %v6431 = vld [vmem:[#allocation7 + $0x6f0] sm:$0xff]
    %v6432 = vld [vmem:[#allocation7 + $0x708] sm:$0xff]
    %v6433 = vld [vmem:[#allocation7 + $0x720] sm:$0xff]
    %v6434 = vld [vmem:[#allocation7 + $0x738] sm:$0xff]
    %v6435 = vld [vmem:[#allocation7 + $0x750] sm:$0xff]
    %v6436 = vld [vmem:[#allocation7 + $0x768] sm:$0xff]
    %v6437 = vld [vmem:[#allocation7 + $0x780] sm:$0xff]
    %v6438 = vld [vmem:[#allocation7 + $0x798] sm:$0xff]
    %v6439 = vld [vmem:[#allocation7 + $0x7b0] sm:$0xff]
    %v6440 = vld [vmem:[#allocation7 + $0x7c8] sm:$0xff]
    %v6441 = vld [vmem:[#allocation7 + $0x7e0] sm:$0xff]
    %v6442 = vld [vmem:[#allocation7 + $0x7f8] sm:$0xff]
    %v6443 = vld [vmem:[#allocation7 + $0x810] sm:$0xff]
    %v6444 = vld [vmem:[#allocation7 + $0x828] sm:$0xff]
    %v6445 = vld [vmem:[#allocation7 + $0x840] sm:$0xff]
    %v6446 = vld [vmem:[#allocation7 + $0x858] sm:$0xff]
    %v6447 = vld [vmem:[#allocation7 + $0x870] sm:$0xff]
    %v6448 = vld [vmem:[#allocation7 + $0x888] sm:$0xff]
    %v6449 = vld [vmem:[#allocation7 + $0x8a0] sm:$0xff]
    %v6450 = vld [vmem:[#allocation7 + $0x8b8] sm:$0xff]
    %v6451 = vld [vmem:[#allocation7 + $0x8d0] sm:$0xff]
    %v6452 = vld [vmem:[#allocation7 + $0x8e8] sm:$0xff]
    %v6453 = vld [vmem:[#allocation7 + $0x900] sm:$0xff]
    %v6454 = vld [vmem:[#allocation7 + $0x918] sm:$0xff]
    %v6455 = vld [vmem:[#allocation7 + $0x930] sm:$0xff]
    %v6456 = vld [vmem:[#allocation7 + $0x948] sm:$0xff]
    %v6457 = vld [vmem:[#allocation7 + $0x960] sm:$0xff]
    %v6458 = vld [vmem:[#allocation7 + $0x978] sm:$0xff]
    %v6459 = vld [vmem:[#allocation7 + $0x990] sm:$0xff]
    %v6460 = vld [vmem:[#allocation7 + $0x9a8] sm:$0xff]
    %v6461 = vld [vmem:[#allocation7 + $0x9c0] sm:$0xff]
    %v6462 = vld [vmem:[#allocation7 + $0x9d8] sm:$0xff]
    %v6463 = vld [vmem:[#allocation7 + $0x9f0] sm:$0xff]
    %v6464 = vld [vmem:[#allocation7 + $0xa08] sm:$0xff]
    %v6465 = vld [vmem:[#allocation7 + $0xa20] sm:$0xff]
    %v6466 = vld [vmem:[#allocation7 + $0xa38] sm:$0xff]
    %v6467 = vld [vmem:[#allocation7 + $0xa50] sm:$0xff]
    %v6468 = vld [vmem:[#allocation7 + $0xa68] sm:$0xff]
    %v6469 = vld [vmem:[#allocation7 + $0xa80] sm:$0xff]
    %v6470 = vld [vmem:[#allocation7 + $0xa98] sm:$0xff]
    %v6471 = vld [vmem:[#allocation7 + $0xab0] sm:$0xff]
    %v6472 = vld [vmem:[#allocation7 + $0xac8] sm:$0xff]
    %v6473 = vld [vmem:[#allocation7 + $0xae0] sm:$0xff]
    %v6474 = vld [vmem:[#allocation7 + $0xaf8] sm:$0xff]
    %v6475 = vld [vmem:[#allocation7 + $0xb10] sm:$0xff]
    %v6476 = vld [vmem:[#allocation7 + $0xb28] sm:$0xff]
    %v6477 = vld [vmem:[#allocation8 + $0x6] ss:$0 sm:$0xff]
    %6478 = vmatprep.subr.mxu0 0.0
    %6479 = vmatpush1.msra.mxu0 %v6445
    %6480 = vmatprep.subr.mxu0 0.0
    %6481 = vmatpush1.msra.mxu0 %v6446
    %6482 = vmatprep.subr.mxu0 0.0
    %6483 = vmatpush1.msra.mxu0 %v6447
    %6484 = vmatprep.subr.mxu0 0.0
    %6485 = vmatpush1.msra.mxu0 %v6448
    %6486 = vmatprep.subr.mxu0 0.0
    %6487 = vmatpush1.msra.mxu0 %v6449
    %6488 = vmatprep.subr.mxu0 0.0
    %6489 = vmatpush1.msra.mxu0 %v6450
    %6490 = vmatprep.subr.mxu0 0.0
    %6491 = vmatpush1.msra.mxu0 %v6451
    %6492 = vmatprep.subr.mxu0 0.0
    %6493 = vmatpush1.msra.mxu0 %v6452
    %6494 = vmatprep.subr.mxu0 0.0
    %6495 = vmatpush1.msra.mxu0 %v6453
    %6496 = vmatprep.subr.mxu0 0.0
    %6497 = vmatpush1.msra.mxu0 %v6454
    %6498 = vmatprep.subr.mxu0 0.0
    %6499 = vmatpush1.msra.mxu0 %v6455
    %6500 = vmatprep.subr.mxu0 0.0
    %6501 = vmatpush1.msra.mxu0 %v6456
    %6502 = vmatprep.subr.mxu0 0.0
    %6503 = vmatpush1.msra.mxu0 %v6457
    %6504 = vmatprep.subr.mxu0 0.0
    %6505 = vmatpush1.msra.mxu0 %v6458
    %6506 = vmatprep.subr.mxu0 0.0
    %6507 = vmatpush1.msra.mxu0 %v6459
    %6508 = vmatprep.subr.mxu0 0.0
    %6509 = vmatpush1.msra.mxu0 %v6460
    %6510 = vmatprep.subr.mxu0 0.0
    %6511 = vmatpush1.msra.mxu0 0.0
    %6512 = vmatprep.subr.mxu0 0.0
    %6513 = vmatpush1.msra.mxu0 0.0
    %6514 = vmatprep.subr.mxu0 0.0
    %6515 = vmatpush1.msra.mxu0 0.0
    %6516 = vmatprep.subr.mxu0 0.0
    %6517 = vmatpush1.msra.mxu0 0.0
    %6518 = vmatprep.subr.mxu0 0.0
    %6519 = vmatpush1.msra.mxu0 0.0
    %6520 = vmatprep.subr.mxu0 0.0
    %6521 = vmatpush1.msra.mxu0 0.0
    %6522 = vmatprep.subr.mxu0 0.0
    %6523 = vmatpush1.msra.mxu0 0.0
    %6524 = vmatprep.subr.mxu0 0.0
    %6525 = vmatpush1.msra.mxu0 0.0
    %6526 = vmatprep.subr.mxu0 0.0
    %6527 = vmatpush1.msra.mxu0 0.0
    %6528 = vmatprep.subr.mxu0 0.0
    %6529 = vmatpush1.msra.mxu0 0.0
    %6530 = vmatprep.subr.mxu0 0.0
    %6531 = vmatpush1.msra.mxu0 0.0
    %6532 = vmatprep.subr.mxu0 0.0
    %6533 = vmatpush1.msra.mxu0 0.0
    %6534 = vmatprep.subr.mxu0 0.0
    %6535 = vmatpush1.msra.mxu0 0.0
    %6536 = vmatprep.subr.mxu0 0.0
    %6537 = vmatpush1.msra.mxu0 0.0
    %6538 = vmatprep.subr.mxu0 0.0
    %6539 = vmatpush1.msra.mxu0 0.0
    %6540 = vmatprep.subr.mxu0 0.0
    %6541 = vmatpush1.msra.mxu0 0.0
    %6542 = vmatprep.mubr.f32.mxu0 0.0
    %6543 = vmatmul.mubr.f32.gmra.mrb[0].mxu0 %v6425
    %v6544 = vpop.f32.mrb[0].mxu0
    %v6545 = vadd.f32 0.0, %v6544
    %v6546 = vpop.f32.mrb[0].mxu0
    %6547 = vmatprep.mubr.f32.mxu0 0.0
    %6548 = vmatmul.mubr.f32.gmra.mrb[0].mxu0 %v6426
    %v6549 = vpop.f32.mrb[0].mxu0
    %v6550 = vadd.f32 0.0, %v6549
    %v6551 = vpop.f32.mrb[0].mxu0
    %6552 = vmatprep.mubr.f32.mxu0 0.0
    %6553 = vmatmul.mubr.f32.gmra.mrb[0].mxu0 %v6427
    %v6554 = vpop.f32.mrb[0].mxu0
    %v6555 = vadd.f32 0.0, %v6554
    %v6556 = vpop.f32.mrb[0].mxu0
    %6557 = vmatprep.mubr.f32.mxu0 0.0
    %6558 = vmatmul.mubr.f32.gmra.mrb[0].mxu0 %v6428
    %v6559 = vpop.f32.mrb[0].mxu0
    %v6560 = vadd.f32 0.0, %v6559
    %v6561 = vpop.f32.mrb[0].mxu0
    %6562 = vdwg.mxu0
    %v6564 = vsel %vm502, %v184, 0
    %v6567 = vsel %vm502, %v185, 0
    %v6570 = vsel %vm502, %v186, 0
    %v6573 = vsel %vm502, %v187, 0
    %6575 = vmatprep.subr.mxu0 0.0
    %6576 = vmatpush1.msra.mxu0 %v6545
    %6577 = vmatprep.subr.mxu0 0.0
    %6578 = vmatpush1.msra.mxu0 %v6550
    %6579 = vmatprep.subr.mxu0 0.0
    %6580 = vmatpush1.msra.mxu0 %v6555
    %6581 = vmatprep.subr.mxu0 0.0
    %6582 = vmatpush1.msra.mxu0 %v6560
    %6583 = vmatprep.subr.mxu0 0.0
    %6584 = vmatpush1.msra.mxu0 0.0
    %6585 = vmatprep.subr.mxu0 0.0
    %6586 = vmatpush1.msra.mxu0 0.0
    %6587 = vmatprep.subr.mxu0 0.0
    %6588 = vmatpush1.msra.mxu0 0.0
    %6589 = vmatprep.subr.mxu0 0.0
    %6590 = vmatpush1.msra.mxu0 0.0
    %6591 = vmatprep.subr.mxu0 0.0
    %6592 = vmatpush1.msra.mxu0 0.0
    %6593 = vmatprep.subr.mxu0 0.0
    %6594 = vmatpush1.msra.mxu0 0.0
    %6595 = vmatprep.subr.mxu0 0.0
    %6596 = vmatpush1.msra.mxu0 0.0
    %6597 = vmatprep.subr.mxu0 0.0
    %6598 = vmatpush1.msra.mxu0 0.0
    %6599 = vmatprep.subr.mxu0 0.0
    %6600 = vmatpush1.msra.mxu0 0.0
    %6601 = vmatprep.subr.mxu0 0.0
    %6602 = vmatpush1.msra.mxu0 0.0
    %6603 = vmatprep.subr.mxu0 0.0
    %6604 = vmatpush1.msra.mxu0 0.0
    %6605 = vmatprep.subr.mxu0 0.0
    %6606 = vmatpush1.msra.mxu0 0.0
    %6607 = vmatprep.subr.mxu0 0.0
    %6608 = vmatpush1.msra.mxu0 0.0
    %6609 = vmatprep.subr.mxu0 0.0
    %6610 = vmatpush1.msra.mxu0 0.0
    %6611 = vmatprep.subr.mxu0 0.0
    %6612 = vmatpush1.msra.mxu0 0.0
    %6613 = vmatprep.subr.mxu0 0.0
    %6614 = vmatpush1.msra.mxu0 0.0
    %6615 = vmatprep.subr.mxu0 0.0
    %6616 = vmatpush1.msra.mxu0 0.0
    %6617 = vmatprep.subr.mxu0 0.0
    %6618 = vmatpush1.msra.mxu0 0.0
    %6619 = vmatprep.subr.mxu0 0.0
    %6620 = vmatpush1.msra.mxu0 0.0
    %6621 = vmatprep.subr.mxu0 0.0
    %6622 = vmatpush1.msra.mxu0 0.0
    %6623 = vmatprep.subr.mxu0 0.0
    %6624 = vmatpush1.msra.mxu0 0.0
    %6625 = vmatprep.subr.mxu0 0.0
    %6626 = vmatpush1.msra.mxu0 0.0
    %6627 = vmatprep.subr.mxu0 0.0
    %6628 = vmatpush1.msra.mxu0 0.0
    %6629 = vmatprep.subr.mxu0 0.0
    %6630 = vmatpush1.msra.mxu0 0.0
    %6631 = vmatprep.subr.mxu0 0.0
    %6632 = vmatpush1.msra.mxu0 0.0
    %6633 = vmatprep.subr.mxu0 0.0
    %6634 = vmatpush1.msra.mxu0 0.0
    %6635 = vmatprep.subr.mxu0 0.0
    %6636 = vmatpush1.msra.mxu0 0.0
    %6637 = vmatprep.subr.mxu0 0.0
    %6638 = vmatpush1.msra.mxu0 0.0
    %6639 = vmatprep.mubr.f32.mxu0 0.0
    %6640 = vmatmul.mubr.f32.gmra.mrb[0].mxu0 %v6564
    %v6641 = vpop.f32.mrb[0].mxu0
    %v6642 = vadd.f32 0.0, %v6641
    %v6643 = vpop.f32.mrb[0].mxu0
    %6644 = vmatprep.mubr.f32.mxu0 0.0
    %6645 = vmatmul.mubr.f32.gmra.mrb[0].mxu0 %v6567
    %v6646 = vpop.f32.mrb[0].mxu0
    %v6647 = vadd.f32 0.0, %v6646
    %v6648 = vpop.f32.mrb[0].mxu0
    %6649 = vmatprep.mubr.f32.mxu0 0.0
    %6650 = vmatmul.mubr.f32.gmra.mrb[0].mxu0 %v6570
    %v6651 = vpop.f32.mrb[0].mxu0
    %v6652 = vadd.f32 0.0, %v6651
    %v6653 = vpop.f32.mrb[0].mxu0
    %6654 = vmatprep.mubr.f32.mxu0 0.0
    %6655 = vmatmul.mubr.f32.gmra.mrb[0].mxu0 %v6573
    %v6656 = vpop.f32.mrb[0].mxu0
    %v6657 = vadd.f32 0.0, %v6656
    %v6658 = vpop.f32.mrb[0].mxu0
    %6659 = vdwg.mxu0
    %6660 = vmatprep.subr.mxu0 0.0
    %6661 = vmatpush1.msra.mxu0 %v6429
    %6662 = vmatprep.subr.mxu0 0.0
    %6663 = vmatpush1.msra.mxu0 %v6430
    %6664 = vmatprep.subr.mxu0 0.0
    %6665 = vmatpush1.msra.mxu0 %v6431
    %6666 = vmatprep.subr.mxu0 0.0
    %6667 = vmatpush1.msra.mxu0 %v6432
    %6668 = vmatprep.subr.mxu0 0.0
    %6669 = vmatpush1.msra.mxu0 %v6433
    %6670 = vmatprep.subr.mxu0 0.0
    %6671 = vmatpush1.msra.mxu0 %v6434
    %6672 = vmatprep.subr.mxu0 0.0
    %6673 = vmatpush1.msra.mxu0 %v6435
    %6674 = vmatprep.subr.mxu0 0.0
    %6675 = vmatpush1.msra.mxu0 %v6436
    %6676 = vmatprep.subr.mxu0 0.0
    %6677 = vmatpush1.msra.mxu0 %v6437
    %6678 = vmatprep.subr.mxu0 0.0
    %6679 = vmatpush1.msra.mxu0 %v6438
    %6680 = vmatprep.subr.mxu0 0.0
    %6681 = vmatpush1.msra.mxu0 %v6439
    %6682 = vmatprep.subr.mxu0 0.0
    %6683 = vmatpush1.msra.mxu0 %v6440
    %6684 = vmatprep.subr.mxu0 0.0
    %6685 = vmatpush1.msra.mxu0 %v6441
    %6686 = vmatprep.subr.mxu0 0.0
    %6687 = vmatpush1.msra.mxu0 %v6442
    %6688 = vmatprep.subr.mxu0 0.0
    %6689 = vmatpush1.msra.mxu0 %v6443
    %6690 = vmatprep.subr.mxu0 0.0
    %6691 = vmatpush1.msra.mxu0 %v6444
    %6692 = vmatprep.subr.mxu0 0.0
    %6693 = vmatpush1.msra.mxu0 0.0
    %6694 = vmatprep.subr.mxu0 0.0
    %6695 = vmatpush1.msra.mxu0 0.0
    %6696 = vmatprep.subr.mxu0 0.0
    %6697 = vmatpush1.msra.mxu0 0.0
    %6698 = vmatprep.subr.mxu0 0.0
    %6699 = vmatpush1.msra.mxu0 0.0
    %6700 = vmatprep.subr.mxu0 0.0
    %6701 = vmatpush1.msra.mxu0 0.0
    %6702 = vmatprep.subr.mxu0 0.0
    %6703 = vmatpush1.msra.mxu0 0.0
    %6704 = vmatprep.subr.mxu0 0.0
    %6705 = vmatpush1.msra.mxu0 0.0
    %6706 = vmatprep.subr.mxu0 0.0
    %6707 = vmatpush1.msra.mxu0 0.0
    %6708 = vmatprep.subr.mxu0 0.0
    %6709 = vmatpush1.msra.mxu0 0.0
    %6710 = vmatprep.subr.mxu0 0.0
    %6711 = vmatpush1.msra.mxu0 0.0
    %6712 = vmatprep.subr.mxu0 0.0
    %6713 = vmatpush1.msra.mxu0 0.0
    %6714 = vmatprep.subr.mxu0 0.0
    %6715 = vmatpush1.msra.mxu0 0.0
    %6716 = vmatprep.subr.mxu0 0.0
    %6717 = vmatpush1.msra.mxu0 0.0
    %6718 = vmatprep.subr.mxu0 0.0
    %6719 = vmatpush1.msra.mxu0 0.0
    %6720 = vmatprep.subr.mxu0 0.0
    %6721 = vmatpush1.msra.mxu0 0.0
    %6722 = vmatprep.subr.mxu0 0.0
    %6723 = vmatpush1.msra.mxu0 0.0
    %6724 = vmatprep.mubr.f32.mxu0 0.0
    %6725 = vmatmul.mubr.f32.gmra.mrb[0].mxu0 %v6425
    %v6726 = vpop.f32.mrb[0].mxu0
    %v6727 = vadd.f32 %v6642, %v6726
    %v6728 = vpop.f32.mrb[0].mxu0
    %6729 = vmatprep.mubr.f32.mxu0 0.0
    %6730 = vmatmul.mubr.f32.gmra.mrb[0].mxu0 %v6426
    %v6731 = vpop.f32.mrb[0].mxu0
    %v6732 = vadd.f32 %v6647, %v6731
    %v6733 = vpop.f32.mrb[0].mxu0
    %6734 = vmatprep.mubr.f32.mxu0 0.0
    %6735 = vmatmul.mubr.f32.gmra.mrb[0].mxu0 %v6427
    %v6736 = vpop.f32.mrb[0].mxu0
    %v6737 = vadd.f32 %v6652, %v6736
    %v6738 = vpop.f32.mrb[0].mxu0
    %6739 = vmatprep.mubr.f32.mxu0 0.0
    %6740 = vmatmul.mubr.f32.gmra.mrb[0].mxu0 %v6428
    %v6741 = vpop.f32.mrb[0].mxu0
    %v6742 = vadd.f32 %v6657, %v6741
    %v6743 = vpop.f32.mrb[0].mxu0
    %6744 = vdwg.mxu0
    %6745 = vmatprep.subr.mxu0 0.0
    %6746 = vmatpush1.msra.mxu0 %v6461
    %6747 = vmatprep.subr.mxu0 0.0
    %6748 = vmatpush1.msra.mxu0 %v6462
    %6749 = vmatprep.subr.mxu0 0.0
    %6750 = vmatpush1.msra.mxu0 %v6463
    %6751 = vmatprep.subr.mxu0 0.0
    %6752 = vmatpush1.msra.mxu0 %v6464
    %6753 = vmatprep.subr.mxu0 0.0
    %6754 = vmatpush1.msra.mxu0 %v6465
    %6755 = vmatprep.subr.mxu0 0.0
    %6756 = vmatpush1.msra.mxu0 %v6466
    %6757 = vmatprep.subr.mxu0 0.0
    %6758 = vmatpush1.msra.mxu0 %v6467
    %6759 = vmatprep.subr.mxu0 0.0
    %6760 = vmatpush1.msra.mxu0 %v6468
    %6761 = vmatprep.subr.mxu0 0.0
    %6762 = vmatpush1.msra.mxu0 %v6469
    %6763 = vmatprep.subr.mxu0 0.0
    %6764 = vmatpush1.msra.mxu0 %v6470
    %6765 = vmatprep.subr.mxu0 0.0
    %6766 = vmatpush1.msra.mxu0 %v6471
    %6767 = vmatprep.subr.mxu0 0.0
    %6768 = vmatpush1.msra.mxu0 %v6472
    %6769 = vmatprep.subr.mxu0 0.0
    %6770 = vmatpush1.msra.mxu0 %v6473
    %6771 = vmatprep.subr.mxu0 0.0
    %6772 = vmatpush1.msra.mxu0 %v6474
    %6773 = vmatprep.subr.mxu0 0.0
    %6774 = vmatpush1.msra.mxu0 %v6475
    %6775 = vmatprep.subr.mxu0 0.0
    %6776 = vmatpush1.msra.mxu0 %v6476
    %6777 = vmatprep.subr.mxu0 0.0
    %6778 = vmatpush1.msra.mxu0 0.0
    %6779 = vmatprep.subr.mxu0 0.0
    %6780 = vmatpush1.msra.mxu0 0.0
    %6781 = vmatprep.subr.mxu0 0.0
    %6782 = vmatpush1.msra.mxu0 0.0
    %6783 = vmatprep.subr.mxu0 0.0
    %6784 = vmatpush1.msra.mxu0 0.0
    %6785 = vmatprep.subr.mxu0 0.0
    %6786 = vmatpush1.msra.mxu0 0.0
    %6787 = vmatprep.subr.mxu0 0.0
    %6788 = vmatpush1.msra.mxu0 0.0
    %6789 = vmatprep.subr.mxu0 0.0
    %6790 = vmatpush1.msra.mxu0 0.0
    %6791 = vmatprep.subr.mxu0 0.0
    %6792 = vmatpush1.msra.mxu0 0.0
    %6793 = vmatprep.subr.mxu0 0.0
    %6794 = vmatpush1.msra.mxu0 0.0
    %6795 = vmatprep.subr.mxu0 0.0
    %6796 = vmatpush1.msra.mxu0 0.0
    %6797 = vmatprep.subr.mxu0 0.0
    %6798 = vmatpush1.msra.mxu0 0.0
    %6799 = vmatprep.subr.mxu0 0.0
    %6800 = vmatpush1.msra.mxu0 0.0
    %6801 = vmatprep.subr.mxu0 0.0
    %6802 = vmatpush1.msra.mxu0 0.0
    %6803 = vmatprep.subr.mxu0 0.0
    %6804 = vmatpush1.msra.mxu0 0.0
    %6805 = vmatprep.subr.mxu0 0.0
    %6806 = vmatpush1.msra.mxu0 0.0
    %6807 = vmatprep.subr.mxu0 0.0
    %6808 = vmatpush1.msra.mxu0 0.0
    %6809 = vmatprep.mubr.f32.mxu0 0.0
    %6810 = vmatmul.mubr.f32.gmra.mrb[0].mxu0 %v6425
    %v6811 = vpop.f32.mrb[0].mxu0
    %v6812 = vadd.f32 0.0, %v6811
    %v6813 = vpop.f32.mrb[0].mxu0
    %6814 = vmatprep.mubr.f32.mxu0 0.0
    %6815 = vmatmul.mubr.f32.gmra.mrb[0].mxu0 %v6426
    %v6816 = vpop.f32.mrb[0].mxu0
    %v6817 = vadd.f32 0.0, %v6816
    %v6818 = vpop.f32.mrb[0].mxu0
    %6819 = vmatprep.mubr.f32.mxu0 0.0
    %6820 = vmatmul.mubr.f32.gmra.mrb[0].mxu0 %v6427
    %v6821 = vpop.f32.mrb[0].mxu0
    %v6822 = vadd.f32 0.0, %v6821
    %v6823 = vpop.f32.mrb[0].mxu0
    %6824 = vmatprep.mubr.f32.mxu0 0.0
    %6825 = vmatmul.mubr.f32.gmra.mrb[0].mxu0 %v6428
    %v6826 = vpop.f32.mrb[0].mxu0
    %v6827 = vadd.f32 0.0, %v6826
    %v6828 = vpop.f32.mrb[0].mxu0
    %6829 = vdwg.mxu0
    %v6831 = vsel %vm502, %v220, 0
    %v6834 = vsel %vm502, %v221, 0
    %v6837 = vsel %vm502, %v222, 0
    %v6840 = vsel %vm502, %v223, 0
    %6842 = vmatprep.subr.mxu0 0.0
    %6843 = vmatpush1.msra.mxu0 %v6812
    %6844 = vmatprep.subr.mxu0 0.0
    %6845 = vmatpush1.msra.mxu0 %v6817
    %6846 = vmatprep.subr.mxu0 0.0
    %6847 = vmatpush1.msra.mxu0 %v6822
    %6848 = vmatprep.subr.mxu0 0.0
    %6849 = vmatpush1.msra.mxu0 %v6827
    %6850 = vmatprep.subr.mxu0 0.0
    %6851 = vmatpush1.msra.mxu0 0.0
    %6852 = vmatprep.subr.mxu0 0.0
    %6853 = vmatpush1.msra.mxu0 0.0
    %6854 = vmatprep.subr.mxu0 0.0
    %6855 = vmatpush1.msra.mxu0 0.0
    %6856 = vmatprep.subr.mxu0 0.0
    %6857 = vmatpush1.msra.mxu0 0.0
    %6858 = vmatprep.subr.mxu0 0.0
    %6859 = vmatpush1.msra.mxu0 0.0
    %6860 = vmatprep.subr.mxu0 0.0
    %6861 = vmatpush1.msra.mxu0 0.0
    %6862 = vmatprep.subr.mxu0 0.0
    %6863 = vmatpush1.msra.mxu0 0.0
    %6864 = vmatprep.subr.mxu0 0.0
    %6865 = vmatpush1.msra.mxu0 0.0
    %6866 = vmatprep.subr.mxu0 0.0
    %6867 = vmatpush1.msra.mxu0 0.0
    %6868 = vmatprep.subr.mxu0 0.0
    %6869 = vmatpush1.msra.mxu0 0.0
    %6870 = vmatprep.subr.mxu0 0.0
    %6871 = vmatpush1.msra.mxu0 0.0
    %6872 = vmatprep.subr.mxu0 0.0
    %6873 = vmatpush1.msra.mxu0 0.0
    %6874 = vmatprep.subr.mxu0 0.0
    %6875 = vmatpush1.msra.mxu0 0.0
    %6876 = vmatprep.subr.mxu0 0.0
    %6877 = vmatpush1.msra.mxu0 0.0
    %6878 = vmatprep.subr.mxu0 0.0
    %6879 = vmatpush1.msra.mxu0 0.0
    %6880 = vmatprep.subr.mxu0 0.0
    %6881 = vmatpush1.msra.mxu0 0.0
    %6882 = vmatprep.subr.mxu0 0.0
    %6883 = vmatpush1.msra.mxu0 0.0
    %6884 = vmatprep.subr.mxu0 0.0
    %6885 = vmatpush1.msra.mxu0 0.0
    %6886 = vmatprep.subr.mxu0 0.0
    %6887 = vmatpush1.msra.mxu0 0.0
    %6888 = vmatprep.subr.mxu0 0.0
    %6889 = vmatpush1.msra.mxu0 0.0
    %6890 = vmatprep.subr.mxu0 0.0
    %6891 = vmatpush1.msra.mxu0 0.0
    %6892 = vmatprep.subr.mxu0 0.0
    %6893 = vmatpush1.msra.mxu0 0.0
    %6894 = vmatprep.subr.mxu0 0.0
    %6895 = vmatpush1.msra.mxu0 0.0
    %6896 = vmatprep.subr.mxu0 0.0
    %6897 = vmatpush1.msra.mxu0 0.0
    %6898 = vmatprep.subr.mxu0 0.0
    %6899 = vmatpush1.msra.mxu0 0.0
    %6900 = vmatprep.subr.mxu0 0.0
    %6901 = vmatpush1.msra.mxu0 0.0
    %6902 = vmatprep.subr.mxu0 0.0
    %6903 = vmatpush1.msra.mxu0 0.0
    %6904 = vmatprep.subr.mxu0 0.0
    %6905 = vmatpush1.msra.mxu0 0.0
    %6906 = vmatprep.mubr.f32.mxu0 0.0
    %6907 = vmatmul.mubr.f32.gmra.mrb[0].mxu0 %v6831
    %v6908 = vpop.f32.mrb[0].mxu0
    %v6909 = vadd.f32 0.0, %v6908
    %v6910 = vpop.f32.mrb[0].mxu0
    %6911 = vmatprep.mubr.f32.mxu0 0.0
    %6912 = vmatmul.mubr.f32.gmra.mrb[0].mxu0 %v6834
    %v6913 = vpop.f32.mrb[0].mxu0
    %v6914 = vadd.f32 0.0, %v6913
    %v6915 = vpop.f32.mrb[0].mxu0
    %6916 = vmatprep.mubr.f32.mxu0 0.0
    %6917 = vmatmul.mubr.f32.gmra.mrb[0].mxu0 %v6837
    %v6918 = vpop.f32.mrb[0].mxu0
    %v6919 = vadd.f32 0.0, %v6918
    %v6920 = vpop.f32.mrb[0].mxu0
    %6921 = vmatprep.mubr.f32.mxu0 0.0
    %6922 = vmatmul.mubr.f32.gmra.mrb[0].mxu0 %v6840
    %v6923 = vpop.f32.mrb[0].mxu0
    %v6924 = vadd.f32 0.0, %v6923
    %v6925 = vpop.f32.mrb[0].mxu0
    %6926 = vdwg.mxu0
    %v6927 = vadd.f32 %v6727, %v6909
    %v6928 = vadd.f32 %v6732, %v6914
    %v6929 = vadd.f32 %v6737, %v6919
    %v6930 = vadd.f32 %v6742, %v6924
    %v6931 = vadd.f32 %v6927, %v6477
    %v6932 = vadd.f32 %v6928, %v6477
    %v6933 = vadd.f32 %v6929, %v6477
    %v6934 = vadd.f32 %v6930, %v6477
    %v6935 = vsel %vm877, %v6931, 0.0
    %6936 = vadd.xlane.f32.xlu0 %v6935
    %v6937 = vpop.xlane.xlu0 %6936
    %v6938 = vsel %vm877, %v6932, 0.0
    %6939 = vadd.xlane.f32.xlu0 %v6938
    %v6940 = vpop.xlane.xlu0 %6939
    %v6941 = vsel %vm877, %v6933, 0.0
    %6942 = vadd.xlane.f32.xlu0 %v6941
    %v6943 = vpop.xlane.xlu0 %6942
    %v6944 = vsel %vm877, %v6934, 0.0
    %6945 = vadd.xlane.f32.xlu0 %v6944
    %v6946 = vpop.xlane.xlu0 %6945
    %v6947 = vmul.f32 %v6937, %v890
    %v6948 = vmul.f32 %v6940, %v890
    %v6949 = vmul.f32 %v6943, %v890
    %v6950 = vmul.f32 %v6946, %v890
    %v6951 = vsub.f32 %v6931, %v6947
    %v6952 = vsub.f32 %v6932, %v6948
    %v6953 = vsub.f32 %v6933, %v6949
    %v6954 = vsub.f32 %v6934, %v6950
    %v6955 = vmul.f32 %v6951, %v6951
    %v6956 = vmul.f32 %v6952, %v6952
    %v6957 = vmul.f32 %v6953, %v6953
    %v6958 = vmul.f32 %v6954, %v6954
    %v6959 = vsel %vm877, %v6955, 0.0
    %6960 = vadd.xlane.f32.xlu0 %v6959
    %v6961 = vpop.xlane.xlu0 %6960
    %v6962 = vsel %vm877, %v6956, 0.0
    %6963 = vadd.xlane.f32.xlu0 %v6962
    %v6964 = vpop.xlane.xlu0 %6963
    %v6965 = vsel %vm877, %v6957, 0.0
    %6966 = vadd.xlane.f32.xlu0 %v6965
    %v6967 = vpop.xlane.xlu0 %6966
    %v6968 = vsel %vm877, %v6958, 0.0
    %6969 = vadd.xlane.f32.xlu0 %v6968
    %v6970 = vpop.xlane.xlu0 %6969
    %v6971 = vmul.f32 %v6961, %v890
    %v6972 = vmul.f32 %v6964, %v890
    %v6973 = vmul.f32 %v6967, %v890
    %v6974 = vmul.f32 %v6970, %v890
    %v6975 = vadd.f32 %v6971, 1e-05
    %v6976 = vadd.f32 %v6972, 1e-05
    %v6977 = vadd.f32 %v6973, 1e-05
    %v6978 = vadd.f32 %v6974, 1e-05
    %v6979 = vrsqrt.pop %v6975
    %v6980 = vrsqrt.pop %v6976
    %v6981 = vrsqrt.pop %v6977
    %v6982 = vrsqrt.pop %v6978
    %v6983 = vmul.f32 %v6951, %v6979
    %v6984 = vmul.f32 %v6952, %v6980
    %v6985 = vmul.f32 %v6953, %v6981
    %v6986 = vmul.f32 %v6954, %v6982
    %v6987 = vmul.f32 %v6983, %v875
    %v6988 = vmul.f32 %v6984, %v875
    %v6989 = vmul.f32 %v6985, %v875
    %v6990 = vmul.f32 %v6986, %v875
    %v6991 = vadd.f32 %v6987, %v876
    %v6992 = vadd.f32 %v6988, %v876
    %v6993 = vadd.f32 %v6989, %v876
    %v6994 = vadd.f32 %v6990, %v876
    %v6995 = vmax.f32 %v6991, 0.0
    %v6996 = vmax.f32 %v6992, 0.0
    %v6997 = vmax.f32 %v6993, 0.0
    %v6998 = vmax.f32 %v6994, 0.0
    %v6999 = vmul.f32 %v6995, %v141
    %v7000 = vmul.f32 %v6996, %v146
    %v7001 = vmul.f32 %v6997, %v141
    %v7002 = vmul.f32 %v6998, %v146
    %v7003 = vld [vmem:[#allocation7 + $0xb40] sm:$0xff]
    %v7004 = vld [vmem:[#allocation7 + $0xb58] sm:$0xff]
    %v7005 = vld [vmem:[#allocation7 + $0xb70] sm:$0xff]
    %v7006 = vld [vmem:[#allocation7 + $0xb88] sm:$0xff]
    %v7007 = vld [vmem:[#allocation7 + $0xba0] sm:$0xff]
    %v7008 = vld [vmem:[#allocation7 + $0xbb8] sm:$0xff]
    %v7009 = vld [vmem:[#allocation7 + $0xbd0] sm:$0xff]
    %v7010 = vld [vmem:[#allocation7 + $0xbe8] sm:$0xff]
    %v7011 = vld [vmem:[#allocation7 + $0xc00] sm:$0xff]
    %v7012 = vld [vmem:[#allocation7 + $0xc18] sm:$0xff]
    %v7013 = vld [vmem:[#allocation7 + $0xc30] sm:$0xff]
    %v7014 = vld [vmem:[#allocation7 + $0xc48] sm:$0xff]
    %v7015 = vld [vmem:[#allocation7 + $0xc60] sm:$0xff]
    %v7016 = vld [vmem:[#allocation7 + $0xc78] sm:$0xff]
    %v7017 = vld [vmem:[#allocation7 + $0xc90] sm:$0xff]
    %v7018 = vld [vmem:[#allocation7 + $0xca8] sm:$0xff]
    %v7019 = vld [vmem:[#allocation7 + $0xcc0] sm:$0xff]
    %v7020 = vld [vmem:[#allocation7 + $0xcd8] sm:$0xff]
    %v7021 = vld [vmem:[#allocation7 + $0xcf0] sm:$0xff]
    %v7022 = vld [vmem:[#allocation7 + $0xd08] sm:$0xff]
    %v7023 = vld [vmem:[#allocation7 + $0xd20] sm:$0xff]
    %v7024 = vld [vmem:[#allocation7 + $0xd38] sm:$0xff]
    %v7025 = vld [vmem:[#allocation7 + $0xd50] sm:$0xff]
    %v7026 = vld [vmem:[#allocation7 + $0xd68] sm:$0xff]
    %v7027 = vld [vmem:[#allocation8 + $0x7] ss:$0 sm:$0xff]
    %v7029 = vsel %vm877, %v6999, 0
    %v7032 = vsel %vm877, %v7000, 0
    %v7035 = vsel %vm877, %v7001, 0
    %v7038 = vsel %vm877, %v7002, 0
    %7040 = vmatprep.subr.mxu0 0.0
    %7041 = vmatpush1.msra.mxu0 %v7011
    %7042 = vmatprep.subr.mxu0 0.0
    %7043 = vmatpush1.msra.mxu0 %v7012
    %7044 = vmatprep.subr.mxu0 0.0
    %7045 = vmatpush1.msra.mxu0 %v7013
    %7046 = vmatprep.subr.mxu0 0.0
    %7047 = vmatpush1.msra.mxu0 %v7014
    %7048 = vmatprep.subr.mxu0 0.0
    %7049 = vmatpush1.msra.mxu0 %v7015
    %7050 = vmatprep.subr.mxu0 0.0
    %7051 = vmatpush1.msra.mxu0 %v7016
    %7052 = vmatprep.subr.mxu0 0.0
    %7053 = vmatpush1.msra.mxu0 %v7017
    %7054 = vmatprep.subr.mxu0 0.0
    %7055 = vmatpush1.msra.mxu0 %v7018
    %7056 = vmatprep.subr.mxu0 0.0
    %7057 = vmatpush1.msra.mxu0 0.0
    %7058 = vmatprep.subr.mxu0 0.0
    %7059 = vmatpush1.msra.mxu0 0.0
    %7060 = vmatprep.subr.mxu0 0.0
    %7061 = vmatpush1.msra.mxu0 0.0
    %7062 = vmatprep.subr.mxu0 0.0
    %7063 = vmatpush1.msra.mxu0 0.0
    %7064 = vmatprep.subr.mxu0 0.0
    %7065 = vmatpush1.msra.mxu0 0.0
    %7066 = vmatprep.subr.mxu0 0.0
    %7067 = vmatpush1.msra.mxu0 0.0
    %7068 = vmatprep.subr.mxu0 0.0
    %7069 = vmatpush1.msra.mxu0 0.0
    %7070 = vmatprep.subr.mxu0 0.0
    %7071 = vmatpush1.msra.mxu0 0.0
    %7072 = vmatprep.subr.mxu0 0.0
    %7073 = vmatpush1.msra.mxu0 0.0
    %7074 = vmatprep.subr.mxu0 0.0
    %7075 = vmatpush1.msra.mxu0 0.0
    %7076 = vmatprep.subr.mxu0 0.0
    %7077 = vmatpush1.msra.mxu0 0.0
    %7078 = vmatprep.subr.mxu0 0.0
    %7079 = vmatpush1.msra.mxu0 0.0
    %7080 = vmatprep.subr.mxu0 0.0
    %7081 = vmatpush1.msra.mxu0 0.0
    %7082 = vmatprep.subr.mxu0 0.0
    %7083 = vmatpush1.msra.mxu0 0.0
    %7084 = vmatprep.subr.mxu0 0.0
    %7085 = vmatpush1.msra.mxu0 0.0
    %7086 = vmatprep.subr.mxu0 0.0
    %7087 = vmatpush1.msra.mxu0 0.0
    %7088 = vmatprep.subr.mxu0 0.0
    %7089 = vmatpush1.msra.mxu0 0.0
    %7090 = vmatprep.subr.mxu0 0.0
    %7091 = vmatpush1.msra.mxu0 0.0
    %7092 = vmatprep.subr.mxu0 0.0
    %7093 = vmatpush1.msra.mxu0 0.0
    %7094 = vmatprep.subr.mxu0 0.0
    %7095 = vmatpush1.msra.mxu0 0.0
    %7096 = vmatprep.subr.mxu0 0.0
    %7097 = vmatpush1.msra.mxu0 0.0
    %7098 = vmatprep.subr.mxu0 0.0
    %7099 = vmatpush1.msra.mxu0 0.0
    %7100 = vmatprep.subr.mxu0 0.0
    %7101 = vmatpush1.msra.mxu0 0.0
    %7102 = vmatprep.subr.mxu0 0.0
    %7103 = vmatpush1.msra.mxu0 0.0
    %7104 = vmatprep.mubr.f32.mxu0 0.0
    %7105 = vmatmul.mubr.f32.gmra.mrb[0].mxu0 %v7029
    %v7106 = vpop.f32.mrb[0].mxu0
    %v7107 = vadd.f32 0.0, %v7106
    %v7108 = vpop.f32.mrb[0].mxu0
    %7109 = vmatprep.mubr.f32.mxu0 0.0
    %7110 = vmatmul.mubr.f32.gmra.mrb[0].mxu0 %v7032
    %v7111 = vpop.f32.mrb[0].mxu0
    %v7112 = vadd.f32 0.0, %v7111
    %v7113 = vpop.f32.mrb[0].mxu0
    %7114 = vmatprep.mubr.f32.mxu0 0.0
    %7115 = vmatmul.mubr.f32.gmra.mrb[0].mxu0 %v7035
    %v7116 = vpop.f32.mrb[0].mxu0
    %v7117 = vadd.f32 0.0, %v7116
    %v7118 = vpop.f32.mrb[0].mxu0
    %7119 = vmatprep.mubr.f32.mxu0 0.0
    %7120 = vmatmul.mubr.f32.gmra.mrb[0].mxu0 %v7038
    %v7121 = vpop.f32.mrb[0].mxu0
    %v7122 = vadd.f32 0.0, %v7121
    %v7123 = vpop.f32.mrb[0].mxu0
    %7124 = vdwg.mxu0
    %7125 = vmatprep.subr.mxu0 0.0
    %7126 = vmatpush1.msra.mxu0 %v7107
    %7127 = vmatprep.subr.mxu0 0.0
    %7128 = vmatpush1.msra.mxu0 %v7112
    %7129 = vmatprep.subr.mxu0 0.0
    %7130 = vmatpush1.msra.mxu0 %v7117
    %7131 = vmatprep.subr.mxu0 0.0
    %7132 = vmatpush1.msra.mxu0 %v7122
    %7133 = vmatprep.subr.mxu0 0.0
    %7134 = vmatpush1.msra.mxu0 0.0
    %7135 = vmatprep.subr.mxu0 0.0
    %7136 = vmatpush1.msra.mxu0 0.0
    %7137 = vmatprep.subr.mxu0 0.0
    %7138 = vmatpush1.msra.mxu0 0.0
    %7139 = vmatprep.subr.mxu0 0.0
    %7140 = vmatpush1.msra.mxu0 0.0
    %7141 = vmatprep.subr.mxu0 0.0
    %7142 = vmatpush1.msra.mxu0 0.0
    %7143 = vmatprep.subr.mxu0 0.0
    %7144 = vmatpush1.msra.mxu0 0.0
    %7145 = vmatprep.subr.mxu0 0.0
    %7146 = vmatpush1.msra.mxu0 0.0
    %7147 = vmatprep.subr.mxu0 0.0
    %7148 = vmatpush1.msra.mxu0 0.0
    %7149 = vmatprep.subr.mxu0 0.0
    %7150 = vmatpush1.msra.mxu0 0.0
    %7151 = vmatprep.subr.mxu0 0.0
    %7152 = vmatpush1.msra.mxu0 0.0
    %7153 = vmatprep.subr.mxu0 0.0
    %7154 = vmatpush1.msra.mxu0 0.0
    %7155 = vmatprep.subr.mxu0 0.0
    %7156 = vmatpush1.msra.mxu0 0.0
    %7157 = vmatprep.subr.mxu0 0.0
    %7158 = vmatpush1.msra.mxu0 0.0
    %7159 = vmatprep.subr.mxu0 0.0
    %7160 = vmatpush1.msra.mxu0 0.0
    %7161 = vmatprep.subr.mxu0 0.0
    %7162 = vmatpush1.msra.mxu0 0.0
    %7163 = vmatprep.subr.mxu0 0.0
    %7164 = vmatpush1.msra.mxu0 0.0
    %7165 = vmatprep.subr.mxu0 0.0
    %7166 = vmatpush1.msra.mxu0 0.0
    %7167 = vmatprep.subr.mxu0 0.0
    %7168 = vmatpush1.msra.mxu0 0.0
    %7169 = vmatprep.subr.mxu0 0.0
    %7170 = vmatpush1.msra.mxu0 0.0
    %7171 = vmatprep.subr.mxu0 0.0
    %7172 = vmatpush1.msra.mxu0 0.0
    %7173 = vmatprep.subr.mxu0 0.0
    %7174 = vmatpush1.msra.mxu0 0.0
    %7175 = vmatprep.subr.mxu0 0.0
    %7176 = vmatpush1.msra.mxu0 0.0
    %7177 = vmatprep.subr.mxu0 0.0
    %7178 = vmatpush1.msra.mxu0 0.0
    %7179 = vmatprep.subr.mxu0 0.0
    %7180 = vmatpush1.msra.mxu0 0.0
    %7181 = vmatprep.subr.mxu0 0.0
    %7182 = vmatpush1.msra.mxu0 0.0
    %7183 = vmatprep.subr.mxu0 0.0
    %7184 = vmatpush1.msra.mxu0 0.0
    %7185 = vmatprep.subr.mxu0 0.0
    %7186 = vmatpush1.msra.mxu0 0.0
    %7187 = vmatprep.subr.mxu0 0.0
    %7188 = vmatpush1.msra.mxu0 0.0
    %7189 = vmatprep.mubr.f32.mxu0 0.0
    %7190 = vmatmul.mubr.f32.gmra.mrb[0].mxu0 %v6564
    %v7191 = vpop.f32.mrb[0].mxu0
    %v7192 = vadd.f32 0.0, %v7191
    %v7193 = vpop.f32.mrb[0].mxu0
    %7194 = vmatprep.mubr.f32.mxu0 0.0
    %7195 = vmatmul.mubr.f32.gmra.mrb[0].mxu0 %v6567
    %v7196 = vpop.f32.mrb[0].mxu0
    %v7197 = vadd.f32 0.0, %v7196
    %v7198 = vpop.f32.mrb[0].mxu0
    %7199 = vmatprep.mubr.f32.mxu0 0.0
    %7200 = vmatmul.mubr.f32.gmra.mrb[0].mxu0 %v6570
    %v7201 = vpop.f32.mrb[0].mxu0
    %v7202 = vadd.f32 0.0, %v7201
    %v7203 = vpop.f32.mrb[0].mxu0
    %7204 = vmatprep.mubr.f32.mxu0 0.0
    %7205 = vmatmul.mubr.f32.gmra.mrb[0].mxu0 %v6573
    %v7206 = vpop.f32.mrb[0].mxu0
    %v7207 = vadd.f32 0.0, %v7206
    %v7208 = vpop.f32.mrb[0].mxu0
    %7209 = vdwg.mxu0
    %7210 = vmatprep.subr.mxu0 0.0
    %7211 = vmatpush1.msra.mxu0 %v7003
    %7212 = vmatprep.subr.mxu0 0.0
    %7213 = vmatpush1.msra.mxu0 %v7004
    %7214 = vmatprep.subr.mxu0 0.0
    %7215 = vmatpush1.msra.mxu0 %v7005
    %7216 = vmatprep.subr.mxu0 0.0
    %7217 = vmatpush1.msra.mxu0 %v7006
    %7218 = vmatprep.subr.mxu0 0.0
    %7219 = vmatpush1.msra.mxu0 %v7007
    %7220 = vmatprep.subr.mxu0 0.0
    %7221 = vmatpush1.msra.mxu0 %v7008
    %7222 = vmatprep.subr.mxu0 0.0
    %7223 = vmatpush1.msra.mxu0 %v7009
    %7224 = vmatprep.subr.mxu0 0.0
    %7225 = vmatpush1.msra.mxu0 %v7010
    %7226 = vmatprep.subr.mxu0 0.0
    %7227 = vmatpush1.msra.mxu0 0.0
    %7228 = vmatprep.subr.mxu0 0.0
    %7229 = vmatpush1.msra.mxu0 0.0
    %7230 = vmatprep.subr.mxu0 0.0
    %7231 = vmatpush1.msra.mxu0 0.0
    %7232 = vmatprep.subr.mxu0 0.0
    %7233 = vmatpush1.msra.mxu0 0.0
    %7234 = vmatprep.subr.mxu0 0.0
    %7235 = vmatpush1.msra.mxu0 0.0
    %7236 = vmatprep.subr.mxu0 0.0
    %7237 = vmatpush1.msra.mxu0 0.0
    %7238 = vmatprep.subr.mxu0 0.0
    %7239 = vmatpush1.msra.mxu0 0.0
    %7240 = vmatprep.subr.mxu0 0.0
    %7241 = vmatpush1.msra.mxu0 0.0
    %7242 = vmatprep.subr.mxu0 0.0
    %7243 = vmatpush1.msra.mxu0 0.0
    %7244 = vmatprep.subr.mxu0 0.0
    %7245 = vmatpush1.msra.mxu0 0.0
    %7246 = vmatprep.subr.mxu0 0.0
    %7247 = vmatpush1.msra.mxu0 0.0
    %7248 = vmatprep.subr.mxu0 0.0
    %7249 = vmatpush1.msra.mxu0 0.0
    %7250 = vmatprep.subr.mxu0 0.0
    %7251 = vmatpush1.msra.mxu0 0.0
    %7252 = vmatprep.subr.mxu0 0.0
    %7253 = vmatpush1.msra.mxu0 0.0
    %7254 = vmatprep.subr.mxu0 0.0
    %7255 = vmatpush1.msra.mxu0 0.0
    %7256 = vmatprep.subr.mxu0 0.0
    %7257 = vmatpush1.msra.mxu0 0.0
    %7258 = vmatprep.subr.mxu0 0.0
    %7259 = vmatpush1.msra.mxu0 0.0
    %7260 = vmatprep.subr.mxu0 0.0
    %7261 = vmatpush1.msra.mxu0 0.0
    %7262 = vmatprep.subr.mxu0 0.0
    %7263 = vmatpush1.msra.mxu0 0.0
    %7264 = vmatprep.subr.mxu0 0.0
    %7265 = vmatpush1.msra.mxu0 0.0
    %7266 = vmatprep.subr.mxu0 0.0
    %7267 = vmatpush1.msra.mxu0 0.0
    %7268 = vmatprep.subr.mxu0 0.0
    %7269 = vmatpush1.msra.mxu0 0.0
    %7270 = vmatprep.subr.mxu0 0.0
    %7271 = vmatpush1.msra.mxu0 0.0
    %7272 = vmatprep.subr.mxu0 0.0
    %7273 = vmatpush1.msra.mxu0 0.0
    %7274 = vmatprep.mubr.f32.mxu0 0.0
    %7275 = vmatmul.mubr.f32.gmra.mrb[0].mxu0 %v7029
    %v7276 = vpop.f32.mrb[0].mxu0
    %v7277 = vadd.f32 %v7192, %v7276
    %v7278 = vpop.f32.mrb[0].mxu0
    %7279 = vmatprep.mubr.f32.mxu0 0.0
    %7280 = vmatmul.mubr.f32.gmra.mrb[0].mxu0 %v7032
    %v7281 = vpop.f32.mrb[0].mxu0
    %v7282 = vadd.f32 %v7197, %v7281
    %v7283 = vpop.f32.mrb[0].mxu0
    %7284 = vmatprep.mubr.f32.mxu0 0.0
    %7285 = vmatmul.mubr.f32.gmra.mrb[0].mxu0 %v7035
    %v7286 = vpop.f32.mrb[0].mxu0
    %v7287 = vadd.f32 %v7202, %v7286
    %v7288 = vpop.f32.mrb[0].mxu0
    %7289 = vmatprep.mubr.f32.mxu0 0.0
    %7290 = vmatmul.mubr.f32.gmra.mrb[0].mxu0 %v7038
    %v7291 = vpop.f32.mrb[0].mxu0
    %v7292 = vadd.f32 %v7207, %v7291
    %v7293 = vpop.f32.mrb[0].mxu0
    %7294 = vdwg.mxu0
    %7295 = vmatprep.subr.mxu0 0.0
    %7296 = vmatpush1.msra.mxu0 %v7019
    %7297 = vmatprep.subr.mxu0 0.0
    %7298 = vmatpush1.msra.mxu0 %v7020
    %7299 = vmatprep.subr.mxu0 0.0
    %7300 = vmatpush1.msra.mxu0 %v7021
    %7301 = vmatprep.subr.mxu0 0.0
    %7302 = vmatpush1.msra.mxu0 %v7022
    %7303 = vmatprep.subr.mxu0 0.0
    %7304 = vmatpush1.msra.mxu0 %v7023
    %7305 = vmatprep.subr.mxu0 0.0
    %7306 = vmatpush1.msra.mxu0 %v7024
    %7307 = vmatprep.subr.mxu0 0.0
    %7308 = vmatpush1.msra.mxu0 %v7025
    %7309 = vmatprep.subr.mxu0 0.0
    %7310 = vmatpush1.msra.mxu0 %v7026
    %7311 = vmatprep.subr.mxu0 0.0
    %7312 = vmatpush1.msra.mxu0 0.0
    %7313 = vmatprep.subr.mxu0 0.0
    %7314 = vmatpush1.msra.mxu0 0.0
    %7315 = vmatprep.subr.mxu0 0.0
    %7316 = vmatpush1.msra.mxu0 0.0
    %7317 = vmatprep.subr.mxu0 0.0
    %7318 = vmatpush1.msra.mxu0 0.0
    %7319 = vmatprep.subr.mxu0 0.0
    %7320 = vmatpush1.msra.mxu0 0.0
    %7321 = vmatprep.subr.mxu0 0.0
    %7322 = vmatpush1.msra.mxu0 0.0
    %7323 = vmatprep.subr.mxu0 0.0
    %7324 = vmatpush1.msra.mxu0 0.0
    %7325 = vmatprep.subr.mxu0 0.0
    %7326 = vmatpush1.msra.mxu0 0.0
    %7327 = vmatprep.subr.mxu0 0.0
    %7328 = vmatpush1.msra.mxu0 0.0
    %7329 = vmatprep.subr.mxu0 0.0
    %7330 = vmatpush1.msra.mxu0 0.0
    %7331 = vmatprep.subr.mxu0 0.0
    %7332 = vmatpush1.msra.mxu0 0.0
    %7333 = vmatprep.subr.mxu0 0.0
    %7334 = vmatpush1.msra.mxu0 0.0
    %7335 = vmatprep.subr.mxu0 0.0
    %7336 = vmatpush1.msra.mxu0 0.0
    %7337 = vmatprep.subr.mxu0 0.0
    %7338 = vmatpush1.msra.mxu0 0.0
    %7339 = vmatprep.subr.mxu0 0.0
    %7340 = vmatpush1.msra.mxu0 0.0
    %7341 = vmatprep.subr.mxu0 0.0
    %7342 = vmatpush1.msra.mxu0 0.0
    %7343 = vmatprep.subr.mxu0 0.0
    %7344 = vmatpush1.msra.mxu0 0.0
    %7345 = vmatprep.subr.mxu0 0.0
    %7346 = vmatpush1.msra.mxu0 0.0
    %7347 = vmatprep.subr.mxu0 0.0
    %7348 = vmatpush1.msra.mxu0 0.0
    %7349 = vmatprep.subr.mxu0 0.0
    %7350 = vmatpush1.msra.mxu0 0.0
    %7351 = vmatprep.subr.mxu0 0.0
    %7352 = vmatpush1.msra.mxu0 0.0
    %7353 = vmatprep.subr.mxu0 0.0
    %7354 = vmatpush1.msra.mxu0 0.0
    %7355 = vmatprep.subr.mxu0 0.0
    %7356 = vmatpush1.msra.mxu0 0.0
    %7357 = vmatprep.subr.mxu0 0.0
    %7358 = vmatpush1.msra.mxu0 0.0
    %7359 = vmatprep.mubr.f32.mxu0 0.0
    %7360 = vmatmul.mubr.f32.gmra.mrb[0].mxu0 %v7029
    %v7361 = vpop.f32.mrb[0].mxu0
    %v7362 = vadd.f32 0.0, %v7361
    %v7363 = vpop.f32.mrb[0].mxu0
    %7364 = vmatprep.mubr.f32.mxu0 0.0
    %7365 = vmatmul.mubr.f32.gmra.mrb[0].mxu0 %v7032
    %v7366 = vpop.f32.mrb[0].mxu0
    %v7367 = vadd.f32 0.0, %v7366
    %v7368 = vpop.f32.mrb[0].mxu0
    %7369 = vmatprep.mubr.f32.mxu0 0.0
    %7370 = vmatmul.mubr.f32.gmra.mrb[0].mxu0 %v7035
    %v7371 = vpop.f32.mrb[0].mxu0
    %v7372 = vadd.f32 0.0, %v7371
    %v7373 = vpop.f32.mrb[0].mxu0
    %7374 = vmatprep.mubr.f32.mxu0 0.0
    %7375 = vmatmul.mubr.f32.gmra.mrb[0].mxu0 %v7038
    %v7376 = vpop.f32.mrb[0].mxu0
    %v7377 = vadd.f32 0.0, %v7376
    %v7378 = vpop.f32.mrb[0].mxu0
    %7379 = vdwg.mxu0
    %7380 = vmatprep.subr.mxu0 0.0
    %7381 = vmatpush1.msra.mxu0 %v7362
    %7382 = vmatprep.subr.mxu0 0.0
    %7383 = vmatpush1.msra.mxu0 %v7367
    %7384 = vmatprep.subr.mxu0 0.0
    %7385 = vmatpush1.msra.mxu0 %v7372
    %7386 = vmatprep.subr.mxu0 0.0
    %7387 = vmatpush1.msra.mxu0 %v7377
    %7388 = vmatprep.subr.mxu0 0.0
    %7389 = vmatpush1.msra.mxu0 0.0
    %7390 = vmatprep.subr.mxu0 0.0
    %7391 = vmatpush1.msra.mxu0 0.0
    %7392 = vmatprep.subr.mxu0 0.0
    %7393 = vmatpush1.msra.mxu0 0.0
    %7394 = vmatprep.subr.mxu0 0.0
    %7395 = vmatpush1.msra.mxu0 0.0
    %7396 = vmatprep.subr.mxu0 0.0
    %7397 = vmatpush1.msra.mxu0 0.0
    %7398 = vmatprep.subr.mxu0 0.0
    %7399 = vmatpush1.msra.mxu0 0.0
    %7400 = vmatprep.subr.mxu0 0.0
    %7401 = vmatpush1.msra.mxu0 0.0
    %7402 = vmatprep.subr.mxu0 0.0
    %7403 = vmatpush1.msra.mxu0 0.0
    %7404 = vmatprep.subr.mxu0 0.0
    %7405 = vmatpush1.msra.mxu0 0.0
    %7406 = vmatprep.subr.mxu0 0.0
    %7407 = vmatpush1.msra.mxu0 0.0
    %7408 = vmatprep.subr.mxu0 0.0
    %7409 = vmatpush1.msra.mxu0 0.0
    %7410 = vmatprep.subr.mxu0 0.0
    %7411 = vmatpush1.msra.mxu0 0.0
    %7412 = vmatprep.subr.mxu0 0.0
    %7413 = vmatpush1.msra.mxu0 0.0
    %7414 = vmatprep.subr.mxu0 0.0
    %7415 = vmatpush1.msra.mxu0 0.0
    %7416 = vmatprep.subr.mxu0 0.0
    %7417 = vmatpush1.msra.mxu0 0.0
    %7418 = vmatprep.subr.mxu0 0.0
    %7419 = vmatpush1.msra.mxu0 0.0
    %7420 = vmatprep.subr.mxu0 0.0
    %7421 = vmatpush1.msra.mxu0 0.0
    %7422 = vmatprep.subr.mxu0 0.0
    %7423 = vmatpush1.msra.mxu0 0.0
    %7424 = vmatprep.subr.mxu0 0.0
    %7425 = vmatpush1.msra.mxu0 0.0
    %7426 = vmatprep.subr.mxu0 0.0
    %7427 = vmatpush1.msra.mxu0 0.0
    %7428 = vmatprep.subr.mxu0 0.0
    %7429 = vmatpush1.msra.mxu0 0.0
    %7430 = vmatprep.subr.mxu0 0.0
    %7431 = vmatpush1.msra.mxu0 0.0
    %7432 = vmatprep.subr.mxu0 0.0
    %7433 = vmatpush1.msra.mxu0 0.0
    %7434 = vmatprep.subr.mxu0 0.0
    %7435 = vmatpush1.msra.mxu0 0.0
    %7436 = vmatprep.subr.mxu0 0.0
    %7437 = vmatpush1.msra.mxu0 0.0
    %7438 = vmatprep.subr.mxu0 0.0
    %7439 = vmatpush1.msra.mxu0 0.0
    %7440 = vmatprep.subr.mxu0 0.0
    %7441 = vmatpush1.msra.mxu0 0.0
    %7442 = vmatprep.subr.mxu0 0.0
    %7443 = vmatpush1.msra.mxu0 0.0
    %7444 = vmatprep.mubr.f32.mxu0 0.0
    %7445 = vmatmul.mubr.f32.gmra.mrb[0].mxu0 %v6831
    %v7446 = vpop.f32.mrb[0].mxu0
    %v7447 = vadd.f32 0.0, %v7446
    %v7448 = vpop.f32.mrb[0].mxu0
    %7449 = vmatprep.mubr.f32.mxu0 0.0
    %7450 = vmatmul.mubr.f32.gmra.mrb[0].mxu0 %v6834
    %v7451 = vpop.f32.mrb[0].mxu0
    %v7452 = vadd.f32 0.0, %v7451
    %v7453 = vpop.f32.mrb[0].mxu0
    %7454 = vmatprep.mubr.f32.mxu0 0.0
    %7455 = vmatmul.mubr.f32.gmra.mrb[0].mxu0 %v6837
    %v7456 = vpop.f32.mrb[0].mxu0
    %v7457 = vadd.f32 0.0, %v7456
    %v7458 = vpop.f32.mrb[0].mxu0
    %7459 = vmatprep.mubr.f32.mxu0 0.0
    %7460 = vmatmul.mubr.f32.gmra.mrb[0].mxu0 %v6840
    %v7461 = vpop.f32.mrb[0].mxu0
    %v7462 = vadd.f32 0.0, %v7461
    %v7463 = vpop.f32.mrb[0].mxu0
    %7464 = vdwg.mxu0
    %v7465 = vadd.f32 %v7277, %v7447
    %v7466 = vadd.f32 %v7282, %v7452
    %v7467 = vadd.f32 %v7287, %v7457
    %v7468 = vadd.f32 %v7292, %v7462
    %v7469 = vadd.f32 %v7465, %v7027
    %v7470 = vadd.f32 %v7466, %v7027
    %v7471 = vadd.f32 %v7467, %v7027
    %v7472 = vadd.f32 %v7468, %v7027
    %v7473 = vld [vmem:[#allocation7 + $0xd80] sm:$0xff]
    %v7474 = vld [vmem:[#allocation7 + $0xd98] sm:$0xff]
    %v7475 = vld [vmem:[#allocation7 + $0xdb0] sm:$0xff]
    %v7476 = vld [vmem:[#allocation7 + $0xdc8] sm:$0xff]
    %v7477 = vld [vmem:[#allocation7 + $0xde0] sm:$0xff]
    %v7478 = vld [vmem:[#allocation7 + $0xdf8] sm:$0xff]
    %v7479 = vld [vmem:[#allocation7 + $0xe10] sm:$0xff]
    %v7480 = vld [vmem:[#allocation7 + $0xe28] sm:$0xff]
    %v7481 = vld [vmem:[#allocation7 + $0xe40] sm:$0xff]
    %v7482 = vld [vmem:[#allocation7 + $0xe58] sm:$0xff]
    %v7483 = vld [vmem:[#allocation7 + $0xe70] sm:$0xff]
    %v7484 = vld [vmem:[#allocation7 + $0xe88] sm:$0xff]
    %v7485 = vld [vmem:[#allocation7 + $0xea0] sm:$0xff]
    %v7486 = vld [vmem:[#allocation7 + $0xeb8] sm:$0xff]
    %v7487 = vld [vmem:[#allocation7 + $0xed0] sm:$0xff]
    %v7488 = vld [vmem:[#allocation7 + $0xee8] sm:$0xff]
    %v7489 = vld [vmem:[#allocation8 + $0x18] ss:$0 sm:$0xff]
    %7490 = vmatprep.subr.mxu0 0.0
    %7491 = vmatpush1.msra.mxu0 %v7473
    %7492 = vmatprep.subr.mxu0 0.0
    %7493 = vmatpush1.msra.mxu0 %v7474
    %7494 = vmatprep.subr.mxu0 0.0
    %7495 = vmatpush1.msra.mxu0 %v7475
    %7496 = vmatprep.subr.mxu0 0.0
    %7497 = vmatpush1.msra.mxu0 %v7476
    %7498 = vmatprep.subr.mxu0 0.0
    %7499 = vmatpush1.msra.mxu0 %v7477
    %7500 = vmatprep.subr.mxu0 0.0
    %7501 = vmatpush1.msra.mxu0 %v7478
    %7502 = vmatprep.subr.mxu0 0.0
    %7503 = vmatpush1.msra.mxu0 %v7479
    %7504 = vmatprep.subr.mxu0 0.0
    %7505 = vmatpush1.msra.mxu0 %v7480
    %7506 = vmatprep.subr.mxu0 0.0
    %7507 = vmatpush1.msra.mxu0 %v7481
    %7508 = vmatprep.subr.mxu0 0.0
    %7509 = vmatpush1.msra.mxu0 %v7482
    %7510 = vmatprep.subr.mxu0 0.0
    %7511 = vmatpush1.msra.mxu0 %v7483
    %7512 = vmatprep.subr.mxu0 0.0
    %7513 = vmatpush1.msra.mxu0 %v7484
    %7514 = vmatprep.subr.mxu0 0.0
    %7515 = vmatpush1.msra.mxu0 %v7485
    %7516 = vmatprep.subr.mxu0 0.0
    %7517 = vmatpush1.msra.mxu0 %v7486
    %7518 = vmatprep.subr.mxu0 0.0
    %7519 = vmatpush1.msra.mxu0 %v7487
    %7520 = vmatprep.subr.mxu0 0.0
    %7521 = vmatpush1.msra.mxu0 %v7488
    %7522 = vmatprep.subr.mxu0 0.0
    %7523 = vmatpush1.msra.mxu0 0.0
    %7524 = vmatprep.subr.mxu0 0.0
    %7525 = vmatpush1.msra.mxu0 0.0
    %7526 = vmatprep.subr.mxu0 0.0
    %7527 = vmatpush1.msra.mxu0 0.0
    %7528 = vmatprep.subr.mxu0 0.0
    %7529 = vmatpush1.msra.mxu0 0.0
    %7530 = vmatprep.subr.mxu0 0.0
    %7531 = vmatpush1.msra.mxu0 0.0
    %7532 = vmatprep.subr.mxu0 0.0
    %7533 = vmatpush1.msra.mxu0 0.0
    %7534 = vmatprep.subr.mxu0 0.0
    %7535 = vmatpush1.msra.mxu0 0.0
    %7536 = vmatprep.subr.mxu0 0.0
    %7537 = vmatpush1.msra.mxu0 0.0
    %7538 = vmatprep.subr.mxu0 0.0
    %7539 = vmatpush1.msra.mxu0 0.0
    %7540 = vmatprep.subr.mxu0 0.0
    %7541 = vmatpush1.msra.mxu0 0.0
    %7542 = vmatprep.subr.mxu0 0.0
    %7543 = vmatpush1.msra.mxu0 0.0
    %7544 = vmatprep.subr.mxu0 0.0
    %7545 = vmatpush1.msra.mxu0 0.0
    %7546 = vmatprep.subr.mxu0 0.0
    %7547 = vmatpush1.msra.mxu0 0.0
    %7548 = vmatprep.subr.mxu0 0.0
    %7549 = vmatpush1.msra.mxu0 0.0
    %7550 = vmatprep.subr.mxu0 0.0
    %7551 = vmatpush1.msra.mxu0 0.0
    %7552 = vmatprep.subr.mxu0 0.0
    %7553 = vmatpush1.msra.mxu0 0.0
    %7554 = vmatprep.mubr.f32.mxu0 0.0
    %7555 = vmatmul.mubr.f32.gmra.mrb[0].mxu0 %v7469
    %v7556 = vpop.f32.mrb[0].mxu0
    %v7557 = vadd.f32 %v7489, %v7556
    %v7558 = vpop.f32.mrb[0].mxu0
    %7559 = vmatprep.mubr.f32.mxu0 0.0
    %7560 = vmatmul.mubr.f32.gmra.mrb[0].mxu0 %v7470
    %v7561 = vpop.f32.mrb[0].mxu0
    %v7562 = vadd.f32 %v7489, %v7561
    %v7563 = vpop.f32.mrb[0].mxu0
    %7564 = vmatprep.mubr.f32.mxu0 0.0
    %7565 = vmatmul.mubr.f32.gmra.mrb[0].mxu0 %v7471
    %v7566 = vpop.f32.mrb[0].mxu0
    %v7567 = vadd.f32 %v7489, %v7566
    %v7568 = vpop.f32.mrb[0].mxu0
    %7569 = vmatprep.mubr.f32.mxu0 0.0
    %7570 = vmatmul.mubr.f32.gmra.mrb[0].mxu0 %v7472
    %v7571 = vpop.f32.mrb[0].mxu0
    %v7572 = vadd.f32 %v7489, %v7571
    %v7573 = vpop.f32.mrb[0].mxu0
    %7574 = vdwg.mxu0
    %7575 = vst [vmem:[#allocation10] sm:$0xff] %v7557
    %7576 = vst [vmem:[#allocation10 + $0x8] sm:$0xff] %v7562
    %7577 = vst [vmem:[#allocation10 + $0x10] sm:$0xff] %v7567
    %7578 = vst [vmem:[#allocation10 + $0x18] sm:$0xff] %v7572
    // Predicated region
    $region34: #{tpu_custom_call.1} parent=1 // pred_check
      _
    $region35: #{tpu_custom_call.1} parent=1 // pred_check_branch
      %7580 = sbr.rel (0) target = $region37
    $region36: #{tpu_custom_call.1} parent=1 // pred_region
      %s7582 = ssub.s32 512, 512
      %7583 = vsyncadd [#allocation4], %s7582
      %s7584 = sshll.u32 [#allocation10], 4
      %s7585 = int_to_ptr.vmem [resolvable:$true] %s7584
      %7590 = dma.vmem_to_hbm [thread:$0]  %s7585, 512, %s4, [#allocation4], 128, 128, 8
    $region37: #{tpu_custom_call.1} parent=1 // pred_fallthru
      _
    // Predicated region
    $region38: #{tpu_custom_call.1} parent=1 // pred_check
      _
    $region39: #{tpu_custom_call.1} parent=1 // pred_check_branch
      %7592 = sbr.rel (0) target = $region41
    $region40: #{tpu_custom_call.1} parent=1 // pred_region
      %7593 = dma.done [#allocation4], 512
    $region41: #{tpu_custom_call.1} parent=1 // pred_fallthru
      _
    %7594 = vsyncpa [#allocation3], 1
    %7595 = vsyncpa [#allocation6], 1
    %7596 = vsyncpa [#allocation9], 1
    %7597 = vsyncpa [#allocation4], 1

</llo_original>
